<compile_context>
chip_gen: v6e
topology: v6e:2x2x1
jax: 0.10.0
libtpu: 0.0.40
codegen_flags: <defaults>
</compile_context>

<pallas_src>
import numpy as np
import jax
import jax.numpy as jnp
from jax.experimental import pallas as pl
from jax.experimental.pallas import tpu as pltpu

_VMEM = pl.BlockSpec(memory_space=pltpu.MemorySpace.VMEM)
_SMEM = pl.BlockSpec(memory_space=pltpu.MemorySpace.SMEM)

LANE = 128      # TPU lane width; featuremap channel dims are zero-padded to this.
STEM_K = 32     # stem conv1 contraction: 9 taps * 3 real channels = 27, padded to 32.

# CLIP preprocessing constants (Normalize transform of `preprocess`)
_CLIP_MEAN = (0.48145466, 0.4578275, 0.40821073)
_CLIP_STD = (0.26862954, 0.26130258, 0.27577711)


# ----------------------------------------------------------------------------
# Fused single-GEMM conv kernel
#   y = relu( slab @ W_folded + shift [+ identity residual] )   (BN / normalize /
#   1x1 proj already folded into W_folded / shift)
#   optional fused 2x2 avgpool (pooling matmul) and fused L2 feature-loss between
#   the two batch halves (sketch rows / target rows).
# ----------------------------------------------------------------------------

def _make_conv_kernel(*, relu, identity_res, c_pad, pool, compute_l2, l2_scale):
    def kernel(*refs):
        it = iter(refs)
        x_ref = next(it)                        # [M, K]   bf16 tap slab
        w_ref = next(it)                        # [K, C]   bf16 (everything folded)
        b_ref = next(it)                        # [1, C]   f32  folded shift
        p_ref = next(it) if pool else None      # [Mo, M]  f32  2x2 avg-pool matrix
        o_ref = next(it)                        # [Mo, C]  bf16 output featuremap
        l2_ref = next(it) if compute_l2 else None   # [1, 1] f32 (SMEM)

        # single K-concat GEMM: bf16 operands, f32 accumulation on the MXU
        y = jnp.dot(x_ref[...], w_ref[...],
                    preferred_element_type=jnp.float32) + b_ref[...]
        if identity_res:
            # center tap (lane-aligned slice of the slab) is the skip connection
            y = y + x_ref[:, 4 * c_pad:5 * c_pad].astype(jnp.float32)
        if relu:
            y = jnp.maximum(y, 0.0)
        if pool:
            # fused 2x2 average pool as a tiny f32 matmul (robust, MXU slot)
            y = jnp.dot(p_ref[...], y, preferred_element_type=jnp.float32)
        o_ref[...] = y.astype(o_ref.dtype)

        if compute_l2:
            half = y.shape[0] // 2
            d = y[:half, :] - y[half:, :]       # sketch rows minus target rows
            l2_ref[0, 0] = jnp.sum(d * d) * l2_scale

    return kernel


def conv_gemm(slab, w, b, *, out_rows, relu=True, identity_res=False,
              pool_mat=None, compute_l2=False, l2_count=1):
    """One fused conv: slab [M, K] bf16, w [K, C] bf16, b [1, C] f32.

    Returns (featuremap [out_rows, C] bf16, l2 scalar or None)."""
    c = w.shape[1]
    kernel = _make_conv_kernel(relu=relu, identity_res=identity_res, c_pad=c,
                               pool=pool_mat is not None, compute_l2=compute_l2,
                               l2_scale=1.0 / float(l2_count))
    ins = [slab, w, b]
    in_specs = [_VMEM, _VMEM, _VMEM]
    if pool_mat is not None:
        ins.append(pool_mat)
        in_specs.append(_VMEM)

    if compute_l2:
        y, l2 = pl.pallas_call(
            kernel,
            out_shape=(jax.ShapeDtypeStruct((out_rows, c), jnp.bfloat16),
                       jax.ShapeDtypeStruct((1, 1), jnp.float32)),
            in_specs=in_specs,
            out_specs=(_VMEM, _SMEM),
        )(*ins)
        return y, l2[0, 0]

    y = pl.pallas_call(
        kernel,
        out_shape=jax.ShapeDtypeStruct((out_rows, c), jnp.bfloat16),
        in_specs=in_specs,
        out_specs=_VMEM,
    )(*ins)
    return y, None


# ----------------------------------------------------------------------------
# Wrapper-side im2col: the 9 taps become the K dim of a single GEMM.
# ----------------------------------------------------------------------------

def im2col3x3(x_nhwc, stride=1):
    n, h, w, c = x_nhwc.shape
    oh, ow = h // stride, w // stride
    xp = jnp.pad(x_nhwc, ((0, 0), (1, 1), (1, 1), (0, 0)))
    taps = [xp[:, r:r + stride * (oh - 1) + 1:stride,
               s:s + stride * (ow - 1) + 1:stride, :]
            for r in range(3) for s in range(3)]
    slab = jnp.concatenate(taps, axis=-1)             # [N, OH, OW, 9*C]
    return slab.reshape(n * oh * ow, 9 * c), (n, oh, ow)


def _make_pool_matrix(n, h, w):
    """[n*h/2*w/2, n*h*w] f32 matrix realizing a 2x2 average pool as a matmul."""
    hp, wp = h // 2, w // 2
    p = np.zeros((n * hp * wp, n * h * w), np.float32)
    for ni in range(n):
        for a in range(hp):
            for b in range(wp):
                r = (ni * hp + a) * wp + b
                for da in (0, 1):
                    for db in (0, 1):
                        col = (ni * h + 2 * a + da) * w + 2 * b + db
                        p[r, col] = 0.25
    return jnp.asarray(p)


# ----------------------------------------------------------------------------
# Fused (simplified) AttentionPool2d + fc cosine-distance loss — one pallas_call
# ----------------------------------------------------------------------------

def _make_attn_kernel(*, n, t_pad, t_real, c, d_real, eps=1e-8):
    inv_sqrt_d = 1.0 / float(d_real) ** 0.5

    def kernel(tok_ref, wqkv_ref, bqkv_ref, wo_ref, bo_ref, loss_ref):
        tok2 = tok_ref[...].reshape(n * t_pad, c)                    # bf16
        qkv = jnp.dot(tok2, wqkv_ref[...], preferred_element_type=jnp.float32)
        qkv = (qkv + bqkv_ref[...]).reshape(n, t_pad, 3 * c)
        q = qkv[:, 0:1, 0:c]                    # mean-token query   [n, 1, c]
        k = qkv[:, :, c:2 * c]                  # keys               [n, T, c]
        v = qkv[:, :, 2 * c:3 * c]              # values             [n, T, c]

        logits = jnp.einsum("nqc,ntc->nqt", q, k,
                            preferred_element_type=jnp.float32) * inv_sqrt_d
        tpos = jax.lax.broadcasted_iota(jnp.int32, logits.shape, 2)
        logits = jnp.where(tpos < t_real, logits, -1e30)   # mask padded tokens
        mx = jnp.max(logits, axis=-1, keepdims=True)
        e = jnp.exp(logits - mx)
        attn = e / jnp.sum(e, axis=-1, keepdims=True)
        ctx = jnp.einsum("nqt,ntd->nqd", attn, v,
                         preferred_element_type=jnp.float32)          # [n, 1, c]
        fc = jnp.dot(ctx.reshape(n, c).astype(jnp.bfloat16), wo_ref[...],
                     preferred_element_type=jnp.float32) + bo_ref[...]  # [n, c]

        # fused fc cosine distance: rows [0:n//2] = sketch, rows [n//2:] = target
        half = n // 2
        a = fc[:half, :]
        b = fc[half:, :]
        dots = jnp.sum(a * b, axis=1, keepdims=True)
        na = jnp.sqrt(jnp.sum(a * a, axis=1, keepdims=True))
        nb = jnp.sqrt(jnp.sum(b * b, axis=1, keepdims=True))
        cosv = dots / (jnp.maximum(na, eps) * jnp.maximum(nb, eps))
        loss_ref[0, 0] = jnp.mean(1.0 - cosv)

    return kernel


def attn_pool_fc_loss(x_nhwc, ap):
    n, h, w, c = x_nhwc.shape
    tokens = x_nhwc.reshape(n, h * w, c).astype(jnp.float32)
    mean_tok = jnp.mean(tokens, axis=1, keepdims=True)
    tok = jnp.concatenate([mean_tok, tokens], axis=1) + ap["pos"][None]   # [n, T, c]
    t_real = h * w + 1
    t_pad = ap["t_pad"]
    tok = jnp.pad(tok, ((0, 0), (0, t_pad - t_real), (0, 0))).astype(jnp.bfloat16)

    kernel = _make_attn_kernel(n=n, t_pad=t_pad, t_real=t_real, c=c,
                               d_real=ap["d_real"])
    loss = pl.pallas_call(
        kernel,
        out_shape=jax.ShapeDtypeStruct((1, 1), jnp.float32),
        in_specs=[_VMEM] * 5,
        out_specs=_SMEM,
    )(tok, ap["wqkv"], ap["bqkv"], ap["wo"], ap["bo"])
    return loss[0, 0]


# ----------------------------------------------------------------------------
# CLIPConvLoss forward (train=False: no augmentation branch)
# ----------------------------------------------------------------------------

def clip_conv_loss(sketch, target, kparams,
                   conv_weights=(0.0, 0.0, 1.0, 1.0, 0.0),
                   c_weight=1.0, fc_weight=50.0):
    # TODO(synk): kornia-style augmentations of the train=True path and the
    # preprocess Resize/CenterCrop are not translated (inputs assumed at encoder res).
    imgs = jnp.concatenate([sketch, target], axis=0)      # batch both encoders together
    x = jnp.transpose(imgs.astype(jnp.float32), (0, 2, 3, 1))        # NCHW -> NHWC
    x = x - jnp.asarray(_CLIP_MEAN, jnp.float32)          # 1/std folded into conv1 w
    n = x.shape[0]

    # --- stem: conv1(s2)+bn+relu, conv2+bn+relu, conv3+bn+relu + fused 2x2 avgpool
    slab, (_, oh, ow) = im2col3x3(x, stride=2)            # [M, 27] on 3 real channels
    slab = jnp.pad(slab, ((0, 0), (0, STEM_K - slab.shape[1]))).astype(jnp.bfloat16)
    y, _ = conv_gemm(slab, kparams["conv1"]["w"], kparams["conv1"]["b"],
                     out_rows=n * oh * ow)
    y = y.reshape(n, oh, ow, LANE)

    slab, _ = im2col3x3(y)
    y, _ = conv_gemm(slab, kparams["conv2"]["w"], kparams["conv2"]["b"],
                     out_rows=n * oh * ow)
    y = y.reshape(n, oh, ow, LANE)

    # conv3 epilogue fuses the stem avgpool (+ featuremaps[0] L2 when weighted)
    php, pwp = oh // 2, ow // 2
    need_l2_stem = conv_weights[0] != 0.0
    slab, _ = im2col3x3(y)
    y, l2 = conv_gemm(slab, kparams["conv3"]["w"], kparams["conv3"]["b"],
                      out_rows=n * php * pwp,
                      pool_mat=_make_pool_matrix(n, oh, ow),
                      compute_l2=need_l2_stem,
                      l2_count=(n // 2) * php * pwp * kparams["stem_c_real"])
    conv_loss = jnp.float32(0.0)
    if need_l2_stem:
        conv_loss = conv_loss + conv_weights[0] * l2
    y = y.reshape(n, php, pwp, LANE)

    # simplified residual layers; per-featuremap L2 terms are fused into the producing
    # conv's epilogue and only computed for non-zero weights.
    for i, lp in enumerate(kparams["layers"]):
        w_i = conv_weights[i + 1]
        need_l2 = w_i != 0.0
        n_, h_, w_sp, _ = y.shape
        cin_r, cout_r = lp["dims"]
        slab, _ = im2col3x3(y)
        y, l2 = conv_gemm(slab, lp["w"], lp["b"], out_rows=n_ * h_ * w_sp,
                          identity_res=(cin_r == cout_r),      # proj is folded into w
                          compute_l2=need_l2,
                          l2_count=(n_ // 2) * h_ * w_sp * cout_r)
        if need_l2:
            conv_loss = conv_loss + w_i * l2
        y = y.reshape(n_, h_, w_sp, LANE)

    fc_loss = attn_pool_fc_loss(y, kparams["attnpool"])
    return conv_loss * c_weight + fc_loss * fc_weight


# ----------------------------------------------------------------------------
# Deterministic synthetic parameters (real dims) + folding/padding for the kernels
# ----------------------------------------------------------------------------

def init_params(key, c0=8, embed=32, hw_tokens=16):
    keys = iter(jax.random.split(key, 64))

    def conv_p(k, cin, cout):
        return dict(
            w=jax.random.normal(next(keys), (k * k, cin, cout), jnp.float32)
              / jnp.sqrt(jnp.float32(k * k * cin)),
            gamma=1.0 + 0.1 * jax.random.normal(next(keys), (cout,), jnp.float32),
            beta=0.1 * jax.random.normal(next(keys), (cout,), jnp.float32),
            mean=0.1 * jax.random.normal(next(keys), (cout,), jnp.float32),
            var=1.0 + 0.1 * jnp.abs(jax.random.normal(next(keys), (cout,), jnp.float32)),
        )

    P = {"conv1": conv_p(3, 3, c0),
         "conv2": conv_p(3, c0, c0),
         "conv3": conv_p(3, c0, 2 * c0)}
    layer_dims = [(2 * c0, 4 * c0), (4 * c0, 4 * c0), (4 * c0, 8 * c0), (8 * c0, 8 * c0)]
    layers = []
    for cin, cout in layer_dims:
        lp = {"dims": (cin, cout), "conv": conv_p(3, cin, cout)}
        if cin != cout:
            lp["proj"] = conv_p(1, cin, cout)
        layers.append(lp)
    P["layers"] = layers

    c = layer_dims[-1][1]
    T = hw_tokens + 1
    P["attnpool"] = dict(
        pos=0.02 * jax.random.normal(next(keys), (T, c), jnp.float32),
        wq=jax.random.normal(next(keys), (c, c), jnp.float32) / jnp.sqrt(jnp.float32(c)),
        bq=jnp.zeros((c,), jnp.float32),
        wk=jax.random.normal(next(keys), (c, c), jnp.float32) / jnp.sqrt(jnp.float32(c)),
        bk=jnp.zeros((c,), jnp.float32),
        wv=jax.random.normal(next(keys), (c, c), jnp.float32) / jnp.sqrt(jnp.float32(c)),
        bv=jnp.zeros((c,), jnp.float32),
        wo=jax.random.normal(next(keys), (c, embed), jnp.float32) / jnp.sqrt(jnp.float32(c)),
        bo=jnp.zeros((embed,), jnp.float32),
    )
    return P


def _bn_scale_shift(p, eps=1e-5):
    scale = p["gamma"] / jnp.sqrt(p["var"] + eps)
    shift = p["beta"] - p["mean"] * scale
    return scale, shift


def _fold_conv3x3(p):
    """Fold BN scale, pad channels to LANE, fold taps into K -> ([9*LANE, LANE] f32, b)."""
    scale, shift = _bn_scale_shift(p)
    w = p["w"] * scale[None, None, :]                              # [9, cin, cout]
    kk, cin, cout = w.shape
    w = jnp.pad(w, ((0, 0), (0, LANE - cin), (0, LANE - cout)))
    b = jnp.pad(shift, (0, LANE - cout)).reshape(1, LANE).astype(jnp.float32)
    return w.reshape(kk * LANE, LANE), b


def _fold_stem_conv1(p):
    """Fold BN scale + CLIP-normalize 1/std; pack 9 taps x 3 channels into K=32."""
    scale, shift = _bn_scale_shift(p)
    std = jnp.asarray(_CLIP_STD, jnp.float32)
    w = p["w"] * scale[None, None, :] / std[None, :, None]         # [9, 3, cout]
    kk, cin, cout = w.shape
    w = w.reshape(kk * cin, cout)                                  # K = 27
    w = jnp.pad(w, ((0, STEM_K - kk * cin), (0, LANE - cout))).astype(jnp.bfloat16)
    b = jnp.pad(shift, (0, LANE - cout)).reshape(1, LANE).astype(jnp.float32)
    return dict(w=w, b=b)


def prepare_params(P):
    kp = {"conv1": _fold_stem_conv1(P["conv1"]),
          "stem_c_real": int(P["conv3"]["w"].shape[-1]),
          "layers": []}
    for name in ("conv2", "conv3"):
        w, b = _fold_conv3x3(P[name])
        kp[name] = dict(w=w.astype(jnp.bfloat16), b=b)

    for lp in P["layers"]:
        cin, cout = lp["dims"]
        w, b = _fold_conv3x3(lp["conv"])
        if "proj" in lp:
            # fold the 1x1 downsample projection (+ its BN) into the center-tap rows
            # of the big weight and its shift into the bias (exact in f32).
            pscale, pshift = _bn_scale_shift(lp["proj"])
            wp = lp["proj"]["w"][0] * pscale[None, :]              # [cin, cout]
            wp = jnp.pad(wp, ((0, LANE - cin), (0, LANE - cout)))
            w = w.at[4 * LANE:5 * LANE, :].add(wp)
            b = b + jnp.pad(pshift, (0, LANE - cout)).reshape(1, LANE)
        kp["layers"].append(dict(dims=(cin, cout), w=w.astype(jnp.bfloat16), b=b))

    ap = P["attnpool"]
    c = int(ap["wq"].shape[0])
    embed = int(ap["wo"].shape[1])
    wqkv = jnp.zeros((LANE, 3 * LANE), jnp.float32)
    wqkv = (wqkv.at[:c, 0:c].set(ap["wq"])
                 .at[:c, LANE:LANE + c].set(ap["wk"])
                 .at[:c, 2 * LANE:2 * LANE + c].set(ap["wv"]))
    bqkv = jnp.zeros((1, 3 * LANE), jnp.float32)
    bqkv = (bqkv.at[0, 0:c].set(ap["bq"])
                 .at[0, LANE:LANE + c].set(ap["bk"])
                 .at[0, 2 * LANE:2 * LANE + c].set(ap["bv"]))
    wo = jnp.zeros((LANE, LANE), jnp.float32).at[:c, :embed].set(ap["wo"])
    bo = jnp.zeros((1, LANE), jnp.float32).at[0, :embed].set(ap["bo"])
    pos = jnp.pad(ap["pos"], ((0, 0), (0, LANE - c)))
    t_real = int(ap["pos"].shape[0])
    t_pad = ((t_real + 31) // 32) * 32
    kp["attnpool"] = dict(pos=pos, wqkv=wqkv.astype(jnp.bfloat16), bqkv=bqkv,
                          wo=wo.astype(jnp.bfloat16), bo=bo, d_real=c, t_pad=t_pad)
    return kp


if __name__ == "__main__":
    key = jax.random.PRNGKey(0)
    k1, k2, k3 = jax.random.split(key, 3)
    sketch = jax.random.uniform(k1, (1, 3, 16, 16), jnp.float32)   # [1, C, H, W]
    target = jax.random.uniform(k2, (1, 3, 16, 16), jnp.float32)
    kparams = prepare_params(init_params(k3))

    loss_fn = jax.jit(lambda s, t: clip_conv_loss(s, t, kparams))
    loss = loss_fn(sketch, target)
    jax.block_until_ready(loss)
    assert loss.shape == () and bool(jnp.isfinite(loss))
    print("KERNEL_OK")
</pallas_src>

<mosaic_0001>
module attributes {stable_mosaic.version = 11 : i64} {
  func.func @kernel(%arg0: memref<128x32xbf16, #tpu.memory_space<vmem>>, %arg1: memref<32x128xbf16, #tpu.memory_space<vmem>>, %arg2: memref<1x128xf32, #tpu.memory_space<vmem>>, %arg3: memref<128x128xbf16, #tpu.memory_space<vmem>>) attributes {dimension_semantics = [], scalar_prefetch = 0 : i64, scratch_operands = 0 : i64, tpu.core_type = #tpu.core_type<tc>} {
    %c0 = arith.constant 0 : index
    %c0_0 = arith.constant 0 : index
    %0 = vector.load %arg0[%c0, %c0_0] : memref<128x32xbf16, #tpu.memory_space<vmem>>, vector<128x32xbf16>
    %c0_1 = arith.constant 0 : index
    %c0_2 = arith.constant 0 : index
    %1 = vector.load %arg1[%c0_1, %c0_2] : memref<32x128xbf16, #tpu.memory_space<vmem>>, vector<32x128xbf16>
    %cst = arith.constant dense<0.000000e+00> : vector<128x128xf32>
    %2 = tpu.matmul %0, %1, %cst {dimension_numbers = #tpu.dot_dimension_numbers<[1], [0], [0], [1], [0, 0, 1, 1], [], []>} : vector<128x32xbf16>, vector<32x128xbf16>, vector<128x128xf32> -> vector<128x128xf32>
    %c0_3 = arith.constant 0 : index
    %c0_4 = arith.constant 0 : index
    %3 = vector.load %arg2[%c0_3, %c0_4] : memref<1x128xf32, #tpu.memory_space<vmem>>, vector<1x128xf32>
    %4 = vector.broadcast %3 : vector<1x128xf32> to vector<128x128xf32>
    %5 = arith.addf %2, %4 : vector<128x128xf32>
    %cst_5 = arith.constant 0.000000e+00 : f32
    %6 = vector.broadcast %cst_5 : f32 to vector<128x128xf32>
    %7 = arith.maximumf %5, %6 : vector<128x128xf32>
    %8 = arith.truncf %7 : vector<128x128xf32> to vector<128x128xbf16>
    %c0_6 = arith.constant 0 : index
    %c0_7 = arith.constant 0 : index
    %9 = vector.load %arg3[%c0_6, %c0_7] : memref<128x128xbf16, #tpu.memory_space<vmem>>, vector<128x128xbf16>
    tpu.vector_store %arg3[%c0_6, %c0_7], %8 {strides = array<i32>} : memref<128x128xbf16, #tpu.memory_space<vmem>>, vector<128x128xbf16>,
    return
  }
}

module attributes {stable_mosaic.version = 11 : i64} {
  func.func @kernel(%arg0: memref<128x1152xbf16, #tpu.memory_space<vmem>>, %arg1: memref<1152x128xbf16, #tpu.memory_space<vmem>>, %arg2: memref<1x128xf32, #tpu.memory_space<vmem>>, %arg3: memref<128x128xbf16, #tpu.memory_space<vmem>>) attributes {dimension_semantics = [], scalar_prefetch = 0 : i64, scratch_operands = 0 : i64, tpu.core_type = #tpu.core_type<tc>} {
    %c0 = arith.constant 0 : index
    %c0_0 = arith.constant 0 : index
    %0 = vector.load %arg0[%c0, %c0_0] : memref<128x1152xbf16, #tpu.memory_space<vmem>>, vector<128x1152xbf16>
    %c0_1 = arith.constant 0 : index
    %c0_2 = arith.constant 0 : index
    %1 = vector.load %arg1[%c0_1, %c0_2] : memref<1152x128xbf16, #tpu.memory_space<vmem>>, vector<1152x128xbf16>
    %cst = arith.constant dense<0.000000e+00> : vector<128x128xf32>
    %2 = tpu.matmul %0, %1, %cst {dimension_numbers = #tpu.dot_dimension_numbers<[1], [0], [0], [1], [0, 0, 1, 1], [], []>} : vector<128x1152xbf16>, vector<1152x128xbf16>, vector<128x128xf32> -> vector<128x128xf32>
    %c0_3 = arith.constant 0 : index
    %c0_4 = arith.constant 0 : index
    %3 = vector.load %arg2[%c0_3, %c0_4] : memref<1x128xf32, #tpu.memory_space<vmem>>, vector<1x128xf32>
    %4 = vector.broadcast %3 : vector<1x128xf32> to vector<128x128xf32>
    %5 = arith.addf %2, %4 : vector<128x128xf32>
    %cst_5 = arith.constant 0.000000e+00 : f32
    %6 = vector.broadcast %cst_5 : f32 to vector<128x128xf32>
    %7 = arith.maximumf %5, %6 : vector<128x128xf32>
    %8 = arith.truncf %7 : vector<128x128xf32> to vector<128x128xbf16>
    %c0_6 = arith.constant 0 : index
    %c0_7 = arith.constant 0 : index
    %9 = vector.load %arg3[%c0_6, %c0_7] : memref<128x128xbf16, #tpu.memory_space<vmem>>, vector<128x128xbf16>
    tpu.vector_store %arg3[%c0_6, %c0_7], %8 {strides = array<i32>} : memref<128x128xbf16, #tpu.memory_space<vmem>>, vector<128x128xbf16>,
    return
  }
}

module attributes {stable_mosaic.version = 11 : i64} {
  func.func @kernel(%arg0: memref<128x1152xbf16, #tpu.memory_space<vmem>>, %arg1: memref<1152x128xbf16, #tpu.memory_space<vmem>>, %arg2: memref<1x128xf32, #tpu.memory_space<vmem>>, %arg3: memref<32x128xf32, #tpu.memory_space<vmem>>, %arg4: memref<32x128xbf16, #tpu.memory_space<vmem>>) attributes {dimension_semantics = [], scalar_prefetch = 0 : i64, scratch_operands = 0 : i64, tpu.core_type = #tpu.core_type<tc>} {
    %c0 = arith.constant 0 : index
    %c0_0 = arith.constant 0 : index
    %0 = vector.load %arg0[%c0, %c0_0] : memref<128x1152xbf16, #tpu.memory_space<vmem>>, vector<128x1152xbf16>
    %c0_1 = arith.constant 0 : index
    %c0_2 = arith.constant 0 : index
    %1 = vector.load %arg1[%c0_1, %c0_2] : memref<1152x128xbf16, #tpu.memory_space<vmem>>, vector<1152x128xbf16>
    %cst = arith.constant dense<0.000000e+00> : vector<128x128xf32>
    %2 = tpu.matmul %0, %1, %cst {dimension_numbers = #tpu.dot_dimension_numbers<[1], [0], [0], [1], [0, 0, 1, 1], [], []>} : vector<128x1152xbf16>, vector<1152x128xbf16>, vector<128x128xf32> -> vector<128x128xf32>
    %c0_3 = arith.constant 0 : index
    %c0_4 = arith.constant 0 : index
    %3 = vector.load %arg2[%c0_3, %c0_4] : memref<1x128xf32, #tpu.memory_space<vmem>>, vector<1x128xf32>
    %4 = vector.broadcast %3 : vector<1x128xf32> to vector<128x128xf32>
    %5 = arith.addf %2, %4 : vector<128x128xf32>
    %cst_5 = arith.constant 0.000000e+00 : f32
    %6 = vector.broadcast %cst_5 : f32 to vector<128x128xf32>
    %7 = arith.maximumf %5, %6 : vector<128x128xf32>
    %c0_6 = arith.constant 0 : index
    %c0_7 = arith.constant 0 : index
    %8 = vector.load %arg3[%c0_6, %c0_7] : memref<32x128xf32, #tpu.memory_space<vmem>>, vector<32x128xf32>
    %cst_8 = arith.constant dense<0.000000e+00> : vector<32x128xf32>
    %9 = tpu.matmul %8, %7, %cst_8 {dimension_numbers = #tpu.dot_dimension_numbers<[1], [0], [0], [1], [0, 0, 1, 1], [], []>} : vector<32x128xf32>, vector<128x128xf32>, vector<32x128xf32> -> vector<32x128xf32>
    %10 = arith.truncf %9 : vector<32x128xf32> to vector<32x128xbf16>
    %c0_9 = arith.constant 0 : index
    %c0_10 = arith.constant 0 : index
    %11 = vector.load %arg4[%c0_9, %c0_10] : memref<32x128xbf16, #tpu.memory_space<vmem>>, vector<32x128xbf16>
    tpu.vector_store %arg4[%c0_9, %c0_10], %10 {strides = array<i32>} : memref<32x128xbf16, #tpu.memory_space<vmem>>, vector<32x128xbf16>,
    return
  }
}

module attributes {stable_mosaic.version = 11 : i64} {
  func.func @kernel(%arg0: memref<32x1152xbf16, #tpu.memory_space<vmem>>, %arg1: memref<1152x128xbf16, #tpu.memory_space<vmem>>, %arg2: memref<1x128xf32, #tpu.memory_space<vmem>>, %arg3: memref<32x128xbf16, #tpu.memory_space<vmem>>) attributes {dimension_semantics = [], scalar_prefetch = 0 : i64, scratch_operands = 0 : i64, tpu.core_type = #tpu.core_type<tc>} {
    %c0 = arith.constant 0 : index
    %c0_0 = arith.constant 0 : index
    %0 = vector.load %arg0[%c0, %c0_0] : memref<32x1152xbf16, #tpu.memory_space<vmem>>, vector<32x1152xbf16>
    %c0_1 = arith.constant 0 : index
    %c0_2 = arith.constant 0 : index
    %1 = vector.load %arg1[%c0_1, %c0_2] : memref<1152x128xbf16, #tpu.memory_space<vmem>>, vector<1152x128xbf16>
    %cst = arith.constant dense<0.000000e+00> : vector<32x128xf32>
    %2 = tpu.matmul %0, %1, %cst {dimension_numbers = #tpu.dot_dimension_numbers<[1], [0], [0], [1], [0, 0, 1, 1], [], []>} : vector<32x1152xbf16>, vector<1152x128xbf16>, vector<32x128xf32> -> vector<32x128xf32>
    %c0_3 = arith.constant 0 : index
    %c0_4 = arith.constant 0 : index
    %3 = vector.load %arg2[%c0_3, %c0_4] : memref<1x128xf32, #tpu.memory_space<vmem>>, vector<1x128xf32>
    %4 = vector.broadcast %3 : vector<1x128xf32> to vector<32x128xf32>
    %5 = arith.addf %2, %4 : vector<32x128xf32>
    %cst_5 = arith.constant 0.000000e+00 : f32
    %6 = vector.broadcast %cst_5 : f32 to vector<32x128xf32>
    %7 = arith.maximumf %5, %6 : vector<32x128xf32>
    %8 = arith.truncf %7 : vector<32x128xf32> to vector<32x128xbf16>
    %c0_6 = arith.constant 0 : index
    %c0_7 = arith.constant 0 : index
    %9 = vector.load %arg3[%c0_6, %c0_7] : memref<32x128xbf16, #tpu.memory_space<vmem>>, vector<32x128xbf16>
    tpu.vector_store %arg3[%c0_6, %c0_7], %8 {strides = array<i32>} : memref<32x128xbf16, #tpu.memory_space<vmem>>, vector<32x128xbf16>,
    return
  }
}

module attributes {stable_mosaic.version = 11 : i64} {
  func.func @kernel(%arg0: memref<32x1152xbf16, #tpu.memory_space<vmem>>, %arg1: memref<1152x128xbf16, #tpu.memory_space<vmem>>, %arg2: memref<1x128xf32, #tpu.memory_space<vmem>>, %arg3: memref<32x128xbf16, #tpu.memory_space<vmem>>, %arg4: memref<1x1xf32, #tpu.memory_space<smem>>) attributes {dimension_semantics = [], scalar_prefetch = 0 : i64, scratch_operands = 0 : i64, tpu.core_type = #tpu.core_type<tc>} {
    %c0 = arith.constant 0 : index
    %c0_0 = arith.constant 0 : index
    %0 = vector.load %arg0[%c0, %c0_0] : memref<32x1152xbf16, #tpu.memory_space<vmem>>, vector<32x1152xbf16>
    %c0_1 = arith.constant 0 : index
    %c0_2 = arith.constant 0 : index
    %1 = vector.load %arg1[%c0_1, %c0_2] : memref<1152x128xbf16, #tpu.memory_space<vmem>>, vector<1152x128xbf16>
    %cst = arith.constant dense<0.000000e+00> : vector<32x128xf32>
    %2 = tpu.matmul %0, %1, %cst {dimension_numbers = #tpu.dot_dimension_numbers<[1], [0], [0], [1], [0, 0, 1, 1], [], []>} : vector<32x1152xbf16>, vector<1152x128xbf16>, vector<32x128xf32> -> vector<32x128xf32>
    %c0_3 = arith.constant 0 : index
    %c0_4 = arith.constant 0 : index
    %3 = vector.load %arg2[%c0_3, %c0_4] : memref<1x128xf32, #tpu.memory_space<vmem>>, vector<1x128xf32>
    %4 = vector.broadcast %3 : vector<1x128xf32> to vector<32x128xf32>
    %5 = arith.addf %2, %4 : vector<32x128xf32>
    %c0_5 = arith.constant 0 : index
    %c512 = arith.constant 512 : index
    %6 = vector.load %arg0[%c0_5, %c512] : memref<32x1152xbf16, #tpu.memory_space<vmem>>, vector<32x128xbf16>
    %7 = arith.extf %6 : vector<32x128xbf16> to vector<32x128xf32>
    %8 = arith.addf %5, %7 : vector<32x128xf32>
    %cst_6 = arith.constant 0.000000e+00 : f32
    %9 = vector.broadcast %cst_6 : f32 to vector<32x128xf32>
    %10 = arith.maximumf %8, %9 : vector<32x128xf32>
    %11 = arith.truncf %10 : vector<32x128xf32> to vector<32x128xbf16>
    %c0_7 = arith.constant 0 : index
    %c0_8 = arith.constant 0 : index
    %12 = vector.load %arg3[%c0_7, %c0_8] : memref<32x128xbf16, #tpu.memory_space<vmem>>, vector<32x128xbf16>
    tpu.vector_store %arg3[%c0_7, %c0_8], %11 {strides = array<i32>} : memref<32x128xbf16, #tpu.memory_space<vmem>>, vector<32x128xbf16>,
    %13 = vector.extract_strided_slice %10 {offsets = [0, 0], sizes = [16, 128], strides = [1, 1]} : vector<32x128xf32> to vector<16x128xf32>
    %14 = vector.extract_strided_slice %10 {offsets = [16, 0], sizes = [16, 128], strides = [1, 1]} : vector<32x128xf32> to vector<16x128xf32>
    %15 = arith.subf %13, %14 : vector<16x128xf32>
    %16 = arith.mulf %15, %15 : vector<16x128xf32>
    %17 = vector.shape_cast %16 : vector<16x128xf32> to vector<1x16x128xf32>
    %cst_9 = arith.constant dense<0.000000e+00> : vector<1xf32>
    %18 = vector.multi_reduction <add>, %17, %cst_9 [1, 2] : vector<1x16x128xf32> to vector<1xf32>
    %19 = vector.shape_cast %18 : vector<1xf32> to vector<1x1x1xf32>
    %20 = vector.extract %19[0, 0, 0] : f32 from vector<1x1x1xf32>
    %cst_10 = arith.constant 0.001953125 : f32
    %21 = arith.mulf %20, %cst_10 : f32
    %c0_11 = arith.constant 0 : index
    %c0_12 = arith.constant 0 : index
    %22 = memref.load %arg4[%c0_11, %c0_12] : memref<1x1xf32, #tpu.memory_space<smem>>
    memref.store %21, %arg4[%c0_11, %c0_12] : memref<1x1xf32, #tpu.memory_space<smem>>
    return
  }
}

module attributes {stable_mosaic.version = 11 : i64} {
  func.func @kernel(%arg0: memref<32x1152xbf16, #tpu.memory_space<vmem>>, %arg1: memref<1152x128xbf16, #tpu.memory_space<vmem>>, %arg2: memref<1x128xf32, #tpu.memory_space<vmem>>, %arg3: memref<32x128xbf16, #tpu.memory_space<vmem>>, %arg4: memref<1x1xf32, #tpu.memory_space<smem>>) attributes {dimension_semantics = [], scalar_prefetch = 0 : i64, scratch_operands = 0 : i64, tpu.core_type = #tpu.core_type<tc>} {
    %c0 = arith.constant 0 : index
    %c0_0 = arith.constant 0 : index
    %0 = vector.load %arg0[%c0, %c0_0] : memref<32x1152xbf16, #tpu.memory_space<vmem>>, vector<32x1152xbf16>
    %c0_1 = arith.constant 0 : index
    %c0_2 = arith.constant 0 : index
    %1 = vector.load %arg1[%c0_1, %c0_2] : memref<1152x128xbf16, #tpu.memory_space<vmem>>, vector<1152x128xbf16>
    %cst = arith.constant dense<0.000000e+00> : vector<32x128xf32>
    %2 = tpu.matmul %0, %1, %cst {dimension_numbers = #tpu.dot_dimension_numbers<[1], [0], [0], [1], [0, 0, 1, 1], [], []>} : vector<32x1152xbf16>, vector<1152x128xbf16>, vector<32x128xf32> -> vector<32x128xf32>
    %c0_3 = arith.constant 0 : index
    %c0_4 = arith.constant 0 : index
    %3 = vector.load %arg2[%c0_3, %c0_4] : memref<1x128xf32, #tpu.memory_space<vmem>>, vector<1x128xf32>
    %4 = vector.broadcast %3 : vector<1x128xf32> to vector<32x128xf32>
    %5 = arith.addf %2, %4 : vector<32x128xf32>
    %cst_5 = arith.constant 0.000000e+00 : f32
    %6 = vector.broadcast %cst_5 : f32 to vector<32x128xf32>
    %7 = arith.maximumf %5, %6 : vector<32x128xf32>
    %8 = arith.truncf %7 : vector<32x128xf32> to vector<32x128xbf16>
    %c0_6 = arith.constant 0 : index
    %c0_7 = arith.constant 0 : index
    %9 = vector.load %arg3[%c0_6, %c0_7] : memref<32x128xbf16, #tpu.memory_space<vmem>>, vector<32x128xbf16>
    tpu.vector_store %arg3[%c0_6, %c0_7], %8 {strides = array<i32>} : memref<32x128xbf16, #tpu.memory_space<vmem>>, vector<32x128xbf16>,
    %10 = vector.extract_strided_slice %7 {offsets = [0, 0], sizes = [16, 128], strides = [1, 1]} : vector<32x128xf32> to vector<16x128xf32>
    %11 = vector.extract_strided_slice %7 {offsets = [16, 0], sizes = [16, 128], strides = [1, 1]} : vector<32x128xf32> to vector<16x128xf32>
    %12 = arith.subf %10, %11 : vector<16x128xf32>
    %13 = arith.mulf %12, %12 : vector<16x128xf32>
    %14 = vector.shape_cast %13 : vector<16x128xf32> to vector<1x16x128xf32>
    %cst_8 = arith.constant dense<0.000000e+00> : vector<1xf32>
    %15 = vector.multi_reduction <add>, %14, %cst_8 [1, 2] : vector<1x16x128xf32> to vector<1xf32>
    %16 = vector.shape_cast %15 : vector<1xf32> to vector<1x1x1xf32>
    %17 = vector.extract %16[0, 0, 0] : f32 from vector<1x1x1xf32>
    %cst_9 = arith.constant 9.765625E-4 : f32
    %18 = arith.mulf %17, %cst_9 : f32
    %c0_10 = arith.constant 0 : index
    %c0_11 = arith.constant 0 : index
    %19 = memref.load %arg4[%c0_10, %c0_11] : memref<1x1xf32, #tpu.memory_space<smem>>
    memref.store %18, %arg4[%c0_10, %c0_11] : memref<1x1xf32, #tpu.memory_space<smem>>
    return
  }
}

module attributes {stable_mosaic.version = 11 : i64} {
  func.func @kernel(%arg0: memref<32x1152xbf16, #tpu.memory_space<vmem>>, %arg1: memref<1152x128xbf16, #tpu.memory_space<vmem>>, %arg2: memref<1x128xf32, #tpu.memory_space<vmem>>, %arg3: memref<32x128xbf16, #tpu.memory_space<vmem>>) attributes {dimension_semantics = [], scalar_prefetch = 0 : i64, scratch_operands = 0 : i64, tpu.core_type = #tpu.core_type<tc>} {
    %c0 = arith.constant 0 : index
    %c0_0 = arith.constant 0 : index
    %0 = vector.load %arg0[%c0, %c0_0] : memref<32x1152xbf16, #tpu.memory_space<vmem>>, vector<32x1152xbf16>
    %c0_1 = arith.constant 0 : index
    %c0_2 = arith.constant 0 : index
    %1 = vector.load %arg1[%c0_1, %c0_2] : memref<1152x128xbf16, #tpu.memory_space<vmem>>, vector<1152x128xbf16>
    %cst = arith.constant dense<0.000000e+00> : vector<32x128xf32>
    %2 = tpu.matmul %0, %1, %cst {dimension_numbers = #tpu.dot_dimension_numbers<[1], [0], [0], [1], [0, 0, 1, 1], [], []>} : vector<32x1152xbf16>, vector<1152x128xbf16>, vector<32x128xf32> -> vector<32x128xf32>
    %c0_3 = arith.constant 0 : index
    %c0_4 = arith.constant 0 : index
    %3 = vector.load %arg2[%c0_3, %c0_4] : memref<1x128xf32, #tpu.memory_space<vmem>>, vector<1x128xf32>
    %4 = vector.broadcast %3 : vector<1x128xf32> to vector<32x128xf32>
    %5 = arith.addf %2, %4 : vector<32x128xf32>
    %c0_5 = arith.constant 0 : index
    %c512 = arith.constant 512 : index
    %6 = vector.load %arg0[%c0_5, %c512] : memref<32x1152xbf16, #tpu.memory_space<vmem>>, vector<32x128xbf16>
    %7 = arith.extf %6 : vector<32x128xbf16> to vector<32x128xf32>
    %8 = arith.addf %5, %7 : vector<32x128xf32>
    %cst_6 = arith.constant 0.000000e+00 : f32
    %9 = vector.broadcast %cst_6 : f32 to vector<32x128xf32>
    %10 = arith.maximumf %8, %9 : vector<32x128xf32>
    %11 = arith.truncf %10 : vector<32x128xf32> to vector<32x128xbf16>
    %c0_7 = arith.constant 0 : index
    %c0_8 = arith.constant 0 : index
    %12 = vector.load %arg3[%c0_7, %c0_8] : memref<32x128xbf16, #tpu.memory_space<vmem>>, vector<32x128xbf16>
    tpu.vector_store %arg3[%c0_7, %c0_8], %11 {strides = array<i32>} : memref<32x128xbf16, #tpu.memory_space<vmem>>, vector<32x128xbf16>,
    return
  }
}

module attributes {stable_mosaic.version = 11 : i64} {
  func.func @kernel(%arg0: memref<2x32x128xbf16, #tpu.memory_space<vmem>>, %arg1: memref<128x384xbf16, #tpu.memory_space<vmem>>, %arg2: memref<1x384xf32, #tpu.memory_space<vmem>>, %arg3: memref<128x128xbf16, #tpu.memory_space<vmem>>, %arg4: memref<1x128xf32, #tpu.memory_space<vmem>>, %arg5: memref<1x1xf32, #tpu.memory_space<smem>>) attributes {dimension_semantics = [], scalar_prefetch = 0 : i64, scratch_operands = 0 : i64, tpu.core_type = #tpu.core_type<tc>} {
    %c0 = arith.constant 0 : index
    %c0_0 = arith.constant 0 : index
    %c0_1 = arith.constant 0 : index
    %0 = vector.load %arg0[%c0, %c0_0, %c0_1] : memref<2x32x128xbf16, #tpu.memory_space<vmem>>, vector<2x32x128xbf16>
    %1 = vector.shape_cast %0 : vector<2x32x128xbf16> to vector<64x128xbf16>
    %c0_2 = arith.constant 0 : index
    %c0_3 = arith.constant 0 : index
    %2 = vector.load %arg1[%c0_2, %c0_3] : memref<128x384xbf16, #tpu.memory_space<vmem>>, vector<128x384xbf16>
    %cst = arith.constant dense<0.000000e+00> : vector<64x384xf32>
    %3 = tpu.matmul %1, %2, %cst {dimension_numbers = #tpu.dot_dimension_numbers<[1], [0], [0], [1], [0, 0, 1, 1], [], []>} : vector<64x128xbf16>, vector<128x384xbf16>, vector<64x384xf32> -> vector<64x384xf32>
    %c0_4 = arith.constant 0 : index
    %c0_5 = arith.constant 0 : index
    %4 = vector.load %arg2[%c0_4, %c0_5] : memref<1x384xf32, #tpu.memory_space<vmem>>, vector<1x384xf32>
    %5 = vector.broadcast %4 : vector<1x384xf32> to vector<64x384xf32>
    %6 = arith.addf %3, %5 : vector<64x384xf32>
    %7 = vector.shape_cast %6 : vector<64x384xf32> to vector<2x32x384xf32>
    %8 = vector.extract_strided_slice %7 {offsets = [0, 0, 0], sizes = [2, 1, 128], strides = [1, 1, 1]} : vector<2x32x384xf32> to vector<2x1x128xf32>
    %9 = vector.extract_strided_slice %7 {offsets = [0, 0, 128], sizes = [2, 32, 128], strides = [1, 1, 1]} : vector<2x32x384xf32> to vector<2x32x128xf32>
    %10 = vector.extract_strided_slice %7 {offsets = [0, 0, 256], sizes = [2, 32, 128], strides = [1, 1, 1]} : vector<2x32x384xf32> to vector<2x32x128xf32>
    "tpu.trace_start"() <{level = 10 : i32, message = "nqc,ntc->nqt"}> : () -> ()
    %cst_6 = arith.constant dense<0.000000e+00> : vector<2x1x32xf32>
    %11 = tpu.matmul %8, %9, %cst_6 {dimension_numbers = #tpu.dot_dimension_numbers<[2], [2], [1], [1], [0, 0, 0, 1, 1, 1], [0], [0]>} : vector<2x1x128xf32>, vector<2x32x128xf32>, vector<2x1x32xf32> -> vector<2x1x32xf32>
    "tpu.trace_stop"() : () -> ()
    %cst_7 = arith.constant 1.250000e-01 : f32
    %12 = vector.broadcast %cst_7 : f32 to vector<2x1x32xf32>
    %13 = arith.mulf %11, %12 : vector<2x1x32xf32>
    %14 = tpu.iota {dimensions = array<i32: 2>} : vector<2x1x32xi32>
    %c17_i32 = arith.constant 17 : i32
    %15 = vector.broadcast %c17_i32 : i32 to vector<2x1x32xi32>
    %16 = arith.cmpi slt, %14, %15 : vector<2x1x32xi32>
    %cst_8 = arith.constant -1.000000e+30 : f32
    %17 = vector.broadcast %cst_8 : f32 to vector<2x1x32xf32>
    %18 = arith.select %16, %13, %17 : vector<2x1x32xi1>, vector<2x1x32xf32>
    %cst_9 = arith.constant dense<0xFF800000> : vector<2x1xf32>
    %19 = vector.multi_reduction <maximumf>, %18, %cst_9 [2] : vector<2x1x32xf32> to vector<2x1xf32>
    %20 = vector.shape_cast %19 : vector<2x1xf32> to vector<2x1x1xf32>
    %21 = vector.broadcast %20 : vector<2x1x1xf32> to vector<2x1x32xf32>
    %22 = arith.subf %18, %21 : vector<2x1x32xf32>
    %23 = math.exp %22 : vector<2x1x32xf32>
    %cst_10 = arith.constant dense<0.000000e+00> : vector<2x1xf32>
    %24 = vector.multi_reduction <add>, %23, %cst_10 [2] : vector<2x1x32xf32> to vector<2x1xf32>
    %25 = vector.shape_cast %24 : vector<2x1xf32> to vector<2x1x1xf32>
    %26 = vector.broadcast %25 : vector<2x1x1xf32> to vector<2x1x32xf32>
    %27 = arith.divf %23, %26 : vector<2x1x32xf32>
    "tpu.trace_start"() <{level = 10 : i32, message = "nqt,ntd->nqd"}> : () -> ()
    %cst_11 = arith.constant dense<0.000000e+00> : vector<2x1x128xf32>
    %28 = tpu.matmul %27, %10, %cst_11 {dimension_numbers = #tpu.dot_dimension_numbers<[2], [1], [1], [2], [0, 0, 0, 1, 1, 2], [0], [0]>} : vector<2x1x32xf32>, vector<2x32x128xf32>, vector<2x1x128xf32> -> vector<2x1x128xf32>
    "tpu.trace_stop"() : () -> ()
    %29 = vector.shape_cast %28 : vector<2x1x128xf32> to vector<2x128xf32>
    %30 = arith.truncf %29 : vector<2x128xf32> to vector<2x128xbf16>
    %c0_12 = arith.constant 0 : index
    %c0_13 = arith.constant 0 : index
    %31 = vector.load %arg3[%c0_12, %c0_13] : memref<128x128xbf16, #tpu.memory_space<vmem>>, vector<128x128xbf16>
    %cst_14 = arith.constant dense<0.000000e+00> : vector<2x128xf32>
    %32 = tpu.matmul %30, %31, %cst_14 {dimension_numbers = #tpu.dot_dimension_numbers<[1], [0], [0], [1], [0, 0, 1, 1], [], []>} : vector<2x128xbf16>, vector<128x128xbf16>, vector<2x128xf32> -> vector<2x128xf32>
    %c0_15 = arith.constant 0 : index
    %c0_16 = arith.constant 0 : index
    %33 = vector.load %arg4[%c0_15, %c0_16] : memref<1x128xf32, #tpu.memory_space<vmem>>, vector<1x128xf32>
    %34 = vector.broadcast %33 : vector<1x128xf32> to vector<2x128xf32>
    %35 = arith.addf %32, %34 : vector<2x128xf32>
    %36 = vector.extract_strided_slice %35 {offsets = [0, 0], sizes = [1, 128], strides = [1, 1]} : vector<2x128xf32> to vector<1x128xf32>
    %37 = vector.extract_strided_slice %35 {offsets = [1, 0], sizes = [1, 128], strides = [1, 1]} : vector<2x128xf32> to vector<1x128xf32>
    %38 = arith.mulf %36, %37 : vector<1x128xf32>
    %cst_17 = arith.constant dense<0.000000e+00> : vector<1xf32>
    %39 = vector.multi_reduction <add>, %38, %cst_17 [1] : vector<1x128xf32> to vector<1xf32>
    %40 = vector.shape_cast %39 : vector<1xf32> to vector<1x1xf32>
    %41 = arith.mulf %36, %36 : vector<1x128xf32>
    %cst_18 = arith.constant dense<0.000000e+00> : vector<1xf32>
    %42 = vector.multi_reduction <add>, %41, %cst_18 [1] : vector<1x128xf32> to vector<1xf32>
    %43 = vector.shape_cast %42 : vector<1xf32> to vector<1x1xf32>
    %44 = math.sqrt %43 : vector<1x1xf32>
    %45 = arith.mulf %37, %37 : vector<1x128xf32>
    %cst_19 = arith.constant dense<0.000000e+00> : vector<1xf32>
    %46 = vector.multi_reduction <add>, %45, %cst_19 [1] : vector<1x128xf32> to vector<1xf32>
    %47 = vector.shape_cast %46 : vector<1xf32> to vector<1x1xf32>
    %48 = math.sqrt %47 : vector<1x1xf32>
    %cst_20 = arith.constant 9.99999993E-9 : f32
    %49 = vector.broadcast %cst_20 : f32 to vector<1x1xf32>
    %50 = arith.maximumf %44, %49 : vector<1x1xf32>
    %cst_21 = arith.constant 9.99999993E-9 : f32
    %51 = vector.broadcast %cst_21 : f32 to vector<1x1xf32>
    %52 = arith.maximumf %48, %51 : vector<1x1xf32>
    %53 = arith.mulf %50, %52 : vector<1x1xf32>
    %54 = arith.divf %40, %53 : vector<1x1xf32>
    %cst_22 = arith.constant 1.000000e+00 : f32
    %55 = vector.broadcast %cst_22 : f32 to vector<1x1xf32>
    %56 = arith.subf %55, %54 : vector<1x1xf32>
    %57 = vector.shape_cast %56 : vector<1x1xf32> to vector<1x1x1xf32>
    %cst_23 = arith.constant dense<0.000000e+00> : vector<1xf32>
    %58 = vector.multi_reduction <add>, %57, %cst_23 [1, 2] : vector<1x1x1xf32> to vector<1xf32>
    %59 = vector.shape_cast %58 : vector<1xf32> to vector<1x1x1xf32>
    %60 = vector.extract %59[0, 0, 0] : f32 from vector<1x1x1xf32>
    %cst_24 = arith.constant 1.000000e+00 : f32
    %61 = arith.divf %60, %cst_24 : f32
    %c0_25 = arith.constant 0 : index
    %c0_26 = arith.constant 0 : index
    %62 = memref.load %arg5[%c0_25, %c0_26] : memref<1x1xf32, #tpu.memory_space<smem>>
    memref.store %61, %arg5[%c0_25, %c0_26] : memref<1x1xf32, #tpu.memory_space<smem>>
    return
  }
}

</mosaic_0001>

<llo_original>
// kernel: _lambda_.8
$region0: #{_lambda_.8}
  #allocation0 [shape = 'u32[]', space=smem, size = 0x4, offset = 0x4, fixed_abs, tag = 'smem constant byte address 0x4 - core index']
  #allocation1 [shape = 'u32[144,128]{1,0:T(1,128)}', space=vmem, size = 0x12000, scoped, tag = 'internal scratch']
  %s0 = inlined_call_operand.vmem [shape: bf16[128,32], index: 0, kind: input, shape index: {}]
  %s1 = inlined_call_operand.vmem [shape: bf16[32,128], index: 1, kind: input, shape index: {}]
  %s2 = inlined_call_operand.vmem [shape: f32[1,128], index: 2, kind: input, shape index: {}]
  %s3 = inlined_call_operand.vmem [shape: bf16[128,128], index: 3, kind: output, shape index: {}]
  %s4 = sld [smem:[#allocation0]]
  $region22: #{_lambda_.8} parent=0
    _
  %s6 = ssub.s32 1, %s4
  %s7 = scalar_select 0, %s6, %s4
  // Predicated region
  $region2: #{_lambda_.8} parent=0 // pred_check
    _
  $region3: #{_lambda_.8} parent=0 // pred_check_branch
    %9 = sbr.rel (0) target = $region5
  $region4: #{_lambda_.8} parent=0 // pred_region
    _
  $region5: #{_lambda_.8} parent=0 // pred_fallthru
    _
  // Predicated region
  $region6: #{_lambda_.8} parent=0 // pred_check
    _
  $region7: #{_lambda_.8} parent=0 // pred_check_branch
    %11 = sbr.rel (0) target = $region9
  $region8: #{_lambda_.8} parent=0 // pred_region
    _
  $region9: #{_lambda_.8} parent=0 // pred_fallthru
    _
  // Predicated region
  $region10: #{_lambda_.8} parent=0 // pred_check
    _
  $region11: #{_lambda_.8} parent=0 // pred_check_branch
    %13 = sbr.rel (0) target = $region13
  $region12: #{_lambda_.8} parent=0 // pred_region
    _
  $region13: #{_lambda_.8} parent=0 // pred_fallthru
    _
  %v15 = vld [vmem:[%s0] sm:$0xf]
  %v16 = vld [vmem:[%s0 + $0x4] sm:$0xf]
  %v17 = vld [vmem:[%s0 + $0x8] sm:$0xf]
  %v18 = vld [vmem:[%s0 + $0xc] sm:$0xf]
  %v19 = vld [vmem:[%s0 + $0x10] sm:$0xf]
  %v20 = vld [vmem:[%s0 + $0x14] sm:$0xf]
  %v21 = vld [vmem:[%s0 + $0x18] sm:$0xf]
  %v22 = vld [vmem:[%s0 + $0x1c] sm:$0xf]
  %v23 = vld [vmem:[%s0 + $0x20] sm:$0xf]
  %v24 = vld [vmem:[%s0 + $0x24] sm:$0xf]
  %v25 = vld [vmem:[%s0 + $0x28] sm:$0xf]
  %v26 = vld [vmem:[%s0 + $0x2c] sm:$0xf]
  %v27 = vld [vmem:[%s0 + $0x30] sm:$0xf]
  %v28 = vld [vmem:[%s0 + $0x34] sm:$0xf]
  %v29 = vld [vmem:[%s0 + $0x38] sm:$0xf]
  %v30 = vld [vmem:[%s0 + $0x3c] sm:$0xf]
  %v31 = vld [vmem:[%s1] sm:$0xf]
  %v32 = vld [vmem:[%s1 + $0x4] sm:$0xf]
  %v33 = vld [vmem:[%s1 + $0x8] sm:$0xf]
  %v34 = vld [vmem:[%s1 + $0xc] sm:$0xf]
  %v35 = vld [vmem:[%s2] sm:$0x1]
  %v37 = vlaneseq
  %v38 = vshrl.u32 %v37, 7
  %v39 = vsub.s32 0, %v38
  %v40 = vrot.slane %v35, %v39
  %v58 = vunpack.c.l.b16 %v15
  %v59 = vunpack.c.l.b16 %v16
  %v60 = vunpack.c.l.b16 %v17
  %v61 = vunpack.c.l.b16 %v18
  %v62 = vunpack.c.l.b16 %v19
  %v63 = vunpack.c.l.b16 %v20
  %v64 = vunpack.c.l.b16 %v21
  %v65 = vunpack.c.l.b16 %v22
  %v66 = vunpack.c.l.b16 %v23
  %v67 = vunpack.c.l.b16 %v24
  %v68 = vunpack.c.l.b16 %v25
  %v69 = vunpack.c.l.b16 %v26
  %v70 = vunpack.c.l.b16 %v27
  %v71 = vunpack.c.l.b16 %v28
  %v72 = vunpack.c.l.b16 %v29
  %v73 = vunpack.c.l.b16 %v30
  %v74 = vpack.c.b16 %v59, %v58
  %v75 = vpack.c.b16 %v61, %v60
  %v76 = vpack.c.b16 %v63, %v62
  %v77 = vpack.c.b16 %v65, %v64
  %v78 = vpack.c.b16 %v67, %v66
  %v79 = vpack.c.b16 %v69, %v68
  %v80 = vpack.c.b16 %v71, %v70
  %v81 = vpack.c.b16 %v73, %v72
  %v86 = vunpack.c.l.b16 %v31
  %v87 = vunpack.c.l.b16 %v32
  %v88 = vunpack.c.l.b16 %v33
  %v89 = vunpack.c.l.b16 %v34
  %v90 = vpack.c.b16 %v87, %v86
  %v91 = vpack.c.b16 %v89, %v88
  %vm94 = vcmask 261120
  %v96 = vsel %vm94, %v74, 0
  %v99 = vsel %vm94, %v75, 0
  %v102 = vsel %vm94, %v76, 0
  %v105 = vsel %vm94, %v77, 0
  %v108 = vsel %vm94, %v78, 0
  %v111 = vsel %vm94, %v79, 0
  %v114 = vsel %vm94, %v80, 0
  %v117 = vsel %vm94, %v81, 0
  %119 = vmatprep.subr.bf16.mxu0 0
  %120 = vmatpush1.bf16.msra.mxu0 0
  %121 = vmatprep.subr.bf16.mxu0 0
  %122 = vmatpush1.bf16.msra.mxu0 0
  %123 = vmatprep.subr.bf16.mxu0 0
  %124 = vmatpush1.bf16.msra.mxu0 0
  %125 = vmatprep.subr.bf16.mxu0 0
  %126 = vmatpush1.bf16.msra.mxu0 0
  %127 = vmatprep.subr.bf16.mxu0 0
  %128 = vmatpush1.bf16.msra.mxu0 0
  %129 = vmatprep.subr.bf16.mxu0 0
  %130 = vmatpush1.bf16.msra.mxu0 0
  %131 = vmatprep.subr.bf16.mxu0 0
  %132 = vmatpush1.bf16.msra.mxu0 %v91
  %133 = vmatprep.subr.bf16.mxu0 0
  %134 = vmatpush1.bf16.msra.mxu0 %v90
  %135 = vmatprep.subr.bf16.mxu0 0
  %136 = vmatpush2.bf16.msra.mxu0 0
  %137 = vmatprep.subr.bf16.mxu0 0
  %138 = vmatpush2.bf16.msra.mxu0 0
  %139 = vmatprep.subr.bf16.mxu0 0
  %140 = vmatpush2.bf16.msra.mxu0 0
  %141 = vmatprep.subr.bf16.mxu0 0
  %142 = vmatpush2.bf16.msra.mxu0 0
  %143 = vmatprep.subr.bf16.mxu0 0
  %144 = vmatpush2.bf16.msra.mxu0 0
  %145 = vmatprep.subr.bf16.mxu0 0
  %146 = vmatpush2.bf16.msra.mxu0 0
  %147 = vmatprep.subr.bf16.mxu0 0
  %148 = vmatpush2.bf16.msra.mxu0 0
  %149 = vmatprep.subr.bf16.mxu0 0
  %150 = vmatpush2.bf16.msra.mxu0 0
  %151 = vmatprep.mubr.bf16.mxu0 0
  %152 = vmatmul.mubr.bf16.gmra.mxu0 %v96
  %v153 = vpop.f32.mrf.mxu0
  %v154 = vadd.f32 %v40, %v153
  %v155 = vpop.f32.mrf.mxu0
  %v156 = vpop.f32.mrf.mxu0
  %v157 = vadd.f32 %v40, %v156
  %v158 = vpop.f32.mrf.mxu0
  %159 = vmatprep.mubr.bf16.mxu0 0
  %160 = vmatmul.mubr.bf16.gmra.mxu0 %v99
  %v161 = vpop.f32.mrf.mxu0
  %v162 = vadd.f32 %v40, %v161
  %v163 = vpop.f32.mrf.mxu0
  %v164 = vpop.f32.mrf.mxu0
  %v165 = vadd.f32 %v40, %v164
  %v166 = vpop.f32.mrf.mxu0
  %167 = vmatprep.mubr.bf16.mxu0 0
  %168 = vmatmul.mubr.bf16.gmra.mxu0 %v102
  %v169 = vpop.f32.mrf.mxu0
  %v170 = vadd.f32 %v40, %v169
  %v171 = vpop.f32.mrf.mxu0
  %v172 = vpop.f32.mrf.mxu0
  %v173 = vadd.f32 %v40, %v172
  %v174 = vpop.f32.mrf.mxu0
  %175 = vmatprep.mubr.bf16.mxu0 0
  %176 = vmatmul.mubr.bf16.gmra.mxu0 %v105
  %v177 = vpop.f32.mrf.mxu0
  %v178 = vadd.f32 %v40, %v177
  %v179 = vpop.f32.mrf.mxu0
  %v180 = vpop.f32.mrf.mxu0
  %v181 = vadd.f32 %v40, %v180
  %v182 = vpop.f32.mrf.mxu0
  %183 = vmatprep.mubr.bf16.mxu0 0
  %184 = vmatmul.mubr.bf16.gmra.mxu0 %v108
  %v185 = vpop.f32.mrf.mxu0
  %v186 = vadd.f32 %v40, %v185
  %v187 = vpop.f32.mrf.mxu0
  %v188 = vpop.f32.mrf.mxu0
  %v189 = vadd.f32 %v40, %v188
  %v190 = vpop.f32.mrf.mxu0
  %191 = vmatprep.mubr.bf16.mxu0 0
  %192 = vmatmul.mubr.bf16.gmra.mxu0 %v111
  %v193 = vpop.f32.mrf.mxu0
  %v194 = vadd.f32 %v40, %v193
  %v195 = vpop.f32.mrf.mxu0
  %v196 = vpop.f32.mrf.mxu0
  %v197 = vadd.f32 %v40, %v196
  %v198 = vpop.f32.mrf.mxu0
  %199 = vmatprep.mubr.bf16.mxu0 0
  %200 = vmatmul.mubr.bf16.gmra.mxu0 %v114
  %v201 = vpop.f32.mrf.mxu0
  %v202 = vadd.f32 %v40, %v201
  %v203 = vpop.f32.mrf.mxu0
  %v204 = vpop.f32.mrf.mxu0
  %v205 = vadd.f32 %v40, %v204
  %v206 = vpop.f32.mrf.mxu0
  %207 = vmatprep.mubr.bf16.mxu0 0
  %208 = vmatmul.mubr.bf16.gmra.mxu0 %v117
  %v209 = vpop.f32.mrf.mxu0
  %v210 = vadd.f32 %v40, %v209
  %v211 = vpop.f32.mrf.mxu0
  %v212 = vpop.f32.mrf.mxu0
  %v213 = vadd.f32 %v40, %v212
  %v214 = vpop.f32.mrf.mxu0
  %215 = vdwg.mxu0
  %v216 = vmax.f32 %v154, 0.0
  %v217 = vmax.f32 %v157, 0.0
  %v218 = vmax.f32 %v162, 0.0
  %v219 = vmax.f32 %v165, 0.0
  %v220 = vmax.f32 %v170, 0.0
  %v221 = vmax.f32 %v173, 0.0
  %v222 = vmax.f32 %v178, 0.0
  %v223 = vmax.f32 %v181, 0.0
  %v224 = vmax.f32 %v186, 0.0
  %v225 = vmax.f32 %v189, 0.0
  %v226 = vmax.f32 %v194, 0.0
  %v227 = vmax.f32 %v197, 0.0
  %v228 = vmax.f32 %v202, 0.0
  %v229 = vmax.f32 %v205, 0.0
  %v230 = vmax.f32 %v210, 0.0
  %v231 = vmax.f32 %v213, 0.0
  %v232 = vpack.c.bf16 %v217, %v216
  %v233 = vpack.c.bf16 %v219, %v218
  %v234 = vpack.c.bf16 %v221, %v220
  %v235 = vpack.c.bf16 %v223, %v222
  %v236 = vpack.c.bf16 %v225, %v224
  %v237 = vpack.c.bf16 %v227, %v226
  %v238 = vpack.c.bf16 %v229, %v228
  %v239 = vpack.c.bf16 %v231, %v230
  %v248 = vunpack.c.l.b16 %v232
  %v249 = vunpack.c.h.b16 %v232
  %v250 = vunpack.c.l.b16 %v233
  %v251 = vunpack.c.h.b16 %v233
  %v252 = vunpack.c.l.b16 %v234
  %v253 = vunpack.c.h.b16 %v234
  %v254 = vunpack.c.l.b16 %v235
  %v255 = vunpack.c.h.b16 %v235
  %v256 = vunpack.c.l.b16 %v236
  %v257 = vunpack.c.h.b16 %v236
  %v258 = vunpack.c.l.b16 %v237
  %v259 = vunpack.c.h.b16 %v237
  %v260 = vunpack.c.l.b16 %v238
  %v261 = vunpack.c.h.b16 %v238
  %v262 = vunpack.c.l.b16 %v239
  %v263 = vunpack.c.h.b16 %v239
  %v264 = vpack.c.b16 %v248, %v248
  %v265 = vpack.c.b16 %v249, %v249
  %v266 = vpack.c.b16 %v250, %v250
  %v267 = vpack.c.b16 %v251, %v251
  %v268 = vpack.c.b16 %v252, %v252
  %v269 = vpack.c.b16 %v253, %v253
  %v270 = vpack.c.b16 %v254, %v254
  %v271 = vpack.c.b16 %v255, %v255
  %v272 = vpack.c.b16 %v256, %v256
  %v273 = vpack.c.b16 %v257, %v257
  %v274 = vpack.c.b16 %v258, %v258
  %v275 = vpack.c.b16 %v259, %v259
  %v276 = vpack.c.b16 %v260, %v260
  %v277 = vpack.c.b16 %v261, %v261
  %v278 = vpack.c.b16 %v262, %v262
  %v279 = vpack.c.b16 %v263, %v263
  %296 = vst [vmem:[%s3] sm:$0xf] %v264
  %297 = vst [vmem:[%s3 + $0x4] sm:$0xf] %v265
  %298 = vst [vmem:[%s3 + $0x8] sm:$0xf] %v266
  %299 = vst [vmem:[%s3 + $0xc] sm:$0xf] %v267
  %300 = vst [vmem:[%s3 + $0x10] sm:$0xf] %v268
  %301 = vst [vmem:[%s3 + $0x14] sm:$0xf] %v269
  %302 = vst [vmem:[%s3 + $0x18] sm:$0xf] %v270
  %303 = vst [vmem:[%s3 + $0x1c] sm:$0xf] %v271
  %304 = vst [vmem:[%s3 + $0x20] sm:$0xf] %v272
  %305 = vst [vmem:[%s3 + $0x24] sm:$0xf] %v273
  %306 = vst [vmem:[%s3 + $0x28] sm:$0xf] %v274
  %307 = vst [vmem:[%s3 + $0x2c] sm:$0xf] %v275
  %308 = vst [vmem:[%s3 + $0x30] sm:$0xf] %v276
  %309 = vst [vmem:[%s3 + $0x34] sm:$0xf] %v277
  %310 = vst [vmem:[%s3 + $0x38] sm:$0xf] %v278
  %311 = vst [vmem:[%s3 + $0x3c] sm:$0xf] %v279
  // Predicated region
  $region14: #{_lambda_.8} parent=0 // pred_check
    _
  $region15: #{_lambda_.8} parent=0 // pred_check_branch
    %313 = sbr.rel (0) target = $region17
  $region16: #{_lambda_.8} parent=0 // pred_region
    _
  $region17: #{_lambda_.8} parent=0 // pred_fallthru
    _
  // Predicated region
  $region18: #{_lambda_.8} parent=0 // pred_check
    _
  $region19: #{_lambda_.8} parent=0 // pred_check_branch
    %315 = sbr.rel (0) target = $region21
  $region20: #{_lambda_.8} parent=0 // pred_region
    _
  $region21: #{_lambda_.8} parent=0 // pred_fallthru
    _

// kernel: _lambda_.11
$region0: #{_lambda_.11}
  #allocation0 [shape = 'u32[]', space=smem, size = 0x4, offset = 0x4, fixed_abs, tag = 'smem constant byte address 0x4 - core index']
  #allocation1 [shape = 'u32[144,128]{1,0:T(1,128)}', space=vmem, size = 0x12000, scoped, tag = 'internal scratch']
  %s0 = inlined_call_operand.vmem [shape: bf16[32,1152], index: 0, kind: input, shape index: {}]
  %s1 = inlined_call_operand.vmem [shape: bf16[1152,128], index: 1, kind: input, shape index: {}]
  %s2 = inlined_call_operand.vmem [shape: f32[1,128], index: 2, kind: input, shape index: {}]
  %s3 = inlined_call_operand.vmem [shape: bf16[32,128], index: 3, kind: output, shape index: {}]
  %s4 = sld [smem:[#allocation0]]
  $region22: #{_lambda_.11} parent=0
    _
  %s6 = ssub.s32 1, %s4
  %s7 = scalar_select 0, %s6, %s4
  // Predicated region
  $region2: #{_lambda_.11} parent=0 // pred_check
    _
  $region3: #{_lambda_.11} parent=0 // pred_check_branch
    %9 = sbr.rel (0) target = $region5
  $region4: #{_lambda_.11} parent=0 // pred_region
    _
  $region5: #{_lambda_.11} parent=0 // pred_fallthru
    _
  // Predicated region
  $region6: #{_lambda_.11} parent=0 // pred_check
    _
  $region7: #{_lambda_.11} parent=0 // pred_check_branch
    %11 = sbr.rel (0) target = $region9
  $region8: #{_lambda_.11} parent=0 // pred_region
    _
  $region9: #{_lambda_.11} parent=0 // pred_fallthru
    _
  // Predicated region
  $region10: #{_lambda_.11} parent=0 // pred_check
    _
  $region11: #{_lambda_.11} parent=0 // pred_check_branch
    %13 = sbr.rel (0) target = $region13
  $region12: #{_lambda_.11} parent=0 // pred_region
    _
  $region13: #{_lambda_.11} parent=0 // pred_fallthru
    _
  %v15 = vld [vmem:[%s0] sm:$0xff]
  %v16 = vld [vmem:[%s0 + $0x8] sm:$0xff]
  %v17 = vld [vmem:[%s0 + $0x10] sm:$0xff]
  %v18 = vld [vmem:[%s0 + $0x18] sm:$0xff]
  %v19 = vld [vmem:[%s0 + $0x20] sm:$0xf]
  %v20 = vld [vmem:[%s0 + $0x24] sm:$0xff]
  %v21 = vld [vmem:[%s0 + $0x2c] sm:$0xff]
  %v22 = vld [vmem:[%s0 + $0x34] sm:$0xff]
  %v23 = vld [vmem:[%s0 + $0x3c] sm:$0xff]
  %v24 = vld [vmem:[%s0 + $0x44] sm:$0xf]
  %v25 = vld [vmem:[%s0 + $0x48] sm:$0xff]
  %v26 = vld [vmem:[%s0 + $0x50] sm:$0xff]
  %v27 = vld [vmem:[%s0 + $0x58] sm:$0xff]
  %v28 = vld [vmem:[%s0 + $0x60] sm:$0xff]
  %v29 = vld [vmem:[%s0 + $0x68] sm:$0xf]
  %v30 = vld [vmem:[%s0 + $0x6c] sm:$0xff]
  %v31 = vld [vmem:[%s0 + $0x74] sm:$0xff]
  %v32 = vld [vmem:[%s0 + $0x7c] sm:$0xff]
  %v33 = vld [vmem:[%s0 + $0x84] sm:$0xff]
  %v34 = vld [vmem:[%s0 + $0x8c] sm:$0xf]
  %v35 = vld [vmem:[%s1] sm:$0xf]
  %v36 = vld [vmem:[%s1 + $0x4] sm:$0xf]
  %v37 = vld [vmem:[%s1 + $0x8] sm:$0xf]
  %v38 = vld [vmem:[%s1 + $0xc] sm:$0xf]
  %v39 = vld [vmem:[%s1 + $0x10] sm:$0xf]
  %v40 = vld [vmem:[%s1 + $0x14] sm:$0xf]
  %v41 = vld [vmem:[%s1 + $0x18] sm:$0xf]
  %v42 = vld [vmem:[%s1 + $0x1c] sm:$0xf]
  %v43 = vld [vmem:[%s1 + $0x20] sm:$0xf]
  %v44 = vld [vmem:[%s1 + $0x24] sm:$0xf]
  %v45 = vld [vmem:[%s1 + $0x28] sm:$0xf]
  %v46 = vld [vmem:[%s1 + $0x2c] sm:$0xf]
  %v47 = vld [vmem:[%s1 + $0x30] sm:$0xf]
  %v48 = vld [vmem:[%s1 + $0x34] sm:$0xf]
  %v49 = vld [vmem:[%s1 + $0x38] sm:$0xf]
  %v50 = vld [vmem:[%s1 + $0x3c] sm:$0xf]
  %v51 = vld [vmem:[%s1 + $0x40] sm:$0xf]
  %v52 = vld [vmem:[%s1 + $0x44] sm:$0xf]
  %v53 = vld [vmem:[%s1 + $0x48] sm:$0xf]
  %v54 = vld [vmem:[%s1 + $0x4c] sm:$0xf]
  %v55 = vld [vmem:[%s1 + $0x50] sm:$0xf]
  %v56 = vld [vmem:[%s1 + $0x54] sm:$0xf]
  %v57 = vld [vmem:[%s1 + $0x58] sm:$0xf]
  %v58 = vld [vmem:[%s1 + $0x5c] sm:$0xf]
  %v59 = vld [vmem:[%s1 + $0x60] sm:$0xf]
  %v60 = vld [vmem:[%s1 + $0x64] sm:$0xf]
  %v61 = vld [vmem:[%s1 + $0x68] sm:$0xf]
  %v62 = vld [vmem:[%s1 + $0x6c] sm:$0xf]
  %v63 = vld [vmem:[%s1 + $0x70] sm:$0xf]
  %v64 = vld [vmem:[%s1 + $0x74] sm:$0xf]
  %v65 = vld [vmem:[%s1 + $0x78] sm:$0xf]
  %v66 = vld [vmem:[%s1 + $0x7c] sm:$0xf]
  %v67 = vld [vmem:[%s1 + $0x80] sm:$0xf]
  %v68 = vld [vmem:[%s1 + $0x84] sm:$0xf]
  %v69 = vld [vmem:[%s1 + $0x88] sm:$0xf]
  %v70 = vld [vmem:[%s1 + $0x8c] sm:$0xf]
  %v71 = vld [vmem:[%s1 + $0x90] sm:$0xf]
  %v72 = vld [vmem:[%s1 + $0x94] sm:$0xf]
  %v73 = vld [vmem:[%s1 + $0x98] sm:$0xf]
  %v74 = vld [vmem:[%s1 + $0x9c] sm:$0xf]
  %v75 = vld [vmem:[%s1 + $0xa0] sm:$0xf]
  %v76 = vld [vmem:[%s1 + $0xa4] sm:$0xf]
  %v77 = vld [vmem:[%s1 + $0xa8] sm:$0xf]
  %v78 = vld [vmem:[%s1 + $0xac] sm:$0xf]
  %v79 = vld [vmem:[%s1 + $0xb0] sm:$0xf]
  %v80 = vld [vmem:[%s1 + $0xb4] sm:$0xf]
  %v81 = vld [vmem:[%s1 + $0xb8] sm:$0xf]
  %v82 = vld [vmem:[%s1 + $0xbc] sm:$0xf]
  %v83 = vld [vmem:[%s1 + $0xc0] sm:$0xf]
  %v84 = vld [vmem:[%s1 + $0xc4] sm:$0xf]
  %v85 = vld [vmem:[%s1 + $0xc8] sm:$0xf]
  %v86 = vld [vmem:[%s1 + $0xcc] sm:$0xf]
  %v87 = vld [vmem:[%s1 + $0xd0] sm:$0xf]
  %v88 = vld [vmem:[%s1 + $0xd4] sm:$0xf]
  %v89 = vld [vmem:[%s1 + $0xd8] sm:$0xf]
  %v90 = vld [vmem:[%s1 + $0xdc] sm:$0xf]
  %v91 = vld [vmem:[%s1 + $0xe0] sm:$0xf]
  %v92 = vld [vmem:[%s1 + $0xe4] sm:$0xf]
  %v93 = vld [vmem:[%s1 + $0xe8] sm:$0xf]
  %v94 = vld [vmem:[%s1 + $0xec] sm:$0xf]
  %v95 = vld [vmem:[%s1 + $0xf0] sm:$0xf]
  %v96 = vld [vmem:[%s1 + $0xf4] sm:$0xf]
  %v97 = vld [vmem:[%s1 + $0xf8] sm:$0xf]
  %v98 = vld [vmem:[%s1 + $0xfc] sm:$0xf]
  %v99 = vld [vmem:[%s1 + $0x100] sm:$0xf]
  %v100 = vld [vmem:[%s1 + $0x104] sm:$0xf]
  %v101 = vld [vmem:[%s1 + $0x108] sm:$0xf]
  %v102 = vld [vmem:[%s1 + $0x10c] sm:$0xf]
  %v103 = vld [vmem:[%s1 + $0x110] sm:$0xf]
  %v104 = vld [vmem:[%s1 + $0x114] sm:$0xf]
  %v105 = vld [vmem:[%s1 + $0x118] sm:$0xf]
  %v106 = vld [vmem:[%s1 + $0x11c] sm:$0xf]
  %v107 = vld [vmem:[%s1 + $0x120] sm:$0xf]
  %v108 = vld [vmem:[%s1 + $0x124] sm:$0xf]
  %v109 = vld [vmem:[%s1 + $0x128] sm:$0xf]
  %v110 = vld [vmem:[%s1 + $0x12c] sm:$0xf]
  %v111 = vld [vmem:[%s1 + $0x130] sm:$0xf]
  %v112 = vld [vmem:[%s1 + $0x134] sm:$0xf]
  %v113 = vld [vmem:[%s1 + $0x138] sm:$0xf]
  %v114 = vld [vmem:[%s1 + $0x13c] sm:$0xf]
  %v115 = vld [vmem:[%s1 + $0x140] sm:$0xf]
  %v116 = vld [vmem:[%s1 + $0x144] sm:$0xf]
  %v117 = vld [vmem:[%s1 + $0x148] sm:$0xf]
  %v118 = vld [vmem:[%s1 + $0x14c] sm:$0xf]
  %v119 = vld [vmem:[%s1 + $0x150] sm:$0xf]
  %v120 = vld [vmem:[%s1 + $0x154] sm:$0xf]
  %v121 = vld [vmem:[%s1 + $0x158] sm:$0xf]
  %v122 = vld [vmem:[%s1 + $0x15c] sm:$0xf]
  %v123 = vld [vmem:[%s1 + $0x160] sm:$0xf]
  %v124 = vld [vmem:[%s1 + $0x164] sm:$0xf]
  %v125 = vld [vmem:[%s1 + $0x168] sm:$0xf]
  %v126 = vld [vmem:[%s1 + $0x16c] sm:$0xf]
  %v127 = vld [vmem:[%s1 + $0x170] sm:$0xf]
  %v128 = vld [vmem:[%s1 + $0x174] sm:$0xf]
  %v129 = vld [vmem:[%s1 + $0x178] sm:$0xf]
  %v130 = vld [vmem:[%s1 + $0x17c] sm:$0xf]
  %v131 = vld [vmem:[%s1 + $0x180] sm:$0xf]
  %v132 = vld [vmem:[%s1 + $0x184] sm:$0xf]
  %v133 = vld [vmem:[%s1 + $0x188] sm:$0xf]
  %v134 = vld [vmem:[%s1 + $0x18c] sm:$0xf]
  %v135 = vld [vmem:[%s1 + $0x190] sm:$0xf]
  %v136 = vld [vmem:[%s1 + $0x194] sm:$0xf]
  %v137 = vld [vmem:[%s1 + $0x198] sm:$0xf]
  %v138 = vld [vmem:[%s1 + $0x19c] sm:$0xf]
  %v139 = vld [vmem:[%s1 + $0x1a0] sm:$0xf]
  %v140 = vld [vmem:[%s1 + $0x1a4] sm:$0xf]
  %v141 = vld [vmem:[%s1 + $0x1a8] sm:$0xf]
  %v142 = vld [vmem:[%s1 + $0x1ac] sm:$0xf]
  %v143 = vld [vmem:[%s1 + $0x1b0] sm:$0xf]
  %v144 = vld [vmem:[%s1 + $0x1b4] sm:$0xf]
  %v145 = vld [vmem:[%s1 + $0x1b8] sm:$0xf]
  %v146 = vld [vmem:[%s1 + $0x1bc] sm:$0xf]
  %v147 = vld [vmem:[%s1 + $0x1c0] sm:$0xf]
  %v148 = vld [vmem:[%s1 + $0x1c4] sm:$0xf]
  %v149 = vld [vmem:[%s1 + $0x1c8] sm:$0xf]
  %v150 = vld [vmem:[%s1 + $0x1cc] sm:$0xf]
  %v151 = vld [vmem:[%s1 + $0x1d0] sm:$0xf]
  %v152 = vld [vmem:[%s1 + $0x1d4] sm:$0xf]
  %v153 = vld [vmem:[%s1 + $0x1d8] sm:$0xf]
  %v154 = vld [vmem:[%s1 + $0x1dc] sm:$0xf]
  %v155 = vld [vmem:[%s1 + $0x1e0] sm:$0xf]
  %v156 = vld [vmem:[%s1 + $0x1e4] sm:$0xf]
  %v157 = vld [vmem:[%s1 + $0x1e8] sm:$0xf]
  %v158 = vld [vmem:[%s1 + $0x1ec] sm:$0xf]
  %v159 = vld [vmem:[%s1 + $0x1f0] sm:$0xf]
  %v160 = vld [vmem:[%s1 + $0x1f4] sm:$0xf]
  %v161 = vld [vmem:[%s1 + $0x1f8] sm:$0xf]
  %v162 = vld [vmem:[%s1 + $0x1fc] sm:$0xf]
  %v163 = vld [vmem:[%s1 + $0x200] sm:$0xf]
  %v164 = vld [vmem:[%s1 + $0x204] sm:$0xf]
  %v165 = vld [vmem:[%s1 + $0x208] sm:$0xf]
  %v166 = vld [vmem:[%s1 + $0x20c] sm:$0xf]
  %v167 = vld [vmem:[%s1 + $0x210] sm:$0xf]
  %v168 = vld [vmem:[%s1 + $0x214] sm:$0xf]
  %v169 = vld [vmem:[%s1 + $0x218] sm:$0xf]
  %v170 = vld [vmem:[%s1 + $0x21c] sm:$0xf]
  %v171 = vld [vmem:[%s1 + $0x220] sm:$0xf]
  %v172 = vld [vmem:[%s1 + $0x224] sm:$0xf]
  %v173 = vld [vmem:[%s1 + $0x228] sm:$0xf]
  %v174 = vld [vmem:[%s1 + $0x22c] sm:$0xf]
  %v175 = vld [vmem:[%s1 + $0x230] sm:$0xf]
  %v176 = vld [vmem:[%s1 + $0x234] sm:$0xf]
  %v177 = vld [vmem:[%s1 + $0x238] sm:$0xf]
  %v178 = vld [vmem:[%s1 + $0x23c] sm:$0xf]
  %v179 = vld [vmem:[%s2] sm:$0x1]
  %v181 = vlaneseq
  %v182 = vshrl.u32 %v181, 7
  %v183 = vsub.s32 0, %v182
  %v184 = vrot.slane %v179, %v183
  %v206 = vunpack.c.l.b16 %v15
  %v207 = vunpack.c.h.b16 %v15
  %v208 = vunpack.c.l.b16 %v16
  %v209 = vunpack.c.h.b16 %v16
  %v210 = vunpack.c.l.b16 %v17
  %v211 = vunpack.c.h.b16 %v17
  %v212 = vunpack.c.l.b16 %v18
  %v213 = vunpack.c.h.b16 %v18
  %v214 = vunpack.c.l.b16 %v19
  %v215 = vunpack.c.l.b16 %v20
  %v216 = vunpack.c.h.b16 %v20
  %v217 = vunpack.c.l.b16 %v21
  %v218 = vunpack.c.h.b16 %v21
  %v219 = vunpack.c.l.b16 %v22
  %v220 = vunpack.c.h.b16 %v22
  %v221 = vunpack.c.l.b16 %v23
  %v222 = vunpack.c.h.b16 %v23
  %v223 = vunpack.c.l.b16 %v24
  %v224 = vunpack.c.l.b16 %v25
  %v225 = vunpack.c.h.b16 %v25
  %v226 = vunpack.c.l.b16 %v26
  %v227 = vunpack.c.h.b16 %v26
  %v228 = vunpack.c.l.b16 %v27
  %v229 = vunpack.c.h.b16 %v27
  %v230 = vunpack.c.l.b16 %v28
  %v231 = vunpack.c.h.b16 %v28
  %v232 = vunpack.c.l.b16 %v29
  %v233 = vunpack.c.l.b16 %v30
  %v234 = vunpack.c.h.b16 %v30
  %v235 = vunpack.c.l.b16 %v31
  %v236 = vunpack.c.h.b16 %v31
  %v237 = vunpack.c.l.b16 %v32
  %v238 = vunpack.c.h.b16 %v32
  %v239 = vunpack.c.l.b16 %v33
  %v240 = vunpack.c.h.b16 %v33
  %v241 = vunpack.c.l.b16 %v34
  %v242 = vpack.c.b16 %v215, %v206
  %v243 = vpack.c.b16 %v216, %v207
  %v244 = vpack.c.b16 %v217, %v208
  %v245 = vpack.c.b16 %v218, %v209
  %v246 = vpack.c.b16 %v219, %v210
  %v247 = vpack.c.b16 %v220, %v211
  %v248 = vpack.c.b16 %v221, %v212
  %v249 = vpack.c.b16 %v222, %v213
  %v250 = vpack.c.b16 %v223, %v214
  %v251 = vpack.c.b16 %v233, %v224
  %v252 = vpack.c.b16 %v234, %v225
  %v253 = vpack.c.b16 %v235, %v226
  %v254 = vpack.c.b16 %v236, %v227
  %v255 = vpack.c.b16 %v237, %v228
  %v256 = vpack.c.b16 %v238, %v229
  %v257 = vpack.c.b16 %v239, %v230
  %v258 = vpack.c.b16 %v240, %v231
  %v259 = vpack.c.b16 %v241, %v232
  %v422 = vunpack.c.l.b16 %v35
  %v423 = vunpack.c.l.b16 %v36
  %v424 = vunpack.c.l.b16 %v37
  %v425 = vunpack.c.l.b16 %v38
  %v426 = vunpack.c.l.b16 %v39
  %v427 = vunpack.c.l.b16 %v40
  %v428 = vunpack.c.l.b16 %v41
  %v429 = vunpack.c.l.b16 %v42
  %v430 = vunpack.c.l.b16 %v43
  %v431 = vunpack.c.l.b16 %v44
  %v432 = vunpack.c.l.b16 %v45
  %v433 = vunpack.c.l.b16 %v46
  %v434 = vunpack.c.l.b16 %v47
  %v435 = vunpack.c.l.b16 %v48
  %v436 = vunpack.c.l.b16 %v49
  %v437 = vunpack.c.l.b16 %v50
  %v438 = vunpack.c.l.b16 %v51
  %v439 = vunpack.c.l.b16 %v52
  %v440 = vunpack.c.l.b16 %v53
  %v441 = vunpack.c.l.b16 %v54
  %v442 = vunpack.c.l.b16 %v55
  %v443 = vunpack.c.l.b16 %v56
  %v444 = vunpack.c.l.b16 %v57
  %v445 = vunpack.c.l.b16 %v58
  %v446 = vunpack.c.l.b16 %v59
  %v447 = vunpack.c.l.b16 %v60
  %v448 = vunpack.c.l.b16 %v61
  %v449 = vunpack.c.l.b16 %v62
  %v450 = vunpack.c.l.b16 %v63
  %v451 = vunpack.c.l.b16 %v64
  %v452 = vunpack.c.l.b16 %v65
  %v453 = vunpack.c.l.b16 %v66
  %v454 = vunpack.c.l.b16 %v67
  %v455 = vunpack.c.l.b16 %v68
  %v456 = vunpack.c.l.b16 %v69
  %v457 = vunpack.c.l.b16 %v70
  %v458 = vunpack.c.l.b16 %v71
  %v459 = vunpack.c.l.b16 %v72
  %v460 = vunpack.c.l.b16 %v73
  %v461 = vunpack.c.l.b16 %v74
  %v462 = vunpack.c.l.b16 %v75
  %v463 = vunpack.c.l.b16 %v76
  %v464 = vunpack.c.l.b16 %v77
  %v465 = vunpack.c.l.b16 %v78
  %v466 = vunpack.c.l.b16 %v79
  %v467 = vunpack.c.l.b16 %v80
  %v468 = vunpack.c.l.b16 %v81
  %v469 = vunpack.c.l.b16 %v82
  %v470 = vunpack.c.l.b16 %v83
  %v471 = vunpack.c.l.b16 %v84
  %v472 = vunpack.c.l.b16 %v85
  %v473 = vunpack.c.l.b16 %v86
  %v474 = vunpack.c.l.b16 %v87
  %v475 = vunpack.c.l.b16 %v88
  %v476 = vunpack.c.l.b16 %v89
  %v477 = vunpack.c.l.b16 %v90
  %v478 = vunpack.c.l.b16 %v91
  %v479 = vunpack.c.l.b16 %v92
  %v480 = vunpack.c.l.b16 %v93
  %v481 = vunpack.c.l.b16 %v94
  %v482 = vunpack.c.l.b16 %v95
  %v483 = vunpack.c.l.b16 %v96
  %v484 = vunpack.c.l.b16 %v97
  %v485 = vunpack.c.l.b16 %v98
  %v486 = vunpack.c.l.b16 %v99
  %v487 = vunpack.c.l.b16 %v100
  %v488 = vunpack.c.l.b16 %v101
  %v489 = vunpack.c.l.b16 %v102
  %v490 = vunpack.c.l.b16 %v103
  %v491 = vunpack.c.l.b16 %v104
  %v492 = vunpack.c.l.b16 %v105
  %v493 = vunpack.c.l.b16 %v106
  %v494 = vunpack.c.l.b16 %v107
  %v495 = vunpack.c.l.b16 %v108
  %v496 = vunpack.c.l.b16 %v109
  %v497 = vunpack.c.l.b16 %v110
  %v498 = vunpack.c.l.b16 %v111
  %v499 = vunpack.c.l.b16 %v112
  %v500 = vunpack.c.l.b16 %v113
  %v501 = vunpack.c.l.b16 %v114
  %v502 = vunpack.c.l.b16 %v115
  %v503 = vunpack.c.l.b16 %v116
  %v504 = vunpack.c.l.b16 %v117
  %v505 = vunpack.c.l.b16 %v118
  %v506 = vunpack.c.l.b16 %v119
  %v507 = vunpack.c.l.b16 %v120
  %v508 = vunpack.c.l.b16 %v121
  %v509 = vunpack.c.l.b16 %v122
  %v510 = vunpack.c.l.b16 %v123
  %v511 = vunpack.c.l.b16 %v124
  %v512 = vunpack.c.l.b16 %v125
  %v513 = vunpack.c.l.b16 %v126
  %v514 = vunpack.c.l.b16 %v127
  %v515 = vunpack.c.l.b16 %v128
  %v516 = vunpack.c.l.b16 %v129
  %v517 = vunpack.c.l.b16 %v130
  %v518 = vunpack.c.l.b16 %v131
  %v519 = vunpack.c.l.b16 %v132
  %v520 = vunpack.c.l.b16 %v133
  %v521 = vunpack.c.l.b16 %v134
  %v522 = vunpack.c.l.b16 %v135
  %v523 = vunpack.c.l.b16 %v136
  %v524 = vunpack.c.l.b16 %v137
  %v525 = vunpack.c.l.b16 %v138
  %v526 = vunpack.c.l.b16 %v139
  %v527 = vunpack.c.l.b16 %v140
  %v528 = vunpack.c.l.b16 %v141
  %v529 = vunpack.c.l.b16 %v142
  %v530 = vunpack.c.l.b16 %v143
  %v531 = vunpack.c.l.b16 %v144
  %v532 = vunpack.c.l.b16 %v145
  %v533 = vunpack.c.l.b16 %v146
  %v534 = vunpack.c.l.b16 %v147
  %v535 = vunpack.c.l.b16 %v148
  %v536 = vunpack.c.l.b16 %v149
  %v537 = vunpack.c.l.b16 %v150
  %v538 = vunpack.c.l.b16 %v151
  %v539 = vunpack.c.l.b16 %v152
  %v540 = vunpack.c.l.b16 %v153
  %v541 = vunpack.c.l.b16 %v154
  %v542 = vunpack.c.l.b16 %v155
  %v543 = vunpack.c.l.b16 %v156
  %v544 = vunpack.c.l.b16 %v157
  %v545 = vunpack.c.l.b16 %v158
  %v546 = vunpack.c.l.b16 %v159
  %v547 = vunpack.c.l.b16 %v160
  %v548 = vunpack.c.l.b16 %v161
  %v549 = vunpack.c.l.b16 %v162
  %v550 = vunpack.c.l.b16 %v163
  %v551 = vunpack.c.l.b16 %v164
  %v552 = vunpack.c.l.b16 %v165
  %v553 = vunpack.c.l.b16 %v166
  %v554 = vunpack.c.l.b16 %v167
  %v555 = vunpack.c.l.b16 %v168
  %v556 = vunpack.c.l.b16 %v169
  %v557 = vunpack.c.l.b16 %v170
  %v558 = vunpack.c.l.b16 %v171
  %v559 = vunpack.c.l.b16 %v172
  %v560 = vunpack.c.l.b16 %v173
  %v561 = vunpack.c.l.b16 %v174
  %v562 = vunpack.c.l.b16 %v175
  %v563 = vunpack.c.l.b16 %v176
  %v564 = vunpack.c.l.b16 %v177
  %v565 = vunpack.c.l.b16 %v178
  %v566 = vpack.c.b16 %v423, %v422
  %v567 = vpack.c.b16 %v425, %v424
  %v568 = vpack.c.b16 %v427, %v426
  %v569 = vpack.c.b16 %v429, %v428
  %v570 = vpack.c.b16 %v431, %v430
  %v571 = vpack.c.b16 %v433, %v432
  %v572 = vpack.c.b16 %v435, %v434
  %v573 = vpack.c.b16 %v437, %v436
  %v574 = vpack.c.b16 %v439, %v438
  %v575 = vpack.c.b16 %v441, %v440
  %v576 = vpack.c.b16 %v443, %v442
  %v577 = vpack.c.b16 %v445, %v444
  %v578 = vpack.c.b16 %v447, %v446
  %v579 = vpack.c.b16 %v449, %v448
  %v580 = vpack.c.b16 %v451, %v450
  %v581 = vpack.c.b16 %v453, %v452
  %v582 = vpack.c.b16 %v455, %v454
  %v583 = vpack.c.b16 %v457, %v456
  %v584 = vpack.c.b16 %v459, %v458
  %v585 = vpack.c.b16 %v461, %v460
  %v586 = vpack.c.b16 %v463, %v462
  %v587 = vpack.c.b16 %v465, %v464
  %v588 = vpack.c.b16 %v467, %v466
  %v589 = vpack.c.b16 %v469, %v468
  %v590 = vpack.c.b16 %v471, %v470
  %v591 = vpack.c.b16 %v473, %v472
  %v592 = vpack.c.b16 %v475, %v474
  %v593 = vpack.c.b16 %v477, %v476
  %v594 = vpack.c.b16 %v479, %v478
  %v595 = vpack.c.b16 %v481, %v480
  %v596 = vpack.c.b16 %v483, %v482
  %v597 = vpack.c.b16 %v485, %v484
  %v598 = vpack.c.b16 %v487, %v486
  %v599 = vpack.c.b16 %v489, %v488
  %v600 = vpack.c.b16 %v491, %v490
  %v601 = vpack.c.b16 %v493, %v492
  %v602 = vpack.c.b16 %v495, %v494
  %v603 = vpack.c.b16 %v497, %v496
  %v604 = vpack.c.b16 %v499, %v498
  %v605 = vpack.c.b16 %v501, %v500
  %v606 = vpack.c.b16 %v503, %v502
  %v607 = vpack.c.b16 %v505, %v504
  %v608 = vpack.c.b16 %v507, %v506
  %v609 = vpack.c.b16 %v509, %v508
  %v610 = vpack.c.b16 %v511, %v510
  %v611 = vpack.c.b16 %v513, %v512
  %v612 = vpack.c.b16 %v515, %v514
  %v613 = vpack.c.b16 %v517, %v516
  %v614 = vpack.c.b16 %v519, %v518
  %v615 = vpack.c.b16 %v521, %v520
  %v616 = vpack.c.b16 %v523, %v522
  %v617 = vpack.c.b16 %v525, %v524
  %v618 = vpack.c.b16 %v527, %v526
  %v619 = vpack.c.b16 %v529, %v528
  %v620 = vpack.c.b16 %v531, %v530
  %v621 = vpack.c.b16 %v533, %v532
  %v622 = vpack.c.b16 %v535, %v534
  %v623 = vpack.c.b16 %v537, %v536
  %v624 = vpack.c.b16 %v539, %v538
  %v625 = vpack.c.b16 %v541, %v540
  %v626 = vpack.c.b16 %v543, %v542
  %v627 = vpack.c.b16 %v545, %v544
  %v628 = vpack.c.b16 %v547, %v546
  %v629 = vpack.c.b16 %v549, %v548
  %v630 = vpack.c.b16 %v551, %v550
  %v631 = vpack.c.b16 %v553, %v552
  %v632 = vpack.c.b16 %v555, %v554
  %v633 = vpack.c.b16 %v557, %v556
  %v634 = vpack.c.b16 %v559, %v558
  %v635 = vpack.c.b16 %v561, %v560
  %v636 = vpack.c.b16 %v563, %v562
  %v637 = vpack.c.b16 %v565, %v564
  %710 = vmatprep.subr.bf16.mxu0 0
  %711 = vmatpush1.bf16.msra.mxu0 %v573
  %712 = vmatprep.subr.bf16.mxu0 0
  %713 = vmatpush1.bf16.msra.mxu0 %v572
  %714 = vmatprep.subr.bf16.mxu0 0
  %715 = vmatpush1.bf16.msra.mxu0 %v571
  %716 = vmatprep.subr.bf16.mxu0 0
  %717 = vmatpush1.bf16.msra.mxu0 %v570
  %718 = vmatprep.subr.bf16.mxu0 0
  %719 = vmatpush1.bf16.msra.mxu0 %v569
  %720 = vmatprep.subr.bf16.mxu0 0
  %721 = vmatpush1.bf16.msra.mxu0 %v568
  %722 = vmatprep.subr.bf16.mxu0 0
  %723 = vmatpush1.bf16.msra.mxu0 %v567
  %724 = vmatprep.subr.bf16.mxu0 0
  %725 = vmatpush1.bf16.msra.mxu0 %v566
  %726 = vmatprep.subr.bf16.mxu0 0
  %727 = vmatpush2.bf16.msra.mxu0 %v581
  %728 = vmatprep.subr.bf16.mxu0 0
  %729 = vmatpush2.bf16.msra.mxu0 %v580
  %730 = vmatprep.subr.bf16.mxu0 0
  %731 = vmatpush2.bf16.msra.mxu0 %v579
  %732 = vmatprep.subr.bf16.mxu0 0
  %733 = vmatpush2.bf16.msra.mxu0 %v578
  %734 = vmatprep.subr.bf16.mxu0 0
  %735 = vmatpush2.bf16.msra.mxu0 %v577
  %736 = vmatprep.subr.bf16.mxu0 0
  %737 = vmatpush2.bf16.msra.mxu0 %v576
  %738 = vmatprep.subr.bf16.mxu0 0
  %739 = vmatpush2.bf16.msra.mxu0 %v575
  %740 = vmatprep.subr.bf16.mxu0 0
  %741 = vmatpush2.bf16.msra.mxu0 %v574
  %742 = vmatprep.mubr.bf16.mxu0 %v243
  %743 = vmatmul.mubr.bf16.gmra.mxu0 %v242
  %v744 = vpop.f32.mrf.mxu0
  %v745 = vadd.f32 %v184, %v744
  %v746 = vpop.f32.mrf.mxu0
  %v747 = vpop.f32.mrf.mxu0
  %v748 = vadd.f32 %v184, %v747
  %v749 = vpop.f32.mrf.mxu0
  %750 = vmatprep.mubr.bf16.mxu0 %v252
  %751 = vmatmul.mubr.bf16.gmra.mxu0 %v251
  %v752 = vpop.f32.mrf.mxu0
  %v753 = vadd.f32 %v184, %v752
  %v754 = vpop.f32.mrf.mxu0
  %v755 = vpop.f32.mrf.mxu0
  %v756 = vadd.f32 %v184, %v755
  %v757 = vpop.f32.mrf.mxu0
  %758 = vdwg.mxu0
  %759 = vmatprep.subr.bf16.mxu0 0
  %760 = vmatpush1.bf16.msra.mxu0 %v589
  %761 = vmatprep.subr.bf16.mxu0 0
  %762 = vmatpush1.bf16.msra.mxu0 %v588
  %763 = vmatprep.subr.bf16.mxu0 0
  %764 = vmatpush1.bf16.msra.mxu0 %v587
  %765 = vmatprep.subr.bf16.mxu0 0
  %766 = vmatpush1.bf16.msra.mxu0 %v586
  %767 = vmatprep.subr.bf16.mxu0 0
  %768 = vmatpush1.bf16.msra.mxu0 %v585
  %769 = vmatprep.subr.bf16.mxu0 0
  %770 = vmatpush1.bf16.msra.mxu0 %v584
  %771 = vmatprep.subr.bf16.mxu0 0
  %772 = vmatpush1.bf16.msra.mxu0 %v583
  %773 = vmatprep.subr.bf16.mxu0 0
  %774 = vmatpush1.bf16.msra.mxu0 %v582
  %775 = vmatprep.subr.bf16.mxu0 0
  %776 = vmatpush2.bf16.msra.mxu0 %v597
  %777 = vmatprep.subr.bf16.mxu0 0
  %778 = vmatpush2.bf16.msra.mxu0 %v596
  %779 = vmatprep.subr.bf16.mxu0 0
  %780 = vmatpush2.bf16.msra.mxu0 %v595
  %781 = vmatprep.subr.bf16.mxu0 0
  %782 = vmatpush2.bf16.msra.mxu0 %v594
  %783 = vmatprep.subr.bf16.mxu0 0
  %784 = vmatpush2.bf16.msra.mxu0 %v593
  %785 = vmatprep.subr.bf16.mxu0 0
  %786 = vmatpush2.bf16.msra.mxu0 %v592
  %787 = vmatprep.subr.bf16.mxu0 0
  %788 = vmatpush2.bf16.msra.mxu0 %v591
  %789 = vmatprep.subr.bf16.mxu0 0
  %790 = vmatpush2.bf16.msra.mxu0 %v590
  %791 = vmatprep.mubr.bf16.mxu0 %v245
  %792 = vmatmul.mubr.bf16.gmra.mxu0 %v244
  %v793 = vpop.f32.mrf.mxu0
  %v794 = vadd.f32 %v745, %v793
  %v795 = vpop.f32.mrf.mxu0
  %v796 = vpop.f32.mrf.mxu0
  %v797 = vadd.f32 %v748, %v796
  %v798 = vpop.f32.mrf.mxu0
  %799 = vmatprep.mubr.bf16.mxu0 %v254
  %800 = vmatmul.mubr.bf16.gmra.mxu0 %v253
  %v801 = vpop.f32.mrf.mxu0
  %v802 = vadd.f32 %v753, %v801
  %v803 = vpop.f32.mrf.mxu0
  %v804 = vpop.f32.mrf.mxu0
  %v805 = vadd.f32 %v756, %v804
  %v806 = vpop.f32.mrf.mxu0
  %807 = vdwg.mxu0
  %808 = vmatprep.subr.bf16.mxu0 0
  %809 = vmatpush1.bf16.msra.mxu0 %v605
  %810 = vmatprep.subr.bf16.mxu0 0
  %811 = vmatpush1.bf16.msra.mxu0 %v604
  %812 = vmatprep.subr.bf16.mxu0 0
  %813 = vmatpush1.bf16.msra.mxu0 %v603
  %814 = vmatprep.subr.bf16.mxu0 0
  %815 = vmatpush1.bf16.msra.mxu0 %v602
  %816 = vmatprep.subr.bf16.mxu0 0
  %817 = vmatpush1.bf16.msra.mxu0 %v601
  %818 = vmatprep.subr.bf16.mxu0 0
  %819 = vmatpush1.bf16.msra.mxu0 %v600
  %820 = vmatprep.subr.bf16.mxu0 0
  %821 = vmatpush1.bf16.msra.mxu0 %v599
  %822 = vmatprep.subr.bf16.mxu0 0
  %823 = vmatpush1.bf16.msra.mxu0 %v598
  %824 = vmatprep.subr.bf16.mxu0 0
  %825 = vmatpush2.bf16.msra.mxu0 %v613
  %826 = vmatprep.subr.bf16.mxu0 0
  %827 = vmatpush2.bf16.msra.mxu0 %v612
  %828 = vmatprep.subr.bf16.mxu0 0
  %829 = vmatpush2.bf16.msra.mxu0 %v611
  %830 = vmatprep.subr.bf16.mxu0 0
  %831 = vmatpush2.bf16.msra.mxu0 %v610
  %832 = vmatprep.subr.bf16.mxu0 0
  %833 = vmatpush2.bf16.msra.mxu0 %v609
  %834 = vmatprep.subr.bf16.mxu0 0
  %835 = vmatpush2.bf16.msra.mxu0 %v608
  %836 = vmatprep.subr.bf16.mxu0 0
  %837 = vmatpush2.bf16.msra.mxu0 %v607
  %838 = vmatprep.subr.bf16.mxu0 0
  %839 = vmatpush2.bf16.msra.mxu0 %v606
  %840 = vmatprep.mubr.bf16.mxu0 %v247
  %841 = vmatmul.mubr.bf16.gmra.mxu0 %v246
  %v842 = vpop.f32.mrf.mxu0
  %v843 = vadd.f32 %v794, %v842
  %v844 = vpop.f32.mrf.mxu0
  %v845 = vpop.f32.mrf.mxu0
  %v846 = vadd.f32 %v797, %v845
  %v847 = vpop.f32.mrf.mxu0
  %848 = vmatprep.mubr.bf16.mxu0 %v256
  %849 = vmatmul.mubr.bf16.gmra.mxu0 %v255
  %v850 = vpop.f32.mrf.mxu0
  %v851 = vadd.f32 %v802, %v850
  %v852 = vpop.f32.mrf.mxu0
  %v853 = vpop.f32.mrf.mxu0
  %v854 = vadd.f32 %v805, %v853
  %v855 = vpop.f32.mrf.mxu0
  %856 = vdwg.mxu0
  %857 = vmatprep.subr.bf16.mxu0 0
  %858 = vmatpush1.bf16.msra.mxu0 %v621
  %859 = vmatprep.subr.bf16.mxu0 0
  %860 = vmatpush1.bf16.msra.mxu0 %v620
  %861 = vmatprep.subr.bf16.mxu0 0
  %862 = vmatpush1.bf16.msra.mxu0 %v619
  %863 = vmatprep.subr.bf16.mxu0 0
  %864 = vmatpush1.bf16.msra.mxu0 %v618
  %865 = vmatprep.subr.bf16.mxu0 0
  %866 = vmatpush1.bf16.msra.mxu0 %v617
  %867 = vmatprep.subr.bf16.mxu0 0
  %868 = vmatpush1.bf16.msra.mxu0 %v616
  %869 = vmatprep.subr.bf16.mxu0 0
  %870 = vmatpush1.bf16.msra.mxu0 %v615
  %871 = vmatprep.subr.bf16.mxu0 0
  %872 = vmatpush1.bf16.msra.mxu0 %v614
  %873 = vmatprep.subr.bf16.mxu0 0
  %874 = vmatpush2.bf16.msra.mxu0 %v629
  %875 = vmatprep.subr.bf16.mxu0 0
  %876 = vmatpush2.bf16.msra.mxu0 %v628
  %877 = vmatprep.subr.bf16.mxu0 0
  %878 = vmatpush2.bf16.msra.mxu0 %v627
  %879 = vmatprep.subr.bf16.mxu0 0
  %880 = vmatpush2.bf16.msra.mxu0 %v626
  %881 = vmatprep.subr.bf16.mxu0 0
  %882 = vmatpush2.bf16.msra.mxu0 %v625
  %883 = vmatprep.subr.bf16.mxu0 0
  %884 = vmatpush2.bf16.msra.mxu0 %v624
  %885 = vmatprep.subr.bf16.mxu0 0
  %886 = vmatpush2.bf16.msra.mxu0 %v623
  %887 = vmatprep.subr.bf16.mxu0 0
  %888 = vmatpush2.bf16.msra.mxu0 %v622
  %889 = vmatprep.mubr.bf16.mxu0 %v249
  %890 = vmatmul.mubr.bf16.gmra.mxu0 %v248
  %v891 = vpop.f32.mrf.mxu0
  %v892 = vadd.f32 %v843, %v891
  %v893 = vpop.f32.mrf.mxu0
  %v894 = vpop.f32.mrf.mxu0
  %v895 = vadd.f32 %v846, %v894
  %v896 = vpop.f32.mrf.mxu0
  %897 = vmatprep.mubr.bf16.mxu0 %v258
  %898 = vmatmul.mubr.bf16.gmra.mxu0 %v257
  %v899 = vpop.f32.mrf.mxu0
  %v900 = vadd.f32 %v851, %v899
  %v901 = vpop.f32.mrf.mxu0
  %v902 = vpop.f32.mrf.mxu0
  %v903 = vadd.f32 %v854, %v902
  %v904 = vpop.f32.mrf.mxu0
  %905 = vdwg.mxu0
  %906 = vmatprep.subr.bf16.mxu0 0
  %907 = vmatpush1.bf16.msra.mxu0 %v637
  %908 = vmatprep.subr.bf16.mxu0 0
  %909 = vmatpush1.bf16.msra.mxu0 %v636
  %910 = vmatprep.subr.bf16.mxu0 0
  %911 = vmatpush1.bf16.msra.mxu0 %v635
  %912 = vmatprep.subr.bf16.mxu0 0
  %913 = vmatpush1.bf16.msra.mxu0 %v634
  %914 = vmatprep.subr.bf16.mxu0 0
  %915 = vmatpush1.bf16.msra.mxu0 %v633
  %916 = vmatprep.subr.bf16.mxu0 0
  %917 = vmatpush1.bf16.msra.mxu0 %v632
  %918 = vmatprep.subr.bf16.mxu0 0
  %919 = vmatpush1.bf16.msra.mxu0 %v631
  %920 = vmatprep.subr.bf16.mxu0 0
  %921 = vmatpush1.bf16.msra.mxu0 %v630
  %922 = vmatprep.subr.bf16.mxu0 0
  %923 = vmatpush2.bf16.msra.mxu0 0
  %924 = vmatprep.subr.bf16.mxu0 0
  %925 = vmatpush2.bf16.msra.mxu0 0
  %926 = vmatprep.subr.bf16.mxu0 0
  %927 = vmatpush2.bf16.msra.mxu0 0
  %928 = vmatprep.subr.bf16.mxu0 0
  %929 = vmatpush2.bf16.msra.mxu0 0
  %930 = vmatprep.subr.bf16.mxu0 0
  %931 = vmatpush2.bf16.msra.mxu0 0
  %932 = vmatprep.subr.bf16.mxu0 0
  %933 = vmatpush2.bf16.msra.mxu0 0
  %934 = vmatprep.subr.bf16.mxu0 0
  %935 = vmatpush2.bf16.msra.mxu0 0
  %936 = vmatprep.subr.bf16.mxu0 0
  %937 = vmatpush2.bf16.msra.mxu0 0
  %938 = vmatprep.mubr.bf16.mxu0 0
  %939 = vmatmul.mubr.bf16.gmra.mxu0 %v250
  %v940 = vpop.f32.mrf.mxu0
  %v941 = vadd.f32 %v892, %v940
  %v942 = vpop.f32.mrf.mxu0
  %v943 = vpop.f32.mrf.mxu0
  %v944 = vadd.f32 %v895, %v943
  %v945 = vpop.f32.mrf.mxu0
  %946 = vmatprep.mubr.bf16.mxu0 0
  %947 = vmatmul.mubr.bf16.gmra.mxu0 %v259
  %v948 = vpop.f32.mrf.mxu0
  %v949 = vadd.f32 %v900, %v948
  %v950 = vpop.f32.mrf.mxu0
  %v951 = vpop.f32.mrf.mxu0
  %v952 = vadd.f32 %v903, %v951
  %v953 = vpop.f32.mrf.mxu0
  %954 = vdwg.mxu0
  %v955 = vmax.f32 %v941, 0.0
  %v956 = vmax.f32 %v944, 0.0
  %v957 = vmax.f32 %v949, 0.0
  %v958 = vmax.f32 %v952, 0.0
  %v959 = vpack.c.bf16 %v956, %v955
  %v960 = vpack.c.bf16 %v958, %v957
  %v963 = vunpack.c.l.b16 %v959
  %v964 = vunpack.c.h.b16 %v959
  %v965 = vunpack.c.l.b16 %v960
  %v966 = vunpack.c.h.b16 %v960
  %v967 = vpack.c.b16 %v963, %v963
  %v968 = vpack.c.b16 %v964, %v964
  %v969 = vpack.c.b16 %v965, %v965
  %v970 = vpack.c.b16 %v966, %v966
  %975 = vst [vmem:[%s3] sm:$0xf] %v967
  %976 = vst [vmem:[%s3 + $0x4] sm:$0xf] %v968
  %977 = vst [vmem:[%s3 + $0x8] sm:$0xf] %v969
  %978 = vst [vmem:[%s3 + $0xc] sm:$0xf] %v970
  // Predicated region
  $region14: #{_lambda_.11} parent=0 // pred_check
    _
  $region15: #{_lambda_.11} parent=0 // pred_check_branch
    %980 = sbr.rel (0) target = $region17
  $region16: #{_lambda_.11} parent=0 // pred_region
    _
  $region17: #{_lambda_.11} parent=0 // pred_fallthru
    _
  // Predicated region
  $region18: #{_lambda_.11} parent=0 // pred_check
    _
  $region19: #{_lambda_.11} parent=0 // pred_check_branch
    %982 = sbr.rel (0) target = $region21
  $region20: #{_lambda_.11} parent=0 // pred_region
    _
  $region21: #{_lambda_.11} parent=0 // pred_fallthru
    _

// kernel: _lambda_.9
$region0: #{_lambda_.9}
  #allocation0 [shape = 'u32[]', space=smem, size = 0x4, offset = 0x4, fixed_abs, tag = 'smem constant byte address 0x4 - core index']
  #allocation1 [shape = 'u32[144,128]{1,0:T(1,128)}', space=vmem, size = 0x12000, scoped, tag = 'internal scratch']
  %s0 = inlined_call_operand.vmem [shape: bf16[128,1152], index: 0, kind: input, shape index: {}]
  %s1 = inlined_call_operand.vmem [shape: bf16[1152,128], index: 1, kind: input, shape index: {}]
  %s2 = inlined_call_operand.vmem [shape: f32[1,128], index: 2, kind: input, shape index: {}]
  %s3 = inlined_call_operand.vmem [shape: bf16[128,128], index: 3, kind: output, shape index: {}]
  %s4 = sld [smem:[#allocation0]]
  $region22: #{_lambda_.9} parent=0
    _
  %s6 = ssub.s32 1, %s4
  %s7 = scalar_select 0, %s6, %s4
  // Predicated region
  $region2: #{_lambda_.9} parent=0 // pred_check
    _
  $region3: #{_lambda_.9} parent=0 // pred_check_branch
    %9 = sbr.rel (0) target = $region5
  $region4: #{_lambda_.9} parent=0 // pred_region
    _
  $region5: #{_lambda_.9} parent=0 // pred_fallthru
    _
  // Predicated region
  $region6: #{_lambda_.9} parent=0 // pred_check
    _
  $region7: #{_lambda_.9} parent=0 // pred_check_branch
    %11 = sbr.rel (0) target = $region9
  $region8: #{_lambda_.9} parent=0 // pred_region
    _
  $region9: #{_lambda_.9} parent=0 // pred_fallthru
    _
  // Predicated region
  $region10: #{_lambda_.9} parent=0 // pred_check
    _
  $region11: #{_lambda_.9} parent=0 // pred_check_branch
    %13 = sbr.rel (0) target = $region13
  $region12: #{_lambda_.9} parent=0 // pred_region
    _
  $region13: #{_lambda_.9} parent=0 // pred_fallthru
    _
  %v15 = vld [vmem:[%s0] sm:$0xff]
  %v16 = vld [vmem:[%s0 + $0x8] sm:$0xff]
  %v17 = vld [vmem:[%s0 + $0x10] sm:$0xff]
  %v18 = vld [vmem:[%s0 + $0x18] sm:$0xff]
  %v19 = vld [vmem:[%s0 + $0x20] sm:$0xf]
  %v20 = vld [vmem:[%s0 + $0x24] sm:$0xff]
  %v21 = vld [vmem:[%s0 + $0x2c] sm:$0xff]
  %v22 = vld [vmem:[%s0 + $0x34] sm:$0xff]
  %v23 = vld [vmem:[%s0 + $0x3c] sm:$0xff]
  %v24 = vld [vmem:[%s0 + $0x44] sm:$0xf]
  %v25 = vld [vmem:[%s0 + $0x48] sm:$0xff]
  %v26 = vld [vmem:[%s0 + $0x50] sm:$0xff]
  %v27 = vld [vmem:[%s0 + $0x58] sm:$0xff]
  %v28 = vld [vmem:[%s0 + $0x60] sm:$0xff]
  %v29 = vld [vmem:[%s0 + $0x68] sm:$0xf]
  %v30 = vld [vmem:[%s0 + $0x6c] sm:$0xff]
  %v31 = vld [vmem:[%s0 + $0x74] sm:$0xff]
  %v32 = vld [vmem:[%s0 + $0x7c] sm:$0xff]
  %v33 = vld [vmem:[%s0 + $0x84] sm:$0xff]
  %v34 = vld [vmem:[%s0 + $0x8c] sm:$0xf]
  %v35 = vld [vmem:[%s0 + $0x90] sm:$0xff]
  %v36 = vld [vmem:[%s0 + $0x98] sm:$0xff]
  %v37 = vld [vmem:[%s0 + $0xa0] sm:$0xff]
  %v38 = vld [vmem:[%s0 + $0xa8] sm:$0xff]
  %v39 = vld [vmem:[%s0 + $0xb0] sm:$0xf]
  %v40 = vld [vmem:[%s0 + $0xb4] sm:$0xff]
  %v41 = vld [vmem:[%s0 + $0xbc] sm:$0xff]
  %v42 = vld [vmem:[%s0 + $0xc4] sm:$0xff]
  %v43 = vld [vmem:[%s0 + $0xcc] sm:$0xff]
  %v44 = vld [vmem:[%s0 + $0xd4] sm:$0xf]
  %v45 = vld [vmem:[%s0 + $0xd8] sm:$0xff]
  %v46 = vld [vmem:[%s0 + $0xe0] sm:$0xff]
  %v47 = vld [vmem:[%s0 + $0xe8] sm:$0xff]
  %v48 = vld [vmem:[%s0 + $0xf0] sm:$0xff]
  %v49 = vld [vmem:[%s0 + $0xf8] sm:$0xf]
  %v50 = vld [vmem:[%s0 + $0xfc] sm:$0xff]
  %v51 = vld [vmem:[%s0 + $0x104] sm:$0xff]
  %v52 = vld [vmem:[%s0 + $0x10c] sm:$0xff]
  %v53 = vld [vmem:[%s0 + $0x114] sm:$0xff]
  %v54 = vld [vmem:[%s0 + $0x11c] sm:$0xf]
  %v55 = vld [vmem:[%s0 + $0x120] sm:$0xff]
  %v56 = vld [vmem:[%s0 + $0x128] sm:$0xff]
  %v57 = vld [vmem:[%s0 + $0x130] sm:$0xff]
  %v58 = vld [vmem:[%s0 + $0x138] sm:$0xff]
  %v59 = vld [vmem:[%s0 + $0x140] sm:$0xf]
  %v60 = vld [vmem:[%s0 + $0x144] sm:$0xff]
  %v61 = vld [vmem:[%s0 + $0x14c] sm:$0xff]
  %v62 = vld [vmem:[%s0 + $0x154] sm:$0xff]
  %v63 = vld [vmem:[%s0 + $0x15c] sm:$0xff]
  %v64 = vld [vmem:[%s0 + $0x164] sm:$0xf]
  %v65 = vld [vmem:[%s0 + $0x168] sm:$0xff]
  %v66 = vld [vmem:[%s0 + $0x170] sm:$0xff]
  %v67 = vld [vmem:[%s0 + $0x178] sm:$0xff]
  %v68 = vld [vmem:[%s0 + $0x180] sm:$0xff]
  %v69 = vld [vmem:[%s0 + $0x188] sm:$0xf]
  %v70 = vld [vmem:[%s0 + $0x18c] sm:$0xff]
  %v71 = vld [vmem:[%s0 + $0x194] sm:$0xff]
  %v72 = vld [vmem:[%s0 + $0x19c] sm:$0xff]
  %v73 = vld [vmem:[%s0 + $0x1a4] sm:$0xff]
  %v74 = vld [vmem:[%s0 + $0x1ac] sm:$0xf]
  %v75 = vld [vmem:[%s0 + $0x1b0] sm:$0xff]
  %v76 = vld [vmem:[%s0 + $0x1b8] sm:$0xff]
  %v77 = vld [vmem:[%s0 + $0x1c0] sm:$0xff]
  %v78 = vld [vmem:[%s0 + $0x1c8] sm:$0xff]
  %v79 = vld [vmem:[%s0 + $0x1d0] sm:$0xf]
  %v80 = vld [vmem:[%s0 + $0x1d4] sm:$0xff]
  %v81 = vld [vmem:[%s0 + $0x1dc] sm:$0xff]
  %v82 = vld [vmem:[%s0 + $0x1e4] sm:$0xff]
  %v83 = vld [vmem:[%s0 + $0x1ec] sm:$0xff]
  %v84 = vld [vmem:[%s0 + $0x1f4] sm:$0xf]
  %v85 = vld [vmem:[%s0 + $0x1f8] sm:$0xff]
  %v86 = vld [vmem:[%s0 + $0x200] sm:$0xff]
  %v87 = vld [vmem:[%s0 + $0x208] sm:$0xff]
  %v88 = vld [vmem:[%s0 + $0x210] sm:$0xff]
  %v89 = vld [vmem:[%s0 + $0x218] sm:$0xf]
  %v90 = vld [vmem:[%s0 + $0x21c] sm:$0xff]
  %v91 = vld [vmem:[%s0 + $0x224] sm:$0xff]
  %v92 = vld [vmem:[%s0 + $0x22c] sm:$0xff]
  %v93 = vld [vmem:[%s0 + $0x234] sm:$0xff]
  %v94 = vld [vmem:[%s0 + $0x23c] sm:$0xf]
  %v95 = vld [vmem:[%s1] sm:$0xf]
  %v96 = vld [vmem:[%s1 + $0x4] sm:$0xf]
  %v97 = vld [vmem:[%s1 + $0x8] sm:$0xf]
  %v98 = vld [vmem:[%s1 + $0xc] sm:$0xf]
  %v99 = vld [vmem:[%s1 + $0x10] sm:$0xf]
  %v100 = vld [vmem:[%s1 + $0x14] sm:$0xf]
  %v101 = vld [vmem:[%s1 + $0x18] sm:$0xf]
  %v102 = vld [vmem:[%s1 + $0x1c] sm:$0xf]
  %v103 = vld [vmem:[%s1 + $0x20] sm:$0xf]
  %v104 = vld [vmem:[%s1 + $0x24] sm:$0xf]
  %v105 = vld [vmem:[%s1 + $0x28] sm:$0xf]
  %v106 = vld [vmem:[%s1 + $0x2c] sm:$0xf]
  %v107 = vld [vmem:[%s1 + $0x30] sm:$0xf]
  %v108 = vld [vmem:[%s1 + $0x34] sm:$0xf]
  %v109 = vld [vmem:[%s1 + $0x38] sm:$0xf]
  %v110 = vld [vmem:[%s1 + $0x3c] sm:$0xf]
  %v111 = vld [vmem:[%s1 + $0x40] sm:$0xf]
  %v112 = vld [vmem:[%s1 + $0x44] sm:$0xf]
  %v113 = vld [vmem:[%s1 + $0x48] sm:$0xf]
  %v114 = vld [vmem:[%s1 + $0x4c] sm:$0xf]
  %v115 = vld [vmem:[%s1 + $0x50] sm:$0xf]
  %v116 = vld [vmem:[%s1 + $0x54] sm:$0xf]
  %v117 = vld [vmem:[%s1 + $0x58] sm:$0xf]
  %v118 = vld [vmem:[%s1 + $0x5c] sm:$0xf]
  %v119 = vld [vmem:[%s1 + $0x60] sm:$0xf]
  %v120 = vld [vmem:[%s1 + $0x64] sm:$0xf]
  %v121 = vld [vmem:[%s1 + $0x68] sm:$0xf]
  %v122 = vld [vmem:[%s1 + $0x6c] sm:$0xf]
  %v123 = vld [vmem:[%s1 + $0x70] sm:$0xf]
  %v124 = vld [vmem:[%s1 + $0x74] sm:$0xf]
  %v125 = vld [vmem:[%s1 + $0x78] sm:$0xf]
  %v126 = vld [vmem:[%s1 + $0x7c] sm:$0xf]
  %v127 = vld [vmem:[%s1 + $0x80] sm:$0xf]
  %v128 = vld [vmem:[%s1 + $0x84] sm:$0xf]
  %v129 = vld [vmem:[%s1 + $0x88] sm:$0xf]
  %v130 = vld [vmem:[%s1 + $0x8c] sm:$0xf]
  %v131 = vld [vmem:[%s1 + $0x90] sm:$0xf]
  %v132 = vld [vmem:[%s1 + $0x94] sm:$0xf]
  %v133 = vld [vmem:[%s1 + $0x98] sm:$0xf]
  %v134 = vld [vmem:[%s1 + $0x9c] sm:$0xf]
  %v135 = vld [vmem:[%s1 + $0xa0] sm:$0xf]
  %v136 = vld [vmem:[%s1 + $0xa4] sm:$0xf]
  %v137 = vld [vmem:[%s1 + $0xa8] sm:$0xf]
  %v138 = vld [vmem:[%s1 + $0xac] sm:$0xf]
  %v139 = vld [vmem:[%s1 + $0xb0] sm:$0xf]
  %v140 = vld [vmem:[%s1 + $0xb4] sm:$0xf]
  %v141 = vld [vmem:[%s1 + $0xb8] sm:$0xf]
  %v142 = vld [vmem:[%s1 + $0xbc] sm:$0xf]
  %v143 = vld [vmem:[%s1 + $0xc0] sm:$0xf]
  %v144 = vld [vmem:[%s1 + $0xc4] sm:$0xf]
  %v145 = vld [vmem:[%s1 + $0xc8] sm:$0xf]
  %v146 = vld [vmem:[%s1 + $0xcc] sm:$0xf]
  %v147 = vld [vmem:[%s1 + $0xd0] sm:$0xf]
  %v148 = vld [vmem:[%s1 + $0xd4] sm:$0xf]
  %v149 = vld [vmem:[%s1 + $0xd8] sm:$0xf]
  %v150 = vld [vmem:[%s1 + $0xdc] sm:$0xf]
  %v151 = vld [vmem:[%s1 + $0xe0] sm:$0xf]
  %v152 = vld [vmem:[%s1 + $0xe4] sm:$0xf]
  %v153 = vld [vmem:[%s1 + $0xe8] sm:$0xf]
  %v154 = vld [vmem:[%s1 + $0xec] sm:$0xf]
  %v155 = vld [vmem:[%s1 + $0xf0] sm:$0xf]
  %v156 = vld [vmem:[%s1 + $0xf4] sm:$0xf]
  %v157 = vld [vmem:[%s1 + $0xf8] sm:$0xf]
  %v158 = vld [vmem:[%s1 + $0xfc] sm:$0xf]
  %v159 = vld [vmem:[%s1 + $0x100] sm:$0xf]
  %v160 = vld [vmem:[%s1 + $0x104] sm:$0xf]
  %v161 = vld [vmem:[%s1 + $0x108] sm:$0xf]
  %v162 = vld [vmem:[%s1 + $0x10c] sm:$0xf]
  %v163 = vld [vmem:[%s1 + $0x110] sm:$0xf]
  %v164 = vld [vmem:[%s1 + $0x114] sm:$0xf]
  %v165 = vld [vmem:[%s1 + $0x118] sm:$0xf]
  %v166 = vld [vmem:[%s1 + $0x11c] sm:$0xf]
  %v167 = vld [vmem:[%s1 + $0x120] sm:$0xf]
  %v168 = vld [vmem:[%s1 + $0x124] sm:$0xf]
  %v169 = vld [vmem:[%s1 + $0x128] sm:$0xf]
  %v170 = vld [vmem:[%s1 + $0x12c] sm:$0xf]
  %v171 = vld [vmem:[%s1 + $0x130] sm:$0xf]
  %v172 = vld [vmem:[%s1 + $0x134] sm:$0xf]
  %v173 = vld [vmem:[%s1 + $0x138] sm:$0xf]
  %v174 = vld [vmem:[%s1 + $0x13c] sm:$0xf]
  %v175 = vld [vmem:[%s1 + $0x140] sm:$0xf]
  %v176 = vld [vmem:[%s1 + $0x144] sm:$0xf]
  %v177 = vld [vmem:[%s1 + $0x148] sm:$0xf]
  %v178 = vld [vmem:[%s1 + $0x14c] sm:$0xf]
  %v179 = vld [vmem:[%s1 + $0x150] sm:$0xf]
  %v180 = vld [vmem:[%s1 + $0x154] sm:$0xf]
  %v181 = vld [vmem:[%s1 + $0x158] sm:$0xf]
  %v182 = vld [vmem:[%s1 + $0x15c] sm:$0xf]
  %v183 = vld [vmem:[%s1 + $0x160] sm:$0xf]
  %v184 = vld [vmem:[%s1 + $0x164] sm:$0xf]
  %v185 = vld [vmem:[%s1 + $0x168] sm:$0xf]
  %v186 = vld [vmem:[%s1 + $0x16c] sm:$0xf]
  %v187 = vld [vmem:[%s1 + $0x170] sm:$0xf]
  %v188 = vld [vmem:[%s1 + $0x174] sm:$0xf]
  %v189 = vld [vmem:[%s1 + $0x178] sm:$0xf]
  %v190 = vld [vmem:[%s1 + $0x17c] sm:$0xf]
  %v191 = vld [vmem:[%s1 + $0x180] sm:$0xf]
  %v192 = vld [vmem:[%s1 + $0x184] sm:$0xf]
  %v193 = vld [vmem:[%s1 + $0x188] sm:$0xf]
  %v194 = vld [vmem:[%s1 + $0x18c] sm:$0xf]
  %v195 = vld [vmem:[%s1 + $0x190] sm:$0xf]
  %v196 = vld [vmem:[%s1 + $0x194] sm:$0xf]
  %v197 = vld [vmem:[%s1 + $0x198] sm:$0xf]
  %v198 = vld [vmem:[%s1 + $0x19c] sm:$0xf]
  %v199 = vld [vmem:[%s1 + $0x1a0] sm:$0xf]
  %v200 = vld [vmem:[%s1 + $0x1a4] sm:$0xf]
  %v201 = vld [vmem:[%s1 + $0x1a8] sm:$0xf]
  %v202 = vld [vmem:[%s1 + $0x1ac] sm:$0xf]
  %v203 = vld [vmem:[%s1 + $0x1b0] sm:$0xf]
  %v204 = vld [vmem:[%s1 + $0x1b4] sm:$0xf]
  %v205 = vld [vmem:[%s1 + $0x1b8] sm:$0xf]
  %v206 = vld [vmem:[%s1 + $0x1bc] sm:$0xf]
  %v207 = vld [vmem:[%s1 + $0x1c0] sm:$0xf]
  %v208 = vld [vmem:[%s1 + $0x1c4] sm:$0xf]
  %v209 = vld [vmem:[%s1 + $0x1c8] sm:$0xf]
  %v210 = vld [vmem:[%s1 + $0x1cc] sm:$0xf]
  %v211 = vld [vmem:[%s1 + $0x1d0] sm:$0xf]
  %v212 = vld [vmem:[%s1 + $0x1d4] sm:$0xf]
  %v213 = vld [vmem:[%s1 + $0x1d8] sm:$0xf]
  %v214 = vld [vmem:[%s1 + $0x1dc] sm:$0xf]
  %v215 = vld [vmem:[%s1 + $0x1e0] sm:$0xf]
  %v216 = vld [vmem:[%s1 + $0x1e4] sm:$0xf]
  %v217 = vld [vmem:[%s1 + $0x1e8] sm:$0xf]
  %v218 = vld [vmem:[%s1 + $0x1ec] sm:$0xf]
  %v219 = vld [vmem:[%s1 + $0x1f0] sm:$0xf]
  %v220 = vld [vmem:[%s1 + $0x1f4] sm:$0xf]
  %v221 = vld [vmem:[%s1 + $0x1f8] sm:$0xf]
  %v222 = vld [vmem:[%s1 + $0x1fc] sm:$0xf]
  %v223 = vld [vmem:[%s1 + $0x200] sm:$0xf]
  %v224 = vld [vmem:[%s1 + $0x204] sm:$0xf]
  %v225 = vld [vmem:[%s1 + $0x208] sm:$0xf]
  %v226 = vld [vmem:[%s1 + $0x20c] sm:$0xf]
  %v227 = vld [vmem:[%s1 + $0x210] sm:$0xf]
  %v228 = vld [vmem:[%s1 + $0x214] sm:$0xf]
  %v229 = vld [vmem:[%s1 + $0x218] sm:$0xf]
  %v230 = vld [vmem:[%s1 + $0x21c] sm:$0xf]
  %v231 = vld [vmem:[%s1 + $0x220] sm:$0xf]
  %v232 = vld [vmem:[%s1 + $0x224] sm:$0xf]
  %v233 = vld [vmem:[%s1 + $0x228] sm:$0xf]
  %v234 = vld [vmem:[%s1 + $0x22c] sm:$0xf]
  %v235 = vld [vmem:[%s1 + $0x230] sm:$0xf]
  %v236 = vld [vmem:[%s1 + $0x234] sm:$0xf]
  %v237 = vld [vmem:[%s1 + $0x238] sm:$0xf]
  %v238 = vld [vmem:[%s1 + $0x23c] sm:$0xf]
  %v239 = vld [vmem:[%s2] sm:$0x1]
  %v241 = vlaneseq
  %v242 = vshrl.u32 %v241, 7
  %v243 = vsub.s32 0, %v242
  %v244 = vrot.slane %v239, %v243
  %v326 = vunpack.c.l.b16 %v15
  %v327 = vunpack.c.h.b16 %v15
  %v328 = vunpack.c.l.b16 %v16
  %v329 = vunpack.c.h.b16 %v16
  %v330 = vunpack.c.l.b16 %v17
  %v331 = vunpack.c.h.b16 %v17
  %v332 = vunpack.c.l.b16 %v18
  %v333 = vunpack.c.h.b16 %v18
  %v334 = vunpack.c.l.b16 %v19
  %v335 = vunpack.c.l.b16 %v20
  %v336 = vunpack.c.h.b16 %v20
  %v337 = vunpack.c.l.b16 %v21
  %v338 = vunpack.c.h.b16 %v21
  %v339 = vunpack.c.l.b16 %v22
  %v340 = vunpack.c.h.b16 %v22
  %v341 = vunpack.c.l.b16 %v23
  %v342 = vunpack.c.h.b16 %v23
  %v343 = vunpack.c.l.b16 %v24
  %v344 = vunpack.c.l.b16 %v25
  %v345 = vunpack.c.h.b16 %v25
  %v346 = vunpack.c.l.b16 %v26
  %v347 = vunpack.c.h.b16 %v26
  %v348 = vunpack.c.l.b16 %v27
  %v349 = vunpack.c.h.b16 %v27
  %v350 = vunpack.c.l.b16 %v28
  %v351 = vunpack.c.h.b16 %v28
  %v352 = vunpack.c.l.b16 %v29
  %v353 = vunpack.c.l.b16 %v30
  %v354 = vunpack.c.h.b16 %v30
  %v355 = vunpack.c.l.b16 %v31
  %v356 = vunpack.c.h.b16 %v31
  %v357 = vunpack.c.l.b16 %v32
  %v358 = vunpack.c.h.b16 %v32
  %v359 = vunpack.c.l.b16 %v33
  %v360 = vunpack.c.h.b16 %v33
  %v361 = vunpack.c.l.b16 %v34
  %v362 = vunpack.c.l.b16 %v35
  %v363 = vunpack.c.h.b16 %v35
  %v364 = vunpack.c.l.b16 %v36
  %v365 = vunpack.c.h.b16 %v36
  %v366 = vunpack.c.l.b16 %v37
  %v367 = vunpack.c.h.b16 %v37
  %v368 = vunpack.c.l.b16 %v38
  %v369 = vunpack.c.h.b16 %v38
  %v370 = vunpack.c.l.b16 %v39
  %v371 = vunpack.c.l.b16 %v40
  %v372 = vunpack.c.h.b16 %v40
  %v373 = vunpack.c.l.b16 %v41
  %v374 = vunpack.c.h.b16 %v41
  %v375 = vunpack.c.l.b16 %v42
  %v376 = vunpack.c.h.b16 %v42
  %v377 = vunpack.c.l.b16 %v43
  %v378 = vunpack.c.h.b16 %v43
  %v379 = vunpack.c.l.b16 %v44
  %v380 = vunpack.c.l.b16 %v45
  %v381 = vunpack.c.h.b16 %v45
  %v382 = vunpack.c.l.b16 %v46
  %v383 = vunpack.c.h.b16 %v46
  %v384 = vunpack.c.l.b16 %v47
  %v385 = vunpack.c.h.b16 %v47
  %v386 = vunpack.c.l.b16 %v48
  %v387 = vunpack.c.h.b16 %v48
  %v388 = vunpack.c.l.b16 %v49
  %v389 = vunpack.c.l.b16 %v50
  %v390 = vunpack.c.h.b16 %v50
  %v391 = vunpack.c.l.b16 %v51
  %v392 = vunpack.c.h.b16 %v51
  %v393 = vunpack.c.l.b16 %v52
  %v394 = vunpack.c.h.b16 %v52
  %v395 = vunpack.c.l.b16 %v53
  %v396 = vunpack.c.h.b16 %v53
  %v397 = vunpack.c.l.b16 %v54
  %v398 = vunpack.c.l.b16 %v55
  %v399 = vunpack.c.h.b16 %v55
  %v400 = vunpack.c.l.b16 %v56
  %v401 = vunpack.c.h.b16 %v56
  %v402 = vunpack.c.l.b16 %v57
  %v403 = vunpack.c.h.b16 %v57
  %v404 = vunpack.c.l.b16 %v58
  %v405 = vunpack.c.h.b16 %v58
  %v406 = vunpack.c.l.b16 %v59
  %v407 = vunpack.c.l.b16 %v60
  %v408 = vunpack.c.h.b16 %v60
  %v409 = vunpack.c.l.b16 %v61
  %v410 = vunpack.c.h.b16 %v61
  %v411 = vunpack.c.l.b16 %v62
  %v412 = vunpack.c.h.b16 %v62
  %v413 = vunpack.c.l.b16 %v63
  %v414 = vunpack.c.h.b16 %v63
  %v415 = vunpack.c.l.b16 %v64
  %v416 = vunpack.c.l.b16 %v65
  %v417 = vunpack.c.h.b16 %v65
  %v418 = vunpack.c.l.b16 %v66
  %v419 = vunpack.c.h.b16 %v66
  %v420 = vunpack.c.l.b16 %v67
  %v421 = vunpack.c.h.b16 %v67
  %v422 = vunpack.c.l.b16 %v68
  %v423 = vunpack.c.h.b16 %v68
  %v424 = vunpack.c.l.b16 %v69
  %v425 = vunpack.c.l.b16 %v70
  %v426 = vunpack.c.h.b16 %v70
  %v427 = vunpack.c.l.b16 %v71
  %v428 = vunpack.c.h.b16 %v71
  %v429 = vunpack.c.l.b16 %v72
  %v430 = vunpack.c.h.b16 %v72
  %v431 = vunpack.c.l.b16 %v73
  %v432 = vunpack.c.h.b16 %v73
  %v433 = vunpack.c.l.b16 %v74
  %v434 = vunpack.c.l.b16 %v75
  %v435 = vunpack.c.h.b16 %v75
  %v436 = vunpack.c.l.b16 %v76
  %v437 = vunpack.c.h.b16 %v76
  %v438 = vunpack.c.l.b16 %v77
  %v439 = vunpack.c.h.b16 %v77
  %v440 = vunpack.c.l.b16 %v78
  %v441 = vunpack.c.h.b16 %v78
  %v442 = vunpack.c.l.b16 %v79
  %v443 = vunpack.c.l.b16 %v80
  %v444 = vunpack.c.h.b16 %v80
  %v445 = vunpack.c.l.b16 %v81
  %v446 = vunpack.c.h.b16 %v81
  %v447 = vunpack.c.l.b16 %v82
  %v448 = vunpack.c.h.b16 %v82
  %v449 = vunpack.c.l.b16 %v83
  %v450 = vunpack.c.h.b16 %v83
  %v451 = vunpack.c.l.b16 %v84
  %v452 = vunpack.c.l.b16 %v85
  %v453 = vunpack.c.h.b16 %v85
  %v454 = vunpack.c.l.b16 %v86
  %v455 = vunpack.c.h.b16 %v86
  %v456 = vunpack.c.l.b16 %v87
  %v457 = vunpack.c.h.b16 %v87
  %v458 = vunpack.c.l.b16 %v88
  %v459 = vunpack.c.h.b16 %v88
  %v460 = vunpack.c.l.b16 %v89
  %v461 = vunpack.c.l.b16 %v90
  %v462 = vunpack.c.h.b16 %v90
  %v463 = vunpack.c.l.b16 %v91
  %v464 = vunpack.c.h.b16 %v91
  %v465 = vunpack.c.l.b16 %v92
  %v466 = vunpack.c.h.b16 %v92
  %v467 = vunpack.c.l.b16 %v93
  %v468 = vunpack.c.h.b16 %v93
  %v469 = vunpack.c.l.b16 %v94
  %v470 = vpack.c.b16 %v335, %v326
  %v471 = vpack.c.b16 %v336, %v327
  %v472 = vpack.c.b16 %v337, %v328
  %v473 = vpack.c.b16 %v338, %v329
  %v474 = vpack.c.b16 %v339, %v330
  %v475 = vpack.c.b16 %v340, %v331
  %v476 = vpack.c.b16 %v341, %v332
  %v477 = vpack.c.b16 %v342, %v333
  %v478 = vpack.c.b16 %v343, %v334
  %v479 = vpack.c.b16 %v353, %v344
  %v480 = vpack.c.b16 %v354, %v345
  %v481 = vpack.c.b16 %v355, %v346
  %v482 = vpack.c.b16 %v356, %v347
  %v483 = vpack.c.b16 %v357, %v348
  %v484 = vpack.c.b16 %v358, %v349
  %v485 = vpack.c.b16 %v359, %v350
  %v486 = vpack.c.b16 %v360, %v351
  %v487 = vpack.c.b16 %v361, %v352
  %v488 = vpack.c.b16 %v371, %v362
  %v489 = vpack.c.b16 %v372, %v363
  %v490 = vpack.c.b16 %v373, %v364
  %v491 = vpack.c.b16 %v374, %v365
  %v492 = vpack.c.b16 %v375, %v366
  %v493 = vpack.c.b16 %v376, %v367
  %v494 = vpack.c.b16 %v377, %v368
  %v495 = vpack.c.b16 %v378, %v369
  %v496 = vpack.c.b16 %v379, %v370
  %v497 = vpack.c.b16 %v389, %v380
  %v498 = vpack.c.b16 %v390, %v381
  %v499 = vpack.c.b16 %v391, %v382
  %v500 = vpack.c.b16 %v392, %v383
  %v501 = vpack.c.b16 %v393, %v384
  %v502 = vpack.c.b16 %v394, %v385
  %v503 = vpack.c.b16 %v395, %v386
  %v504 = vpack.c.b16 %v396, %v387
  %v505 = vpack.c.b16 %v397, %v388
  %v506 = vpack.c.b16 %v407, %v398
  %v507 = vpack.c.b16 %v408, %v399
  %v508 = vpack.c.b16 %v409, %v400
  %v509 = vpack.c.b16 %v410, %v401
  %v510 = vpack.c.b16 %v411, %v402
  %v511 = vpack.c.b16 %v412, %v403
  %v512 = vpack.c.b16 %v413, %v404
  %v513 = vpack.c.b16 %v414, %v405
  %v514 = vpack.c.b16 %v415, %v406
  %v515 = vpack.c.b16 %v425, %v416
  %v516 = vpack.c.b16 %v426, %v417
  %v517 = vpack.c.b16 %v427, %v418
  %v518 = vpack.c.b16 %v428, %v419
  %v519 = vpack.c.b16 %v429, %v420
  %v520 = vpack.c.b16 %v430, %v421
  %v521 = vpack.c.b16 %v431, %v422
  %v522 = vpack.c.b16 %v432, %v423
  %v523 = vpack.c.b16 %v433, %v424
  %v524 = vpack.c.b16 %v443, %v434
  %v525 = vpack.c.b16 %v444, %v435
  %v526 = vpack.c.b16 %v445, %v436
  %v527 = vpack.c.b16 %v446, %v437
  %v528 = vpack.c.b16 %v447, %v438
  %v529 = vpack.c.b16 %v448, %v439
  %v530 = vpack.c.b16 %v449, %v440
  %v531 = vpack.c.b16 %v450, %v441
  %v532 = vpack.c.b16 %v451, %v442
  %v533 = vpack.c.b16 %v461, %v452
  %v534 = vpack.c.b16 %v462, %v453
  %v535 = vpack.c.b16 %v463, %v454
  %v536 = vpack.c.b16 %v464, %v455
  %v537 = vpack.c.b16 %v465, %v456
  %v538 = vpack.c.b16 %v466, %v457
  %v539 = vpack.c.b16 %v467, %v458
  %v540 = vpack.c.b16 %v468, %v459
  %v541 = vpack.c.b16 %v469, %v460
  %v758 = vunpack.c.l.b16 %v95
  %v759 = vunpack.c.l.b16 %v96
  %v760 = vunpack.c.l.b16 %v97
  %v761 = vunpack.c.l.b16 %v98
  %v762 = vunpack.c.l.b16 %v99
  %v763 = vunpack.c.l.b16 %v100
  %v764 = vunpack.c.l.b16 %v101
  %v765 = vunpack.c.l.b16 %v102
  %v766 = vunpack.c.l.b16 %v103
  %v767 = vunpack.c.l.b16 %v104
  %v768 = vunpack.c.l.b16 %v105
  %v769 = vunpack.c.l.b16 %v106
  %v770 = vunpack.c.l.b16 %v107
  %v771 = vunpack.c.l.b16 %v108
  %v772 = vunpack.c.l.b16 %v109
  %v773 = vunpack.c.l.b16 %v110
  %v774 = vunpack.c.l.b16 %v111
  %v775 = vunpack.c.l.b16 %v112
  %v776 = vunpack.c.l.b16 %v113
  %v777 = vunpack.c.l.b16 %v114
  %v778 = vunpack.c.l.b16 %v115
  %v779 = vunpack.c.l.b16 %v116
  %v780 = vunpack.c.l.b16 %v117
  %v781 = vunpack.c.l.b16 %v118
  %v782 = vunpack.c.l.b16 %v119
  %v783 = vunpack.c.l.b16 %v120
  %v784 = vunpack.c.l.b16 %v121
  %v785 = vunpack.c.l.b16 %v122
  %v786 = vunpack.c.l.b16 %v123
  %v787 = vunpack.c.l.b16 %v124
  %v788 = vunpack.c.l.b16 %v125
  %v789 = vunpack.c.l.b16 %v126
  %v790 = vunpack.c.l.b16 %v127
  %v791 = vunpack.c.l.b16 %v128
  %v792 = vunpack.c.l.b16 %v129
  %v793 = vunpack.c.l.b16 %v130
  %v794 = vunpack.c.l.b16 %v131
  %v795 = vunpack.c.l.b16 %v132
  %v796 = vunpack.c.l.b16 %v133
  %v797 = vunpack.c.l.b16 %v134
  %v798 = vunpack.c.l.b16 %v135
  %v799 = vunpack.c.l.b16 %v136
  %v800 = vunpack.c.l.b16 %v137
  %v801 = vunpack.c.l.b16 %v138
  %v802 = vunpack.c.l.b16 %v139
  %v803 = vunpack.c.l.b16 %v140
  %v804 = vunpack.c.l.b16 %v141
  %v805 = vunpack.c.l.b16 %v142
  %v806 = vunpack.c.l.b16 %v143
  %v807 = vunpack.c.l.b16 %v144
  %v808 = vunpack.c.l.b16 %v145
  %v809 = vunpack.c.l.b16 %v146
  %v810 = vunpack.c.l.b16 %v147
  %v811 = vunpack.c.l.b16 %v148
  %v812 = vunpack.c.l.b16 %v149
  %v813 = vunpack.c.l.b16 %v150
  %v814 = vunpack.c.l.b16 %v151
  %v815 = vunpack.c.l.b16 %v152
  %v816 = vunpack.c.l.b16 %v153
  %v817 = vunpack.c.l.b16 %v154
  %v818 = vunpack.c.l.b16 %v155
  %v819 = vunpack.c.l.b16 %v156
  %v820 = vunpack.c.l.b16 %v157
  %v821 = vunpack.c.l.b16 %v158
  %v822 = vunpack.c.l.b16 %v159
  %v823 = vunpack.c.l.b16 %v160
  %v824 = vunpack.c.l.b16 %v161
  %v825 = vunpack.c.l.b16 %v162
  %v826 = vunpack.c.l.b16 %v163
  %v827 = vunpack.c.l.b16 %v164
  %v828 = vunpack.c.l.b16 %v165
  %v829 = vunpack.c.l.b16 %v166
  %v830 = vunpack.c.l.b16 %v167
  %v831 = vunpack.c.l.b16 %v168
  %v832 = vunpack.c.l.b16 %v169
  %v833 = vunpack.c.l.b16 %v170
  %v834 = vunpack.c.l.b16 %v171
  %v835 = vunpack.c.l.b16 %v172
  %v836 = vunpack.c.l.b16 %v173
  %v837 = vunpack.c.l.b16 %v174
  %v838 = vunpack.c.l.b16 %v175
  %v839 = vunpack.c.l.b16 %v176
  %v840 = vunpack.c.l.b16 %v177
  %v841 = vunpack.c.l.b16 %v178
  %v842 = vunpack.c.l.b16 %v179
  %v843 = vunpack.c.l.b16 %v180
  %v844 = vunpack.c.l.b16 %v181
  %v845 = vunpack.c.l.b16 %v182
  %v846 = vunpack.c.l.b16 %v183
  %v847 = vunpack.c.l.b16 %v184
  %v848 = vunpack.c.l.b16 %v185
  %v849 = vunpack.c.l.b16 %v186
  %v850 = vunpack.c.l.b16 %v187
  %v851 = vunpack.c.l.b16 %v188
  %v852 = vunpack.c.l.b16 %v189
  %v853 = vunpack.c.l.b16 %v190
  %v854 = vunpack.c.l.b16 %v191
  %v855 = vunpack.c.l.b16 %v192
  %v856 = vunpack.c.l.b16 %v193
  %v857 = vunpack.c.l.b16 %v194
  %v858 = vunpack.c.l.b16 %v195
  %v859 = vunpack.c.l.b16 %v196
  %v860 = vunpack.c.l.b16 %v197
  %v861 = vunpack.c.l.b16 %v198
  %v862 = vunpack.c.l.b16 %v199
  %v863 = vunpack.c.l.b16 %v200
  %v864 = vunpack.c.l.b16 %v201
  %v865 = vunpack.c.l.b16 %v202
  %v866 = vunpack.c.l.b16 %v203
  %v867 = vunpack.c.l.b16 %v204
  %v868 = vunpack.c.l.b16 %v205
  %v869 = vunpack.c.l.b16 %v206
  %v870 = vunpack.c.l.b16 %v207
  %v871 = vunpack.c.l.b16 %v208
  %v872 = vunpack.c.l.b16 %v209
  %v873 = vunpack.c.l.b16 %v210
  %v874 = vunpack.c.l.b16 %v211
  %v875 = vunpack.c.l.b16 %v212
  %v876 = vunpack.c.l.b16 %v213
  %v877 = vunpack.c.l.b16 %v214
  %v878 = vunpack.c.l.b16 %v215
  %v879 = vunpack.c.l.b16 %v216
  %v880 = vunpack.c.l.b16 %v217
  %v881 = vunpack.c.l.b16 %v218
  %v882 = vunpack.c.l.b16 %v219
  %v883 = vunpack.c.l.b16 %v220
  %v884 = vunpack.c.l.b16 %v221
  %v885 = vunpack.c.l.b16 %v222
  %v886 = vunpack.c.l.b16 %v223
  %v887 = vunpack.c.l.b16 %v224
  %v888 = vunpack.c.l.b16 %v225
  %v889 = vunpack.c.l.b16 %v226
  %v890 = vunpack.c.l.b16 %v227
  %v891 = vunpack.c.l.b16 %v228
  %v892 = vunpack.c.l.b16 %v229
  %v893 = vunpack.c.l.b16 %v230
  %v894 = vunpack.c.l.b16 %v231
  %v895 = vunpack.c.l.b16 %v232
  %v896 = vunpack.c.l.b16 %v233
  %v897 = vunpack.c.l.b16 %v234
  %v898 = vunpack.c.l.b16 %v235
  %v899 = vunpack.c.l.b16 %v236
  %v900 = vunpack.c.l.b16 %v237
  %v901 = vunpack.c.l.b16 %v238
  %v902 = vpack.c.b16 %v759, %v758
  %v903 = vpack.c.b16 %v761, %v760
  %v904 = vpack.c.b16 %v763, %v762
  %v905 = vpack.c.b16 %v765, %v764
  %v906 = vpack.c.b16 %v767, %v766
  %v907 = vpack.c.b16 %v769, %v768
  %v908 = vpack.c.b16 %v771, %v770
  %v909 = vpack.c.b16 %v773, %v772
  %v910 = vpack.c.b16 %v775, %v774
  %v911 = vpack.c.b16 %v777, %v776
  %v912 = vpack.c.b16 %v779, %v778
  %v913 = vpack.c.b16 %v781, %v780
  %v914 = vpack.c.b16 %v783, %v782
  %v915 = vpack.c.b16 %v785, %v784
  %v916 = vpack.c.b16 %v787, %v786
  %v917 = vpack.c.b16 %v789, %v788
  %v918 = vpack.c.b16 %v791, %v790
  %v919 = vpack.c.b16 %v793, %v792
  %v920 = vpack.c.b16 %v795, %v794
  %v921 = vpack.c.b16 %v797, %v796
  %v922 = vpack.c.b16 %v799, %v798
  %v923 = vpack.c.b16 %v801, %v800
  %v924 = vpack.c.b16 %v803, %v802
  %v925 = vpack.c.b16 %v805, %v804
  %v926 = vpack.c.b16 %v807, %v806
  %v927 = vpack.c.b16 %v809, %v808
  %v928 = vpack.c.b16 %v811, %v810
  %v929 = vpack.c.b16 %v813, %v812
  %v930 = vpack.c.b16 %v815, %v814
  %v931 = vpack.c.b16 %v817, %v816
  %v932 = vpack.c.b16 %v819, %v818
  %v933 = vpack.c.b16 %v821, %v820
  %v934 = vpack.c.b16 %v823, %v822
  %v935 = vpack.c.b16 %v825, %v824
  %v936 = vpack.c.b16 %v827, %v826
  %v937 = vpack.c.b16 %v829, %v828
  %v938 = vpack.c.b16 %v831, %v830
  %v939 = vpack.c.b16 %v833, %v832
  %v940 = vpack.c.b16 %v835, %v834
  %v941 = vpack.c.b16 %v837, %v836
  %v942 = vpack.c.b16 %v839, %v838
  %v943 = vpack.c.b16 %v841, %v840
  %v944 = vpack.c.b16 %v843, %v842
  %v945 = vpack.c.b16 %v845, %v844
  %v946 = vpack.c.b16 %v847, %v846
  %v947 = vpack.c.b16 %v849, %v848
  %v948 = vpack.c.b16 %v851, %v850
  %v949 = vpack.c.b16 %v853, %v852
  %v950 = vpack.c.b16 %v855, %v854
  %v951 = vpack.c.b16 %v857, %v856
  %v952 = vpack.c.b16 %v859, %v858
  %v953 = vpack.c.b16 %v861, %v860
  %v954 = vpack.c.b16 %v863, %v862
  %v955 = vpack.c.b16 %v865, %v864
  %v956 = vpack.c.b16 %v867, %v866
  %v957 = vpack.c.b16 %v869, %v868
  %v958 = vpack.c.b16 %v871, %v870
  %v959 = vpack.c.b16 %v873, %v872
  %v960 = vpack.c.b16 %v875, %v874
  %v961 = vpack.c.b16 %v877, %v876
  %v962 = vpack.c.b16 %v879, %v878
  %v963 = vpack.c.b16 %v881, %v880
  %v964 = vpack.c.b16 %v883, %v882
  %v965 = vpack.c.b16 %v885, %v884
  %v966 = vpack.c.b16 %v887, %v886
  %v967 = vpack.c.b16 %v889, %v888
  %v968 = vpack.c.b16 %v891, %v890
  %v969 = vpack.c.b16 %v893, %v892
  %v970 = vpack.c.b16 %v895, %v894
  %v971 = vpack.c.b16 %v897, %v896
  %v972 = vpack.c.b16 %v899, %v898
  %v973 = vpack.c.b16 %v901, %v900
  %1046 = vmatprep.subr.bf16.mxu0 0
  %1047 = vmatpush1.bf16.msra.mxu0 %v909
  %1048 = vmatprep.subr.bf16.mxu0 0
  %1049 = vmatpush1.bf16.msra.mxu0 %v908
  %1050 = vmatprep.subr.bf16.mxu0 0
  %1051 = vmatpush1.bf16.msra.mxu0 %v907
  %1052 = vmatprep.subr.bf16.mxu0 0
  %1053 = vmatpush1.bf16.msra.mxu0 %v906
  %1054 = vmatprep.subr.bf16.mxu0 0
  %1055 = vmatpush1.bf16.msra.mxu0 %v905
  %1056 = vmatprep.subr.bf16.mxu0 0
  %1057 = vmatpush1.bf16.msra.mxu0 %v904
  %1058 = vmatprep.subr.bf16.mxu0 0
  %1059 = vmatpush1.bf16.msra.mxu0 %v903
  %1060 = vmatprep.subr.bf16.mxu0 0
  %1061 = vmatpush1.bf16.msra.mxu0 %v902
  %1062 = vmatprep.subr.bf16.mxu0 0
  %1063 = vmatpush2.bf16.msra.mxu0 %v917
  %1064 = vmatprep.subr.bf16.mxu0 0
  %1065 = vmatpush2.bf16.msra.mxu0 %v916
  %1066 = vmatprep.subr.bf16.mxu0 0
  %1067 = vmatpush2.bf16.msra.mxu0 %v915
  %1068 = vmatprep.subr.bf16.mxu0 0
  %1069 = vmatpush2.bf16.msra.mxu0 %v914
  %1070 = vmatprep.subr.bf16.mxu0 0
  %1071 = vmatpush2.bf16.msra.mxu0 %v913
  %1072 = vmatprep.subr.bf16.mxu0 0
  %1073 = vmatpush2.bf16.msra.mxu0 %v912
  %1074 = vmatprep.subr.bf16.mxu0 0
  %1075 = vmatpush2.bf16.msra.mxu0 %v911
  %1076 = vmatprep.subr.bf16.mxu0 0
  %1077 = vmatpush2.bf16.msra.mxu0 %v910
  %1078 = vmatprep.mubr.bf16.mxu0 %v471
  %1079 = vmatmul.mubr.bf16.gmra.mxu0 %v470
  %v1080 = vpop.f32.mrf.mxu0
  %v1081 = vadd.f32 %v244, %v1080
  %v1082 = vpop.f32.mrf.mxu0
  %v1083 = vpop.f32.mrf.mxu0
  %v1084 = vadd.f32 %v244, %v1083
  %v1085 = vpop.f32.mrf.mxu0
  %1086 = vmatprep.mubr.bf16.mxu0 %v480
  %1087 = vmatmul.mubr.bf16.gmra.mxu0 %v479
  %v1088 = vpop.f32.mrf.mxu0
  %v1089 = vadd.f32 %v244, %v1088
  %v1090 = vpop.f32.mrf.mxu0
  %v1091 = vpop.f32.mrf.mxu0
  %v1092 = vadd.f32 %v244, %v1091
  %v1093 = vpop.f32.mrf.mxu0
  %1094 = vmatprep.mubr.bf16.mxu0 %v489
  %1095 = vmatmul.mubr.bf16.gmra.mxu0 %v488
  %v1096 = vpop.f32.mrf.mxu0
  %v1097 = vadd.f32 %v244, %v1096
  %v1098 = vpop.f32.mrf.mxu0
  %v1099 = vpop.f32.mrf.mxu0
  %v1100 = vadd.f32 %v244, %v1099
  %v1101 = vpop.f32.mrf.mxu0
  %1102 = vmatprep.mubr.bf16.mxu0 %v498
  %1103 = vmatmul.mubr.bf16.gmra.mxu0 %v497
  %v1104 = vpop.f32.mrf.mxu0
  %v1105 = vadd.f32 %v244, %v1104
  %v1106 = vpop.f32.mrf.mxu0
  %v1107 = vpop.f32.mrf.mxu0
  %v1108 = vadd.f32 %v244, %v1107
  %v1109 = vpop.f32.mrf.mxu0
  %1110 = vmatprep.mubr.bf16.mxu0 %v507
  %1111 = vmatmul.mubr.bf16.gmra.mxu0 %v506
  %v1112 = vpop.f32.mrf.mxu0
  %v1113 = vadd.f32 %v244, %v1112
  %v1114 = vpop.f32.mrf.mxu0
  %v1115 = vpop.f32.mrf.mxu0
  %v1116 = vadd.f32 %v244, %v1115
  %v1117 = vpop.f32.mrf.mxu0
  %1118 = vmatprep.mubr.bf16.mxu0 %v516
  %1119 = vmatmul.mubr.bf16.gmra.mxu0 %v515
  %v1120 = vpop.f32.mrf.mxu0
  %v1121 = vadd.f32 %v244, %v1120
  %v1122 = vpop.f32.mrf.mxu0
  %v1123 = vpop.f32.mrf.mxu0
  %v1124 = vadd.f32 %v244, %v1123
  %v1125 = vpop.f32.mrf.mxu0
  %1126 = vmatprep.mubr.bf16.mxu0 %v525
  %1127 = vmatmul.mubr.bf16.gmra.mxu0 %v524
  %v1128 = vpop.f32.mrf.mxu0
  %v1129 = vadd.f32 %v244, %v1128
  %v1130 = vpop.f32.mrf.mxu0
  %v1131 = vpop.f32.mrf.mxu0
  %v1132 = vadd.f32 %v244, %v1131
  %v1133 = vpop.f32.mrf.mxu0
  %1134 = vmatprep.mubr.bf16.mxu0 %v534
  %1135 = vmatmul.mubr.bf16.gmra.mxu0 %v533
  %v1136 = vpop.f32.mrf.mxu0
  %v1137 = vadd.f32 %v244, %v1136
  %v1138 = vpop.f32.mrf.mxu0
  %v1139 = vpop.f32.mrf.mxu0
  %v1140 = vadd.f32 %v244, %v1139
  %v1141 = vpop.f32.mrf.mxu0
  %1142 = vdwg.mxu0
  %1143 = vmatprep.subr.bf16.mxu0 0
  %1144 = vmatpush1.bf16.msra.mxu0 %v925
  %1145 = vmatprep.subr.bf16.mxu0 0
  %1146 = vmatpush1.bf16.msra.mxu0 %v924
  %1147 = vmatprep.subr.bf16.mxu0 0
  %1148 = vmatpush1.bf16.msra.mxu0 %v923
  %1149 = vmatprep.subr.bf16.mxu0 0
  %1150 = vmatpush1.bf16.msra.mxu0 %v922
  %1151 = vmatprep.subr.bf16.mxu0 0
  %1152 = vmatpush1.bf16.msra.mxu0 %v921
  %1153 = vmatprep.subr.bf16.mxu0 0
  %1154 = vmatpush1.bf16.msra.mxu0 %v920
  %1155 = vmatprep.subr.bf16.mxu0 0
  %1156 = vmatpush1.bf16.msra.mxu0 %v919
  %1157 = vmatprep.subr.bf16.mxu0 0
  %1158 = vmatpush1.bf16.msra.mxu0 %v918
  %1159 = vmatprep.subr.bf16.mxu0 0
  %1160 = vmatpush2.bf16.msra.mxu0 %v933
  %1161 = vmatprep.subr.bf16.mxu0 0
  %1162 = vmatpush2.bf16.msra.mxu0 %v932
  %1163 = vmatprep.subr.bf16.mxu0 0
  %1164 = vmatpush2.bf16.msra.mxu0 %v931
  %1165 = vmatprep.subr.bf16.mxu0 0
  %1166 = vmatpush2.bf16.msra.mxu0 %v930
  %1167 = vmatprep.subr.bf16.mxu0 0
  %1168 = vmatpush2.bf16.msra.mxu0 %v929
  %1169 = vmatprep.subr.bf16.mxu0 0
  %1170 = vmatpush2.bf16.msra.mxu0 %v928
  %1171 = vmatprep.subr.bf16.mxu0 0
  %1172 = vmatpush2.bf16.msra.mxu0 %v927
  %1173 = vmatprep.subr.bf16.mxu0 0
  %1174 = vmatpush2.bf16.msra.mxu0 %v926
  %1175 = vmatprep.mubr.bf16.mxu0 %v473
  %1176 = vmatmul.mubr.bf16.gmra.mxu0 %v472
  %v1177 = vpop.f32.mrf.mxu0
  %v1178 = vadd.f32 %v1081, %v1177
  %v1179 = vpop.f32.mrf.mxu0
  %v1180 = vpop.f32.mrf.mxu0
  %v1181 = vadd.f32 %v1084, %v1180
  %v1182 = vpop.f32.mrf.mxu0
  %1183 = vmatprep.mubr.bf16.mxu0 %v482
  %1184 = vmatmul.mubr.bf16.gmra.mxu0 %v481
  %v1185 = vpop.f32.mrf.mxu0
  %v1186 = vadd.f32 %v1089, %v1185
  %v1187 = vpop.f32.mrf.mxu0
  %v1188 = vpop.f32.mrf.mxu0
  %v1189 = vadd.f32 %v1092, %v1188
  %v1190 = vpop.f32.mrf.mxu0
  %1191 = vmatprep.mubr.bf16.mxu0 %v491
  %1192 = vmatmul.mubr.bf16.gmra.mxu0 %v490
  %v1193 = vpop.f32.mrf.mxu0
  %v1194 = vadd.f32 %v1097, %v1193
  %v1195 = vpop.f32.mrf.mxu0
  %v1196 = vpop.f32.mrf.mxu0
  %v1197 = vadd.f32 %v1100, %v1196
  %v1198 = vpop.f32.mrf.mxu0
  %1199 = vmatprep.mubr.bf16.mxu0 %v500
  %1200 = vmatmul.mubr.bf16.gmra.mxu0 %v499
  %v1201 = vpop.f32.mrf.mxu0
  %v1202 = vadd.f32 %v1105, %v1201
  %v1203 = vpop.f32.mrf.mxu0
  %v1204 = vpop.f32.mrf.mxu0
  %v1205 = vadd.f32 %v1108, %v1204
  %v1206 = vpop.f32.mrf.mxu0
  %1207 = vmatprep.mubr.bf16.mxu0 %v509
  %1208 = vmatmul.mubr.bf16.gmra.mxu0 %v508
  %v1209 = vpop.f32.mrf.mxu0
  %v1210 = vadd.f32 %v1113, %v1209
  %v1211 = vpop.f32.mrf.mxu0
  %v1212 = vpop.f32.mrf.mxu0
  %v1213 = vadd.f32 %v1116, %v1212
  %v1214 = vpop.f32.mrf.mxu0
  %1215 = vmatprep.mubr.bf16.mxu0 %v518
  %1216 = vmatmul.mubr.bf16.gmra.mxu0 %v517
  %v1217 = vpop.f32.mrf.mxu0
  %v1218 = vadd.f32 %v1121, %v1217
  %v1219 = vpop.f32.mrf.mxu0
  %v1220 = vpop.f32.mrf.mxu0
  %v1221 = vadd.f32 %v1124, %v1220
  %v1222 = vpop.f32.mrf.mxu0
  %1223 = vmatprep.mubr.bf16.mxu0 %v527
  %1224 = vmatmul.mubr.bf16.gmra.mxu0 %v526
  %v1225 = vpop.f32.mrf.mxu0
  %v1226 = vadd.f32 %v1129, %v1225
  %v1227 = vpop.f32.mrf.mxu0
  %v1228 = vpop.f32.mrf.mxu0
  %v1229 = vadd.f32 %v1132, %v1228
  %v1230 = vpop.f32.mrf.mxu0
  %1231 = vmatprep.mubr.bf16.mxu0 %v536
  %1232 = vmatmul.mubr.bf16.gmra.mxu0 %v535
  %v1233 = vpop.f32.mrf.mxu0
  %v1234 = vadd.f32 %v1137, %v1233
  %v1235 = vpop.f32.mrf.mxu0
  %v1236 = vpop.f32.mrf.mxu0
  %v1237 = vadd.f32 %v1140, %v1236
  %v1238 = vpop.f32.mrf.mxu0
  %1239 = vdwg.mxu0
  %1240 = vmatprep.subr.bf16.mxu0 0
  %1241 = vmatpush1.bf16.msra.mxu0 %v941
  %1242 = vmatprep.subr.bf16.mxu0 0
  %1243 = vmatpush1.bf16.msra.mxu0 %v940
  %1244 = vmatprep.subr.bf16.mxu0 0
  %1245 = vmatpush1.bf16.msra.mxu0 %v939
  %1246 = vmatprep.subr.bf16.mxu0 0
  %1247 = vmatpush1.bf16.msra.mxu0 %v938
  %1248 = vmatprep.subr.bf16.mxu0 0
  %1249 = vmatpush1.bf16.msra.mxu0 %v937
  %1250 = vmatprep.subr.bf16.mxu0 0
  %1251 = vmatpush1.bf16.msra.mxu0 %v936
  %1252 = vmatprep.subr.bf16.mxu0 0
  %1253 = vmatpush1.bf16.msra.mxu0 %v935
  %1254 = vmatprep.subr.bf16.mxu0 0
  %1255 = vmatpush1.bf16.msra.mxu0 %v934
  %1256 = vmatprep.subr.bf16.mxu0 0
  %1257 = vmatpush2.bf16.msra.mxu0 %v949
  %1258 = vmatprep.subr.bf16.mxu0 0
  %1259 = vmatpush2.bf16.msra.mxu0 %v948
  %1260 = vmatprep.subr.bf16.mxu0 0
  %1261 = vmatpush2.bf16.msra.mxu0 %v947
  %1262 = vmatprep.subr.bf16.mxu0 0
  %1263 = vmatpush2.bf16.msra.mxu0 %v946
  %1264 = vmatprep.subr.bf16.mxu0 0
  %1265 = vmatpush2.bf16.msra.mxu0 %v945
  %1266 = vmatprep.subr.bf16.mxu0 0
  %1267 = vmatpush2.bf16.msra.mxu0 %v944
  %1268 = vmatprep.subr.bf16.mxu0 0
  %1269 = vmatpush2.bf16.msra.mxu0 %v943
  %1270 = vmatprep.subr.bf16.mxu0 0
  %1271 = vmatpush2.bf16.msra.mxu0 %v942
  %1272 = vmatprep.mubr.bf16.mxu0 %v475
  %1273 = vmatmul.mubr.bf16.gmra.mxu0 %v474
  %v1274 = vpop.f32.mrf.mxu0
  %v1275 = vadd.f32 %v1178, %v1274
  %v1276 = vpop.f32.mrf.mxu0
  %v1277 = vpop.f32.mrf.mxu0
  %v1278 = vadd.f32 %v1181, %v1277
  %v1279 = vpop.f32.mrf.mxu0
  %1280 = vmatprep.mubr.bf16.mxu0 %v484
  %1281 = vmatmul.mubr.bf16.gmra.mxu0 %v483
  %v1282 = vpop.f32.mrf.mxu0
  %v1283 = vadd.f32 %v1186, %v1282
  %v1284 = vpop.f32.mrf.mxu0
  %v1285 = vpop.f32.mrf.mxu0
  %v1286 = vadd.f32 %v1189, %v1285
  %v1287 = vpop.f32.mrf.mxu0
  %1288 = vmatprep.mubr.bf16.mxu0 %v493
  %1289 = vmatmul.mubr.bf16.gmra.mxu0 %v492
  %v1290 = vpop.f32.mrf.mxu0
  %v1291 = vadd.f32 %v1194, %v1290
  %v1292 = vpop.f32.mrf.mxu0
  %v1293 = vpop.f32.mrf.mxu0
  %v1294 = vadd.f32 %v1197, %v1293
  %v1295 = vpop.f32.mrf.mxu0
  %1296 = vmatprep.mubr.bf16.mxu0 %v502
  %1297 = vmatmul.mubr.bf16.gmra.mxu0 %v501
  %v1298 = vpop.f32.mrf.mxu0
  %v1299 = vadd.f32 %v1202, %v1298
  %v1300 = vpop.f32.mrf.mxu0
  %v1301 = vpop.f32.mrf.mxu0
  %v1302 = vadd.f32 %v1205, %v1301
  %v1303 = vpop.f32.mrf.mxu0
  %1304 = vmatprep.mubr.bf16.mxu0 %v511
  %1305 = vmatmul.mubr.bf16.gmra.mxu0 %v510
  %v1306 = vpop.f32.mrf.mxu0
  %v1307 = vadd.f32 %v1210, %v1306
  %v1308 = vpop.f32.mrf.mxu0
  %v1309 = vpop.f32.mrf.mxu0
  %v1310 = vadd.f32 %v1213, %v1309
  %v1311 = vpop.f32.mrf.mxu0
  %1312 = vmatprep.mubr.bf16.mxu0 %v520
  %1313 = vmatmul.mubr.bf16.gmra.mxu0 %v519
  %v1314 = vpop.f32.mrf.mxu0
  %v1315 = vadd.f32 %v1218, %v1314
  %v1316 = vpop.f32.mrf.mxu0
  %v1317 = vpop.f32.mrf.mxu0
  %v1318 = vadd.f32 %v1221, %v1317
  %v1319 = vpop.f32.mrf.mxu0
  %1320 = vmatprep.mubr.bf16.mxu0 %v529
  %1321 = vmatmul.mubr.bf16.gmra.mxu0 %v528
  %v1322 = vpop.f32.mrf.mxu0
  %v1323 = vadd.f32 %v1226, %v1322
  %v1324 = vpop.f32.mrf.mxu0
  %v1325 = vpop.f32.mrf.mxu0
  %v1326 = vadd.f32 %v1229, %v1325
  %v1327 = vpop.f32.mrf.mxu0
  %1328 = vmatprep.mubr.bf16.mxu0 %v538
  %1329 = vmatmul.mubr.bf16.gmra.mxu0 %v537
  %v1330 = vpop.f32.mrf.mxu0
  %v1331 = vadd.f32 %v1234, %v1330
  %v1332 = vpop.f32.mrf.mxu0
  %v1333 = vpop.f32.mrf.mxu0
  %v1334 = vadd.f32 %v1237, %v1333
  %v1335 = vpop.f32.mrf.mxu0
  %1336 = vdwg.mxu0
  %1337 = vmatprep.subr.bf16.mxu0 0
  %1338 = vmatpush1.bf16.msra.mxu0 %v957
  %1339 = vmatprep.subr.bf16.mxu0 0
  %1340 = vmatpush1.bf16.msra.mxu0 %v956
  %1341 = vmatprep.subr.bf16.mxu0 0
  %1342 = vmatpush1.bf16.msra.mxu0 %v955
  %1343 = vmatprep.subr.bf16.mxu0 0
  %1344 = vmatpush1.bf16.msra.mxu0 %v954
  %1345 = vmatprep.subr.bf16.mxu0 0
  %1346 = vmatpush1.bf16.msra.mxu0 %v953
  %1347 = vmatprep.subr.bf16.mxu0 0
  %1348 = vmatpush1.bf16.msra.mxu0 %v952
  %1349 = vmatprep.subr.bf16.mxu0 0
  %1350 = vmatpush1.bf16.msra.mxu0 %v951
  %1351 = vmatprep.subr.bf16.mxu0 0
  %1352 = vmatpush1.bf16.msra.mxu0 %v950
  %1353 = vmatprep.subr.bf16.mxu0 0
  %1354 = vmatpush2.bf16.msra.mxu0 %v965
  %1355 = vmatprep.subr.bf16.mxu0 0
  %1356 = vmatpush2.bf16.msra.mxu0 %v964
  %1357 = vmatprep.subr.bf16.mxu0 0
  %1358 = vmatpush2.bf16.msra.mxu0 %v963
  %1359 = vmatprep.subr.bf16.mxu0 0
  %1360 = vmatpush2.bf16.msra.mxu0 %v962
  %1361 = vmatprep.subr.bf16.mxu0 0
  %1362 = vmatpush2.bf16.msra.mxu0 %v961
  %1363 = vmatprep.subr.bf16.mxu0 0
  %1364 = vmatpush2.bf16.msra.mxu0 %v960
  %1365 = vmatprep.subr.bf16.mxu0 0
  %1366 = vmatpush2.bf16.msra.mxu0 %v959
  %1367 = vmatprep.subr.bf16.mxu0 0
  %1368 = vmatpush2.bf16.msra.mxu0 %v958
  %1369 = vmatprep.mubr.bf16.mxu0 %v477
  %1370 = vmatmul.mubr.bf16.gmra.mxu0 %v476
  %v1371 = vpop.f32.mrf.mxu0
  %v1372 = vadd.f32 %v1275, %v1371
  %v1373 = vpop.f32.mrf.mxu0
  %v1374 = vpop.f32.mrf.mxu0
  %v1375 = vadd.f32 %v1278, %v1374
  %v1376 = vpop.f32.mrf.mxu0
  %1377 = vmatprep.mubr.bf16.mxu0 %v486
  %1378 = vmatmul.mubr.bf16.gmra.mxu0 %v485
  %v1379 = vpop.f32.mrf.mxu0
  %v1380 = vadd.f32 %v1283, %v1379
  %v1381 = vpop.f32.mrf.mxu0
  %v1382 = vpop.f32.mrf.mxu0
  %v1383 = vadd.f32 %v1286, %v1382
  %v1384 = vpop.f32.mrf.mxu0
  %1385 = vmatprep.mubr.bf16.mxu0 %v495
  %1386 = vmatmul.mubr.bf16.gmra.mxu0 %v494
  %v1387 = vpop.f32.mrf.mxu0
  %v1388 = vadd.f32 %v1291, %v1387
  %v1389 = vpop.f32.mrf.mxu0
  %v1390 = vpop.f32.mrf.mxu0
  %v1391 = vadd.f32 %v1294, %v1390
  %v1392 = vpop.f32.mrf.mxu0
  %1393 = vmatprep.mubr.bf16.mxu0 %v504
  %1394 = vmatmul.mubr.bf16.gmra.mxu0 %v503
  %v1395 = vpop.f32.mrf.mxu0
  %v1396 = vadd.f32 %v1299, %v1395
  %v1397 = vpop.f32.mrf.mxu0
  %v1398 = vpop.f32.mrf.mxu0
  %v1399 = vadd.f32 %v1302, %v1398
  %v1400 = vpop.f32.mrf.mxu0
  %1401 = vmatprep.mubr.bf16.mxu0 %v513
  %1402 = vmatmul.mubr.bf16.gmra.mxu0 %v512
  %v1403 = vpop.f32.mrf.mxu0
  %v1404 = vadd.f32 %v1307, %v1403
  %v1405 = vpop.f32.mrf.mxu0
  %v1406 = vpop.f32.mrf.mxu0
  %v1407 = vadd.f32 %v1310, %v1406
  %v1408 = vpop.f32.mrf.mxu0
  %1409 = vmatprep.mubr.bf16.mxu0 %v522
  %1410 = vmatmul.mubr.bf16.gmra.mxu0 %v521
  %v1411 = vpop.f32.mrf.mxu0
  %v1412 = vadd.f32 %v1315, %v1411
  %v1413 = vpop.f32.mrf.mxu0
  %v1414 = vpop.f32.mrf.mxu0
  %v1415 = vadd.f32 %v1318, %v1414
  %v1416 = vpop.f32.mrf.mxu0
  %1417 = vmatprep.mubr.bf16.mxu0 %v531
  %1418 = vmatmul.mubr.bf16.gmra.mxu0 %v530
  %v1419 = vpop.f32.mrf.mxu0
  %v1420 = vadd.f32 %v1323, %v1419
  %v1421 = vpop.f32.mrf.mxu0
  %v1422 = vpop.f32.mrf.mxu0
  %v1423 = vadd.f32 %v1326, %v1422
  %v1424 = vpop.f32.mrf.mxu0
  %1425 = vmatprep.mubr.bf16.mxu0 %v540
  %1426 = vmatmul.mubr.bf16.gmra.mxu0 %v539
  %v1427 = vpop.f32.mrf.mxu0
  %v1428 = vadd.f32 %v1331, %v1427
  %v1429 = vpop.f32.mrf.mxu0
  %v1430 = vpop.f32.mrf.mxu0
  %v1431 = vadd.f32 %v1334, %v1430
  %v1432 = vpop.f32.mrf.mxu0
  %1433 = vdwg.mxu0
  %1434 = vmatprep.subr.bf16.mxu0 0
  %1435 = vmatpush1.bf16.msra.mxu0 %v973
  %1436 = vmatprep.subr.bf16.mxu0 0
  %1437 = vmatpush1.bf16.msra.mxu0 %v972
  %1438 = vmatprep.subr.bf16.mxu0 0
  %1439 = vmatpush1.bf16.msra.mxu0 %v971
  %1440 = vmatprep.subr.bf16.mxu0 0
  %1441 = vmatpush1.bf16.msra.mxu0 %v970
  %1442 = vmatprep.subr.bf16.mxu0 0
  %1443 = vmatpush1.bf16.msra.mxu0 %v969
  %1444 = vmatprep.subr.bf16.mxu0 0
  %1445 = vmatpush1.bf16.msra.mxu0 %v968
  %1446 = vmatprep.subr.bf16.mxu0 0
  %1447 = vmatpush1.bf16.msra.mxu0 %v967
  %1448 = vmatprep.subr.bf16.mxu0 0
  %1449 = vmatpush1.bf16.msra.mxu0 %v966
  %1450 = vmatprep.subr.bf16.mxu0 0
  %1451 = vmatpush2.bf16.msra.mxu0 0
  %1452 = vmatprep.subr.bf16.mxu0 0
  %1453 = vmatpush2.bf16.msra.mxu0 0
  %1454 = vmatprep.subr.bf16.mxu0 0
  %1455 = vmatpush2.bf16.msra.mxu0 0
  %1456 = vmatprep.subr.bf16.mxu0 0
  %1457 = vmatpush2.bf16.msra.mxu0 0
  %1458 = vmatprep.subr.bf16.mxu0 0
  %1459 = vmatpush2.bf16.msra.mxu0 0
  %1460 = vmatprep.subr.bf16.mxu0 0
  %1461 = vmatpush2.bf16.msra.mxu0 0
  %1462 = vmatprep.subr.bf16.mxu0 0
  %1463 = vmatpush2.bf16.msra.mxu0 0
  %1464 = vmatprep.subr.bf16.mxu0 0
  %1465 = vmatpush2.bf16.msra.mxu0 0
  %1466 = vmatprep.mubr.bf16.mxu0 0
  %1467 = vmatmul.mubr.bf16.gmra.mxu0 %v478
  %v1468 = vpop.f32.mrf.mxu0
  %v1469 = vadd.f32 %v1372, %v1468
  %v1470 = vpop.f32.mrf.mxu0
  %v1471 = vpop.f32.mrf.mxu0
  %v1472 = vadd.f32 %v1375, %v1471
  %v1473 = vpop.f32.mrf.mxu0
  %1474 = vmatprep.mubr.bf16.mxu0 0
  %1475 = vmatmul.mubr.bf16.gmra.mxu0 %v487
  %v1476 = vpop.f32.mrf.mxu0
  %v1477 = vadd.f32 %v1380, %v1476
  %v1478 = vpop.f32.mrf.mxu0
  %v1479 = vpop.f32.mrf.mxu0
  %v1480 = vadd.f32 %v1383, %v1479
  %v1481 = vpop.f32.mrf.mxu0
  %1482 = vmatprep.mubr.bf16.mxu0 0
  %1483 = vmatmul.mubr.bf16.gmra.mxu0 %v496
  %v1484 = vpop.f32.mrf.mxu0
  %v1485 = vadd.f32 %v1388, %v1484
  %v1486 = vpop.f32.mrf.mxu0
  %v1487 = vpop.f32.mrf.mxu0
  %v1488 = vadd.f32 %v1391, %v1487
  %v1489 = vpop.f32.mrf.mxu0
  %1490 = vmatprep.mubr.bf16.mxu0 0
  %1491 = vmatmul.mubr.bf16.gmra.mxu0 %v505
  %v1492 = vpop.f32.mrf.mxu0
  %v1493 = vadd.f32 %v1396, %v1492
  %v1494 = vpop.f32.mrf.mxu0
  %v1495 = vpop.f32.mrf.mxu0
  %v1496 = vadd.f32 %v1399, %v1495
  %v1497 = vpop.f32.mrf.mxu0
  %1498 = vmatprep.mubr.bf16.mxu0 0
  %1499 = vmatmul.mubr.bf16.gmra.mxu0 %v514
  %v1500 = vpop.f32.mrf.mxu0
  %v1501 = vadd.f32 %v1404, %v1500
  %v1502 = vpop.f32.mrf.mxu0
  %v1503 = vpop.f32.mrf.mxu0
  %v1504 = vadd.f32 %v1407, %v1503
  %v1505 = vpop.f32.mrf.mxu0
  %1506 = vmatprep.mubr.bf16.mxu0 0
  %1507 = vmatmul.mubr.bf16.gmra.mxu0 %v523
  %v1508 = vpop.f32.mrf.mxu0
  %v1509 = vadd.f32 %v1412, %v1508
  %v1510 = vpop.f32.mrf.mxu0
  %v1511 = vpop.f32.mrf.mxu0
  %v1512 = vadd.f32 %v1415, %v1511
  %v1513 = vpop.f32.mrf.mxu0
  %1514 = vmatprep.mubr.bf16.mxu0 0
  %1515 = vmatmul.mubr.bf16.gmra.mxu0 %v532
  %v1516 = vpop.f32.mrf.mxu0
  %v1517 = vadd.f32 %v1420, %v1516
  %v1518 = vpop.f32.mrf.mxu0
  %v1519 = vpop.f32.mrf.mxu0
  %v1520 = vadd.f32 %v1423, %v1519
  %v1521 = vpop.f32.mrf.mxu0
  %1522 = vmatprep.mubr.bf16.mxu0 0
  %1523 = vmatmul.mubr.bf16.gmra.mxu0 %v541
  %v1524 = vpop.f32.mrf.mxu0
  %v1525 = vadd.f32 %v1428, %v1524
  %v1526 = vpop.f32.mrf.mxu0
  %v1527 = vpop.f32.mrf.mxu0
  %v1528 = vadd.f32 %v1431, %v1527
  %v1529 = vpop.f32.mrf.mxu0
  %1530 = vdwg.mxu0
  %v1531 = vmax.f32 %v1469, 0.0
  %v1532 = vmax.f32 %v1472, 0.0
  %v1533 = vmax.f32 %v1477, 0.0
  %v1534 = vmax.f32 %v1480, 0.0
  %v1535 = vmax.f32 %v1485, 0.0
  %v1536 = vmax.f32 %v1488, 0.0
  %v1537 = vmax.f32 %v1493, 0.0
  %v1538 = vmax.f32 %v1496, 0.0
  %v1539 = vmax.f32 %v1501, 0.0
  %v1540 = vmax.f32 %v1504, 0.0
  %v1541 = vmax.f32 %v1509, 0.0
  %v1542 = vmax.f32 %v1512, 0.0
  %v1543 = vmax.f32 %v1517, 0.0
  %v1544 = vmax.f32 %v1520, 0.0
  %v1545 = vmax.f32 %v1525, 0.0
  %v1546 = vmax.f32 %v1528, 0.0
  %v1547 = vpack.c.bf16 %v1532, %v1531
  %v1548 = vpack.c.bf16 %v1534, %v1533
  %v1549 = vpack.c.bf16 %v1536, %v1535
  %v1550 = vpack.c.bf16 %v1538, %v1537
  %v1551 = vpack.c.bf16 %v1540, %v1539
  %v1552 = vpack.c.bf16 %v1542, %v1541
  %v1553 = vpack.c.bf16 %v1544, %v1543
  %v1554 = vpack.c.bf16 %v1546, %v1545
  %v1563 = vunpack.c.l.b16 %v1547
  %v1564 = vunpack.c.h.b16 %v1547
  %v1565 = vunpack.c.l.b16 %v1548
  %v1566 = vunpack.c.h.b16 %v1548
  %v1567 = vunpack.c.l.b16 %v1549
  %v1568 = vunpack.c.h.b16 %v1549
  %v1569 = vunpack.c.l.b16 %v1550
  %v1570 = vunpack.c.h.b16 %v1550
  %v1571 = vunpack.c.l.b16 %v1551
  %v1572 = vunpack.c.h.b16 %v1551
  %v1573 = vunpack.c.l.b16 %v1552
  %v1574 = vunpack.c.h.b16 %v1552
  %v1575 = vunpack.c.l.b16 %v1553
  %v1576 = vunpack.c.h.b16 %v1553
  %v1577 = vunpack.c.l.b16 %v1554
  %v1578 = vunpack.c.h.b16 %v1554
  %v1579 = vpack.c.b16 %v1563, %v1563
  %v1580 = vpack.c.b16 %v1564, %v1564
  %v1581 = vpack.c.b16 %v1565, %v1565
  %v1582 = vpack.c.b16 %v1566, %v1566
  %v1583 = vpack.c.b16 %v1567, %v1567
  %v1584 = vpack.c.b16 %v1568, %v1568
  %v1585 = vpack.c.b16 %v1569, %v1569
  %v1586 = vpack.c.b16 %v1570, %v1570
  %v1587 = vpack.c.b16 %v1571, %v1571
  %v1588 = vpack.c.b16 %v1572, %v1572
  %v1589 = vpack.c.b16 %v1573, %v1573
  %v1590 = vpack.c.b16 %v1574, %v1574
  %v1591 = vpack.c.b16 %v1575, %v1575
  %v1592 = vpack.c.b16 %v1576, %v1576
  %v1593 = vpack.c.b16 %v1577, %v1577
  %v1594 = vpack.c.b16 %v1578, %v1578
  %1611 = vst [vmem:[%s3] sm:$0xf] %v1579
  %1612 = vst [vmem:[%s3 + $0x4] sm:$0xf] %v1580
  %1613 = vst [vmem:[%s3 + $0x8] sm:$0xf] %v1581
  %1614 = vst [vmem:[%s3 + $0xc] sm:$0xf] %v1582
  %1615 = vst [vmem:[%s3 + $0x10] sm:$0xf] %v1583
  %1616 = vst [vmem:[%s3 + $0x14] sm:$0xf] %v1584
  %1617 = vst [vmem:[%s3 + $0x18] sm:$0xf] %v1585
  %1618 = vst [vmem:[%s3 + $0x1c] sm:$0xf] %v1586
  %1619 = vst [vmem:[%s3 + $0x20] sm:$0xf] %v1587
  %1620 = vst [vmem:[%s3 + $0x24] sm:$0xf] %v1588
  %1621 = vst [vmem:[%s3 + $0x28] sm:$0xf] %v1589
  %1622 = vst [vmem:[%s3 + $0x2c] sm:$0xf] %v1590
  %1623 = vst [vmem:[%s3 + $0x30] sm:$0xf] %v1591
  %1624 = vst [vmem:[%s3 + $0x34] sm:$0xf] %v1592
  %1625 = vst [vmem:[%s3 + $0x38] sm:$0xf] %v1593
  %1626 = vst [vmem:[%s3 + $0x3c] sm:$0xf] %v1594
  // Predicated region
  $region14: #{_lambda_.9} parent=0 // pred_check
    _
  $region15: #{_lambda_.9} parent=0 // pred_check_branch
    %1628 = sbr.rel (0) target = $region17
  $region16: #{_lambda_.9} parent=0 // pred_region
    _
  $region17: #{_lambda_.9} parent=0 // pred_fallthru
    _
  // Predicated region
  $region18: #{_lambda_.9} parent=0 // pred_check
    _
  $region19: #{_lambda_.9} parent=0 // pred_check_branch
    %1630 = sbr.rel (0) target = $region21
  $region20: #{_lambda_.9} parent=0 // pred_region
    _
  $region21: #{_lambda_.9} parent=0 // pred_fallthru
    _

// kernel: _lambda_.10
$region0: #{_lambda_.10}
  #allocation0 [shape = 'u32[]', space=smem, size = 0x4, offset = 0x4, fixed_abs, tag = 'smem constant byte address 0x4 - core index']
  #allocation1 [shape = 'u32[144,128]{1,0:T(1,128)}', space=vmem, size = 0x12000, scoped, tag = 'internal scratch']
  %s0 = inlined_call_operand.vmem [shape: bf16[128,1152], index: 0, kind: input, shape index: {}]
  %s1 = inlined_call_operand.vmem [shape: bf16[1152,128], index: 1, kind: input, shape index: {}]
  %s2 = inlined_call_operand.vmem [shape: f32[1,128], index: 2, kind: input, shape index: {}]
  %s3 = inlined_call_operand.vmem [shape: f32[32,128], index: 3, kind: input, shape index: {}]
  %s4 = inlined_call_operand.vmem [shape: bf16[32,128], index: 4, kind: output, shape index: {}]
  %s5 = sld [smem:[#allocation0]]
  $region26: #{_lambda_.10} parent=0
    _
  %s7 = ssub.s32 1, %s5
  %s8 = scalar_select 0, %s7, %s5
  // Predicated region
  $region2: #{_lambda_.10} parent=0 // pred_check
    _
  $region3: #{_lambda_.10} parent=0 // pred_check_branch
    %10 = sbr.rel (0) target = $region5
  $region4: #{_lambda_.10} parent=0 // pred_region
    _
  $region5: #{_lambda_.10} parent=0 // pred_fallthru
    _
  // Predicated region
  $region6: #{_lambda_.10} parent=0 // pred_check
    _
  $region7: #{_lambda_.10} parent=0 // pred_check_branch
    %12 = sbr.rel (0) target = $region9
  $region8: #{_lambda_.10} parent=0 // pred_region
    _
  $region9: #{_lambda_.10} parent=0 // pred_fallthru
    _
  // Predicated region
  $region10: #{_lambda_.10} parent=0 // pred_check
    _
  $region11: #{_lambda_.10} parent=0 // pred_check_branch
    %14 = sbr.rel (0) target = $region13
  $region12: #{_lambda_.10} parent=0 // pred_region
    _
  $region13: #{_lambda_.10} parent=0 // pred_fallthru
    _
  // Predicated region
  $region14: #{_lambda_.10} parent=0 // pred_check
    _
  $region15: #{_lambda_.10} parent=0 // pred_check_branch
    %16 = sbr.rel (0) target = $region17
  $region16: #{_lambda_.10} parent=0 // pred_region
    _
  $region17: #{_lambda_.10} parent=0 // pred_fallthru
    _
  %v18 = vld [vmem:[%s0] sm:$0xff]
  %v19 = vld [vmem:[%s0 + $0x8] sm:$0xff]
  %v20 = vld [vmem:[%s0 + $0x10] sm:$0xff]
  %v21 = vld [vmem:[%s0 + $0x18] sm:$0xff]
  %v22 = vld [vmem:[%s0 + $0x20] sm:$0xf]
  %v23 = vld [vmem:[%s0 + $0x24] sm:$0xff]
  %v24 = vld [vmem:[%s0 + $0x2c] sm:$0xff]
  %v25 = vld [vmem:[%s0 + $0x34] sm:$0xff]
  %v26 = vld [vmem:[%s0 + $0x3c] sm:$0xff]
  %v27 = vld [vmem:[%s0 + $0x44] sm:$0xf]
  %v28 = vld [vmem:[%s0 + $0x48] sm:$0xff]
  %v29 = vld [vmem:[%s0 + $0x50] sm:$0xff]
  %v30 = vld [vmem:[%s0 + $0x58] sm:$0xff]
  %v31 = vld [vmem:[%s0 + $0x60] sm:$0xff]
  %v32 = vld [vmem:[%s0 + $0x68] sm:$0xf]
  %v33 = vld [vmem:[%s0 + $0x6c] sm:$0xff]
  %v34 = vld [vmem:[%s0 + $0x74] sm:$0xff]
  %v35 = vld [vmem:[%s0 + $0x7c] sm:$0xff]
  %v36 = vld [vmem:[%s0 + $0x84] sm:$0xff]
  %v37 = vld [vmem:[%s0 + $0x8c] sm:$0xf]
  %v38 = vld [vmem:[%s0 + $0x90] sm:$0xff]
  %v39 = vld [vmem:[%s0 + $0x98] sm:$0xff]
  %v40 = vld [vmem:[%s0 + $0xa0] sm:$0xff]
  %v41 = vld [vmem:[%s0 + $0xa8] sm:$0xff]
  %v42 = vld [vmem:[%s0 + $0xb0] sm:$0xf]
  %v43 = vld [vmem:[%s0 + $0xb4] sm:$0xff]
  %v44 = vld [vmem:[%s0 + $0xbc] sm:$0xff]
  %v45 = vld [vmem:[%s0 + $0xc4] sm:$0xff]
  %v46 = vld [vmem:[%s0 + $0xcc] sm:$0xff]
  %v47 = vld [vmem:[%s0 + $0xd4] sm:$0xf]
  %v48 = vld [vmem:[%s0 + $0xd8] sm:$0xff]
  %v49 = vld [vmem:[%s0 + $0xe0] sm:$0xff]
  %v50 = vld [vmem:[%s0 + $0xe8] sm:$0xff]
  %v51 = vld [vmem:[%s0 + $0xf0] sm:$0xff]
  %v52 = vld [vmem:[%s0 + $0xf8] sm:$0xf]
  %v53 = vld [vmem:[%s0 + $0xfc] sm:$0xff]
  %v54 = vld [vmem:[%s0 + $0x104] sm:$0xff]
  %v55 = vld [vmem:[%s0 + $0x10c] sm:$0xff]
  %v56 = vld [vmem:[%s0 + $0x114] sm:$0xff]
  %v57 = vld [vmem:[%s0 + $0x11c] sm:$0xf]
  %v58 = vld [vmem:[%s0 + $0x120] sm:$0xff]
  %v59 = vld [vmem:[%s0 + $0x128] sm:$0xff]
  %v60 = vld [vmem:[%s0 + $0x130] sm:$0xff]
  %v61 = vld [vmem:[%s0 + $0x138] sm:$0xff]
  %v62 = vld [vmem:[%s0 + $0x140] sm:$0xf]
  %v63 = vld [vmem:[%s0 + $0x144] sm:$0xff]
  %v64 = vld [vmem:[%s0 + $0x14c] sm:$0xff]
  %v65 = vld [vmem:[%s0 + $0x154] sm:$0xff]
  %v66 = vld [vmem:[%s0 + $0x15c] sm:$0xff]
  %v67 = vld [vmem:[%s0 + $0x164] sm:$0xf]
  %v68 = vld [vmem:[%s0 + $0x168] sm:$0xff]
  %v69 = vld [vmem:[%s0 + $0x170] sm:$0xff]
  %v70 = vld [vmem:[%s0 + $0x178] sm:$0xff]
  %v71 = vld [vmem:[%s0 + $0x180] sm:$0xff]
  %v72 = vld [vmem:[%s0 + $0x188] sm:$0xf]
  %v73 = vld [vmem:[%s0 + $0x18c] sm:$0xff]
  %v74 = vld [vmem:[%s0 + $0x194] sm:$0xff]
  %v75 = vld [vmem:[%s0 + $0x19c] sm:$0xff]
  %v76 = vld [vmem:[%s0 + $0x1a4] sm:$0xff]
  %v77 = vld [vmem:[%s0 + $0x1ac] sm:$0xf]
  %v78 = vld [vmem:[%s0 + $0x1b0] sm:$0xff]
  %v79 = vld [vmem:[%s0 + $0x1b8] sm:$0xff]
  %v80 = vld [vmem:[%s0 + $0x1c0] sm:$0xff]
  %v81 = vld [vmem:[%s0 + $0x1c8] sm:$0xff]
  %v82 = vld [vmem:[%s0 + $0x1d0] sm:$0xf]
  %v83 = vld [vmem:[%s0 + $0x1d4] sm:$0xff]
  %v84 = vld [vmem:[%s0 + $0x1dc] sm:$0xff]
  %v85 = vld [vmem:[%s0 + $0x1e4] sm:$0xff]
  %v86 = vld [vmem:[%s0 + $0x1ec] sm:$0xff]
  %v87 = vld [vmem:[%s0 + $0x1f4] sm:$0xf]
  %v88 = vld [vmem:[%s0 + $0x1f8] sm:$0xff]
  %v89 = vld [vmem:[%s0 + $0x200] sm:$0xff]
  %v90 = vld [vmem:[%s0 + $0x208] sm:$0xff]
  %v91 = vld [vmem:[%s0 + $0x210] sm:$0xff]
  %v92 = vld [vmem:[%s0 + $0x218] sm:$0xf]
  %v93 = vld [vmem:[%s0 + $0x21c] sm:$0xff]
  %v94 = vld [vmem:[%s0 + $0x224] sm:$0xff]
  %v95 = vld [vmem:[%s0 + $0x22c] sm:$0xff]
  %v96 = vld [vmem:[%s0 + $0x234] sm:$0xff]
  %v97 = vld [vmem:[%s0 + $0x23c] sm:$0xf]
  %v98 = vld [vmem:[%s1] sm:$0xf]
  %v99 = vld [vmem:[%s1 + $0x4] sm:$0xf]
  %v100 = vld [vmem:[%s1 + $0x8] sm:$0xf]
  %v101 = vld [vmem:[%s1 + $0xc] sm:$0xf]
  %v102 = vld [vmem:[%s1 + $0x10] sm:$0xf]
  %v103 = vld [vmem:[%s1 + $0x14] sm:$0xf]
  %v104 = vld [vmem:[%s1 + $0x18] sm:$0xf]
  %v105 = vld [vmem:[%s1 + $0x1c] sm:$0xf]
  %v106 = vld [vmem:[%s1 + $0x20] sm:$0xf]
  %v107 = vld [vmem:[%s1 + $0x24] sm:$0xf]
  %v108 = vld [vmem:[%s1 + $0x28] sm:$0xf]
  %v109 = vld [vmem:[%s1 + $0x2c] sm:$0xf]
  %v110 = vld [vmem:[%s1 + $0x30] sm:$0xf]
  %v111 = vld [vmem:[%s1 + $0x34] sm:$0xf]
  %v112 = vld [vmem:[%s1 + $0x38] sm:$0xf]
  %v113 = vld [vmem:[%s1 + $0x3c] sm:$0xf]
  %v114 = vld [vmem:[%s1 + $0x40] sm:$0xf]
  %v115 = vld [vmem:[%s1 + $0x44] sm:$0xf]
  %v116 = vld [vmem:[%s1 + $0x48] sm:$0xf]
  %v117 = vld [vmem:[%s1 + $0x4c] sm:$0xf]
  %v118 = vld [vmem:[%s1 + $0x50] sm:$0xf]
  %v119 = vld [vmem:[%s1 + $0x54] sm:$0xf]
  %v120 = vld [vmem:[%s1 + $0x58] sm:$0xf]
  %v121 = vld [vmem:[%s1 + $0x5c] sm:$0xf]
  %v122 = vld [vmem:[%s1 + $0x60] sm:$0xf]
  %v123 = vld [vmem:[%s1 + $0x64] sm:$0xf]
  %v124 = vld [vmem:[%s1 + $0x68] sm:$0xf]
  %v125 = vld [vmem:[%s1 + $0x6c] sm:$0xf]
  %v126 = vld [vmem:[%s1 + $0x70] sm:$0xf]
  %v127 = vld [vmem:[%s1 + $0x74] sm:$0xf]
  %v128 = vld [vmem:[%s1 + $0x78] sm:$0xf]
  %v129 = vld [vmem:[%s1 + $0x7c] sm:$0xf]
  %v130 = vld [vmem:[%s1 + $0x80] sm:$0xf]
  %v131 = vld [vmem:[%s1 + $0x84] sm:$0xf]
  %v132 = vld [vmem:[%s1 + $0x88] sm:$0xf]
  %v133 = vld [vmem:[%s1 + $0x8c] sm:$0xf]
  %v134 = vld [vmem:[%s1 + $0x90] sm:$0xf]
  %v135 = vld [vmem:[%s1 + $0x94] sm:$0xf]
  %v136 = vld [vmem:[%s1 + $0x98] sm:$0xf]
  %v137 = vld [vmem:[%s1 + $0x9c] sm:$0xf]
  %v138 = vld [vmem:[%s1 + $0xa0] sm:$0xf]
  %v139 = vld [vmem:[%s1 + $0xa4] sm:$0xf]
  %v140 = vld [vmem:[%s1 + $0xa8] sm:$0xf]
  %v141 = vld [vmem:[%s1 + $0xac] sm:$0xf]
  %v142 = vld [vmem:[%s1 + $0xb0] sm:$0xf]
  %v143 = vld [vmem:[%s1 + $0xb4] sm:$0xf]
  %v144 = vld [vmem:[%s1 + $0xb8] sm:$0xf]
  %v145 = vld [vmem:[%s1 + $0xbc] sm:$0xf]
  %v146 = vld [vmem:[%s1 + $0xc0] sm:$0xf]
  %v147 = vld [vmem:[%s1 + $0xc4] sm:$0xf]
  %v148 = vld [vmem:[%s1 + $0xc8] sm:$0xf]
  %v149 = vld [vmem:[%s1 + $0xcc] sm:$0xf]
  %v150 = vld [vmem:[%s1 + $0xd0] sm:$0xf]
  %v151 = vld [vmem:[%s1 + $0xd4] sm:$0xf]
  %v152 = vld [vmem:[%s1 + $0xd8] sm:$0xf]
  %v153 = vld [vmem:[%s1 + $0xdc] sm:$0xf]
  %v154 = vld [vmem:[%s1 + $0xe0] sm:$0xf]
  %v155 = vld [vmem:[%s1 + $0xe4] sm:$0xf]
  %v156 = vld [vmem:[%s1 + $0xe8] sm:$0xf]
  %v157 = vld [vmem:[%s1 + $0xec] sm:$0xf]
  %v158 = vld [vmem:[%s1 + $0xf0] sm:$0xf]
  %v159 = vld [vmem:[%s1 + $0xf4] sm:$0xf]
  %v160 = vld [vmem:[%s1 + $0xf8] sm:$0xf]
  %v161 = vld [vmem:[%s1 + $0xfc] sm:$0xf]
  %v162 = vld [vmem:[%s1 + $0x100] sm:$0xf]
  %v163 = vld [vmem:[%s1 + $0x104] sm:$0xf]
  %v164 = vld [vmem:[%s1 + $0x108] sm:$0xf]
  %v165 = vld [vmem:[%s1 + $0x10c] sm:$0xf]
  %v166 = vld [vmem:[%s1 + $0x110] sm:$0xf]
  %v167 = vld [vmem:[%s1 + $0x114] sm:$0xf]
  %v168 = vld [vmem:[%s1 + $0x118] sm:$0xf]
  %v169 = vld [vmem:[%s1 + $0x11c] sm:$0xf]
  %v170 = vld [vmem:[%s1 + $0x120] sm:$0xf]
  %v171 = vld [vmem:[%s1 + $0x124] sm:$0xf]
  %v172 = vld [vmem:[%s1 + $0x128] sm:$0xf]
  %v173 = vld [vmem:[%s1 + $0x12c] sm:$0xf]
  %v174 = vld [vmem:[%s1 + $0x130] sm:$0xf]
  %v175 = vld [vmem:[%s1 + $0x134] sm:$0xf]
  %v176 = vld [vmem:[%s1 + $0x138] sm:$0xf]
  %v177 = vld [vmem:[%s1 + $0x13c] sm:$0xf]
  %v178 = vld [vmem:[%s1 + $0x140] sm:$0xf]
  %v179 = vld [vmem:[%s1 + $0x144] sm:$0xf]
  %v180 = vld [vmem:[%s1 + $0x148] sm:$0xf]
  %v181 = vld [vmem:[%s1 + $0x14c] sm:$0xf]
  %v182 = vld [vmem:[%s1 + $0x150] sm:$0xf]
  %v183 = vld [vmem:[%s1 + $0x154] sm:$0xf]
  %v184 = vld [vmem:[%s1 + $0x158] sm:$0xf]
  %v185 = vld [vmem:[%s1 + $0x15c] sm:$0xf]
  %v186 = vld [vmem:[%s1 + $0x160] sm:$0xf]
  %v187 = vld [vmem:[%s1 + $0x164] sm:$0xf]
  %v188 = vld [vmem:[%s1 + $0x168] sm:$0xf]
  %v189 = vld [vmem:[%s1 + $0x16c] sm:$0xf]
  %v190 = vld [vmem:[%s1 + $0x170] sm:$0xf]
  %v191 = vld [vmem:[%s1 + $0x174] sm:$0xf]
  %v192 = vld [vmem:[%s1 + $0x178] sm:$0xf]
  %v193 = vld [vmem:[%s1 + $0x17c] sm:$0xf]
  %v194 = vld [vmem:[%s1 + $0x180] sm:$0xf]
  %v195 = vld [vmem:[%s1 + $0x184] sm:$0xf]
  %v196 = vld [vmem:[%s1 + $0x188] sm:$0xf]
  %v197 = vld [vmem:[%s1 + $0x18c] sm:$0xf]
  %v198 = vld [vmem:[%s1 + $0x190] sm:$0xf]
  %v199 = vld [vmem:[%s1 + $0x194] sm:$0xf]
  %v200 = vld [vmem:[%s1 + $0x198] sm:$0xf]
  %v201 = vld [vmem:[%s1 + $0x19c] sm:$0xf]
  %v202 = vld [vmem:[%s1 + $0x1a0] sm:$0xf]
  %v203 = vld [vmem:[%s1 + $0x1a4] sm:$0xf]
  %v204 = vld [vmem:[%s1 + $0x1a8] sm:$0xf]
  %v205 = vld [vmem:[%s1 + $0x1ac] sm:$0xf]
  %v206 = vld [vmem:[%s1 + $0x1b0] sm:$0xf]
  %v207 = vld [vmem:[%s1 + $0x1b4] sm:$0xf]
  %v208 = vld [vmem:[%s1 + $0x1b8] sm:$0xf]
  %v209 = vld [vmem:[%s1 + $0x1bc] sm:$0xf]
  %v210 = vld [vmem:[%s1 + $0x1c0] sm:$0xf]
  %v211 = vld [vmem:[%s1 + $0x1c4] sm:$0xf]
  %v212 = vld [vmem:[%s1 + $0x1c8] sm:$0xf]
  %v213 = vld [vmem:[%s1 + $0x1cc] sm:$0xf]
  %v214 = vld [vmem:[%s1 + $0x1d0] sm:$0xf]
  %v215 = vld [vmem:[%s1 + $0x1d4] sm:$0xf]
  %v216 = vld [vmem:[%s1 + $0x1d8] sm:$0xf]
  %v217 = vld [vmem:[%s1 + $0x1dc] sm:$0xf]
  %v218 = vld [vmem:[%s1 + $0x1e0] sm:$0xf]
  %v219 = vld [vmem:[%s1 + $0x1e4] sm:$0xf]
  %v220 = vld [vmem:[%s1 + $0x1e8] sm:$0xf]
  %v221 = vld [vmem:[%s1 + $0x1ec] sm:$0xf]
  %v222 = vld [vmem:[%s1 + $0x1f0] sm:$0xf]
  %v223 = vld [vmem:[%s1 + $0x1f4] sm:$0xf]
  %v224 = vld [vmem:[%s1 + $0x1f8] sm:$0xf]
  %v225 = vld [vmem:[%s1 + $0x1fc] sm:$0xf]
  %v226 = vld [vmem:[%s1 + $0x200] sm:$0xf]
  %v227 = vld [vmem:[%s1 + $0x204] sm:$0xf]
  %v228 = vld [vmem:[%s1 + $0x208] sm:$0xf]
  %v229 = vld [vmem:[%s1 + $0x20c] sm:$0xf]
  %v230 = vld [vmem:[%s1 + $0x210] sm:$0xf]
  %v231 = vld [vmem:[%s1 + $0x214] sm:$0xf]
  %v232 = vld [vmem:[%s1 + $0x218] sm:$0xf]
  %v233 = vld [vmem:[%s1 + $0x21c] sm:$0xf]
  %v234 = vld [vmem:[%s1 + $0x220] sm:$0xf]
  %v235 = vld [vmem:[%s1 + $0x224] sm:$0xf]
  %v236 = vld [vmem:[%s1 + $0x228] sm:$0xf]
  %v237 = vld [vmem:[%s1 + $0x22c] sm:$0xf]
  %v238 = vld [vmem:[%s1 + $0x230] sm:$0xf]
  %v239 = vld [vmem:[%s1 + $0x234] sm:$0xf]
  %v240 = vld [vmem:[%s1 + $0x238] sm:$0xf]
  %v241 = vld [vmem:[%s1 + $0x23c] sm:$0xf]
  %v242 = vld [vmem:[%s2] sm:$0x1]
  %v244 = vlaneseq
  %v245 = vshrl.u32 %v244, 7
  %v246 = vsub.s32 0, %v245
  %v247 = vrot.slane %v242, %v246
  %v329 = vunpack.c.l.b16 %v18
  %v330 = vunpack.c.h.b16 %v18
  %v331 = vunpack.c.l.b16 %v19
  %v332 = vunpack.c.h.b16 %v19
  %v333 = vunpack.c.l.b16 %v20
  %v334 = vunpack.c.h.b16 %v20
  %v335 = vunpack.c.l.b16 %v21
  %v336 = vunpack.c.h.b16 %v21
  %v337 = vunpack.c.l.b16 %v22
  %v338 = vunpack.c.l.b16 %v23
  %v339 = vunpack.c.h.b16 %v23
  %v340 = vunpack.c.l.b16 %v24
  %v341 = vunpack.c.h.b16 %v24
  %v342 = vunpack.c.l.b16 %v25
  %v343 = vunpack.c.h.b16 %v25
  %v344 = vunpack.c.l.b16 %v26
  %v345 = vunpack.c.h.b16 %v26
  %v346 = vunpack.c.l.b16 %v27
  %v347 = vunpack.c.l.b16 %v28
  %v348 = vunpack.c.h.b16 %v28
  %v349 = vunpack.c.l.b16 %v29
  %v350 = vunpack.c.h.b16 %v29
  %v351 = vunpack.c.l.b16 %v30
  %v352 = vunpack.c.h.b16 %v30
  %v353 = vunpack.c.l.b16 %v31
  %v354 = vunpack.c.h.b16 %v31
  %v355 = vunpack.c.l.b16 %v32
  %v356 = vunpack.c.l.b16 %v33
  %v357 = vunpack.c.h.b16 %v33
  %v358 = vunpack.c.l.b16 %v34
  %v359 = vunpack.c.h.b16 %v34
  %v360 = vunpack.c.l.b16 %v35
  %v361 = vunpack.c.h.b16 %v35
  %v362 = vunpack.c.l.b16 %v36
  %v363 = vunpack.c.h.b16 %v36
  %v364 = vunpack.c.l.b16 %v37
  %v365 = vunpack.c.l.b16 %v38
  %v366 = vunpack.c.h.b16 %v38
  %v367 = vunpack.c.l.b16 %v39
  %v368 = vunpack.c.h.b16 %v39
  %v369 = vunpack.c.l.b16 %v40
  %v370 = vunpack.c.h.b16 %v40
  %v371 = vunpack.c.l.b16 %v41
  %v372 = vunpack.c.h.b16 %v41
  %v373 = vunpack.c.l.b16 %v42
  %v374 = vunpack.c.l.b16 %v43
  %v375 = vunpack.c.h.b16 %v43
  %v376 = vunpack.c.l.b16 %v44
  %v377 = vunpack.c.h.b16 %v44
  %v378 = vunpack.c.l.b16 %v45
  %v379 = vunpack.c.h.b16 %v45
  %v380 = vunpack.c.l.b16 %v46
  %v381 = vunpack.c.h.b16 %v46
  %v382 = vunpack.c.l.b16 %v47
  %v383 = vunpack.c.l.b16 %v48
  %v384 = vunpack.c.h.b16 %v48
  %v385 = vunpack.c.l.b16 %v49
  %v386 = vunpack.c.h.b16 %v49
  %v387 = vunpack.c.l.b16 %v50
  %v388 = vunpack.c.h.b16 %v50
  %v389 = vunpack.c.l.b16 %v51
  %v390 = vunpack.c.h.b16 %v51
  %v391 = vunpack.c.l.b16 %v52
  %v392 = vunpack.c.l.b16 %v53
  %v393 = vunpack.c.h.b16 %v53
  %v394 = vunpack.c.l.b16 %v54
  %v395 = vunpack.c.h.b16 %v54
  %v396 = vunpack.c.l.b16 %v55
  %v397 = vunpack.c.h.b16 %v55
  %v398 = vunpack.c.l.b16 %v56
  %v399 = vunpack.c.h.b16 %v56
  %v400 = vunpack.c.l.b16 %v57
  %v401 = vunpack.c.l.b16 %v58
  %v402 = vunpack.c.h.b16 %v58
  %v403 = vunpack.c.l.b16 %v59
  %v404 = vunpack.c.h.b16 %v59
  %v405 = vunpack.c.l.b16 %v60
  %v406 = vunpack.c.h.b16 %v60
  %v407 = vunpack.c.l.b16 %v61
  %v408 = vunpack.c.h.b16 %v61
  %v409 = vunpack.c.l.b16 %v62
  %v410 = vunpack.c.l.b16 %v63
  %v411 = vunpack.c.h.b16 %v63
  %v412 = vunpack.c.l.b16 %v64
  %v413 = vunpack.c.h.b16 %v64
  %v414 = vunpack.c.l.b16 %v65
  %v415 = vunpack.c.h.b16 %v65
  %v416 = vunpack.c.l.b16 %v66
  %v417 = vunpack.c.h.b16 %v66
  %v418 = vunpack.c.l.b16 %v67
  %v419 = vunpack.c.l.b16 %v68
  %v420 = vunpack.c.h.b16 %v68
  %v421 = vunpack.c.l.b16 %v69
  %v422 = vunpack.c.h.b16 %v69
  %v423 = vunpack.c.l.b16 %v70
  %v424 = vunpack.c.h.b16 %v70
  %v425 = vunpack.c.l.b16 %v71
  %v426 = vunpack.c.h.b16 %v71
  %v427 = vunpack.c.l.b16 %v72
  %v428 = vunpack.c.l.b16 %v73
  %v429 = vunpack.c.h.b16 %v73
  %v430 = vunpack.c.l.b16 %v74
  %v431 = vunpack.c.h.b16 %v74
  %v432 = vunpack.c.l.b16 %v75
  %v433 = vunpack.c.h.b16 %v75
  %v434 = vunpack.c.l.b16 %v76
  %v435 = vunpack.c.h.b16 %v76
  %v436 = vunpack.c.l.b16 %v77
  %v437 = vunpack.c.l.b16 %v78
  %v438 = vunpack.c.h.b16 %v78
  %v439 = vunpack.c.l.b16 %v79
  %v440 = vunpack.c.h.b16 %v79
  %v441 = vunpack.c.l.b16 %v80
  %v442 = vunpack.c.h.b16 %v80
  %v443 = vunpack.c.l.b16 %v81
  %v444 = vunpack.c.h.b16 %v81
  %v445 = vunpack.c.l.b16 %v82
  %v446 = vunpack.c.l.b16 %v83
  %v447 = vunpack.c.h.b16 %v83
  %v448 = vunpack.c.l.b16 %v84
  %v449 = vunpack.c.h.b16 %v84
  %v450 = vunpack.c.l.b16 %v85
  %v451 = vunpack.c.h.b16 %v85
  %v452 = vunpack.c.l.b16 %v86
  %v453 = vunpack.c.h.b16 %v86
  %v454 = vunpack.c.l.b16 %v87
  %v455 = vunpack.c.l.b16 %v88
  %v456 = vunpack.c.h.b16 %v88
  %v457 = vunpack.c.l.b16 %v89
  %v458 = vunpack.c.h.b16 %v89
  %v459 = vunpack.c.l.b16 %v90
  %v460 = vunpack.c.h.b16 %v90
  %v461 = vunpack.c.l.b16 %v91
  %v462 = vunpack.c.h.b16 %v91
  %v463 = vunpack.c.l.b16 %v92
  %v464 = vunpack.c.l.b16 %v93
  %v465 = vunpack.c.h.b16 %v93
  %v466 = vunpack.c.l.b16 %v94
  %v467 = vunpack.c.h.b16 %v94
  %v468 = vunpack.c.l.b16 %v95
  %v469 = vunpack.c.h.b16 %v95
  %v470 = vunpack.c.l.b16 %v96
  %v471 = vunpack.c.h.b16 %v96
  %v472 = vunpack.c.l.b16 %v97
  %v473 = vpack.c.b16 %v338, %v329
  %v474 = vpack.c.b16 %v339, %v330
  %v475 = vpack.c.b16 %v340, %v331
  %v476 = vpack.c.b16 %v341, %v332
  %v477 = vpack.c.b16 %v342, %v333
  %v478 = vpack.c.b16 %v343, %v334
  %v479 = vpack.c.b16 %v344, %v335
  %v480 = vpack.c.b16 %v345, %v336
  %v481 = vpack.c.b16 %v346, %v337
  %v482 = vpack.c.b16 %v356, %v347
  %v483 = vpack.c.b16 %v357, %v348
  %v484 = vpack.c.b16 %v358, %v349
  %v485 = vpack.c.b16 %v359, %v350
  %v486 = vpack.c.b16 %v360, %v351
  %v487 = vpack.c.b16 %v361, %v352
  %v488 = vpack.c.b16 %v362, %v353
  %v489 = vpack.c.b16 %v363, %v354
  %v490 = vpack.c.b16 %v364, %v355
  %v491 = vpack.c.b16 %v374, %v365
  %v492 = vpack.c.b16 %v375, %v366
  %v493 = vpack.c.b16 %v376, %v367
  %v494 = vpack.c.b16 %v377, %v368
  %v495 = vpack.c.b16 %v378, %v369
  %v496 = vpack.c.b16 %v379, %v370
  %v497 = vpack.c.b16 %v380, %v371
  %v498 = vpack.c.b16 %v381, %v372
  %v499 = vpack.c.b16 %v382, %v373
  %v500 = vpack.c.b16 %v392, %v383
  %v501 = vpack.c.b16 %v393, %v384
  %v502 = vpack.c.b16 %v394, %v385
  %v503 = vpack.c.b16 %v395, %v386
  %v504 = vpack.c.b16 %v396, %v387
  %v505 = vpack.c.b16 %v397, %v388
  %v506 = vpack.c.b16 %v398, %v389
  %v507 = vpack.c.b16 %v399, %v390
  %v508 = vpack.c.b16 %v400, %v391
  %v509 = vpack.c.b16 %v410, %v401
  %v510 = vpack.c.b16 %v411, %v402
  %v511 = vpack.c.b16 %v412, %v403
  %v512 = vpack.c.b16 %v413, %v404
  %v513 = vpack.c.b16 %v414, %v405
  %v514 = vpack.c.b16 %v415, %v406
  %v515 = vpack.c.b16 %v416, %v407
  %v516 = vpack.c.b16 %v417, %v408
  %v517 = vpack.c.b16 %v418, %v409
  %v518 = vpack.c.b16 %v428, %v419
  %v519 = vpack.c.b16 %v429, %v420
  %v520 = vpack.c.b16 %v430, %v421
  %v521 = vpack.c.b16 %v431, %v422
  %v522 = vpack.c.b16 %v432, %v423
  %v523 = vpack.c.b16 %v433, %v424
  %v524 = vpack.c.b16 %v434, %v425
  %v525 = vpack.c.b16 %v435, %v426
  %v526 = vpack.c.b16 %v436, %v427
  %v527 = vpack.c.b16 %v446, %v437
  %v528 = vpack.c.b16 %v447, %v438
  %v529 = vpack.c.b16 %v448, %v439
  %v530 = vpack.c.b16 %v449, %v440
  %v531 = vpack.c.b16 %v450, %v441
  %v532 = vpack.c.b16 %v451, %v442
  %v533 = vpack.c.b16 %v452, %v443
  %v534 = vpack.c.b16 %v453, %v444
  %v535 = vpack.c.b16 %v454, %v445
  %v536 = vpack.c.b16 %v464, %v455
  %v537 = vpack.c.b16 %v465, %v456
  %v538 = vpack.c.b16 %v466, %v457
  %v539 = vpack.c.b16 %v467, %v458
  %v540 = vpack.c.b16 %v468, %v459
  %v541 = vpack.c.b16 %v469, %v460
  %v542 = vpack.c.b16 %v470, %v461
  %v543 = vpack.c.b16 %v471, %v462
  %v544 = vpack.c.b16 %v472, %v463
  %v761 = vunpack.c.l.b16 %v98
  %v762 = vunpack.c.l.b16 %v99
  %v763 = vunpack.c.l.b16 %v100
  %v764 = vunpack.c.l.b16 %v101
  %v765 = vunpack.c.l.b16 %v102
  %v766 = vunpack.c.l.b16 %v103
  %v767 = vunpack.c.l.b16 %v104
  %v768 = vunpack.c.l.b16 %v105
  %v769 = vunpack.c.l.b16 %v106
  %v770 = vunpack.c.l.b16 %v107
  %v771 = vunpack.c.l.b16 %v108
  %v772 = vunpack.c.l.b16 %v109
  %v773 = vunpack.c.l.b16 %v110
  %v774 = vunpack.c.l.b16 %v111
  %v775 = vunpack.c.l.b16 %v112
  %v776 = vunpack.c.l.b16 %v113
  %v777 = vunpack.c.l.b16 %v114
  %v778 = vunpack.c.l.b16 %v115
  %v779 = vunpack.c.l.b16 %v116
  %v780 = vunpack.c.l.b16 %v117
  %v781 = vunpack.c.l.b16 %v118
  %v782 = vunpack.c.l.b16 %v119
  %v783 = vunpack.c.l.b16 %v120
  %v784 = vunpack.c.l.b16 %v121
  %v785 = vunpack.c.l.b16 %v122
  %v786 = vunpack.c.l.b16 %v123
  %v787 = vunpack.c.l.b16 %v124
  %v788 = vunpack.c.l.b16 %v125
  %v789 = vunpack.c.l.b16 %v126
  %v790 = vunpack.c.l.b16 %v127
  %v791 = vunpack.c.l.b16 %v128
  %v792 = vunpack.c.l.b16 %v129
  %v793 = vunpack.c.l.b16 %v130
  %v794 = vunpack.c.l.b16 %v131
  %v795 = vunpack.c.l.b16 %v132
  %v796 = vunpack.c.l.b16 %v133
  %v797 = vunpack.c.l.b16 %v134
  %v798 = vunpack.c.l.b16 %v135
  %v799 = vunpack.c.l.b16 %v136
  %v800 = vunpack.c.l.b16 %v137
  %v801 = vunpack.c.l.b16 %v138
  %v802 = vunpack.c.l.b16 %v139
  %v803 = vunpack.c.l.b16 %v140
  %v804 = vunpack.c.l.b16 %v141
  %v805 = vunpack.c.l.b16 %v142
  %v806 = vunpack.c.l.b16 %v143
  %v807 = vunpack.c.l.b16 %v144
  %v808 = vunpack.c.l.b16 %v145
  %v809 = vunpack.c.l.b16 %v146
  %v810 = vunpack.c.l.b16 %v147
  %v811 = vunpack.c.l.b16 %v148
  %v812 = vunpack.c.l.b16 %v149
  %v813 = vunpack.c.l.b16 %v150
  %v814 = vunpack.c.l.b16 %v151
  %v815 = vunpack.c.l.b16 %v152
  %v816 = vunpack.c.l.b16 %v153
  %v817 = vunpack.c.l.b16 %v154
  %v818 = vunpack.c.l.b16 %v155
  %v819 = vunpack.c.l.b16 %v156
  %v820 = vunpack.c.l.b16 %v157
  %v821 = vunpack.c.l.b16 %v158
  %v822 = vunpack.c.l.b16 %v159
  %v823 = vunpack.c.l.b16 %v160
  %v824 = vunpack.c.l.b16 %v161
  %v825 = vunpack.c.l.b16 %v162
  %v826 = vunpack.c.l.b16 %v163
  %v827 = vunpack.c.l.b16 %v164
  %v828 = vunpack.c.l.b16 %v165
  %v829 = vunpack.c.l.b16 %v166
  %v830 = vunpack.c.l.b16 %v167
  %v831 = vunpack.c.l.b16 %v168
  %v832 = vunpack.c.l.b16 %v169
  %v833 = vunpack.c.l.b16 %v170
  %v834 = vunpack.c.l.b16 %v171
  %v835 = vunpack.c.l.b16 %v172
  %v836 = vunpack.c.l.b16 %v173
  %v837 = vunpack.c.l.b16 %v174
  %v838 = vunpack.c.l.b16 %v175
  %v839 = vunpack.c.l.b16 %v176
  %v840 = vunpack.c.l.b16 %v177
  %v841 = vunpack.c.l.b16 %v178
  %v842 = vunpack.c.l.b16 %v179
  %v843 = vunpack.c.l.b16 %v180
  %v844 = vunpack.c.l.b16 %v181
  %v845 = vunpack.c.l.b16 %v182
  %v846 = vunpack.c.l.b16 %v183
  %v847 = vunpack.c.l.b16 %v184
  %v848 = vunpack.c.l.b16 %v185
  %v849 = vunpack.c.l.b16 %v186
  %v850 = vunpack.c.l.b16 %v187
  %v851 = vunpack.c.l.b16 %v188
  %v852 = vunpack.c.l.b16 %v189
  %v853 = vunpack.c.l.b16 %v190
  %v854 = vunpack.c.l.b16 %v191
  %v855 = vunpack.c.l.b16 %v192
  %v856 = vunpack.c.l.b16 %v193
  %v857 = vunpack.c.l.b16 %v194
  %v858 = vunpack.c.l.b16 %v195
  %v859 = vunpack.c.l.b16 %v196
  %v860 = vunpack.c.l.b16 %v197
  %v861 = vunpack.c.l.b16 %v198
  %v862 = vunpack.c.l.b16 %v199
  %v863 = vunpack.c.l.b16 %v200
  %v864 = vunpack.c.l.b16 %v201
  %v865 = vunpack.c.l.b16 %v202
  %v866 = vunpack.c.l.b16 %v203
  %v867 = vunpack.c.l.b16 %v204
  %v868 = vunpack.c.l.b16 %v205
  %v869 = vunpack.c.l.b16 %v206
  %v870 = vunpack.c.l.b16 %v207
  %v871 = vunpack.c.l.b16 %v208
  %v872 = vunpack.c.l.b16 %v209
  %v873 = vunpack.c.l.b16 %v210
  %v874 = vunpack.c.l.b16 %v211
  %v875 = vunpack.c.l.b16 %v212
  %v876 = vunpack.c.l.b16 %v213
  %v877 = vunpack.c.l.b16 %v214
  %v878 = vunpack.c.l.b16 %v215
  %v879 = vunpack.c.l.b16 %v216
  %v880 = vunpack.c.l.b16 %v217
  %v881 = vunpack.c.l.b16 %v218
  %v882 = vunpack.c.l.b16 %v219
  %v883 = vunpack.c.l.b16 %v220
  %v884 = vunpack.c.l.b16 %v221
  %v885 = vunpack.c.l.b16 %v222
  %v886 = vunpack.c.l.b16 %v223
  %v887 = vunpack.c.l.b16 %v224
  %v888 = vunpack.c.l.b16 %v225
  %v889 = vunpack.c.l.b16 %v226
  %v890 = vunpack.c.l.b16 %v227
  %v891 = vunpack.c.l.b16 %v228
  %v892 = vunpack.c.l.b16 %v229
  %v893 = vunpack.c.l.b16 %v230
  %v894 = vunpack.c.l.b16 %v231
  %v895 = vunpack.c.l.b16 %v232
  %v896 = vunpack.c.l.b16 %v233
  %v897 = vunpack.c.l.b16 %v234
  %v898 = vunpack.c.l.b16 %v235
  %v899 = vunpack.c.l.b16 %v236
  %v900 = vunpack.c.l.b16 %v237
  %v901 = vunpack.c.l.b16 %v238
  %v902 = vunpack.c.l.b16 %v239
  %v903 = vunpack.c.l.b16 %v240
  %v904 = vunpack.c.l.b16 %v241
  %v905 = vpack.c.b16 %v762, %v761
  %v906 = vpack.c.b16 %v764, %v763
  %v907 = vpack.c.b16 %v766, %v765
  %v908 = vpack.c.b16 %v768, %v767
  %v909 = vpack.c.b16 %v770, %v769
  %v910 = vpack.c.b16 %v772, %v771
  %v911 = vpack.c.b16 %v774, %v773
  %v912 = vpack.c.b16 %v776, %v775
  %v913 = vpack.c.b16 %v778, %v777
  %v914 = vpack.c.b16 %v780, %v779
  %v915 = vpack.c.b16 %v782, %v781
  %v916 = vpack.c.b16 %v784, %v783
  %v917 = vpack.c.b16 %v786, %v785
  %v918 = vpack.c.b16 %v788, %v787
  %v919 = vpack.c.b16 %v790, %v789
  %v920 = vpack.c.b16 %v792, %v791
  %v921 = vpack.c.b16 %v794, %v793
  %v922 = vpack.c.b16 %v796, %v795
  %v923 = vpack.c.b16 %v798, %v797
  %v924 = vpack.c.b16 %v800, %v799
  %v925 = vpack.c.b16 %v802, %v801
  %v926 = vpack.c.b16 %v804, %v803
  %v927 = vpack.c.b16 %v806, %v805
  %v928 = vpack.c.b16 %v808, %v807
  %v929 = vpack.c.b16 %v810, %v809
  %v930 = vpack.c.b16 %v812, %v811
  %v931 = vpack.c.b16 %v814, %v813
  %v932 = vpack.c.b16 %v816, %v815
  %v933 = vpack.c.b16 %v818, %v817
  %v934 = vpack.c.b16 %v820, %v819
  %v935 = vpack.c.b16 %v822, %v821
  %v936 = vpack.c.b16 %v824, %v823
  %v937 = vpack.c.b16 %v826, %v825
  %v938 = vpack.c.b16 %v828, %v827
  %v939 = vpack.c.b16 %v830, %v829
  %v940 = vpack.c.b16 %v832, %v831
  %v941 = vpack.c.b16 %v834, %v833
  %v942 = vpack.c.b16 %v836, %v835
  %v943 = vpack.c.b16 %v838, %v837
  %v944 = vpack.c.b16 %v840, %v839
  %v945 = vpack.c.b16 %v842, %v841
  %v946 = vpack.c.b16 %v844, %v843
  %v947 = vpack.c.b16 %v846, %v845
  %v948 = vpack.c.b16 %v848, %v847
  %v949 = vpack.c.b16 %v850, %v849
  %v950 = vpack.c.b16 %v852, %v851
  %v951 = vpack.c.b16 %v854, %v853
  %v952 = vpack.c.b16 %v856, %v855
  %v953 = vpack.c.b16 %v858, %v857
  %v954 = vpack.c.b16 %v860, %v859
  %v955 = vpack.c.b16 %v862, %v861
  %v956 = vpack.c.b16 %v864, %v863
  %v957 = vpack.c.b16 %v866, %v865
  %v958 = vpack.c.b16 %v868, %v867
  %v959 = vpack.c.b16 %v870, %v869
  %v960 = vpack.c.b16 %v872, %v871
  %v961 = vpack.c.b16 %v874, %v873
  %v962 = vpack.c.b16 %v876, %v875
  %v963 = vpack.c.b16 %v878, %v877
  %v964 = vpack.c.b16 %v880, %v879
  %v965 = vpack.c.b16 %v882, %v881
  %v966 = vpack.c.b16 %v884, %v883
  %v967 = vpack.c.b16 %v886, %v885
  %v968 = vpack.c.b16 %v888, %v887
  %v969 = vpack.c.b16 %v890, %v889
  %v970 = vpack.c.b16 %v892, %v891
  %v971 = vpack.c.b16 %v894, %v893
  %v972 = vpack.c.b16 %v896, %v895
  %v973 = vpack.c.b16 %v898, %v897
  %v974 = vpack.c.b16 %v900, %v899
  %v975 = vpack.c.b16 %v902, %v901
  %v976 = vpack.c.b16 %v904, %v903
  %1049 = vmatprep.subr.bf16.mxu0 0
  %1050 = vmatpush1.bf16.msra.mxu0 %v912
  %1051 = vmatprep.subr.bf16.mxu0 0
  %1052 = vmatpush1.bf16.msra.mxu0 %v911
  %1053 = vmatprep.subr.bf16.mxu0 0
  %1054 = vmatpush1.bf16.msra.mxu0 %v910
  %1055 = vmatprep.subr.bf16.mxu0 0
  %1056 = vmatpush1.bf16.msra.mxu0 %v909
  %1057 = vmatprep.subr.bf16.mxu0 0
  %1058 = vmatpush1.bf16.msra.mxu0 %v908
  %1059 = vmatprep.subr.bf16.mxu0 0
  %1060 = vmatpush1.bf16.msra.mxu0 %v907
  %1061 = vmatprep.subr.bf16.mxu0 0
  %1062 = vmatpush1.bf16.msra.mxu0 %v906
  %1063 = vmatprep.subr.bf16.mxu0 0
  %1064 = vmatpush1.bf16.msra.mxu0 %v905
  %1065 = vmatprep.subr.bf16.mxu0 0
  %1066 = vmatpush2.bf16.msra.mxu0 %v920
  %1067 = vmatprep.subr.bf16.mxu0 0
  %1068 = vmatpush2.bf16.msra.mxu0 %v919
  %1069 = vmatprep.subr.bf16.mxu0 0
  %1070 = vmatpush2.bf16.msra.mxu0 %v918
  %1071 = vmatprep.subr.bf16.mxu0 0
  %1072 = vmatpush2.bf16.msra.mxu0 %v917
  %1073 = vmatprep.subr.bf16.mxu0 0
  %1074 = vmatpush2.bf16.msra.mxu0 %v916
  %1075 = vmatprep.subr.bf16.mxu0 0
  %1076 = vmatpush2.bf16.msra.mxu0 %v915
  %1077 = vmatprep.subr.bf16.mxu0 0
  %1078 = vmatpush2.bf16.msra.mxu0 %v914
  %1079 = vmatprep.subr.bf16.mxu0 0
  %1080 = vmatpush2.bf16.msra.mxu0 %v913
  %1081 = vmatprep.mubr.bf16.mxu0 %v474
  %1082 = vmatmul.mubr.bf16.gmra.mxu0 %v473
  %v1083 = vpop.f32.mrf.mxu0
  %v1084 = vadd.f32 %v247, %v1083
  %v1085 = vpop.f32.mrf.mxu0
  %v1086 = vpop.f32.mrf.mxu0
  %v1087 = vadd.f32 %v247, %v1086
  %v1088 = vpop.f32.mrf.mxu0
  %1089 = vmatprep.mubr.bf16.mxu0 %v483
  %1090 = vmatmul.mubr.bf16.gmra.mxu0 %v482
  %v1091 = vpop.f32.mrf.mxu0
  %v1092 = vadd.f32 %v247, %v1091
  %v1093 = vpop.f32.mrf.mxu0
  %v1094 = vpop.f32.mrf.mxu0
  %v1095 = vadd.f32 %v247, %v1094
  %v1096 = vpop.f32.mrf.mxu0
  %1097 = vmatprep.mubr.bf16.mxu0 %v492
  %1098 = vmatmul.mubr.bf16.gmra.mxu0 %v491
  %v1099 = vpop.f32.mrf.mxu0
  %v1100 = vadd.f32 %v247, %v1099
  %v1101 = vpop.f32.mrf.mxu0
  %v1102 = vpop.f32.mrf.mxu0
  %v1103 = vadd.f32 %v247, %v1102
  %v1104 = vpop.f32.mrf.mxu0
  %1105 = vmatprep.mubr.bf16.mxu0 %v501
  %1106 = vmatmul.mubr.bf16.gmra.mxu0 %v500
  %v1107 = vpop.f32.mrf.mxu0
  %v1108 = vadd.f32 %v247, %v1107
  %v1109 = vpop.f32.mrf.mxu0
  %v1110 = vpop.f32.mrf.mxu0
  %v1111 = vadd.f32 %v247, %v1110
  %v1112 = vpop.f32.mrf.mxu0
  %1113 = vmatprep.mubr.bf16.mxu0 %v510
  %1114 = vmatmul.mubr.bf16.gmra.mxu0 %v509
  %v1115 = vpop.f32.mrf.mxu0
  %v1116 = vadd.f32 %v247, %v1115
  %v1117 = vpop.f32.mrf.mxu0
  %v1118 = vpop.f32.mrf.mxu0
  %v1119 = vadd.f32 %v247, %v1118
  %v1120 = vpop.f32.mrf.mxu0
  %1121 = vmatprep.mubr.bf16.mxu0 %v519
  %1122 = vmatmul.mubr.bf16.gmra.mxu0 %v518
  %v1123 = vpop.f32.mrf.mxu0
  %v1124 = vadd.f32 %v247, %v1123
  %v1125 = vpop.f32.mrf.mxu0
  %v1126 = vpop.f32.mrf.mxu0
  %v1127 = vadd.f32 %v247, %v1126
  %v1128 = vpop.f32.mrf.mxu0
  %1129 = vmatprep.mubr.bf16.mxu0 %v528
  %1130 = vmatmul.mubr.bf16.gmra.mxu0 %v527
  %v1131 = vpop.f32.mrf.mxu0
  %v1132 = vadd.f32 %v247, %v1131
  %v1133 = vpop.f32.mrf.mxu0
  %v1134 = vpop.f32.mrf.mxu0
  %v1135 = vadd.f32 %v247, %v1134
  %v1136 = vpop.f32.mrf.mxu0
  %1137 = vmatprep.mubr.bf16.mxu0 %v537
  %1138 = vmatmul.mubr.bf16.gmra.mxu0 %v536
  %v1139 = vpop.f32.mrf.mxu0
  %v1140 = vadd.f32 %v247, %v1139
  %v1141 = vpop.f32.mrf.mxu0
  %v1142 = vpop.f32.mrf.mxu0
  %v1143 = vadd.f32 %v247, %v1142
  %v1144 = vpop.f32.mrf.mxu0
  %1145 = vdwg.mxu0
  %1146 = vmatprep.subr.bf16.mxu0 0
  %1147 = vmatpush1.bf16.msra.mxu0 %v928
  %1148 = vmatprep.subr.bf16.mxu0 0
  %1149 = vmatpush1.bf16.msra.mxu0 %v927
  %1150 = vmatprep.subr.bf16.mxu0 0
  %1151 = vmatpush1.bf16.msra.mxu0 %v926
  %1152 = vmatprep.subr.bf16.mxu0 0
  %1153 = vmatpush1.bf16.msra.mxu0 %v925
  %1154 = vmatprep.subr.bf16.mxu0 0
  %1155 = vmatpush1.bf16.msra.mxu0 %v924
  %1156 = vmatprep.subr.bf16.mxu0 0
  %1157 = vmatpush1.bf16.msra.mxu0 %v923
  %1158 = vmatprep.subr.bf16.mxu0 0
  %1159 = vmatpush1.bf16.msra.mxu0 %v922
  %1160 = vmatprep.subr.bf16.mxu0 0
  %1161 = vmatpush1.bf16.msra.mxu0 %v921
  %1162 = vmatprep.subr.bf16.mxu0 0
  %1163 = vmatpush2.bf16.msra.mxu0 %v936
  %1164 = vmatprep.subr.bf16.mxu0 0
  %1165 = vmatpush2.bf16.msra.mxu0 %v935
  %1166 = vmatprep.subr.bf16.mxu0 0
  %1167 = vmatpush2.bf16.msra.mxu0 %v934
  %1168 = vmatprep.subr.bf16.mxu0 0
  %1169 = vmatpush2.bf16.msra.mxu0 %v933
  %1170 = vmatprep.subr.bf16.mxu0 0
  %1171 = vmatpush2.bf16.msra.mxu0 %v932
  %1172 = vmatprep.subr.bf16.mxu0 0
  %1173 = vmatpush2.bf16.msra.mxu0 %v931
  %1174 = vmatprep.subr.bf16.mxu0 0
  %1175 = vmatpush2.bf16.msra.mxu0 %v930
  %1176 = vmatprep.subr.bf16.mxu0 0
  %1177 = vmatpush2.bf16.msra.mxu0 %v929
  %1178 = vmatprep.mubr.bf16.mxu0 %v476
  %1179 = vmatmul.mubr.bf16.gmra.mxu0 %v475
  %v1180 = vpop.f32.mrf.mxu0
  %v1181 = vadd.f32 %v1084, %v1180
  %v1182 = vpop.f32.mrf.mxu0
  %v1183 = vpop.f32.mrf.mxu0
  %v1184 = vadd.f32 %v1087, %v1183
  %v1185 = vpop.f32.mrf.mxu0
  %1186 = vmatprep.mubr.bf16.mxu0 %v485
  %1187 = vmatmul.mubr.bf16.gmra.mxu0 %v484
  %v1188 = vpop.f32.mrf.mxu0
  %v1189 = vadd.f32 %v1092, %v1188
  %v1190 = vpop.f32.mrf.mxu0
  %v1191 = vpop.f32.mrf.mxu0
  %v1192 = vadd.f32 %v1095, %v1191
  %v1193 = vpop.f32.mrf.mxu0
  %1194 = vmatprep.mubr.bf16.mxu0 %v494
  %1195 = vmatmul.mubr.bf16.gmra.mxu0 %v493
  %v1196 = vpop.f32.mrf.mxu0
  %v1197 = vadd.f32 %v1100, %v1196
  %v1198 = vpop.f32.mrf.mxu0
  %v1199 = vpop.f32.mrf.mxu0
  %v1200 = vadd.f32 %v1103, %v1199
  %v1201 = vpop.f32.mrf.mxu0
  %1202 = vmatprep.mubr.bf16.mxu0 %v503
  %1203 = vmatmul.mubr.bf16.gmra.mxu0 %v502
  %v1204 = vpop.f32.mrf.mxu0
  %v1205 = vadd.f32 %v1108, %v1204
  %v1206 = vpop.f32.mrf.mxu0
  %v1207 = vpop.f32.mrf.mxu0
  %v1208 = vadd.f32 %v1111, %v1207
  %v1209 = vpop.f32.mrf.mxu0
  %1210 = vmatprep.mubr.bf16.mxu0 %v512
  %1211 = vmatmul.mubr.bf16.gmra.mxu0 %v511
  %v1212 = vpop.f32.mrf.mxu0
  %v1213 = vadd.f32 %v1116, %v1212
  %v1214 = vpop.f32.mrf.mxu0
  %v1215 = vpop.f32.mrf.mxu0
  %v1216 = vadd.f32 %v1119, %v1215
  %v1217 = vpop.f32.mrf.mxu0
  %1218 = vmatprep.mubr.bf16.mxu0 %v521
  %1219 = vmatmul.mubr.bf16.gmra.mxu0 %v520
  %v1220 = vpop.f32.mrf.mxu0
  %v1221 = vadd.f32 %v1124, %v1220
  %v1222 = vpop.f32.mrf.mxu0
  %v1223 = vpop.f32.mrf.mxu0
  %v1224 = vadd.f32 %v1127, %v1223
  %v1225 = vpop.f32.mrf.mxu0
  %1226 = vmatprep.mubr.bf16.mxu0 %v530
  %1227 = vmatmul.mubr.bf16.gmra.mxu0 %v529
  %v1228 = vpop.f32.mrf.mxu0
  %v1229 = vadd.f32 %v1132, %v1228
  %v1230 = vpop.f32.mrf.mxu0
  %v1231 = vpop.f32.mrf.mxu0
  %v1232 = vadd.f32 %v1135, %v1231
  %v1233 = vpop.f32.mrf.mxu0
  %1234 = vmatprep.mubr.bf16.mxu0 %v539
  %1235 = vmatmul.mubr.bf16.gmra.mxu0 %v538
  %v1236 = vpop.f32.mrf.mxu0
  %v1237 = vadd.f32 %v1140, %v1236
  %v1238 = vpop.f32.mrf.mxu0
  %v1239 = vpop.f32.mrf.mxu0
  %v1240 = vadd.f32 %v1143, %v1239
  %v1241 = vpop.f32.mrf.mxu0
  %1242 = vdwg.mxu0
  %1243 = vmatprep.subr.bf16.mxu0 0
  %1244 = vmatpush1.bf16.msra.mxu0 %v944
  %1245 = vmatprep.subr.bf16.mxu0 0
  %1246 = vmatpush1.bf16.msra.mxu0 %v943
  %1247 = vmatprep.subr.bf16.mxu0 0
  %1248 = vmatpush1.bf16.msra.mxu0 %v942
  %1249 = vmatprep.subr.bf16.mxu0 0
  %1250 = vmatpush1.bf16.msra.mxu0 %v941
  %1251 = vmatprep.subr.bf16.mxu0 0
  %1252 = vmatpush1.bf16.msra.mxu0 %v940
  %1253 = vmatprep.subr.bf16.mxu0 0
  %1254 = vmatpush1.bf16.msra.mxu0 %v939
  %1255 = vmatprep.subr.bf16.mxu0 0
  %1256 = vmatpush1.bf16.msra.mxu0 %v938
  %1257 = vmatprep.subr.bf16.mxu0 0
  %1258 = vmatpush1.bf16.msra.mxu0 %v937
  %1259 = vmatprep.subr.bf16.mxu0 0
  %1260 = vmatpush2.bf16.msra.mxu0 %v952
  %1261 = vmatprep.subr.bf16.mxu0 0
  %1262 = vmatpush2.bf16.msra.mxu0 %v951
  %1263 = vmatprep.subr.bf16.mxu0 0
  %1264 = vmatpush2.bf16.msra.mxu0 %v950
  %1265 = vmatprep.subr.bf16.mxu0 0
  %1266 = vmatpush2.bf16.msra.mxu0 %v949
  %1267 = vmatprep.subr.bf16.mxu0 0
  %1268 = vmatpush2.bf16.msra.mxu0 %v948
  %1269 = vmatprep.subr.bf16.mxu0 0
  %1270 = vmatpush2.bf16.msra.mxu0 %v947
  %1271 = vmatprep.subr.bf16.mxu0 0
  %1272 = vmatpush2.bf16.msra.mxu0 %v946
  %1273 = vmatprep.subr.bf16.mxu0 0
  %1274 = vmatpush2.bf16.msra.mxu0 %v945
  %1275 = vmatprep.mubr.bf16.mxu0 %v478
  %1276 = vmatmul.mubr.bf16.gmra.mxu0 %v477
  %v1277 = vpop.f32.mrf.mxu0
  %v1278 = vadd.f32 %v1181, %v1277
  %v1279 = vpop.f32.mrf.mxu0
  %v1280 = vpop.f32.mrf.mxu0
  %v1281 = vadd.f32 %v1184, %v1280
  %v1282 = vpop.f32.mrf.mxu0
  %1283 = vmatprep.mubr.bf16.mxu0 %v487
  %1284 = vmatmul.mubr.bf16.gmra.mxu0 %v486
  %v1285 = vpop.f32.mrf.mxu0
  %v1286 = vadd.f32 %v1189, %v1285
  %v1287 = vpop.f32.mrf.mxu0
  %v1288 = vpop.f32.mrf.mxu0
  %v1289 = vadd.f32 %v1192, %v1288
  %v1290 = vpop.f32.mrf.mxu0
  %1291 = vmatprep.mubr.bf16.mxu0 %v496
  %1292 = vmatmul.mubr.bf16.gmra.mxu0 %v495
  %v1293 = vpop.f32.mrf.mxu0
  %v1294 = vadd.f32 %v1197, %v1293
  %v1295 = vpop.f32.mrf.mxu0
  %v1296 = vpop.f32.mrf.mxu0
  %v1297 = vadd.f32 %v1200, %v1296
  %v1298 = vpop.f32.mrf.mxu0
  %1299 = vmatprep.mubr.bf16.mxu0 %v505
  %1300 = vmatmul.mubr.bf16.gmra.mxu0 %v504
  %v1301 = vpop.f32.mrf.mxu0
  %v1302 = vadd.f32 %v1205, %v1301
  %v1303 = vpop.f32.mrf.mxu0
  %v1304 = vpop.f32.mrf.mxu0
  %v1305 = vadd.f32 %v1208, %v1304
  %v1306 = vpop.f32.mrf.mxu0
  %1307 = vmatprep.mubr.bf16.mxu0 %v514
  %1308 = vmatmul.mubr.bf16.gmra.mxu0 %v513
  %v1309 = vpop.f32.mrf.mxu0
  %v1310 = vadd.f32 %v1213, %v1309
  %v1311 = vpop.f32.mrf.mxu0
  %v1312 = vpop.f32.mrf.mxu0
  %v1313 = vadd.f32 %v1216, %v1312
  %v1314 = vpop.f32.mrf.mxu0
  %1315 = vmatprep.mubr.bf16.mxu0 %v523
  %1316 = vmatmul.mubr.bf16.gmra.mxu0 %v522
  %v1317 = vpop.f32.mrf.mxu0
  %v1318 = vadd.f32 %v1221, %v1317
  %v1319 = vpop.f32.mrf.mxu0
  %v1320 = vpop.f32.mrf.mxu0
  %v1321 = vadd.f32 %v1224, %v1320
  %v1322 = vpop.f32.mrf.mxu0
  %1323 = vmatprep.mubr.bf16.mxu0 %v532
  %1324 = vmatmul.mubr.bf16.gmra.mxu0 %v531
  %v1325 = vpop.f32.mrf.mxu0
  %v1326 = vadd.f32 %v1229, %v1325
  %v1327 = vpop.f32.mrf.mxu0
  %v1328 = vpop.f32.mrf.mxu0
  %v1329 = vadd.f32 %v1232, %v1328
  %v1330 = vpop.f32.mrf.mxu0
  %1331 = vmatprep.mubr.bf16.mxu0 %v541
  %1332 = vmatmul.mubr.bf16.gmra.mxu0 %v540
  %v1333 = vpop.f32.mrf.mxu0
  %v1334 = vadd.f32 %v1237, %v1333
  %v1335 = vpop.f32.mrf.mxu0
  %v1336 = vpop.f32.mrf.mxu0
  %v1337 = vadd.f32 %v1240, %v1336
  %v1338 = vpop.f32.mrf.mxu0
  %1339 = vdwg.mxu0
  %1340 = vmatprep.subr.bf16.mxu0 0
  %1341 = vmatpush1.bf16.msra.mxu0 %v960
  %1342 = vmatprep.subr.bf16.mxu0 0
  %1343 = vmatpush1.bf16.msra.mxu0 %v959
  %1344 = vmatprep.subr.bf16.mxu0 0
  %1345 = vmatpush1.bf16.msra.mxu0 %v958
  %1346 = vmatprep.subr.bf16.mxu0 0
  %1347 = vmatpush1.bf16.msra.mxu0 %v957
  %1348 = vmatprep.subr.bf16.mxu0 0
  %1349 = vmatpush1.bf16.msra.mxu0 %v956
  %1350 = vmatprep.subr.bf16.mxu0 0
  %1351 = vmatpush1.bf16.msra.mxu0 %v955
  %1352 = vmatprep.subr.bf16.mxu0 0
  %1353 = vmatpush1.bf16.msra.mxu0 %v954
  %1354 = vmatprep.subr.bf16.mxu0 0
  %1355 = vmatpush1.bf16.msra.mxu0 %v953
  %1356 = vmatprep.subr.bf16.mxu0 0
  %1357 = vmatpush2.bf16.msra.mxu0 %v968
  %1358 = vmatprep.subr.bf16.mxu0 0
  %1359 = vmatpush2.bf16.msra.mxu0 %v967
  %1360 = vmatprep.subr.bf16.mxu0 0
  %1361 = vmatpush2.bf16.msra.mxu0 %v966
  %1362 = vmatprep.subr.bf16.mxu0 0
  %1363 = vmatpush2.bf16.msra.mxu0 %v965
  %1364 = vmatprep.subr.bf16.mxu0 0
  %1365 = vmatpush2.bf16.msra.mxu0 %v964
  %1366 = vmatprep.subr.bf16.mxu0 0
  %1367 = vmatpush2.bf16.msra.mxu0 %v963
  %1368 = vmatprep.subr.bf16.mxu0 0
  %1369 = vmatpush2.bf16.msra.mxu0 %v962
  %1370 = vmatprep.subr.bf16.mxu0 0
  %1371 = vmatpush2.bf16.msra.mxu0 %v961
  %1372 = vmatprep.mubr.bf16.mxu0 %v480
  %1373 = vmatmul.mubr.bf16.gmra.mxu0 %v479
  %v1374 = vpop.f32.mrf.mxu0
  %v1375 = vadd.f32 %v1278, %v1374
  %v1376 = vpop.f32.mrf.mxu0
  %v1377 = vpop.f32.mrf.mxu0
  %v1378 = vadd.f32 %v1281, %v1377
  %v1379 = vpop.f32.mrf.mxu0
  %1380 = vmatprep.mubr.bf16.mxu0 %v489
  %1381 = vmatmul.mubr.bf16.gmra.mxu0 %v488
  %v1382 = vpop.f32.mrf.mxu0
  %v1383 = vadd.f32 %v1286, %v1382
  %v1384 = vpop.f32.mrf.mxu0
  %v1385 = vpop.f32.mrf.mxu0
  %v1386 = vadd.f32 %v1289, %v1385
  %v1387 = vpop.f32.mrf.mxu0
  %1388 = vmatprep.mubr.bf16.mxu0 %v498
  %1389 = vmatmul.mubr.bf16.gmra.mxu0 %v497
  %v1390 = vpop.f32.mrf.mxu0
  %v1391 = vadd.f32 %v1294, %v1390
  %v1392 = vpop.f32.mrf.mxu0
  %v1393 = vpop.f32.mrf.mxu0
  %v1394 = vadd.f32 %v1297, %v1393
  %v1395 = vpop.f32.mrf.mxu0
  %1396 = vmatprep.mubr.bf16.mxu0 %v507
  %1397 = vmatmul.mubr.bf16.gmra.mxu0 %v506
  %v1398 = vpop.f32.mrf.mxu0
  %v1399 = vadd.f32 %v1302, %v1398
  %v1400 = vpop.f32.mrf.mxu0
  %v1401 = vpop.f32.mrf.mxu0
  %v1402 = vadd.f32 %v1305, %v1401
  %v1403 = vpop.f32.mrf.mxu0
  %1404 = vmatprep.mubr.bf16.mxu0 %v516
  %1405 = vmatmul.mubr.bf16.gmra.mxu0 %v515
  %v1406 = vpop.f32.mrf.mxu0
  %v1407 = vadd.f32 %v1310, %v1406
  %v1408 = vpop.f32.mrf.mxu0
  %v1409 = vpop.f32.mrf.mxu0
  %v1410 = vadd.f32 %v1313, %v1409
  %v1411 = vpop.f32.mrf.mxu0
  %1412 = vmatprep.mubr.bf16.mxu0 %v525
  %1413 = vmatmul.mubr.bf16.gmra.mxu0 %v524
  %v1414 = vpop.f32.mrf.mxu0
  %v1415 = vadd.f32 %v1318, %v1414
  %v1416 = vpop.f32.mrf.mxu0
  %v1417 = vpop.f32.mrf.mxu0
  %v1418 = vadd.f32 %v1321, %v1417
  %v1419 = vpop.f32.mrf.mxu0
  %1420 = vmatprep.mubr.bf16.mxu0 %v534
  %1421 = vmatmul.mubr.bf16.gmra.mxu0 %v533
  %v1422 = vpop.f32.mrf.mxu0
  %v1423 = vadd.f32 %v1326, %v1422
  %v1424 = vpop.f32.mrf.mxu0
  %v1425 = vpop.f32.mrf.mxu0
  %v1426 = vadd.f32 %v1329, %v1425
  %v1427 = vpop.f32.mrf.mxu0
  %1428 = vmatprep.mubr.bf16.mxu0 %v543
  %1429 = vmatmul.mubr.bf16.gmra.mxu0 %v542
  %v1430 = vpop.f32.mrf.mxu0
  %v1431 = vadd.f32 %v1334, %v1430
  %v1432 = vpop.f32.mrf.mxu0
  %v1433 = vpop.f32.mrf.mxu0
  %v1434 = vadd.f32 %v1337, %v1433
  %v1435 = vpop.f32.mrf.mxu0
  %1436 = vdwg.mxu0
  %1437 = vmatprep.subr.bf16.mxu0 0
  %1438 = vmatpush1.bf16.msra.mxu0 %v976
  %1439 = vmatprep.subr.bf16.mxu0 0
  %1440 = vmatpush1.bf16.msra.mxu0 %v975
  %1441 = vmatprep.subr.bf16.mxu0 0
  %1442 = vmatpush1.bf16.msra.mxu0 %v974
  %1443 = vmatprep.subr.bf16.mxu0 0
  %1444 = vmatpush1.bf16.msra.mxu0 %v973
  %1445 = vmatprep.subr.bf16.mxu0 0
  %1446 = vmatpush1.bf16.msra.mxu0 %v972
  %1447 = vmatprep.subr.bf16.mxu0 0
  %1448 = vmatpush1.bf16.msra.mxu0 %v971
  %1449 = vmatprep.subr.bf16.mxu0 0
  %1450 = vmatpush1.bf16.msra.mxu0 %v970
  %1451 = vmatprep.subr.bf16.mxu0 0
  %1452 = vmatpush1.bf16.msra.mxu0 %v969
  %1453 = vmatprep.subr.bf16.mxu0 0
  %1454 = vmatpush2.bf16.msra.mxu0 0
  %1455 = vmatprep.subr.bf16.mxu0 0
  %1456 = vmatpush2.bf16.msra.mxu0 0
  %1457 = vmatprep.subr.bf16.mxu0 0
  %1458 = vmatpush2.bf16.msra.mxu0 0
  %1459 = vmatprep.subr.bf16.mxu0 0
  %1460 = vmatpush2.bf16.msra.mxu0 0
  %1461 = vmatprep.subr.bf16.mxu0 0
  %1462 = vmatpush2.bf16.msra.mxu0 0
  %1463 = vmatprep.subr.bf16.mxu0 0
  %1464 = vmatpush2.bf16.msra.mxu0 0
  %1465 = vmatprep.subr.bf16.mxu0 0
  %1466 = vmatpush2.bf16.msra.mxu0 0
  %1467 = vmatprep.subr.bf16.mxu0 0
  %1468 = vmatpush2.bf16.msra.mxu0 0
  %1469 = vmatprep.mubr.bf16.mxu0 0
  %1470 = vmatmul.mubr.bf16.gmra.mxu0 %v481
  %v1471 = vpop.f32.mrf.mxu0
  %v1472 = vadd.f32 %v1375, %v1471
  %v1473 = vpop.f32.mrf.mxu0
  %v1474 = vpop.f32.mrf.mxu0
  %v1475 = vadd.f32 %v1378, %v1474
  %v1476 = vpop.f32.mrf.mxu0
  %1477 = vmatprep.mubr.bf16.mxu0 0
  %1478 = vmatmul.mubr.bf16.gmra.mxu0 %v490
  %v1479 = vpop.f32.mrf.mxu0
  %v1480 = vadd.f32 %v1383, %v1479
  %v1481 = vpop.f32.mrf.mxu0
  %v1482 = vpop.f32.mrf.mxu0
  %v1483 = vadd.f32 %v1386, %v1482
  %v1484 = vpop.f32.mrf.mxu0
  %1485 = vmatprep.mubr.bf16.mxu0 0
  %1486 = vmatmul.mubr.bf16.gmra.mxu0 %v499
  %v1487 = vpop.f32.mrf.mxu0
  %v1488 = vadd.f32 %v1391, %v1487
  %v1489 = vpop.f32.mrf.mxu0
  %v1490 = vpop.f32.mrf.mxu0
  %v1491 = vadd.f32 %v1394, %v1490
  %v1492 = vpop.f32.mrf.mxu0
  %1493 = vmatprep.mubr.bf16.mxu0 0
  %1494 = vmatmul.mubr.bf16.gmra.mxu0 %v508
  %v1495 = vpop.f32.mrf.mxu0
  %v1496 = vadd.f32 %v1399, %v1495
  %v1497 = vpop.f32.mrf.mxu0
  %v1498 = vpop.f32.mrf.mxu0
  %v1499 = vadd.f32 %v1402, %v1498
  %v1500 = vpop.f32.mrf.mxu0
  %1501 = vmatprep.mubr.bf16.mxu0 0
  %1502 = vmatmul.mubr.bf16.gmra.mxu0 %v517
  %v1503 = vpop.f32.mrf.mxu0
  %v1504 = vadd.f32 %v1407, %v1503
  %v1505 = vpop.f32.mrf.mxu0
  %v1506 = vpop.f32.mrf.mxu0
  %v1507 = vadd.f32 %v1410, %v1506
  %v1508 = vpop.f32.mrf.mxu0
  %1509 = vmatprep.mubr.bf16.mxu0 0
  %1510 = vmatmul.mubr.bf16.gmra.mxu0 %v526
  %v1511 = vpop.f32.mrf.mxu0
  %v1512 = vadd.f32 %v1415, %v1511
  %v1513 = vpop.f32.mrf.mxu0
  %v1514 = vpop.f32.mrf.mxu0
  %v1515 = vadd.f32 %v1418, %v1514
  %v1516 = vpop.f32.mrf.mxu0
  %1517 = vmatprep.mubr.bf16.mxu0 0
  %1518 = vmatmul.mubr.bf16.gmra.mxu0 %v535
  %v1519 = vpop.f32.mrf.mxu0
  %v1520 = vadd.f32 %v1423, %v1519
  %v1521 = vpop.f32.mrf.mxu0
  %v1522 = vpop.f32.mrf.mxu0
  %v1523 = vadd.f32 %v1426, %v1522
  %v1524 = vpop.f32.mrf.mxu0
  %1525 = vmatprep.mubr.bf16.mxu0 0
  %1526 = vmatmul.mubr.bf16.gmra.mxu0 %v544
  %v1527 = vpop.f32.mrf.mxu0
  %v1528 = vadd.f32 %v1431, %v1527
  %v1529 = vpop.f32.mrf.mxu0
  %v1530 = vpop.f32.mrf.mxu0
  %v1531 = vadd.f32 %v1434, %v1530
  %v1532 = vpop.f32.mrf.mxu0
  %1533 = vdwg.mxu0
  %v1534 = vmax.f32 %v1472, 0.0
  %v1535 = vmax.f32 %v1475, 0.0
  %v1536 = vmax.f32 %v1480, 0.0
  %v1537 = vmax.f32 %v1483, 0.0
  %v1538 = vmax.f32 %v1488, 0.0
  %v1539 = vmax.f32 %v1491, 0.0
  %v1540 = vmax.f32 %v1496, 0.0
  %v1541 = vmax.f32 %v1499, 0.0
  %v1542 = vmax.f32 %v1504, 0.0
  %v1543 = vmax.f32 %v1507, 0.0
  %v1544 = vmax.f32 %v1512, 0.0
  %v1545 = vmax.f32 %v1515, 0.0
  %v1546 = vmax.f32 %v1520, 0.0
  %v1547 = vmax.f32 %v1523, 0.0
  %v1548 = vmax.f32 %v1528, 0.0
  %v1549 = vmax.f32 %v1531, 0.0
  %v1550 = vld [vmem:[%s3] sm:$0xff]
  %v1551 = vld [vmem:[%s3 + $0x8] sm:$0xff]
  %v1552 = vld [vmem:[%s3 + $0x10] sm:$0xff]
  %v1553 = vld [vmem:[%s3 + $0x18] sm:$0xff]
  %1554 = vmatprep.subr.mxu0 0.0
  %1555 = vmatpush1.msra.mxu0 %v1549
  %1556 = vmatprep.subr.mxu0 0.0
  %1557 = vmatpush1.msra.mxu0 %v1548
  %1558 = vmatprep.subr.mxu0 0.0
  %1559 = vmatpush1.msra.mxu0 %v1547
  %1560 = vmatprep.subr.mxu0 0.0
  %1561 = vmatpush1.msra.mxu0 %v1546
  %1562 = vmatprep.subr.mxu0 0.0
  %1563 = vmatpush1.msra.mxu0 %v1545
  %1564 = vmatprep.subr.mxu0 0.0
  %1565 = vmatpush1.msra.mxu0 %v1544
  %1566 = vmatprep.subr.mxu0 0.0
  %1567 = vmatpush1.msra.mxu0 %v1543
  %1568 = vmatprep.subr.mxu0 0.0
  %1569 = vmatpush1.msra.mxu0 %v1542
  %1570 = vmatprep.subr.mxu0 0.0
  %1571 = vmatpush1.msra.mxu0 %v1541
  %1572 = vmatprep.subr.mxu0 0.0
  %1573 = vmatpush1.msra.mxu0 %v1540
  %1574 = vmatprep.subr.mxu0 0.0
  %1575 = vmatpush1.msra.mxu0 %v1539
  %1576 = vmatprep.subr.mxu0 0.0
  %1577 = vmatpush1.msra.mxu0 %v1538
  %1578 = vmatprep.subr.mxu0 0.0
  %1579 = vmatpush1.msra.mxu0 %v1537
  %1580 = vmatprep.subr.mxu0 0.0
  %1581 = vmatpush1.msra.mxu0 %v1536
  %1582 = vmatprep.subr.mxu0 0.0
  %1583 = vmatpush1.msra.mxu0 %v1535
  %1584 = vmatprep.subr.mxu0 0.0
  %1585 = vmatpush1.msra.mxu0 %v1534
  %1586 = vmatprep.subr.mxu0 0.0
  %1587 = vmatpush2.msra.mxu0 0.0
  %1588 = vmatprep.subr.mxu0 0.0
  %1589 = vmatpush2.msra.mxu0 0.0
  %1590 = vmatprep.subr.mxu0 0.0
  %1591 = vmatpush2.msra.mxu0 0.0
  %1592 = vmatprep.subr.mxu0 0.0
  %1593 = vmatpush2.msra.mxu0 0.0
  %1594 = vmatprep.subr.mxu0 0.0
  %1595 = vmatpush2.msra.mxu0 0.0
  %1596 = vmatprep.subr.mxu0 0.0
  %1597 = vmatpush2.msra.mxu0 0.0
  %1598 = vmatprep.subr.mxu0 0.0
  %1599 = vmatpush2.msra.mxu0 0.0
  %1600 = vmatprep.subr.mxu0 0.0
  %1601 = vmatpush2.msra.mxu0 0.0
  %1602 = vmatprep.subr.mxu0 0.0
  %1603 = vmatpush2.msra.mxu0 0.0
  %1604 = vmatprep.subr.mxu0 0.0
  %1605 = vmatpush2.msra.mxu0 0.0
  %1606 = vmatprep.subr.mxu0 0.0
  %1607 = vmatpush2.msra.mxu0 0.0
  %1608 = vmatprep.subr.mxu0 0.0
  %1609 = vmatpush2.msra.mxu0 0.0
  %1610 = vmatprep.subr.mxu0 0.0
  %1611 = vmatpush2.msra.mxu0 0.0
  %1612 = vmatprep.subr.mxu0 0.0
  %1613 = vmatpush2.msra.mxu0 0.0
  %1614 = vmatprep.subr.mxu0 0.0
  %1615 = vmatpush2.msra.mxu0 0.0
  %1616 = vmatprep.subr.mxu0 0.0
  %1617 = vmatpush2.msra.mxu0 0.0
  %1618 = vmatprep.mubr.f32.mxu0 0.0
  %1619 = vmatmul.mubr.f32.gmra.mxu0 %v1550
  %v1620 = vpop.f32.mrf.mxu0
  %v1621 = vadd.f32 0.0, %v1620
  %v1622 = vpop.f32.mrf.mxu0
  %1623 = vmatprep.mubr.f32.mxu0 0.0
  %1624 = vmatmul.mubr.f32.gmra.mxu0 %v1551
  %v1625 = vpop.f32.mrf.mxu0
  %v1626 = vadd.f32 0.0, %v1625
  %v1627 = vpop.f32.mrf.mxu0
  %1628 = vmatprep.mubr.f32.mxu0 0.0
  %1629 = vmatmul.mubr.f32.gmra.mxu0 %v1552
  %v1630 = vpop.f32.mrf.mxu0
  %v1631 = vadd.f32 0.0, %v1630
  %v1632 = vpop.f32.mrf.mxu0
  %1633 = vmatprep.mubr.f32.mxu0 0.0
  %1634 = vmatmul.mubr.f32.gmra.mxu0 %v1553
  %v1635 = vpop.f32.mrf.mxu0
  %v1636 = vadd.f32 0.0, %v1635
  %v1637 = vpop.f32.mrf.mxu0
  %1638 = vdwg.mxu0
  %v1639 = vpack.c.bf16 %v1626, %v1621
  %v1640 = vpack.c.bf16 %v1636, %v1631
  %v1643 = vunpack.c.l.b16 %v1639
  %v1644 = vunpack.c.h.b16 %v1639
  %v1645 = vunpack.c.l.b16 %v1640
  %v1646 = vunpack.c.h.b16 %v1640
  %v1647 = vpack.c.b16 %v1643, %v1643
  %v1648 = vpack.c.b16 %v1644, %v1644
  %v1649 = vpack.c.b16 %v1645, %v1645
  %v1650 = vpack.c.b16 %v1646, %v1646
  %1655 = vst [vmem:[%s4] sm:$0xf] %v1647
  %1656 = vst [vmem:[%s4 + $0x4] sm:$0xf] %v1648
  %1657 = vst [vmem:[%s4 + $0x8] sm:$0xf] %v1649
  %1658 = vst [vmem:[%s4 + $0xc] sm:$0xf] %v1650
  // Predicated region
  $region18: #{_lambda_.10} parent=0 // pred_check
    _
  $region19: #{_lambda_.10} parent=0 // pred_check_branch
    %1660 = sbr.rel (0) target = $region21
  $region20: #{_lambda_.10} parent=0 // pred_region
    _
  $region21: #{_lambda_.10} parent=0 // pred_fallthru
    _
  // Predicated region
  $region22: #{_lambda_.10} parent=0 // pred_check
    _
  $region23: #{_lambda_.10} parent=0 // pred_check_branch
    %1662 = sbr.rel (0) target = $region25
  $region24: #{_lambda_.10} parent=0 // pred_region
    _
  $region25: #{_lambda_.10} parent=0 // pred_fallthru
    _

// kernel: _lambda_.12
$region0: #{_lambda_.12}
  #allocation0 [shape = 'u32[]', space=smem, size = 0x4, offset = 0x4, fixed_abs, tag = 'smem constant byte address 0x4 - core index']
  #allocation1 [shape = 'u32[144,128]{1,0:T(1,128)}', space=vmem, size = 0x12000, scoped, tag = 'internal scratch']
  %s0 = inlined_call_operand.vmem [shape: bf16[32,1152], index: 0, kind: input, shape index: {}]
  %s1 = inlined_call_operand.vmem [shape: bf16[1152,128], index: 1, kind: input, shape index: {}]
  %s2 = inlined_call_operand.vmem [shape: f32[1,128], index: 2, kind: input, shape index: {}]
  %s3 = inlined_call_operand.vmem [shape: bf16[32,128], index: 3, kind: output, shape index: {0}]
  %s4 = inlined_call_operand.hbm [shape: f32[1,1], index: 4, kind: output, shape index: {1}]
  %5 = xla_tuple %s3, %s4
  %s6 = sld [smem:[#allocation0]]
  $region30: #{_lambda_.12} parent=0
    _
  %s8 = ssub.s32 1, %s6
  %s9 = scalar_select 0, %s8, %s6
  $region1: #{_lambda_.12} parent=0
    #allocation2 [shape = 'u8[512]{0}', space=smem, size = 0x200, scoped, tag = 'output window, operand 1, single buffered']
    #allocation3 [shape = 's32[1]{0}', space=sflag, size = 0x4, scoped, tag = 'scoped memory for _lambda_.12']
    %10 = vsyncpa [#allocation3], 0
    // Predicated region
    $region2: #{_lambda_.12} parent=1 // pred_check
      _
    $region3: #{_lambda_.12} parent=1 // pred_check_branch
      %12 = sbr.rel (0) target = $region5
    $region4: #{_lambda_.12} parent=1 // pred_region
      _
    $region5: #{_lambda_.12} parent=1 // pred_fallthru
      _
    // Predicated region
    $region6: #{_lambda_.12} parent=1 // pred_check
      _
    $region7: #{_lambda_.12} parent=1 // pred_check_branch
      %14 = sbr.rel (0) target = $region9
    $region8: #{_lambda_.12} parent=1 // pred_region
      _
    $region9: #{_lambda_.12} parent=1 // pred_fallthru
      _
    // Predicated region
    $region10: #{_lambda_.12} parent=1 // pred_check
      _
    $region11: #{_lambda_.12} parent=1 // pred_check_branch
      %16 = sbr.rel (0) target = $region13
    $region12: #{_lambda_.12} parent=1 // pred_region
      _
    $region13: #{_lambda_.12} parent=1 // pred_fallthru
      _
    %v18 = vld [vmem:[%s0] sm:$0xff]
    %v19 = vld [vmem:[%s0 + $0x8] sm:$0xff]
    %v20 = vld [vmem:[%s0 + $0x10] sm:$0xff]
    %v21 = vld [vmem:[%s0 + $0x18] sm:$0xff]
    %v22 = vld [vmem:[%s0 + $0x20] sm:$0xf]
    %v23 = vld [vmem:[%s0 + $0x24] sm:$0xff]
    %v24 = vld [vmem:[%s0 + $0x2c] sm:$0xff]
    %v25 = vld [vmem:[%s0 + $0x34] sm:$0xff]
    %v26 = vld [vmem:[%s0 + $0x3c] sm:$0xff]
    %v27 = vld [vmem:[%s0 + $0x44] sm:$0xf]
    %v28 = vld [vmem:[%s0 + $0x48] sm:$0xff]
    %v29 = vld [vmem:[%s0 + $0x50] sm:$0xff]
    %v30 = vld [vmem:[%s0 + $0x58] sm:$0xff]
    %v31 = vld [vmem:[%s0 + $0x60] sm:$0xff]
    %v32 = vld [vmem:[%s0 + $0x68] sm:$0xf]
    %v33 = vld [vmem:[%s0 + $0x6c] sm:$0xff]
    %v34 = vld [vmem:[%s0 + $0x74] sm:$0xff]
    %v35 = vld [vmem:[%s0 + $0x7c] sm:$0xff]
    %v36 = vld [vmem:[%s0 + $0x84] sm:$0xff]
    %v37 = vld [vmem:[%s0 + $0x8c] sm:$0xf]
    %v38 = vld [vmem:[%s1] sm:$0xf]
    %v39 = vld [vmem:[%s1 + $0x4] sm:$0xf]
    %v40 = vld [vmem:[%s1 + $0x8] sm:$0xf]
    %v41 = vld [vmem:[%s1 + $0xc] sm:$0xf]
    %v42 = vld [vmem:[%s1 + $0x10] sm:$0xf]
    %v43 = vld [vmem:[%s1 + $0x14] sm:$0xf]
    %v44 = vld [vmem:[%s1 + $0x18] sm:$0xf]
    %v45 = vld [vmem:[%s1 + $0x1c] sm:$0xf]
    %v46 = vld [vmem:[%s1 + $0x20] sm:$0xf]
    %v47 = vld [vmem:[%s1 + $0x24] sm:$0xf]
    %v48 = vld [vmem:[%s1 + $0x28] sm:$0xf]
    %v49 = vld [vmem:[%s1 + $0x2c] sm:$0xf]
    %v50 = vld [vmem:[%s1 + $0x30] sm:$0xf]
    %v51 = vld [vmem:[%s1 + $0x34] sm:$0xf]
    %v52 = vld [vmem:[%s1 + $0x38] sm:$0xf]
    %v53 = vld [vmem:[%s1 + $0x3c] sm:$0xf]
    %v54 = vld [vmem:[%s1 + $0x40] sm:$0xf]
    %v55 = vld [vmem:[%s1 + $0x44] sm:$0xf]
    %v56 = vld [vmem:[%s1 + $0x48] sm:$0xf]
    %v57 = vld [vmem:[%s1 + $0x4c] sm:$0xf]
    %v58 = vld [vmem:[%s1 + $0x50] sm:$0xf]
    %v59 = vld [vmem:[%s1 + $0x54] sm:$0xf]
    %v60 = vld [vmem:[%s1 + $0x58] sm:$0xf]
    %v61 = vld [vmem:[%s1 + $0x5c] sm:$0xf]
    %v62 = vld [vmem:[%s1 + $0x60] sm:$0xf]
    %v63 = vld [vmem:[%s1 + $0x64] sm:$0xf]
    %v64 = vld [vmem:[%s1 + $0x68] sm:$0xf]
    %v65 = vld [vmem:[%s1 + $0x6c] sm:$0xf]
    %v66 = vld [vmem:[%s1 + $0x70] sm:$0xf]
    %v67 = vld [vmem:[%s1 + $0x74] sm:$0xf]
    %v68 = vld [vmem:[%s1 + $0x78] sm:$0xf]
    %v69 = vld [vmem:[%s1 + $0x7c] sm:$0xf]
    %v70 = vld [vmem:[%s1 + $0x80] sm:$0xf]
    %v71 = vld [vmem:[%s1 + $0x84] sm:$0xf]
    %v72 = vld [vmem:[%s1 + $0x88] sm:$0xf]
    %v73 = vld [vmem:[%s1 + $0x8c] sm:$0xf]
    %v74 = vld [vmem:[%s1 + $0x90] sm:$0xf]
    %v75 = vld [vmem:[%s1 + $0x94] sm:$0xf]
    %v76 = vld [vmem:[%s1 + $0x98] sm:$0xf]
    %v77 = vld [vmem:[%s1 + $0x9c] sm:$0xf]
    %v78 = vld [vmem:[%s1 + $0xa0] sm:$0xf]
    %v79 = vld [vmem:[%s1 + $0xa4] sm:$0xf]
    %v80 = vld [vmem:[%s1 + $0xa8] sm:$0xf]
    %v81 = vld [vmem:[%s1 + $0xac] sm:$0xf]
    %v82 = vld [vmem:[%s1 + $0xb0] sm:$0xf]
    %v83 = vld [vmem:[%s1 + $0xb4] sm:$0xf]
    %v84 = vld [vmem:[%s1 + $0xb8] sm:$0xf]
    %v85 = vld [vmem:[%s1 + $0xbc] sm:$0xf]
    %v86 = vld [vmem:[%s1 + $0xc0] sm:$0xf]
    %v87 = vld [vmem:[%s1 + $0xc4] sm:$0xf]
    %v88 = vld [vmem:[%s1 + $0xc8] sm:$0xf]
    %v89 = vld [vmem:[%s1 + $0xcc] sm:$0xf]
    %v90 = vld [vmem:[%s1 + $0xd0] sm:$0xf]
    %v91 = vld [vmem:[%s1 + $0xd4] sm:$0xf]
    %v92 = vld [vmem:[%s1 + $0xd8] sm:$0xf]
    %v93 = vld [vmem:[%s1 + $0xdc] sm:$0xf]
    %v94 = vld [vmem:[%s1 + $0xe0] sm:$0xf]
    %v95 = vld [vmem:[%s1 + $0xe4] sm:$0xf]
    %v96 = vld [vmem:[%s1 + $0xe8] sm:$0xf]
    %v97 = vld [vmem:[%s1 + $0xec] sm:$0xf]
    %v98 = vld [vmem:[%s1 + $0xf0] sm:$0xf]
    %v99 = vld [vmem:[%s1 + $0xf4] sm:$0xf]
    %v100 = vld [vmem:[%s1 + $0xf8] sm:$0xf]
    %v101 = vld [vmem:[%s1 + $0xfc] sm:$0xf]
    %v102 = vld [vmem:[%s1 + $0x100] sm:$0xf]
    %v103 = vld [vmem:[%s1 + $0x104] sm:$0xf]
    %v104 = vld [vmem:[%s1 + $0x108] sm:$0xf]
    %v105 = vld [vmem:[%s1 + $0x10c] sm:$0xf]
    %v106 = vld [vmem:[%s1 + $0x110] sm:$0xf]
    %v107 = vld [vmem:[%s1 + $0x114] sm:$0xf]
    %v108 = vld [vmem:[%s1 + $0x118] sm:$0xf]
    %v109 = vld [vmem:[%s1 + $0x11c] sm:$0xf]
    %v110 = vld [vmem:[%s1 + $0x120] sm:$0xf]
    %v111 = vld [vmem:[%s1 + $0x124] sm:$0xf]
    %v112 = vld [vmem:[%s1 + $0x128] sm:$0xf]
    %v113 = vld [vmem:[%s1 + $0x12c] sm:$0xf]
    %v114 = vld [vmem:[%s1 + $0x130] sm:$0xf]
    %v115 = vld [vmem:[%s1 + $0x134] sm:$0xf]
    %v116 = vld [vmem:[%s1 + $0x138] sm:$0xf]
    %v117 = vld [vmem:[%s1 + $0x13c] sm:$0xf]
    %v118 = vld [vmem:[%s1 + $0x140] sm:$0xf]
    %v119 = vld [vmem:[%s1 + $0x144] sm:$0xf]
    %v120 = vld [vmem:[%s1 + $0x148] sm:$0xf]
    %v121 = vld [vmem:[%s1 + $0x14c] sm:$0xf]
    %v122 = vld [vmem:[%s1 + $0x150] sm:$0xf]
    %v123 = vld [vmem:[%s1 + $0x154] sm:$0xf]
    %v124 = vld [vmem:[%s1 + $0x158] sm:$0xf]
    %v125 = vld [vmem:[%s1 + $0x15c] sm:$0xf]
    %v126 = vld [vmem:[%s1 + $0x160] sm:$0xf]
    %v127 = vld [vmem:[%s1 + $0x164] sm:$0xf]
    %v128 = vld [vmem:[%s1 + $0x168] sm:$0xf]
    %v129 = vld [vmem:[%s1 + $0x16c] sm:$0xf]
    %v130 = vld [vmem:[%s1 + $0x170] sm:$0xf]
    %v131 = vld [vmem:[%s1 + $0x174] sm:$0xf]
    %v132 = vld [vmem:[%s1 + $0x178] sm:$0xf]
    %v133 = vld [vmem:[%s1 + $0x17c] sm:$0xf]
    %v134 = vld [vmem:[%s1 + $0x180] sm:$0xf]
    %v135 = vld [vmem:[%s1 + $0x184] sm:$0xf]
    %v136 = vld [vmem:[%s1 + $0x188] sm:$0xf]
    %v137 = vld [vmem:[%s1 + $0x18c] sm:$0xf]
    %v138 = vld [vmem:[%s1 + $0x190] sm:$0xf]
    %v139 = vld [vmem:[%s1 + $0x194] sm:$0xf]
    %v140 = vld [vmem:[%s1 + $0x198] sm:$0xf]
    %v141 = vld [vmem:[%s1 + $0x19c] sm:$0xf]
    %v142 = vld [vmem:[%s1 + $0x1a0] sm:$0xf]
    %v143 = vld [vmem:[%s1 + $0x1a4] sm:$0xf]
    %v144 = vld [vmem:[%s1 + $0x1a8] sm:$0xf]
    %v145 = vld [vmem:[%s1 + $0x1ac] sm:$0xf]
    %v146 = vld [vmem:[%s1 + $0x1b0] sm:$0xf]
    %v147 = vld [vmem:[%s1 + $0x1b4] sm:$0xf]
    %v148 = vld [vmem:[%s1 + $0x1b8] sm:$0xf]
    %v149 = vld [vmem:[%s1 + $0x1bc] sm:$0xf]
    %v150 = vld [vmem:[%s1 + $0x1c0] sm:$0xf]
    %v151 = vld [vmem:[%s1 + $0x1c4] sm:$0xf]
    %v152 = vld [vmem:[%s1 + $0x1c8] sm:$0xf]
    %v153 = vld [vmem:[%s1 + $0x1cc] sm:$0xf]
    %v154 = vld [vmem:[%s1 + $0x1d0] sm:$0xf]
    %v155 = vld [vmem:[%s1 + $0x1d4] sm:$0xf]
    %v156 = vld [vmem:[%s1 + $0x1d8] sm:$0xf]
    %v157 = vld [vmem:[%s1 + $0x1dc] sm:$0xf]
    %v158 = vld [vmem:[%s1 + $0x1e0] sm:$0xf]
    %v159 = vld [vmem:[%s1 + $0x1e4] sm:$0xf]
    %v160 = vld [vmem:[%s1 + $0x1e8] sm:$0xf]
    %v161 = vld [vmem:[%s1 + $0x1ec] sm:$0xf]
    %v162 = vld [vmem:[%s1 + $0x1f0] sm:$0xf]
    %v163 = vld [vmem:[%s1 + $0x1f4] sm:$0xf]
    %v164 = vld [vmem:[%s1 + $0x1f8] sm:$0xf]
    %v165 = vld [vmem:[%s1 + $0x1fc] sm:$0xf]
    %v166 = vld [vmem:[%s1 + $0x200] sm:$0xf]
    %v167 = vld [vmem:[%s1 + $0x204] sm:$0xf]
    %v168 = vld [vmem:[%s1 + $0x208] sm:$0xf]
    %v169 = vld [vmem:[%s1 + $0x20c] sm:$0xf]
    %v170 = vld [vmem:[%s1 + $0x210] sm:$0xf]
    %v171 = vld [vmem:[%s1 + $0x214] sm:$0xf]
    %v172 = vld [vmem:[%s1 + $0x218] sm:$0xf]
    %v173 = vld [vmem:[%s1 + $0x21c] sm:$0xf]
    %v174 = vld [vmem:[%s1 + $0x220] sm:$0xf]
    %v175 = vld [vmem:[%s1 + $0x224] sm:$0xf]
    %v176 = vld [vmem:[%s1 + $0x228] sm:$0xf]
    %v177 = vld [vmem:[%s1 + $0x22c] sm:$0xf]
    %v178 = vld [vmem:[%s1 + $0x230] sm:$0xf]
    %v179 = vld [vmem:[%s1 + $0x234] sm:$0xf]
    %v180 = vld [vmem:[%s1 + $0x238] sm:$0xf]
    %v181 = vld [vmem:[%s1 + $0x23c] sm:$0xf]
    %v182 = vld [vmem:[%s2] sm:$0x1]
    %v184 = vlaneseq
    %v185 = vshrl.u32 %v184, 7
    %v186 = vsub.s32 0, %v185
    %v187 = vrot.slane %v182, %v186
    %v209 = vunpack.c.l.b16 %v18
    %v210 = vunpack.c.h.b16 %v18
    %v211 = vunpack.c.l.b16 %v19
    %v212 = vunpack.c.h.b16 %v19
    %v213 = vunpack.c.l.b16 %v20
    %v214 = vunpack.c.h.b16 %v20
    %v215 = vunpack.c.l.b16 %v21
    %v216 = vunpack.c.h.b16 %v21
    %v217 = vunpack.c.l.b16 %v22
    %v218 = vunpack.c.l.b16 %v23
    %v219 = vunpack.c.h.b16 %v23
    %v220 = vunpack.c.l.b16 %v24
    %v221 = vunpack.c.h.b16 %v24
    %v222 = vunpack.c.l.b16 %v25
    %v223 = vunpack.c.h.b16 %v25
    %v224 = vunpack.c.l.b16 %v26
    %v225 = vunpack.c.h.b16 %v26
    %v226 = vunpack.c.l.b16 %v27
    %v227 = vunpack.c.l.b16 %v28
    %v228 = vunpack.c.h.b16 %v28
    %v229 = vunpack.c.l.b16 %v29
    %v230 = vunpack.c.h.b16 %v29
    %v231 = vunpack.c.l.b16 %v30
    %v232 = vunpack.c.h.b16 %v30
    %v233 = vunpack.c.l.b16 %v31
    %v234 = vunpack.c.h.b16 %v31
    %v235 = vunpack.c.l.b16 %v32
    %v236 = vunpack.c.l.b16 %v33
    %v237 = vunpack.c.h.b16 %v33
    %v238 = vunpack.c.l.b16 %v34
    %v239 = vunpack.c.h.b16 %v34
    %v240 = vunpack.c.l.b16 %v35
    %v241 = vunpack.c.h.b16 %v35
    %v242 = vunpack.c.l.b16 %v36
    %v243 = vunpack.c.h.b16 %v36
    %v244 = vunpack.c.l.b16 %v37
    %v245 = vpack.c.b16 %v218, %v209
    %v246 = vpack.c.b16 %v219, %v210
    %v247 = vpack.c.b16 %v220, %v211
    %v248 = vpack.c.b16 %v221, %v212
    %v249 = vpack.c.b16 %v222, %v213
    %v250 = vpack.c.b16 %v223, %v214
    %v251 = vpack.c.b16 %v224, %v215
    %v252 = vpack.c.b16 %v225, %v216
    %v253 = vpack.c.b16 %v226, %v217
    %v254 = vpack.c.b16 %v236, %v227
    %v255 = vpack.c.b16 %v237, %v228
    %v256 = vpack.c.b16 %v238, %v229
    %v257 = vpack.c.b16 %v239, %v230
    %v258 = vpack.c.b16 %v240, %v231
    %v259 = vpack.c.b16 %v241, %v232
    %v260 = vpack.c.b16 %v242, %v233
    %v261 = vpack.c.b16 %v243, %v234
    %v262 = vpack.c.b16 %v244, %v235
    %v425 = vunpack.c.l.b16 %v38
    %v426 = vunpack.c.l.b16 %v39
    %v427 = vunpack.c.l.b16 %v40
    %v428 = vunpack.c.l.b16 %v41
    %v429 = vunpack.c.l.b16 %v42
    %v430 = vunpack.c.l.b16 %v43
    %v431 = vunpack.c.l.b16 %v44
    %v432 = vunpack.c.l.b16 %v45
    %v433 = vunpack.c.l.b16 %v46
    %v434 = vunpack.c.l.b16 %v47
    %v435 = vunpack.c.l.b16 %v48
    %v436 = vunpack.c.l.b16 %v49
    %v437 = vunpack.c.l.b16 %v50
    %v438 = vunpack.c.l.b16 %v51
    %v439 = vunpack.c.l.b16 %v52
    %v440 = vunpack.c.l.b16 %v53
    %v441 = vunpack.c.l.b16 %v54
    %v442 = vunpack.c.l.b16 %v55
    %v443 = vunpack.c.l.b16 %v56
    %v444 = vunpack.c.l.b16 %v57
    %v445 = vunpack.c.l.b16 %v58
    %v446 = vunpack.c.l.b16 %v59
    %v447 = vunpack.c.l.b16 %v60
    %v448 = vunpack.c.l.b16 %v61
    %v449 = vunpack.c.l.b16 %v62
    %v450 = vunpack.c.l.b16 %v63
    %v451 = vunpack.c.l.b16 %v64
    %v452 = vunpack.c.l.b16 %v65
    %v453 = vunpack.c.l.b16 %v66
    %v454 = vunpack.c.l.b16 %v67
    %v455 = vunpack.c.l.b16 %v68
    %v456 = vunpack.c.l.b16 %v69
    %v457 = vunpack.c.l.b16 %v70
    %v458 = vunpack.c.l.b16 %v71
    %v459 = vunpack.c.l.b16 %v72
    %v460 = vunpack.c.l.b16 %v73
    %v461 = vunpack.c.l.b16 %v74
    %v462 = vunpack.c.l.b16 %v75
    %v463 = vunpack.c.l.b16 %v76
    %v464 = vunpack.c.l.b16 %v77
    %v465 = vunpack.c.l.b16 %v78
    %v466 = vunpack.c.l.b16 %v79
    %v467 = vunpack.c.l.b16 %v80
    %v468 = vunpack.c.l.b16 %v81
    %v469 = vunpack.c.l.b16 %v82
    %v470 = vunpack.c.l.b16 %v83
    %v471 = vunpack.c.l.b16 %v84
    %v472 = vunpack.c.l.b16 %v85
    %v473 = vunpack.c.l.b16 %v86
    %v474 = vunpack.c.l.b16 %v87
    %v475 = vunpack.c.l.b16 %v88
    %v476 = vunpack.c.l.b16 %v89
    %v477 = vunpack.c.l.b16 %v90
    %v478 = vunpack.c.l.b16 %v91
    %v479 = vunpack.c.l.b16 %v92
    %v480 = vunpack.c.l.b16 %v93
    %v481 = vunpack.c.l.b16 %v94
    %v482 = vunpack.c.l.b16 %v95
    %v483 = vunpack.c.l.b16 %v96
    %v484 = vunpack.c.l.b16 %v97
    %v485 = vunpack.c.l.b16 %v98
    %v486 = vunpack.c.l.b16 %v99
    %v487 = vunpack.c.l.b16 %v100
    %v488 = vunpack.c.l.b16 %v101
    %v489 = vunpack.c.l.b16 %v102
    %v490 = vunpack.c.l.b16 %v103
    %v491 = vunpack.c.l.b16 %v104
    %v492 = vunpack.c.l.b16 %v105
    %v493 = vunpack.c.l.b16 %v106
    %v494 = vunpack.c.l.b16 %v107
    %v495 = vunpack.c.l.b16 %v108
    %v496 = vunpack.c.l.b16 %v109
    %v497 = vunpack.c.l.b16 %v110
    %v498 = vunpack.c.l.b16 %v111
    %v499 = vunpack.c.l.b16 %v112
    %v500 = vunpack.c.l.b16 %v113
    %v501 = vunpack.c.l.b16 %v114
    %v502 = vunpack.c.l.b16 %v115
    %v503 = vunpack.c.l.b16 %v116
    %v504 = vunpack.c.l.b16 %v117
    %v505 = vunpack.c.l.b16 %v118
    %v506 = vunpack.c.l.b16 %v119
    %v507 = vunpack.c.l.b16 %v120
    %v508 = vunpack.c.l.b16 %v121
    %v509 = vunpack.c.l.b16 %v122
    %v510 = vunpack.c.l.b16 %v123
    %v511 = vunpack.c.l.b16 %v124
    %v512 = vunpack.c.l.b16 %v125
    %v513 = vunpack.c.l.b16 %v126
    %v514 = vunpack.c.l.b16 %v127
    %v515 = vunpack.c.l.b16 %v128
    %v516 = vunpack.c.l.b16 %v129
    %v517 = vunpack.c.l.b16 %v130
    %v518 = vunpack.c.l.b16 %v131
    %v519 = vunpack.c.l.b16 %v132
    %v520 = vunpack.c.l.b16 %v133
    %v521 = vunpack.c.l.b16 %v134
    %v522 = vunpack.c.l.b16 %v135
    %v523 = vunpack.c.l.b16 %v136
    %v524 = vunpack.c.l.b16 %v137
    %v525 = vunpack.c.l.b16 %v138
    %v526 = vunpack.c.l.b16 %v139
    %v527 = vunpack.c.l.b16 %v140
    %v528 = vunpack.c.l.b16 %v141
    %v529 = vunpack.c.l.b16 %v142
    %v530 = vunpack.c.l.b16 %v143
    %v531 = vunpack.c.l.b16 %v144
    %v532 = vunpack.c.l.b16 %v145
    %v533 = vunpack.c.l.b16 %v146
    %v534 = vunpack.c.l.b16 %v147
    %v535 = vunpack.c.l.b16 %v148
    %v536 = vunpack.c.l.b16 %v149
    %v537 = vunpack.c.l.b16 %v150
    %v538 = vunpack.c.l.b16 %v151
    %v539 = vunpack.c.l.b16 %v152
    %v540 = vunpack.c.l.b16 %v153
    %v541 = vunpack.c.l.b16 %v154
    %v542 = vunpack.c.l.b16 %v155
    %v543 = vunpack.c.l.b16 %v156
    %v544 = vunpack.c.l.b16 %v157
    %v545 = vunpack.c.l.b16 %v158
    %v546 = vunpack.c.l.b16 %v159
    %v547 = vunpack.c.l.b16 %v160
    %v548 = vunpack.c.l.b16 %v161
    %v549 = vunpack.c.l.b16 %v162
    %v550 = vunpack.c.l.b16 %v163
    %v551 = vunpack.c.l.b16 %v164
    %v552 = vunpack.c.l.b16 %v165
    %v553 = vunpack.c.l.b16 %v166
    %v554 = vunpack.c.l.b16 %v167
    %v555 = vunpack.c.l.b16 %v168
    %v556 = vunpack.c.l.b16 %v169
    %v557 = vunpack.c.l.b16 %v170
    %v558 = vunpack.c.l.b16 %v171
    %v559 = vunpack.c.l.b16 %v172
    %v560 = vunpack.c.l.b16 %v173
    %v561 = vunpack.c.l.b16 %v174
    %v562 = vunpack.c.l.b16 %v175
    %v563 = vunpack.c.l.b16 %v176
    %v564 = vunpack.c.l.b16 %v177
    %v565 = vunpack.c.l.b16 %v178
    %v566 = vunpack.c.l.b16 %v179
    %v567 = vunpack.c.l.b16 %v180
    %v568 = vunpack.c.l.b16 %v181
    %v569 = vpack.c.b16 %v426, %v425
    %v570 = vpack.c.b16 %v428, %v427
    %v571 = vpack.c.b16 %v430, %v429
    %v572 = vpack.c.b16 %v432, %v431
    %v573 = vpack.c.b16 %v434, %v433
    %v574 = vpack.c.b16 %v436, %v435
    %v575 = vpack.c.b16 %v438, %v437
    %v576 = vpack.c.b16 %v440, %v439
    %v577 = vpack.c.b16 %v442, %v441
    %v578 = vpack.c.b16 %v444, %v443
    %v579 = vpack.c.b16 %v446, %v445
    %v580 = vpack.c.b16 %v448, %v447
    %v581 = vpack.c.b16 %v450, %v449
    %v582 = vpack.c.b16 %v452, %v451
    %v583 = vpack.c.b16 %v454, %v453
    %v584 = vpack.c.b16 %v456, %v455
    %v585 = vpack.c.b16 %v458, %v457
    %v586 = vpack.c.b16 %v460, %v459
    %v587 = vpack.c.b16 %v462, %v461
    %v588 = vpack.c.b16 %v464, %v463
    %v589 = vpack.c.b16 %v466, %v465
    %v590 = vpack.c.b16 %v468, %v467
    %v591 = vpack.c.b16 %v470, %v469
    %v592 = vpack.c.b16 %v472, %v471
    %v593 = vpack.c.b16 %v474, %v473
    %v594 = vpack.c.b16 %v476, %v475
    %v595 = vpack.c.b16 %v478, %v477
    %v596 = vpack.c.b16 %v480, %v479
    %v597 = vpack.c.b16 %v482, %v481
    %v598 = vpack.c.b16 %v484, %v483
    %v599 = vpack.c.b16 %v486, %v485
    %v600 = vpack.c.b16 %v488, %v487
    %v601 = vpack.c.b16 %v490, %v489
    %v602 = vpack.c.b16 %v492, %v491
    %v603 = vpack.c.b16 %v494, %v493
    %v604 = vpack.c.b16 %v496, %v495
    %v605 = vpack.c.b16 %v498, %v497
    %v606 = vpack.c.b16 %v500, %v499
    %v607 = vpack.c.b16 %v502, %v501
    %v608 = vpack.c.b16 %v504, %v503
    %v609 = vpack.c.b16 %v506, %v505
    %v610 = vpack.c.b16 %v508, %v507
    %v611 = vpack.c.b16 %v510, %v509
    %v612 = vpack.c.b16 %v512, %v511
    %v613 = vpack.c.b16 %v514, %v513
    %v614 = vpack.c.b16 %v516, %v515
    %v615 = vpack.c.b16 %v518, %v517
    %v616 = vpack.c.b16 %v520, %v519
    %v617 = vpack.c.b16 %v522, %v521
    %v618 = vpack.c.b16 %v524, %v523
    %v619 = vpack.c.b16 %v526, %v525
    %v620 = vpack.c.b16 %v528, %v527
    %v621 = vpack.c.b16 %v530, %v529
    %v622 = vpack.c.b16 %v532, %v531
    %v623 = vpack.c.b16 %v534, %v533
    %v624 = vpack.c.b16 %v536, %v535
    %v625 = vpack.c.b16 %v538, %v537
    %v626 = vpack.c.b16 %v540, %v539
    %v627 = vpack.c.b16 %v542, %v541
    %v628 = vpack.c.b16 %v544, %v543
    %v629 = vpack.c.b16 %v546, %v545
    %v630 = vpack.c.b16 %v548, %v547
    %v631 = vpack.c.b16 %v550, %v549
    %v632 = vpack.c.b16 %v552, %v551
    %v633 = vpack.c.b16 %v554, %v553
    %v634 = vpack.c.b16 %v556, %v555
    %v635 = vpack.c.b16 %v558, %v557
    %v636 = vpack.c.b16 %v560, %v559
    %v637 = vpack.c.b16 %v562, %v561
    %v638 = vpack.c.b16 %v564, %v563
    %v639 = vpack.c.b16 %v566, %v565
    %v640 = vpack.c.b16 %v568, %v567
    %713 = vmatprep.subr.bf16.mxu0 0
    %714 = vmatpush1.bf16.msra.mxu0 %v576
    %715 = vmatprep.subr.bf16.mxu0 0
    %716 = vmatpush1.bf16.msra.mxu0 %v575
    %717 = vmatprep.subr.bf16.mxu0 0
    %718 = vmatpush1.bf16.msra.mxu0 %v574
    %719 = vmatprep.subr.bf16.mxu0 0
    %720 = vmatpush1.bf16.msra.mxu0 %v573
    %721 = vmatprep.subr.bf16.mxu0 0
    %722 = vmatpush1.bf16.msra.mxu0 %v572
    %723 = vmatprep.subr.bf16.mxu0 0
    %724 = vmatpush1.bf16.msra.mxu0 %v571
    %725 = vmatprep.subr.bf16.mxu0 0
    %726 = vmatpush1.bf16.msra.mxu0 %v570
    %727 = vmatprep.subr.bf16.mxu0 0
    %728 = vmatpush1.bf16.msra.mxu0 %v569
    %729 = vmatprep.subr.bf16.mxu0 0
    %730 = vmatpush2.bf16.msra.mxu0 %v584
    %731 = vmatprep.subr.bf16.mxu0 0
    %732 = vmatpush2.bf16.msra.mxu0 %v583
    %733 = vmatprep.subr.bf16.mxu0 0
    %734 = vmatpush2.bf16.msra.mxu0 %v582
    %735 = vmatprep.subr.bf16.mxu0 0
    %736 = vmatpush2.bf16.msra.mxu0 %v581
    %737 = vmatprep.subr.bf16.mxu0 0
    %738 = vmatpush2.bf16.msra.mxu0 %v580
    %739 = vmatprep.subr.bf16.mxu0 0
    %740 = vmatpush2.bf16.msra.mxu0 %v579
    %741 = vmatprep.subr.bf16.mxu0 0
    %742 = vmatpush2.bf16.msra.mxu0 %v578
    %743 = vmatprep.subr.bf16.mxu0 0
    %744 = vmatpush2.bf16.msra.mxu0 %v577
    %745 = vmatprep.mubr.bf16.mxu0 %v246
    %746 = vmatmul.mubr.bf16.gmra.mxu0 %v245
    %v747 = vpop.f32.mrf.mxu0
    %v748 = vadd.f32 %v187, %v747
    %v749 = vpop.f32.mrf.mxu0
    %v750 = vpop.f32.mrf.mxu0
    %v751 = vadd.f32 %v187, %v750
    %v752 = vpop.f32.mrf.mxu0
    %753 = vmatprep.mubr.bf16.mxu0 %v255
    %754 = vmatmul.mubr.bf16.gmra.mxu0 %v254
    %v755 = vpop.f32.mrf.mxu0
    %v756 = vadd.f32 %v187, %v755
    %v757 = vpop.f32.mrf.mxu0
    %v758 = vpop.f32.mrf.mxu0
    %v759 = vadd.f32 %v187, %v758
    %v760 = vpop.f32.mrf.mxu0
    %761 = vdwg.mxu0
    %762 = vmatprep.subr.bf16.mxu0 0
    %763 = vmatpush1.bf16.msra.mxu0 %v592
    %764 = vmatprep.subr.bf16.mxu0 0
    %765 = vmatpush1.bf16.msra.mxu0 %v591
    %766 = vmatprep.subr.bf16.mxu0 0
    %767 = vmatpush1.bf16.msra.mxu0 %v590
    %768 = vmatprep.subr.bf16.mxu0 0
    %769 = vmatpush1.bf16.msra.mxu0 %v589
    %770 = vmatprep.subr.bf16.mxu0 0
    %771 = vmatpush1.bf16.msra.mxu0 %v588
    %772 = vmatprep.subr.bf16.mxu0 0
    %773 = vmatpush1.bf16.msra.mxu0 %v587
    %774 = vmatprep.subr.bf16.mxu0 0
    %775 = vmatpush1.bf16.msra.mxu0 %v586
    %776 = vmatprep.subr.bf16.mxu0 0
    %777 = vmatpush1.bf16.msra.mxu0 %v585
    %778 = vmatprep.subr.bf16.mxu0 0
    %779 = vmatpush2.bf16.msra.mxu0 %v600
    %780 = vmatprep.subr.bf16.mxu0 0
    %781 = vmatpush2.bf16.msra.mxu0 %v599
    %782 = vmatprep.subr.bf16.mxu0 0
    %783 = vmatpush2.bf16.msra.mxu0 %v598
    %784 = vmatprep.subr.bf16.mxu0 0
    %785 = vmatpush2.bf16.msra.mxu0 %v597
    %786 = vmatprep.subr.bf16.mxu0 0
    %787 = vmatpush2.bf16.msra.mxu0 %v596
    %788 = vmatprep.subr.bf16.mxu0 0
    %789 = vmatpush2.bf16.msra.mxu0 %v595
    %790 = vmatprep.subr.bf16.mxu0 0
    %791 = vmatpush2.bf16.msra.mxu0 %v594
    %792 = vmatprep.subr.bf16.mxu0 0
    %793 = vmatpush2.bf16.msra.mxu0 %v593
    %794 = vmatprep.mubr.bf16.mxu0 %v248
    %795 = vmatmul.mubr.bf16.gmra.mxu0 %v247
    %v796 = vpop.f32.mrf.mxu0
    %v797 = vadd.f32 %v748, %v796
    %v798 = vpop.f32.mrf.mxu0
    %v799 = vpop.f32.mrf.mxu0
    %v800 = vadd.f32 %v751, %v799
    %v801 = vpop.f32.mrf.mxu0
    %802 = vmatprep.mubr.bf16.mxu0 %v257
    %803 = vmatmul.mubr.bf16.gmra.mxu0 %v256
    %v804 = vpop.f32.mrf.mxu0
    %v805 = vadd.f32 %v756, %v804
    %v806 = vpop.f32.mrf.mxu0
    %v807 = vpop.f32.mrf.mxu0
    %v808 = vadd.f32 %v759, %v807
    %v809 = vpop.f32.mrf.mxu0
    %810 = vdwg.mxu0
    %811 = vmatprep.subr.bf16.mxu0 0
    %812 = vmatpush1.bf16.msra.mxu0 %v608
    %813 = vmatprep.subr.bf16.mxu0 0
    %814 = vmatpush1.bf16.msra.mxu0 %v607
    %815 = vmatprep.subr.bf16.mxu0 0
    %816 = vmatpush1.bf16.msra.mxu0 %v606
    %817 = vmatprep.subr.bf16.mxu0 0
    %818 = vmatpush1.bf16.msra.mxu0 %v605
    %819 = vmatprep.subr.bf16.mxu0 0
    %820 = vmatpush1.bf16.msra.mxu0 %v604
    %821 = vmatprep.subr.bf16.mxu0 0
    %822 = vmatpush1.bf16.msra.mxu0 %v603
    %823 = vmatprep.subr.bf16.mxu0 0
    %824 = vmatpush1.bf16.msra.mxu0 %v602
    %825 = vmatprep.subr.bf16.mxu0 0
    %826 = vmatpush1.bf16.msra.mxu0 %v601
    %827 = vmatprep.subr.bf16.mxu0 0
    %828 = vmatpush2.bf16.msra.mxu0 %v616
    %829 = vmatprep.subr.bf16.mxu0 0
    %830 = vmatpush2.bf16.msra.mxu0 %v615
    %831 = vmatprep.subr.bf16.mxu0 0
    %832 = vmatpush2.bf16.msra.mxu0 %v614
    %833 = vmatprep.subr.bf16.mxu0 0
    %834 = vmatpush2.bf16.msra.mxu0 %v613
    %835 = vmatprep.subr.bf16.mxu0 0
    %836 = vmatpush2.bf16.msra.mxu0 %v612
    %837 = vmatprep.subr.bf16.mxu0 0
    %838 = vmatpush2.bf16.msra.mxu0 %v611
    %839 = vmatprep.subr.bf16.mxu0 0
    %840 = vmatpush2.bf16.msra.mxu0 %v610
    %841 = vmatprep.subr.bf16.mxu0 0
    %842 = vmatpush2.bf16.msra.mxu0 %v609
    %843 = vmatprep.mubr.bf16.mxu0 %v250
    %844 = vmatmul.mubr.bf16.gmra.mxu0 %v249
    %v845 = vpop.f32.mrf.mxu0
    %v846 = vadd.f32 %v797, %v845
    %v847 = vpop.f32.mrf.mxu0
    %v848 = vpop.f32.mrf.mxu0
    %v849 = vadd.f32 %v800, %v848
    %v850 = vpop.f32.mrf.mxu0
    %851 = vmatprep.mubr.bf16.mxu0 %v259
    %852 = vmatmul.mubr.bf16.gmra.mxu0 %v258
    %v853 = vpop.f32.mrf.mxu0
    %v854 = vadd.f32 %v805, %v853
    %v855 = vpop.f32.mrf.mxu0
    %v856 = vpop.f32.mrf.mxu0
    %v857 = vadd.f32 %v808, %v856
    %v858 = vpop.f32.mrf.mxu0
    %859 = vdwg.mxu0
    %860 = vmatprep.subr.bf16.mxu0 0
    %861 = vmatpush1.bf16.msra.mxu0 %v624
    %862 = vmatprep.subr.bf16.mxu0 0
    %863 = vmatpush1.bf16.msra.mxu0 %v623
    %864 = vmatprep.subr.bf16.mxu0 0
    %865 = vmatpush1.bf16.msra.mxu0 %v622
    %866 = vmatprep.subr.bf16.mxu0 0
    %867 = vmatpush1.bf16.msra.mxu0 %v621
    %868 = vmatprep.subr.bf16.mxu0 0
    %869 = vmatpush1.bf16.msra.mxu0 %v620
    %870 = vmatprep.subr.bf16.mxu0 0
    %871 = vmatpush1.bf16.msra.mxu0 %v619
    %872 = vmatprep.subr.bf16.mxu0 0
    %873 = vmatpush1.bf16.msra.mxu0 %v618
    %874 = vmatprep.subr.bf16.mxu0 0
    %875 = vmatpush1.bf16.msra.mxu0 %v617
    %876 = vmatprep.subr.bf16.mxu0 0
    %877 = vmatpush2.bf16.msra.mxu0 %v632
    %878 = vmatprep.subr.bf16.mxu0 0
    %879 = vmatpush2.bf16.msra.mxu0 %v631
    %880 = vmatprep.subr.bf16.mxu0 0
    %881 = vmatpush2.bf16.msra.mxu0 %v630
    %882 = vmatprep.subr.bf16.mxu0 0
    %883 = vmatpush2.bf16.msra.mxu0 %v629
    %884 = vmatprep.subr.bf16.mxu0 0
    %885 = vmatpush2.bf16.msra.mxu0 %v628
    %886 = vmatprep.subr.bf16.mxu0 0
    %887 = vmatpush2.bf16.msra.mxu0 %v627
    %888 = vmatprep.subr.bf16.mxu0 0
    %889 = vmatpush2.bf16.msra.mxu0 %v626
    %890 = vmatprep.subr.bf16.mxu0 0
    %891 = vmatpush2.bf16.msra.mxu0 %v625
    %892 = vmatprep.mubr.bf16.mxu0 %v252
    %893 = vmatmul.mubr.bf16.gmra.mxu0 %v251
    %v894 = vpop.f32.mrf.mxu0
    %v895 = vadd.f32 %v846, %v894
    %v896 = vpop.f32.mrf.mxu0
    %v897 = vpop.f32.mrf.mxu0
    %v898 = vadd.f32 %v849, %v897
    %v899 = vpop.f32.mrf.mxu0
    %900 = vmatprep.mubr.bf16.mxu0 %v261
    %901 = vmatmul.mubr.bf16.gmra.mxu0 %v260
    %v902 = vpop.f32.mrf.mxu0
    %v903 = vadd.f32 %v854, %v902
    %v904 = vpop.f32.mrf.mxu0
    %v905 = vpop.f32.mrf.mxu0
    %v906 = vadd.f32 %v857, %v905
    %v907 = vpop.f32.mrf.mxu0
    %908 = vdwg.mxu0
    %909 = vmatprep.subr.bf16.mxu0 0
    %910 = vmatpush1.bf16.msra.mxu0 %v640
    %911 = vmatprep.subr.bf16.mxu0 0
    %912 = vmatpush1.bf16.msra.mxu0 %v639
    %913 = vmatprep.subr.bf16.mxu0 0
    %914 = vmatpush1.bf16.msra.mxu0 %v638
    %915 = vmatprep.subr.bf16.mxu0 0
    %916 = vmatpush1.bf16.msra.mxu0 %v637
    %917 = vmatprep.subr.bf16.mxu0 0
    %918 = vmatpush1.bf16.msra.mxu0 %v636
    %919 = vmatprep.subr.bf16.mxu0 0
    %920 = vmatpush1.bf16.msra.mxu0 %v635
    %921 = vmatprep.subr.bf16.mxu0 0
    %922 = vmatpush1.bf16.msra.mxu0 %v634
    %923 = vmatprep.subr.bf16.mxu0 0
    %924 = vmatpush1.bf16.msra.mxu0 %v633
    %925 = vmatprep.subr.bf16.mxu0 0
    %926 = vmatpush2.bf16.msra.mxu0 0
    %927 = vmatprep.subr.bf16.mxu0 0
    %928 = vmatpush2.bf16.msra.mxu0 0
    %929 = vmatprep.subr.bf16.mxu0 0
    %930 = vmatpush2.bf16.msra.mxu0 0
    %931 = vmatprep.subr.bf16.mxu0 0
    %932 = vmatpush2.bf16.msra.mxu0 0
    %933 = vmatprep.subr.bf16.mxu0 0
    %934 = vmatpush2.bf16.msra.mxu0 0
    %935 = vmatprep.subr.bf16.mxu0 0
    %936 = vmatpush2.bf16.msra.mxu0 0
    %937 = vmatprep.subr.bf16.mxu0 0
    %938 = vmatpush2.bf16.msra.mxu0 0
    %939 = vmatprep.subr.bf16.mxu0 0
    %940 = vmatpush2.bf16.msra.mxu0 0
    %941 = vmatprep.mubr.bf16.mxu0 0
    %942 = vmatmul.mubr.bf16.gmra.mxu0 %v253
    %v943 = vpop.f32.mrf.mxu0
    %v944 = vadd.f32 %v895, %v943
    %v945 = vpop.f32.mrf.mxu0
    %v946 = vpop.f32.mrf.mxu0
    %v947 = vadd.f32 %v898, %v946
    %v948 = vpop.f32.mrf.mxu0
    %949 = vmatprep.mubr.bf16.mxu0 0
    %950 = vmatmul.mubr.bf16.gmra.mxu0 %v262
    %v951 = vpop.f32.mrf.mxu0
    %v952 = vadd.f32 %v903, %v951
    %v953 = vpop.f32.mrf.mxu0
    %v954 = vpop.f32.mrf.mxu0
    %v955 = vadd.f32 %v906, %v954
    %v956 = vpop.f32.mrf.mxu0
    %957 = vdwg.mxu0
    %v958 = vld [vmem:[%s0 + $0x10] sm:$0xf]
    %v959 = vld [vmem:[%s0 + $0x34] sm:$0xf]
    %v960 = vld [vmem:[%s0 + $0x58] sm:$0xf]
    %v961 = vld [vmem:[%s0 + $0x7c] sm:$0xf]
    %v962 = vunpack.c.l.bf16 %v958
    %v963 = vunpack.c.l.bf16 %v959
    %v964 = vunpack.c.l.bf16 %v960
    %v965 = vunpack.c.l.bf16 %v961
    %v966 = vadd.f32 %v944, %v962
    %v967 = vadd.f32 %v947, %v963
    %v968 = vadd.f32 %v952, %v964
    %v969 = vadd.f32 %v955, %v965
    %v970 = vmax.f32 %v966, 0.0
    %v971 = vmax.f32 %v967, 0.0
    %v972 = vmax.f32 %v968, 0.0
    %v973 = vmax.f32 %v969, 0.0
    %v974 = vpack.c.bf16 %v971, %v970
    %v975 = vpack.c.bf16 %v973, %v972
    %v978 = vunpack.c.l.b16 %v974
    %v979 = vunpack.c.h.b16 %v974
    %v980 = vunpack.c.l.b16 %v975
    %v981 = vunpack.c.h.b16 %v975
    %v982 = vpack.c.b16 %v978, %v978
    %v983 = vpack.c.b16 %v979, %v979
    %v984 = vpack.c.b16 %v980, %v980
    %v985 = vpack.c.b16 %v981, %v981
    %990 = vst [vmem:[%s3] sm:$0xf] %v982
    %991 = vst [vmem:[%s3 + $0x4] sm:$0xf] %v983
    %992 = vst [vmem:[%s3 + $0x8] sm:$0xf] %v984
    %993 = vst [vmem:[%s3 + $0xc] sm:$0xf] %v985
    %v994 = vsub.f32 %v970, %v972
    %v995 = vsub.f32 %v971, %v973
    %v996 = vmul.f32 %v994, %v994
    %v997 = vmul.f32 %v995, %v995
    %v998 = vadd.f32 %v996, %v997
    %999 = vadd.xlane.f32.xlu0 %v998
    %v1000 = vpop.xlane.xlu0 %999
    %v1001 = vrot.slane %v1000, 4
    %v1002 = vadd.f32 %v1000, %v1001
    %v1003 = vrot.slane %v1002, 2
    %v1004 = vadd.f32 %v1002, %v1003
    %v1005 = vrot.slane %v1004, 1
    %v1006 = vadd.f32 %v1004, %v1005
    %s1007 = vtos %v1006
    %s1008 = smul.f32 %s1007, 0.001953125
    %s1009 = scalar_lea.smem [#allocation2], 0
    %1010 = sst [smem:[%s1009]] %s1008
    // Predicated region
    $region14: #{_lambda_.12} parent=1 // pred_check
      _
    $region15: #{_lambda_.12} parent=1 // pred_check_branch
      %1012 = sbr.rel (0) target = $region17
    $region16: #{_lambda_.12} parent=1 // pred_region
      _
    $region17: #{_lambda_.12} parent=1 // pred_fallthru
      _
    // Predicated region
    $region18: #{_lambda_.12} parent=1 // pred_check
      _
    $region19: #{_lambda_.12} parent=1 // pred_check_branch
      %1014 = sbr.rel (0) target = $region21
    $region20: #{_lambda_.12} parent=1 // pred_region
      %s1016 = ssub.s32 16, 16
      %1017 = vsyncadd [#allocation3], %s1016
      %1020 = dma.smem_to_hbm [#allocation2], 16, %s4, [#allocation3]
    $region21: #{_lambda_.12} parent=1 // pred_fallthru
      _
    // Predicated region
    $region22: #{_lambda_.12} parent=1 // pred_check
      _
    $region23: #{_lambda_.12} parent=1 // pred_check_branch
      %1022 = sbr.rel (0) target = $region25
    $region24: #{_lambda_.12} parent=1 // pred_region
      _
    $region25: #{_lambda_.12} parent=1 // pred_fallthru
      _
    // Predicated region
    $region26: #{_lambda_.12} parent=1 // pred_check
      _
    $region27: #{_lambda_.12} parent=1 // pred_check_branch
      %1024 = sbr.rel (0) target = $region29
    $region28: #{_lambda_.12} parent=1 // pred_region
      %1025 = dma.done [#allocation3], 16
    $region29: #{_lambda_.12} parent=1 // pred_fallthru
      _
    %1026 = sfence
    %1027 = vsyncpa [#allocation3], 1

// kernel: _lambda_.13
$region0: #{_lambda_.13}
  #allocation0 [shape = 'u32[]', space=smem, size = 0x4, offset = 0x4, fixed_abs, tag = 'smem constant byte address 0x4 - core index']
  #allocation1 [shape = 'u32[144,128]{1,0:T(1,128)}', space=vmem, size = 0x12000, scoped, tag = 'internal scratch']
  %s0 = inlined_call_operand.vmem [shape: bf16[32,1152], index: 0, kind: input, shape index: {}]
  %s1 = inlined_call_operand.vmem [shape: bf16[1152,128], index: 1, kind: input, shape index: {}]
  %s2 = inlined_call_operand.vmem [shape: f32[1,128], index: 2, kind: input, shape index: {}]
  %s3 = inlined_call_operand.vmem [shape: bf16[32,128], index: 3, kind: output, shape index: {0}]
  %s4 = inlined_call_operand.hbm [shape: f32[1,1], index: 4, kind: output, shape index: {1}]
  %5 = xla_tuple %s3, %s4
  %s6 = sld [smem:[#allocation0]]
  $region30: #{_lambda_.13} parent=0
    _
  %s8 = ssub.s32 1, %s6
  %s9 = scalar_select 0, %s8, %s6
  $region1: #{_lambda_.13} parent=0
    #allocation2 [shape = 'u8[512]{0}', space=smem, size = 0x200, scoped, tag = 'output window, operand 1, single buffered']
    #allocation3 [shape = 's32[1]{0}', space=sflag, size = 0x4, scoped, tag = 'scoped memory for _lambda_.13']
    %10 = vsyncpa [#allocation3], 0
    // Predicated region
    $region2: #{_lambda_.13} parent=1 // pred_check
      _
    $region3: #{_lambda_.13} parent=1 // pred_check_branch
      %12 = sbr.rel (0) target = $region5
    $region4: #{_lambda_.13} parent=1 // pred_region
      _
    $region5: #{_lambda_.13} parent=1 // pred_fallthru
      _
    // Predicated region
    $region6: #{_lambda_.13} parent=1 // pred_check
      _
    $region7: #{_lambda_.13} parent=1 // pred_check_branch
      %14 = sbr.rel (0) target = $region9
    $region8: #{_lambda_.13} parent=1 // pred_region
      _
    $region9: #{_lambda_.13} parent=1 // pred_fallthru
      _
    // Predicated region
    $region10: #{_lambda_.13} parent=1 // pred_check
      _
    $region11: #{_lambda_.13} parent=1 // pred_check_branch
      %16 = sbr.rel (0) target = $region13
    $region12: #{_lambda_.13} parent=1 // pred_region
      _
    $region13: #{_lambda_.13} parent=1 // pred_fallthru
      _
    %v18 = vld [vmem:[%s0] sm:$0xff]
    %v19 = vld [vmem:[%s0 + $0x8] sm:$0xff]
    %v20 = vld [vmem:[%s0 + $0x10] sm:$0xff]
    %v21 = vld [vmem:[%s0 + $0x18] sm:$0xff]
    %v22 = vld [vmem:[%s0 + $0x20] sm:$0xf]
    %v23 = vld [vmem:[%s0 + $0x24] sm:$0xff]
    %v24 = vld [vmem:[%s0 + $0x2c] sm:$0xff]
    %v25 = vld [vmem:[%s0 + $0x34] sm:$0xff]
    %v26 = vld [vmem:[%s0 + $0x3c] sm:$0xff]
    %v27 = vld [vmem:[%s0 + $0x44] sm:$0xf]
    %v28 = vld [vmem:[%s0 + $0x48] sm:$0xff]
    %v29 = vld [vmem:[%s0 + $0x50] sm:$0xff]
    %v30 = vld [vmem:[%s0 + $0x58] sm:$0xff]
    %v31 = vld [vmem:[%s0 + $0x60] sm:$0xff]
    %v32 = vld [vmem:[%s0 + $0x68] sm:$0xf]
    %v33 = vld [vmem:[%s0 + $0x6c] sm:$0xff]
    %v34 = vld [vmem:[%s0 + $0x74] sm:$0xff]
    %v35 = vld [vmem:[%s0 + $0x7c] sm:$0xff]
    %v36 = vld [vmem:[%s0 + $0x84] sm:$0xff]
    %v37 = vld [vmem:[%s0 + $0x8c] sm:$0xf]
    %v38 = vld [vmem:[%s1] sm:$0xf]
    %v39 = vld [vmem:[%s1 + $0x4] sm:$0xf]
    %v40 = vld [vmem:[%s1 + $0x8] sm:$0xf]
    %v41 = vld [vmem:[%s1 + $0xc] sm:$0xf]
    %v42 = vld [vmem:[%s1 + $0x10] sm:$0xf]
    %v43 = vld [vmem:[%s1 + $0x14] sm:$0xf]
    %v44 = vld [vmem:[%s1 + $0x18] sm:$0xf]
    %v45 = vld [vmem:[%s1 + $0x1c] sm:$0xf]
    %v46 = vld [vmem:[%s1 + $0x20] sm:$0xf]
    %v47 = vld [vmem:[%s1 + $0x24] sm:$0xf]
    %v48 = vld [vmem:[%s1 + $0x28] sm:$0xf]
    %v49 = vld [vmem:[%s1 + $0x2c] sm:$0xf]
    %v50 = vld [vmem:[%s1 + $0x30] sm:$0xf]
    %v51 = vld [vmem:[%s1 + $0x34] sm:$0xf]
    %v52 = vld [vmem:[%s1 + $0x38] sm:$0xf]
    %v53 = vld [vmem:[%s1 + $0x3c] sm:$0xf]
    %v54 = vld [vmem:[%s1 + $0x40] sm:$0xf]
    %v55 = vld [vmem:[%s1 + $0x44] sm:$0xf]
    %v56 = vld [vmem:[%s1 + $0x48] sm:$0xf]
    %v57 = vld [vmem:[%s1 + $0x4c] sm:$0xf]
    %v58 = vld [vmem:[%s1 + $0x50] sm:$0xf]
    %v59 = vld [vmem:[%s1 + $0x54] sm:$0xf]
    %v60 = vld [vmem:[%s1 + $0x58] sm:$0xf]
    %v61 = vld [vmem:[%s1 + $0x5c] sm:$0xf]
    %v62 = vld [vmem:[%s1 + $0x60] sm:$0xf]
    %v63 = vld [vmem:[%s1 + $0x64] sm:$0xf]
    %v64 = vld [vmem:[%s1 + $0x68] sm:$0xf]
    %v65 = vld [vmem:[%s1 + $0x6c] sm:$0xf]
    %v66 = vld [vmem:[%s1 + $0x70] sm:$0xf]
    %v67 = vld [vmem:[%s1 + $0x74] sm:$0xf]
    %v68 = vld [vmem:[%s1 + $0x78] sm:$0xf]
    %v69 = vld [vmem:[%s1 + $0x7c] sm:$0xf]
    %v70 = vld [vmem:[%s1 + $0x80] sm:$0xf]
    %v71 = vld [vmem:[%s1 + $0x84] sm:$0xf]
    %v72 = vld [vmem:[%s1 + $0x88] sm:$0xf]
    %v73 = vld [vmem:[%s1 + $0x8c] sm:$0xf]
    %v74 = vld [vmem:[%s1 + $0x90] sm:$0xf]
    %v75 = vld [vmem:[%s1 + $0x94] sm:$0xf]
    %v76 = vld [vmem:[%s1 + $0x98] sm:$0xf]
    %v77 = vld [vmem:[%s1 + $0x9c] sm:$0xf]
    %v78 = vld [vmem:[%s1 + $0xa0] sm:$0xf]
    %v79 = vld [vmem:[%s1 + $0xa4] sm:$0xf]
    %v80 = vld [vmem:[%s1 + $0xa8] sm:$0xf]
    %v81 = vld [vmem:[%s1 + $0xac] sm:$0xf]
    %v82 = vld [vmem:[%s1 + $0xb0] sm:$0xf]
    %v83 = vld [vmem:[%s1 + $0xb4] sm:$0xf]
    %v84 = vld [vmem:[%s1 + $0xb8] sm:$0xf]
    %v85 = vld [vmem:[%s1 + $0xbc] sm:$0xf]
    %v86 = vld [vmem:[%s1 + $0xc0] sm:$0xf]
    %v87 = vld [vmem:[%s1 + $0xc4] sm:$0xf]
    %v88 = vld [vmem:[%s1 + $0xc8] sm:$0xf]
    %v89 = vld [vmem:[%s1 + $0xcc] sm:$0xf]
    %v90 = vld [vmem:[%s1 + $0xd0] sm:$0xf]
    %v91 = vld [vmem:[%s1 + $0xd4] sm:$0xf]
    %v92 = vld [vmem:[%s1 + $0xd8] sm:$0xf]
    %v93 = vld [vmem:[%s1 + $0xdc] sm:$0xf]
    %v94 = vld [vmem:[%s1 + $0xe0] sm:$0xf]
    %v95 = vld [vmem:[%s1 + $0xe4] sm:$0xf]
    %v96 = vld [vmem:[%s1 + $0xe8] sm:$0xf]
    %v97 = vld [vmem:[%s1 + $0xec] sm:$0xf]
    %v98 = vld [vmem:[%s1 + $0xf0] sm:$0xf]
    %v99 = vld [vmem:[%s1 + $0xf4] sm:$0xf]
    %v100 = vld [vmem:[%s1 + $0xf8] sm:$0xf]
    %v101 = vld [vmem:[%s1 + $0xfc] sm:$0xf]
    %v102 = vld [vmem:[%s1 + $0x100] sm:$0xf]
    %v103 = vld [vmem:[%s1 + $0x104] sm:$0xf]
    %v104 = vld [vmem:[%s1 + $0x108] sm:$0xf]
    %v105 = vld [vmem:[%s1 + $0x10c] sm:$0xf]
    %v106 = vld [vmem:[%s1 + $0x110] sm:$0xf]
    %v107 = vld [vmem:[%s1 + $0x114] sm:$0xf]
    %v108 = vld [vmem:[%s1 + $0x118] sm:$0xf]
    %v109 = vld [vmem:[%s1 + $0x11c] sm:$0xf]
    %v110 = vld [vmem:[%s1 + $0x120] sm:$0xf]
    %v111 = vld [vmem:[%s1 + $0x124] sm:$0xf]
    %v112 = vld [vmem:[%s1 + $0x128] sm:$0xf]
    %v113 = vld [vmem:[%s1 + $0x12c] sm:$0xf]
    %v114 = vld [vmem:[%s1 + $0x130] sm:$0xf]
    %v115 = vld [vmem:[%s1 + $0x134] sm:$0xf]
    %v116 = vld [vmem:[%s1 + $0x138] sm:$0xf]
    %v117 = vld [vmem:[%s1 + $0x13c] sm:$0xf]
    %v118 = vld [vmem:[%s1 + $0x140] sm:$0xf]
    %v119 = vld [vmem:[%s1 + $0x144] sm:$0xf]
    %v120 = vld [vmem:[%s1 + $0x148] sm:$0xf]
    %v121 = vld [vmem:[%s1 + $0x14c] sm:$0xf]
    %v122 = vld [vmem:[%s1 + $0x150] sm:$0xf]
    %v123 = vld [vmem:[%s1 + $0x154] sm:$0xf]
    %v124 = vld [vmem:[%s1 + $0x158] sm:$0xf]
    %v125 = vld [vmem:[%s1 + $0x15c] sm:$0xf]
    %v126 = vld [vmem:[%s1 + $0x160] sm:$0xf]
    %v127 = vld [vmem:[%s1 + $0x164] sm:$0xf]
    %v128 = vld [vmem:[%s1 + $0x168] sm:$0xf]
    %v129 = vld [vmem:[%s1 + $0x16c] sm:$0xf]
    %v130 = vld [vmem:[%s1 + $0x170] sm:$0xf]
    %v131 = vld [vmem:[%s1 + $0x174] sm:$0xf]
    %v132 = vld [vmem:[%s1 + $0x178] sm:$0xf]
    %v133 = vld [vmem:[%s1 + $0x17c] sm:$0xf]
    %v134 = vld [vmem:[%s1 + $0x180] sm:$0xf]
    %v135 = vld [vmem:[%s1 + $0x184] sm:$0xf]
    %v136 = vld [vmem:[%s1 + $0x188] sm:$0xf]
    %v137 = vld [vmem:[%s1 + $0x18c] sm:$0xf]
    %v138 = vld [vmem:[%s1 + $0x190] sm:$0xf]
    %v139 = vld [vmem:[%s1 + $0x194] sm:$0xf]
    %v140 = vld [vmem:[%s1 + $0x198] sm:$0xf]
    %v141 = vld [vmem:[%s1 + $0x19c] sm:$0xf]
    %v142 = vld [vmem:[%s1 + $0x1a0] sm:$0xf]
    %v143 = vld [vmem:[%s1 + $0x1a4] sm:$0xf]
    %v144 = vld [vmem:[%s1 + $0x1a8] sm:$0xf]
    %v145 = vld [vmem:[%s1 + $0x1ac] sm:$0xf]
    %v146 = vld [vmem:[%s1 + $0x1b0] sm:$0xf]
    %v147 = vld [vmem:[%s1 + $0x1b4] sm:$0xf]
    %v148 = vld [vmem:[%s1 + $0x1b8] sm:$0xf]
    %v149 = vld [vmem:[%s1 + $0x1bc] sm:$0xf]
    %v150 = vld [vmem:[%s1 + $0x1c0] sm:$0xf]
    %v151 = vld [vmem:[%s1 + $0x1c4] sm:$0xf]
    %v152 = vld [vmem:[%s1 + $0x1c8] sm:$0xf]
    %v153 = vld [vmem:[%s1 + $0x1cc] sm:$0xf]
    %v154 = vld [vmem:[%s1 + $0x1d0] sm:$0xf]
    %v155 = vld [vmem:[%s1 + $0x1d4] sm:$0xf]
    %v156 = vld [vmem:[%s1 + $0x1d8] sm:$0xf]
    %v157 = vld [vmem:[%s1 + $0x1dc] sm:$0xf]
    %v158 = vld [vmem:[%s1 + $0x1e0] sm:$0xf]
    %v159 = vld [vmem:[%s1 + $0x1e4] sm:$0xf]
    %v160 = vld [vmem:[%s1 + $0x1e8] sm:$0xf]
    %v161 = vld [vmem:[%s1 + $0x1ec] sm:$0xf]
    %v162 = vld [vmem:[%s1 + $0x1f0] sm:$0xf]
    %v163 = vld [vmem:[%s1 + $0x1f4] sm:$0xf]
    %v164 = vld [vmem:[%s1 + $0x1f8] sm:$0xf]
    %v165 = vld [vmem:[%s1 + $0x1fc] sm:$0xf]
    %v166 = vld [vmem:[%s1 + $0x200] sm:$0xf]
    %v167 = vld [vmem:[%s1 + $0x204] sm:$0xf]
    %v168 = vld [vmem:[%s1 + $0x208] sm:$0xf]
    %v169 = vld [vmem:[%s1 + $0x20c] sm:$0xf]
    %v170 = vld [vmem:[%s1 + $0x210] sm:$0xf]
    %v171 = vld [vmem:[%s1 + $0x214] sm:$0xf]
    %v172 = vld [vmem:[%s1 + $0x218] sm:$0xf]
    %v173 = vld [vmem:[%s1 + $0x21c] sm:$0xf]
    %v174 = vld [vmem:[%s1 + $0x220] sm:$0xf]
    %v175 = vld [vmem:[%s1 + $0x224] sm:$0xf]
    %v176 = vld [vmem:[%s1 + $0x228] sm:$0xf]
    %v177 = vld [vmem:[%s1 + $0x22c] sm:$0xf]
    %v178 = vld [vmem:[%s1 + $0x230] sm:$0xf]
    %v179 = vld [vmem:[%s1 + $0x234] sm:$0xf]
    %v180 = vld [vmem:[%s1 + $0x238] sm:$0xf]
    %v181 = vld [vmem:[%s1 + $0x23c] sm:$0xf]
    %v182 = vld [vmem:[%s2] sm:$0x1]
    %v184 = vlaneseq
    %v185 = vshrl.u32 %v184, 7
    %v186 = vsub.s32 0, %v185
    %v187 = vrot.slane %v182, %v186
    %v209 = vunpack.c.l.b16 %v18
    %v210 = vunpack.c.h.b16 %v18
    %v211 = vunpack.c.l.b16 %v19
    %v212 = vunpack.c.h.b16 %v19
    %v213 = vunpack.c.l.b16 %v20
    %v214 = vunpack.c.h.b16 %v20
    %v215 = vunpack.c.l.b16 %v21
    %v216 = vunpack.c.h.b16 %v21
    %v217 = vunpack.c.l.b16 %v22
    %v218 = vunpack.c.l.b16 %v23
    %v219 = vunpack.c.h.b16 %v23
    %v220 = vunpack.c.l.b16 %v24
    %v221 = vunpack.c.h.b16 %v24
    %v222 = vunpack.c.l.b16 %v25
    %v223 = vunpack.c.h.b16 %v25
    %v224 = vunpack.c.l.b16 %v26
    %v225 = vunpack.c.h.b16 %v26
    %v226 = vunpack.c.l.b16 %v27
    %v227 = vunpack.c.l.b16 %v28
    %v228 = vunpack.c.h.b16 %v28
    %v229 = vunpack.c.l.b16 %v29
    %v230 = vunpack.c.h.b16 %v29
    %v231 = vunpack.c.l.b16 %v30
    %v232 = vunpack.c.h.b16 %v30
    %v233 = vunpack.c.l.b16 %v31
    %v234 = vunpack.c.h.b16 %v31
    %v235 = vunpack.c.l.b16 %v32
    %v236 = vunpack.c.l.b16 %v33
    %v237 = vunpack.c.h.b16 %v33
    %v238 = vunpack.c.l.b16 %v34
    %v239 = vunpack.c.h.b16 %v34
    %v240 = vunpack.c.l.b16 %v35
    %v241 = vunpack.c.h.b16 %v35
    %v242 = vunpack.c.l.b16 %v36
    %v243 = vunpack.c.h.b16 %v36
    %v244 = vunpack.c.l.b16 %v37
    %v245 = vpack.c.b16 %v218, %v209
    %v246 = vpack.c.b16 %v219, %v210
    %v247 = vpack.c.b16 %v220, %v211
    %v248 = vpack.c.b16 %v221, %v212
    %v249 = vpack.c.b16 %v222, %v213
    %v250 = vpack.c.b16 %v223, %v214
    %v251 = vpack.c.b16 %v224, %v215
    %v252 = vpack.c.b16 %v225, %v216
    %v253 = vpack.c.b16 %v226, %v217
    %v254 = vpack.c.b16 %v236, %v227
    %v255 = vpack.c.b16 %v237, %v228
    %v256 = vpack.c.b16 %v238, %v229
    %v257 = vpack.c.b16 %v239, %v230
    %v258 = vpack.c.b16 %v240, %v231
    %v259 = vpack.c.b16 %v241, %v232
    %v260 = vpack.c.b16 %v242, %v233
    %v261 = vpack.c.b16 %v243, %v234
    %v262 = vpack.c.b16 %v244, %v235
    %v425 = vunpack.c.l.b16 %v38
    %v426 = vunpack.c.l.b16 %v39
    %v427 = vunpack.c.l.b16 %v40
    %v428 = vunpack.c.l.b16 %v41
    %v429 = vunpack.c.l.b16 %v42
    %v430 = vunpack.c.l.b16 %v43
    %v431 = vunpack.c.l.b16 %v44
    %v432 = vunpack.c.l.b16 %v45
    %v433 = vunpack.c.l.b16 %v46
    %v434 = vunpack.c.l.b16 %v47
    %v435 = vunpack.c.l.b16 %v48
    %v436 = vunpack.c.l.b16 %v49
    %v437 = vunpack.c.l.b16 %v50
    %v438 = vunpack.c.l.b16 %v51
    %v439 = vunpack.c.l.b16 %v52
    %v440 = vunpack.c.l.b16 %v53
    %v441 = vunpack.c.l.b16 %v54
    %v442 = vunpack.c.l.b16 %v55
    %v443 = vunpack.c.l.b16 %v56
    %v444 = vunpack.c.l.b16 %v57
    %v445 = vunpack.c.l.b16 %v58
    %v446 = vunpack.c.l.b16 %v59
    %v447 = vunpack.c.l.b16 %v60
    %v448 = vunpack.c.l.b16 %v61
    %v449 = vunpack.c.l.b16 %v62
    %v450 = vunpack.c.l.b16 %v63
    %v451 = vunpack.c.l.b16 %v64
    %v452 = vunpack.c.l.b16 %v65
    %v453 = vunpack.c.l.b16 %v66
    %v454 = vunpack.c.l.b16 %v67
    %v455 = vunpack.c.l.b16 %v68
    %v456 = vunpack.c.l.b16 %v69
    %v457 = vunpack.c.l.b16 %v70
    %v458 = vunpack.c.l.b16 %v71
    %v459 = vunpack.c.l.b16 %v72
    %v460 = vunpack.c.l.b16 %v73
    %v461 = vunpack.c.l.b16 %v74
    %v462 = vunpack.c.l.b16 %v75
    %v463 = vunpack.c.l.b16 %v76
    %v464 = vunpack.c.l.b16 %v77
    %v465 = vunpack.c.l.b16 %v78
    %v466 = vunpack.c.l.b16 %v79
    %v467 = vunpack.c.l.b16 %v80
    %v468 = vunpack.c.l.b16 %v81
    %v469 = vunpack.c.l.b16 %v82
    %v470 = vunpack.c.l.b16 %v83
    %v471 = vunpack.c.l.b16 %v84
    %v472 = vunpack.c.l.b16 %v85
    %v473 = vunpack.c.l.b16 %v86
    %v474 = vunpack.c.l.b16 %v87
    %v475 = vunpack.c.l.b16 %v88
    %v476 = vunpack.c.l.b16 %v89
    %v477 = vunpack.c.l.b16 %v90
    %v478 = vunpack.c.l.b16 %v91
    %v479 = vunpack.c.l.b16 %v92
    %v480 = vunpack.c.l.b16 %v93
    %v481 = vunpack.c.l.b16 %v94
    %v482 = vunpack.c.l.b16 %v95
    %v483 = vunpack.c.l.b16 %v96
    %v484 = vunpack.c.l.b16 %v97
    %v485 = vunpack.c.l.b16 %v98
    %v486 = vunpack.c.l.b16 %v99
    %v487 = vunpack.c.l.b16 %v100
    %v488 = vunpack.c.l.b16 %v101
    %v489 = vunpack.c.l.b16 %v102
    %v490 = vunpack.c.l.b16 %v103
    %v491 = vunpack.c.l.b16 %v104
    %v492 = vunpack.c.l.b16 %v105
    %v493 = vunpack.c.l.b16 %v106
    %v494 = vunpack.c.l.b16 %v107
    %v495 = vunpack.c.l.b16 %v108
    %v496 = vunpack.c.l.b16 %v109
    %v497 = vunpack.c.l.b16 %v110
    %v498 = vunpack.c.l.b16 %v111
    %v499 = vunpack.c.l.b16 %v112
    %v500 = vunpack.c.l.b16 %v113
    %v501 = vunpack.c.l.b16 %v114
    %v502 = vunpack.c.l.b16 %v115
    %v503 = vunpack.c.l.b16 %v116
    %v504 = vunpack.c.l.b16 %v117
    %v505 = vunpack.c.l.b16 %v118
    %v506 = vunpack.c.l.b16 %v119
    %v507 = vunpack.c.l.b16 %v120
    %v508 = vunpack.c.l.b16 %v121
    %v509 = vunpack.c.l.b16 %v122
    %v510 = vunpack.c.l.b16 %v123
    %v511 = vunpack.c.l.b16 %v124
    %v512 = vunpack.c.l.b16 %v125
    %v513 = vunpack.c.l.b16 %v126
    %v514 = vunpack.c.l.b16 %v127
    %v515 = vunpack.c.l.b16 %v128
    %v516 = vunpack.c.l.b16 %v129
    %v517 = vunpack.c.l.b16 %v130
    %v518 = vunpack.c.l.b16 %v131
    %v519 = vunpack.c.l.b16 %v132
    %v520 = vunpack.c.l.b16 %v133
    %v521 = vunpack.c.l.b16 %v134
    %v522 = vunpack.c.l.b16 %v135
    %v523 = vunpack.c.l.b16 %v136
    %v524 = vunpack.c.l.b16 %v137
    %v525 = vunpack.c.l.b16 %v138
    %v526 = vunpack.c.l.b16 %v139
    %v527 = vunpack.c.l.b16 %v140
    %v528 = vunpack.c.l.b16 %v141
    %v529 = vunpack.c.l.b16 %v142
    %v530 = vunpack.c.l.b16 %v143
    %v531 = vunpack.c.l.b16 %v144
    %v532 = vunpack.c.l.b16 %v145
    %v533 = vunpack.c.l.b16 %v146
    %v534 = vunpack.c.l.b16 %v147
    %v535 = vunpack.c.l.b16 %v148
    %v536 = vunpack.c.l.b16 %v149
    %v537 = vunpack.c.l.b16 %v150
    %v538 = vunpack.c.l.b16 %v151
    %v539 = vunpack.c.l.b16 %v152
    %v540 = vunpack.c.l.b16 %v153
    %v541 = vunpack.c.l.b16 %v154
    %v542 = vunpack.c.l.b16 %v155
    %v543 = vunpack.c.l.b16 %v156
    %v544 = vunpack.c.l.b16 %v157
    %v545 = vunpack.c.l.b16 %v158
    %v546 = vunpack.c.l.b16 %v159
    %v547 = vunpack.c.l.b16 %v160
    %v548 = vunpack.c.l.b16 %v161
    %v549 = vunpack.c.l.b16 %v162
    %v550 = vunpack.c.l.b16 %v163
    %v551 = vunpack.c.l.b16 %v164
    %v552 = vunpack.c.l.b16 %v165
    %v553 = vunpack.c.l.b16 %v166
    %v554 = vunpack.c.l.b16 %v167
    %v555 = vunpack.c.l.b16 %v168
    %v556 = vunpack.c.l.b16 %v169
    %v557 = vunpack.c.l.b16 %v170
    %v558 = vunpack.c.l.b16 %v171
    %v559 = vunpack.c.l.b16 %v172
    %v560 = vunpack.c.l.b16 %v173
    %v561 = vunpack.c.l.b16 %v174
    %v562 = vunpack.c.l.b16 %v175
    %v563 = vunpack.c.l.b16 %v176
    %v564 = vunpack.c.l.b16 %v177
    %v565 = vunpack.c.l.b16 %v178
    %v566 = vunpack.c.l.b16 %v179
    %v567 = vunpack.c.l.b16 %v180
    %v568 = vunpack.c.l.b16 %v181
    %v569 = vpack.c.b16 %v426, %v425
    %v570 = vpack.c.b16 %v428, %v427
    %v571 = vpack.c.b16 %v430, %v429
    %v572 = vpack.c.b16 %v432, %v431
    %v573 = vpack.c.b16 %v434, %v433
    %v574 = vpack.c.b16 %v436, %v435
    %v575 = vpack.c.b16 %v438, %v437
    %v576 = vpack.c.b16 %v440, %v439
    %v577 = vpack.c.b16 %v442, %v441
    %v578 = vpack.c.b16 %v444, %v443
    %v579 = vpack.c.b16 %v446, %v445
    %v580 = vpack.c.b16 %v448, %v447
    %v581 = vpack.c.b16 %v450, %v449
    %v582 = vpack.c.b16 %v452, %v451
    %v583 = vpack.c.b16 %v454, %v453
    %v584 = vpack.c.b16 %v456, %v455
    %v585 = vpack.c.b16 %v458, %v457
    %v586 = vpack.c.b16 %v460, %v459
    %v587 = vpack.c.b16 %v462, %v461
    %v588 = vpack.c.b16 %v464, %v463
    %v589 = vpack.c.b16 %v466, %v465
    %v590 = vpack.c.b16 %v468, %v467
    %v591 = vpack.c.b16 %v470, %v469
    %v592 = vpack.c.b16 %v472, %v471
    %v593 = vpack.c.b16 %v474, %v473
    %v594 = vpack.c.b16 %v476, %v475
    %v595 = vpack.c.b16 %v478, %v477
    %v596 = vpack.c.b16 %v480, %v479
    %v597 = vpack.c.b16 %v482, %v481
    %v598 = vpack.c.b16 %v484, %v483
    %v599 = vpack.c.b16 %v486, %v485
    %v600 = vpack.c.b16 %v488, %v487
    %v601 = vpack.c.b16 %v490, %v489
    %v602 = vpack.c.b16 %v492, %v491
    %v603 = vpack.c.b16 %v494, %v493
    %v604 = vpack.c.b16 %v496, %v495
    %v605 = vpack.c.b16 %v498, %v497
    %v606 = vpack.c.b16 %v500, %v499
    %v607 = vpack.c.b16 %v502, %v501
    %v608 = vpack.c.b16 %v504, %v503
    %v609 = vpack.c.b16 %v506, %v505
    %v610 = vpack.c.b16 %v508, %v507
    %v611 = vpack.c.b16 %v510, %v509
    %v612 = vpack.c.b16 %v512, %v511
    %v613 = vpack.c.b16 %v514, %v513
    %v614 = vpack.c.b16 %v516, %v515
    %v615 = vpack.c.b16 %v518, %v517
    %v616 = vpack.c.b16 %v520, %v519
    %v617 = vpack.c.b16 %v522, %v521
    %v618 = vpack.c.b16 %v524, %v523
    %v619 = vpack.c.b16 %v526, %v525
    %v620 = vpack.c.b16 %v528, %v527
    %v621 = vpack.c.b16 %v530, %v529
    %v622 = vpack.c.b16 %v532, %v531
    %v623 = vpack.c.b16 %v534, %v533
    %v624 = vpack.c.b16 %v536, %v535
    %v625 = vpack.c.b16 %v538, %v537
    %v626 = vpack.c.b16 %v540, %v539
    %v627 = vpack.c.b16 %v542, %v541
    %v628 = vpack.c.b16 %v544, %v543
    %v629 = vpack.c.b16 %v546, %v545
    %v630 = vpack.c.b16 %v548, %v547
    %v631 = vpack.c.b16 %v550, %v549
    %v632 = vpack.c.b16 %v552, %v551
    %v633 = vpack.c.b16 %v554, %v553
    %v634 = vpack.c.b16 %v556, %v555
    %v635 = vpack.c.b16 %v558, %v557
    %v636 = vpack.c.b16 %v560, %v559
    %v637 = vpack.c.b16 %v562, %v561
    %v638 = vpack.c.b16 %v564, %v563
    %v639 = vpack.c.b16 %v566, %v565
    %v640 = vpack.c.b16 %v568, %v567
    %713 = vmatprep.subr.bf16.mxu0 0
    %714 = vmatpush1.bf16.msra.mxu0 %v576
    %715 = vmatprep.subr.bf16.mxu0 0
    %716 = vmatpush1.bf16.msra.mxu0 %v575
    %717 = vmatprep.subr.bf16.mxu0 0
    %718 = vmatpush1.bf16.msra.mxu0 %v574
    %719 = vmatprep.subr.bf16.mxu0 0
    %720 = vmatpush1.bf16.msra.mxu0 %v573
    %721 = vmatprep.subr.bf16.mxu0 0
    %722 = vmatpush1.bf16.msra.mxu0 %v572
    %723 = vmatprep.subr.bf16.mxu0 0
    %724 = vmatpush1.bf16.msra.mxu0 %v571
    %725 = vmatprep.subr.bf16.mxu0 0
    %726 = vmatpush1.bf16.msra.mxu0 %v570
    %727 = vmatprep.subr.bf16.mxu0 0
    %728 = vmatpush1.bf16.msra.mxu0 %v569
    %729 = vmatprep.subr.bf16.mxu0 0
    %730 = vmatpush2.bf16.msra.mxu0 %v584
    %731 = vmatprep.subr.bf16.mxu0 0
    %732 = vmatpush2.bf16.msra.mxu0 %v583
    %733 = vmatprep.subr.bf16.mxu0 0
    %734 = vmatpush2.bf16.msra.mxu0 %v582
    %735 = vmatprep.subr.bf16.mxu0 0
    %736 = vmatpush2.bf16.msra.mxu0 %v581
    %737 = vmatprep.subr.bf16.mxu0 0
    %738 = vmatpush2.bf16.msra.mxu0 %v580
    %739 = vmatprep.subr.bf16.mxu0 0
    %740 = vmatpush2.bf16.msra.mxu0 %v579
    %741 = vmatprep.subr.bf16.mxu0 0
    %742 = vmatpush2.bf16.msra.mxu0 %v578
    %743 = vmatprep.subr.bf16.mxu0 0
    %744 = vmatpush2.bf16.msra.mxu0 %v577
    %745 = vmatprep.mubr.bf16.mxu0 %v246
    %746 = vmatmul.mubr.bf16.gmra.mxu0 %v245
    %v747 = vpop.f32.mrf.mxu0
    %v748 = vadd.f32 %v187, %v747
    %v749 = vpop.f32.mrf.mxu0
    %v750 = vpop.f32.mrf.mxu0
    %v751 = vadd.f32 %v187, %v750
    %v752 = vpop.f32.mrf.mxu0
    %753 = vmatprep.mubr.bf16.mxu0 %v255
    %754 = vmatmul.mubr.bf16.gmra.mxu0 %v254
    %v755 = vpop.f32.mrf.mxu0
    %v756 = vadd.f32 %v187, %v755
    %v757 = vpop.f32.mrf.mxu0
    %v758 = vpop.f32.mrf.mxu0
    %v759 = vadd.f32 %v187, %v758
    %v760 = vpop.f32.mrf.mxu0
    %761 = vdwg.mxu0
    %762 = vmatprep.subr.bf16.mxu0 0
    %763 = vmatpush1.bf16.msra.mxu0 %v592
    %764 = vmatprep.subr.bf16.mxu0 0
    %765 = vmatpush1.bf16.msra.mxu0 %v591
    %766 = vmatprep.subr.bf16.mxu0 0
    %767 = vmatpush1.bf16.msra.mxu0 %v590
    %768 = vmatprep.subr.bf16.mxu0 0
    %769 = vmatpush1.bf16.msra.mxu0 %v589
    %770 = vmatprep.subr.bf16.mxu0 0
    %771 = vmatpush1.bf16.msra.mxu0 %v588
    %772 = vmatprep.subr.bf16.mxu0 0
    %773 = vmatpush1.bf16.msra.mxu0 %v587
    %774 = vmatprep.subr.bf16.mxu0 0
    %775 = vmatpush1.bf16.msra.mxu0 %v586
    %776 = vmatprep.subr.bf16.mxu0 0
    %777 = vmatpush1.bf16.msra.mxu0 %v585
    %778 = vmatprep.subr.bf16.mxu0 0
    %779 = vmatpush2.bf16.msra.mxu0 %v600
    %780 = vmatprep.subr.bf16.mxu0 0
    %781 = vmatpush2.bf16.msra.mxu0 %v599
    %782 = vmatprep.subr.bf16.mxu0 0
    %783 = vmatpush2.bf16.msra.mxu0 %v598
    %784 = vmatprep.subr.bf16.mxu0 0
    %785 = vmatpush2.bf16.msra.mxu0 %v597
    %786 = vmatprep.subr.bf16.mxu0 0
    %787 = vmatpush2.bf16.msra.mxu0 %v596
    %788 = vmatprep.subr.bf16.mxu0 0
    %789 = vmatpush2.bf16.msra.mxu0 %v595
    %790 = vmatprep.subr.bf16.mxu0 0
    %791 = vmatpush2.bf16.msra.mxu0 %v594
    %792 = vmatprep.subr.bf16.mxu0 0
    %793 = vmatpush2.bf16.msra.mxu0 %v593
    %794 = vmatprep.mubr.bf16.mxu0 %v248
    %795 = vmatmul.mubr.bf16.gmra.mxu0 %v247
    %v796 = vpop.f32.mrf.mxu0
    %v797 = vadd.f32 %v748, %v796
    %v798 = vpop.f32.mrf.mxu0
    %v799 = vpop.f32.mrf.mxu0
    %v800 = vadd.f32 %v751, %v799
    %v801 = vpop.f32.mrf.mxu0
    %802 = vmatprep.mubr.bf16.mxu0 %v257
    %803 = vmatmul.mubr.bf16.gmra.mxu0 %v256
    %v804 = vpop.f32.mrf.mxu0
    %v805 = vadd.f32 %v756, %v804
    %v806 = vpop.f32.mrf.mxu0
    %v807 = vpop.f32.mrf.mxu0
    %v808 = vadd.f32 %v759, %v807
    %v809 = vpop.f32.mrf.mxu0
    %810 = vdwg.mxu0
    %811 = vmatprep.subr.bf16.mxu0 0
    %812 = vmatpush1.bf16.msra.mxu0 %v608
    %813 = vmatprep.subr.bf16.mxu0 0
    %814 = vmatpush1.bf16.msra.mxu0 %v607
    %815 = vmatprep.subr.bf16.mxu0 0
    %816 = vmatpush1.bf16.msra.mxu0 %v606
    %817 = vmatprep.subr.bf16.mxu0 0
    %818 = vmatpush1.bf16.msra.mxu0 %v605
    %819 = vmatprep.subr.bf16.mxu0 0
    %820 = vmatpush1.bf16.msra.mxu0 %v604
    %821 = vmatprep.subr.bf16.mxu0 0
    %822 = vmatpush1.bf16.msra.mxu0 %v603
    %823 = vmatprep.subr.bf16.mxu0 0
    %824 = vmatpush1.bf16.msra.mxu0 %v602
    %825 = vmatprep.subr.bf16.mxu0 0
    %826 = vmatpush1.bf16.msra.mxu0 %v601
    %827 = vmatprep.subr.bf16.mxu0 0
    %828 = vmatpush2.bf16.msra.mxu0 %v616
    %829 = vmatprep.subr.bf16.mxu0 0
    %830 = vmatpush2.bf16.msra.mxu0 %v615
    %831 = vmatprep.subr.bf16.mxu0 0
    %832 = vmatpush2.bf16.msra.mxu0 %v614
    %833 = vmatprep.subr.bf16.mxu0 0
    %834 = vmatpush2.bf16.msra.mxu0 %v613
    %835 = vmatprep.subr.bf16.mxu0 0
    %836 = vmatpush2.bf16.msra.mxu0 %v612
    %837 = vmatprep.subr.bf16.mxu0 0
    %838 = vmatpush2.bf16.msra.mxu0 %v611
    %839 = vmatprep.subr.bf16.mxu0 0
    %840 = vmatpush2.bf16.msra.mxu0 %v610
    %841 = vmatprep.subr.bf16.mxu0 0
    %842 = vmatpush2.bf16.msra.mxu0 %v609
    %843 = vmatprep.mubr.bf16.mxu0 %v250
    %844 = vmatmul.mubr.bf16.gmra.mxu0 %v249
    %v845 = vpop.f32.mrf.mxu0
    %v846 = vadd.f32 %v797, %v845
    %v847 = vpop.f32.mrf.mxu0
    %v848 = vpop.f32.mrf.mxu0
    %v849 = vadd.f32 %v800, %v848
    %v850 = vpop.f32.mrf.mxu0
    %851 = vmatprep.mubr.bf16.mxu0 %v259
    %852 = vmatmul.mubr.bf16.gmra.mxu0 %v258
    %v853 = vpop.f32.mrf.mxu0
    %v854 = vadd.f32 %v805, %v853
    %v855 = vpop.f32.mrf.mxu0
    %v856 = vpop.f32.mrf.mxu0
    %v857 = vadd.f32 %v808, %v856
    %v858 = vpop.f32.mrf.mxu0
    %859 = vdwg.mxu0
    %860 = vmatprep.subr.bf16.mxu0 0
    %861 = vmatpush1.bf16.msra.mxu0 %v624
    %862 = vmatprep.subr.bf16.mxu0 0
    %863 = vmatpush1.bf16.msra.mxu0 %v623
    %864 = vmatprep.subr.bf16.mxu0 0
    %865 = vmatpush1.bf16.msra.mxu0 %v622
    %866 = vmatprep.subr.bf16.mxu0 0
    %867 = vmatpush1.bf16.msra.mxu0 %v621
    %868 = vmatprep.subr.bf16.mxu0 0
    %869 = vmatpush1.bf16.msra.mxu0 %v620
    %870 = vmatprep.subr.bf16.mxu0 0
    %871 = vmatpush1.bf16.msra.mxu0 %v619
    %872 = vmatprep.subr.bf16.mxu0 0
    %873 = vmatpush1.bf16.msra.mxu0 %v618
    %874 = vmatprep.subr.bf16.mxu0 0
    %875 = vmatpush1.bf16.msra.mxu0 %v617
    %876 = vmatprep.subr.bf16.mxu0 0
    %877 = vmatpush2.bf16.msra.mxu0 %v632
    %878 = vmatprep.subr.bf16.mxu0 0
    %879 = vmatpush2.bf16.msra.mxu0 %v631
    %880 = vmatprep.subr.bf16.mxu0 0
    %881 = vmatpush2.bf16.msra.mxu0 %v630
    %882 = vmatprep.subr.bf16.mxu0 0
    %883 = vmatpush2.bf16.msra.mxu0 %v629
    %884 = vmatprep.subr.bf16.mxu0 0
    %885 = vmatpush2.bf16.msra.mxu0 %v628
    %886 = vmatprep.subr.bf16.mxu0 0
    %887 = vmatpush2.bf16.msra.mxu0 %v627
    %888 = vmatprep.subr.bf16.mxu0 0
    %889 = vmatpush2.bf16.msra.mxu0 %v626
    %890 = vmatprep.subr.bf16.mxu0 0
    %891 = vmatpush2.bf16.msra.mxu0 %v625
    %892 = vmatprep.mubr.bf16.mxu0 %v252
    %893 = vmatmul.mubr.bf16.gmra.mxu0 %v251
    %v894 = vpop.f32.mrf.mxu0
    %v895 = vadd.f32 %v846, %v894
    %v896 = vpop.f32.mrf.mxu0
    %v897 = vpop.f32.mrf.mxu0
    %v898 = vadd.f32 %v849, %v897
    %v899 = vpop.f32.mrf.mxu0
    %900 = vmatprep.mubr.bf16.mxu0 %v261
    %901 = vmatmul.mubr.bf16.gmra.mxu0 %v260
    %v902 = vpop.f32.mrf.mxu0
    %v903 = vadd.f32 %v854, %v902
    %v904 = vpop.f32.mrf.mxu0
    %v905 = vpop.f32.mrf.mxu0
    %v906 = vadd.f32 %v857, %v905
    %v907 = vpop.f32.mrf.mxu0
    %908 = vdwg.mxu0
    %909 = vmatprep.subr.bf16.mxu0 0
    %910 = vmatpush1.bf16.msra.mxu0 %v640
    %911 = vmatprep.subr.bf16.mxu0 0
    %912 = vmatpush1.bf16.msra.mxu0 %v639
    %913 = vmatprep.subr.bf16.mxu0 0
    %914 = vmatpush1.bf16.msra.mxu0 %v638
    %915 = vmatprep.subr.bf16.mxu0 0
    %916 = vmatpush1.bf16.msra.mxu0 %v637
    %917 = vmatprep.subr.bf16.mxu0 0
    %918 = vmatpush1.bf16.msra.mxu0 %v636
    %919 = vmatprep.subr.bf16.mxu0 0
    %920 = vmatpush1.bf16.msra.mxu0 %v635
    %921 = vmatprep.subr.bf16.mxu0 0
    %922 = vmatpush1.bf16.msra.mxu0 %v634
    %923 = vmatprep.subr.bf16.mxu0 0
    %924 = vmatpush1.bf16.msra.mxu0 %v633
    %925 = vmatprep.subr.bf16.mxu0 0
    %926 = vmatpush2.bf16.msra.mxu0 0
    %927 = vmatprep.subr.bf16.mxu0 0
    %928 = vmatpush2.bf16.msra.mxu0 0
    %929 = vmatprep.subr.bf16.mxu0 0
    %930 = vmatpush2.bf16.msra.mxu0 0
    %931 = vmatprep.subr.bf16.mxu0 0
    %932 = vmatpush2.bf16.msra.mxu0 0
    %933 = vmatprep.subr.bf16.mxu0 0
    %934 = vmatpush2.bf16.msra.mxu0 0
    %935 = vmatprep.subr.bf16.mxu0 0
    %936 = vmatpush2.bf16.msra.mxu0 0
    %937 = vmatprep.subr.bf16.mxu0 0
    %938 = vmatpush2.bf16.msra.mxu0 0
    %939 = vmatprep.subr.bf16.mxu0 0
    %940 = vmatpush2.bf16.msra.mxu0 0
    %941 = vmatprep.mubr.bf16.mxu0 0
    %942 = vmatmul.mubr.bf16.gmra.mxu0 %v253
    %v943 = vpop.f32.mrf.mxu0
    %v944 = vadd.f32 %v895, %v943
    %v945 = vpop.f32.mrf.mxu0
    %v946 = vpop.f32.mrf.mxu0
    %v947 = vadd.f32 %v898, %v946
    %v948 = vpop.f32.mrf.mxu0
    %949 = vmatprep.mubr.bf16.mxu0 0
    %950 = vmatmul.mubr.bf16.gmra.mxu0 %v262
    %v951 = vpop.f32.mrf.mxu0
    %v952 = vadd.f32 %v903, %v951
    %v953 = vpop.f32.mrf.mxu0
    %v954 = vpop.f32.mrf.mxu0
    %v955 = vadd.f32 %v906, %v954
    %v956 = vpop.f32.mrf.mxu0
    %957 = vdwg.mxu0
    %v958 = vmax.f32 %v944, 0.0
    %v959 = vmax.f32 %v947, 0.0
    %v960 = vmax.f32 %v952, 0.0
    %v961 = vmax.f32 %v955, 0.0
    %v962 = vpack.c.bf16 %v959, %v958
    %v963 = vpack.c.bf16 %v961, %v960
    %v966 = vunpack.c.l.b16 %v962
    %v967 = vunpack.c.h.b16 %v962
    %v968 = vunpack.c.l.b16 %v963
    %v969 = vunpack.c.h.b16 %v963
    %v970 = vpack.c.b16 %v966, %v966
    %v971 = vpack.c.b16 %v967, %v967
    %v972 = vpack.c.b16 %v968, %v968
    %v973 = vpack.c.b16 %v969, %v969
    %978 = vst [vmem:[%s3] sm:$0xf] %v970
    %979 = vst [vmem:[%s3 + $0x4] sm:$0xf] %v971
    %980 = vst [vmem:[%s3 + $0x8] sm:$0xf] %v972
    %981 = vst [vmem:[%s3 + $0xc] sm:$0xf] %v973
    %v982 = vsub.f32 %v958, %v960
    %v983 = vsub.f32 %v959, %v961
    %v984 = vmul.f32 %v982, %v982
    %v985 = vmul.f32 %v983, %v983
    %v986 = vadd.f32 %v984, %v985
    %987 = vadd.xlane.f32.xlu0 %v986
    %v988 = vpop.xlane.xlu0 %987
    %v989 = vrot.slane %v988, 4
    %v990 = vadd.f32 %v988, %v989
    %v991 = vrot.slane %v990, 2
    %v992 = vadd.f32 %v990, %v991
    %v993 = vrot.slane %v992, 1
    %v994 = vadd.f32 %v992, %v993
    %s995 = vtos %v994
    %s996 = smul.f32 %s995, 0.0009765625
    %s997 = scalar_lea.smem [#allocation2], 0
    %998 = sst [smem:[%s997]] %s996
    // Predicated region
    $region14: #{_lambda_.13} parent=1 // pred_check
      _
    $region15: #{_lambda_.13} parent=1 // pred_check_branch
      %1000 = sbr.rel (0) target = $region17
    $region16: #{_lambda_.13} parent=1 // pred_region
      _
    $region17: #{_lambda_.13} parent=1 // pred_fallthru
      _
    // Predicated region
    $region18: #{_lambda_.13} parent=1 // pred_check
      _
    $region19: #{_lambda_.13} parent=1 // pred_check_branch
      %1002 = sbr.rel (0) target = $region21
    $region20: #{_lambda_.13} parent=1 // pred_region
      %s1004 = ssub.s32 16, 16
      %1005 = vsyncadd [#allocation3], %s1004
      %1008 = dma.smem_to_hbm [#allocation2], 16, %s4, [#allocation3]
    $region21: #{_lambda_.13} parent=1 // pred_fallthru
      _
    // Predicated region
    $region22: #{_lambda_.13} parent=1 // pred_check
      _
    $region23: #{_lambda_.13} parent=1 // pred_check_branch
      %1010 = sbr.rel (0) target = $region25
    $region24: #{_lambda_.13} parent=1 // pred_region
      _
    $region25: #{_lambda_.13} parent=1 // pred_fallthru
      _
    // Predicated region
    $region26: #{_lambda_.13} parent=1 // pred_check
      _
    $region27: #{_lambda_.13} parent=1 // pred_check_branch
      %1012 = sbr.rel (0) target = $region29
    $region28: #{_lambda_.13} parent=1 // pred_region
      %1013 = dma.done [#allocation3], 16
    $region29: #{_lambda_.13} parent=1 // pred_fallthru
      _
    %1014 = sfence
    %1015 = vsyncpa [#allocation3], 1

// kernel: _lambda_.14
$region0: #{_lambda_.14}
  #allocation0 [shape = 'u32[]', space=smem, size = 0x4, offset = 0x4, fixed_abs, tag = 'smem constant byte address 0x4 - core index']
  #allocation1 [shape = 'u32[144,128]{1,0:T(1,128)}', space=vmem, size = 0x12000, scoped, tag = 'internal scratch']
  %s0 = inlined_call_operand.vmem [shape: bf16[32,1152], index: 0, kind: input, shape index: {}]
  %s1 = inlined_call_operand.vmem [shape: bf16[1152,128], index: 1, kind: input, shape index: {}]
  %s2 = inlined_call_operand.vmem [shape: f32[1,128], index: 2, kind: input, shape index: {}]
  %s3 = inlined_call_operand.vmem [shape: bf16[32,128], index: 3, kind: output, shape index: {}]
  %s4 = sld [smem:[#allocation0]]
  $region22: #{_lambda_.14} parent=0
    _
  %s6 = ssub.s32 1, %s4
  %s7 = scalar_select 0, %s6, %s4
  // Predicated region
  $region2: #{_lambda_.14} parent=0 // pred_check
    _
  $region3: #{_lambda_.14} parent=0 // pred_check_branch
    %9 = sbr.rel (0) target = $region5
  $region4: #{_lambda_.14} parent=0 // pred_region
    _
  $region5: #{_lambda_.14} parent=0 // pred_fallthru
    _
  // Predicated region
  $region6: #{_lambda_.14} parent=0 // pred_check
    _
  $region7: #{_lambda_.14} parent=0 // pred_check_branch
    %11 = sbr.rel (0) target = $region9
  $region8: #{_lambda_.14} parent=0 // pred_region
    _
  $region9: #{_lambda_.14} parent=0 // pred_fallthru
    _
  // Predicated region
  $region10: #{_lambda_.14} parent=0 // pred_check
    _
  $region11: #{_lambda_.14} parent=0 // pred_check_branch
    %13 = sbr.rel (0) target = $region13
  $region12: #{_lambda_.14} parent=0 // pred_region
    _
  $region13: #{_lambda_.14} parent=0 // pred_fallthru
    _
  %v15 = vld [vmem:[%s0] sm:$0xff]
  %v16 = vld [vmem:[%s0 + $0x8] sm:$0xff]
  %v17 = vld [vmem:[%s0 + $0x10] sm:$0xff]
  %v18 = vld [vmem:[%s0 + $0x18] sm:$0xff]
  %v19 = vld [vmem:[%s0 + $0x20] sm:$0xf]
  %v20 = vld [vmem:[%s0 + $0x24] sm:$0xff]
  %v21 = vld [vmem:[%s0 + $0x2c] sm:$0xff]
  %v22 = vld [vmem:[%s0 + $0x34] sm:$0xff]
  %v23 = vld [vmem:[%s0 + $0x3c] sm:$0xff]
  %v24 = vld [vmem:[%s0 + $0x44] sm:$0xf]
  %v25 = vld [vmem:[%s0 + $0x48] sm:$0xff]
  %v26 = vld [vmem:[%s0 + $0x50] sm:$0xff]
  %v27 = vld [vmem:[%s0 + $0x58] sm:$0xff]
  %v28 = vld [vmem:[%s0 + $0x60] sm:$0xff]
  %v29 = vld [vmem:[%s0 + $0x68] sm:$0xf]
  %v30 = vld [vmem:[%s0 + $0x6c] sm:$0xff]
  %v31 = vld [vmem:[%s0 + $0x74] sm:$0xff]
  %v32 = vld [vmem:[%s0 + $0x7c] sm:$0xff]
  %v33 = vld [vmem:[%s0 + $0x84] sm:$0xff]
  %v34 = vld [vmem:[%s0 + $0x8c] sm:$0xf]
  %v35 = vld [vmem:[%s1] sm:$0xf]
  %v36 = vld [vmem:[%s1 + $0x4] sm:$0xf]
  %v37 = vld [vmem:[%s1 + $0x8] sm:$0xf]
  %v38 = vld [vmem:[%s1 + $0xc] sm:$0xf]
  %v39 = vld [vmem:[%s1 + $0x10] sm:$0xf]
  %v40 = vld [vmem:[%s1 + $0x14] sm:$0xf]
  %v41 = vld [vmem:[%s1 + $0x18] sm:$0xf]
  %v42 = vld [vmem:[%s1 + $0x1c] sm:$0xf]
  %v43 = vld [vmem:[%s1 + $0x20] sm:$0xf]
  %v44 = vld [vmem:[%s1 + $0x24] sm:$0xf]
  %v45 = vld [vmem:[%s1 + $0x28] sm:$0xf]
  %v46 = vld [vmem:[%s1 + $0x2c] sm:$0xf]
  %v47 = vld [vmem:[%s1 + $0x30] sm:$0xf]
  %v48 = vld [vmem:[%s1 + $0x34] sm:$0xf]
  %v49 = vld [vmem:[%s1 + $0x38] sm:$0xf]
  %v50 = vld [vmem:[%s1 + $0x3c] sm:$0xf]
  %v51 = vld [vmem:[%s1 + $0x40] sm:$0xf]
  %v52 = vld [vmem:[%s1 + $0x44] sm:$0xf]
  %v53 = vld [vmem:[%s1 + $0x48] sm:$0xf]
  %v54 = vld [vmem:[%s1 + $0x4c] sm:$0xf]
  %v55 = vld [vmem:[%s1 + $0x50] sm:$0xf]
  %v56 = vld [vmem:[%s1 + $0x54] sm:$0xf]
  %v57 = vld [vmem:[%s1 + $0x58] sm:$0xf]
  %v58 = vld [vmem:[%s1 + $0x5c] sm:$0xf]
  %v59 = vld [vmem:[%s1 + $0x60] sm:$0xf]
  %v60 = vld [vmem:[%s1 + $0x64] sm:$0xf]
  %v61 = vld [vmem:[%s1 + $0x68] sm:$0xf]
  %v62 = vld [vmem:[%s1 + $0x6c] sm:$0xf]
  %v63 = vld [vmem:[%s1 + $0x70] sm:$0xf]
  %v64 = vld [vmem:[%s1 + $0x74] sm:$0xf]
  %v65 = vld [vmem:[%s1 + $0x78] sm:$0xf]
  %v66 = vld [vmem:[%s1 + $0x7c] sm:$0xf]
  %v67 = vld [vmem:[%s1 + $0x80] sm:$0xf]
  %v68 = vld [vmem:[%s1 + $0x84] sm:$0xf]
  %v69 = vld [vmem:[%s1 + $0x88] sm:$0xf]
  %v70 = vld [vmem:[%s1 + $0x8c] sm:$0xf]
  %v71 = vld [vmem:[%s1 + $0x90] sm:$0xf]
  %v72 = vld [vmem:[%s1 + $0x94] sm:$0xf]
  %v73 = vld [vmem:[%s1 + $0x98] sm:$0xf]
  %v74 = vld [vmem:[%s1 + $0x9c] sm:$0xf]
  %v75 = vld [vmem:[%s1 + $0xa0] sm:$0xf]
  %v76 = vld [vmem:[%s1 + $0xa4] sm:$0xf]
  %v77 = vld [vmem:[%s1 + $0xa8] sm:$0xf]
  %v78 = vld [vmem:[%s1 + $0xac] sm:$0xf]
  %v79 = vld [vmem:[%s1 + $0xb0] sm:$0xf]
  %v80 = vld [vmem:[%s1 + $0xb4] sm:$0xf]
  %v81 = vld [vmem:[%s1 + $0xb8] sm:$0xf]
  %v82 = vld [vmem:[%s1 + $0xbc] sm:$0xf]
  %v83 = vld [vmem:[%s1 + $0xc0] sm:$0xf]
  %v84 = vld [vmem:[%s1 + $0xc4] sm:$0xf]
  %v85 = vld [vmem:[%s1 + $0xc8] sm:$0xf]
  %v86 = vld [vmem:[%s1 + $0xcc] sm:$0xf]
  %v87 = vld [vmem:[%s1 + $0xd0] sm:$0xf]
  %v88 = vld [vmem:[%s1 + $0xd4] sm:$0xf]
  %v89 = vld [vmem:[%s1 + $0xd8] sm:$0xf]
  %v90 = vld [vmem:[%s1 + $0xdc] sm:$0xf]
  %v91 = vld [vmem:[%s1 + $0xe0] sm:$0xf]
  %v92 = vld [vmem:[%s1 + $0xe4] sm:$0xf]
  %v93 = vld [vmem:[%s1 + $0xe8] sm:$0xf]
  %v94 = vld [vmem:[%s1 + $0xec] sm:$0xf]
  %v95 = vld [vmem:[%s1 + $0xf0] sm:$0xf]
  %v96 = vld [vmem:[%s1 + $0xf4] sm:$0xf]
  %v97 = vld [vmem:[%s1 + $0xf8] sm:$0xf]
  %v98 = vld [vmem:[%s1 + $0xfc] sm:$0xf]
  %v99 = vld [vmem:[%s1 + $0x100] sm:$0xf]
  %v100 = vld [vmem:[%s1 + $0x104] sm:$0xf]
  %v101 = vld [vmem:[%s1 + $0x108] sm:$0xf]
  %v102 = vld [vmem:[%s1 + $0x10c] sm:$0xf]
  %v103 = vld [vmem:[%s1 + $0x110] sm:$0xf]
  %v104 = vld [vmem:[%s1 + $0x114] sm:$0xf]
  %v105 = vld [vmem:[%s1 + $0x118] sm:$0xf]
  %v106 = vld [vmem:[%s1 + $0x11c] sm:$0xf]
  %v107 = vld [vmem:[%s1 + $0x120] sm:$0xf]
  %v108 = vld [vmem:[%s1 + $0x124] sm:$0xf]
  %v109 = vld [vmem:[%s1 + $0x128] sm:$0xf]
  %v110 = vld [vmem:[%s1 + $0x12c] sm:$0xf]
  %v111 = vld [vmem:[%s1 + $0x130] sm:$0xf]
  %v112 = vld [vmem:[%s1 + $0x134] sm:$0xf]
  %v113 = vld [vmem:[%s1 + $0x138] sm:$0xf]
  %v114 = vld [vmem:[%s1 + $0x13c] sm:$0xf]
  %v115 = vld [vmem:[%s1 + $0x140] sm:$0xf]
  %v116 = vld [vmem:[%s1 + $0x144] sm:$0xf]
  %v117 = vld [vmem:[%s1 + $0x148] sm:$0xf]
  %v118 = vld [vmem:[%s1 + $0x14c] sm:$0xf]
  %v119 = vld [vmem:[%s1 + $0x150] sm:$0xf]
  %v120 = vld [vmem:[%s1 + $0x154] sm:$0xf]
  %v121 = vld [vmem:[%s1 + $0x158] sm:$0xf]
  %v122 = vld [vmem:[%s1 + $0x15c] sm:$0xf]
  %v123 = vld [vmem:[%s1 + $0x160] sm:$0xf]
  %v124 = vld [vmem:[%s1 + $0x164] sm:$0xf]
  %v125 = vld [vmem:[%s1 + $0x168] sm:$0xf]
  %v126 = vld [vmem:[%s1 + $0x16c] sm:$0xf]
  %v127 = vld [vmem:[%s1 + $0x170] sm:$0xf]
  %v128 = vld [vmem:[%s1 + $0x174] sm:$0xf]
  %v129 = vld [vmem:[%s1 + $0x178] sm:$0xf]
  %v130 = vld [vmem:[%s1 + $0x17c] sm:$0xf]
  %v131 = vld [vmem:[%s1 + $0x180] sm:$0xf]
  %v132 = vld [vmem:[%s1 + $0x184] sm:$0xf]
  %v133 = vld [vmem:[%s1 + $0x188] sm:$0xf]
  %v134 = vld [vmem:[%s1 + $0x18c] sm:$0xf]
  %v135 = vld [vmem:[%s1 + $0x190] sm:$0xf]
  %v136 = vld [vmem:[%s1 + $0x194] sm:$0xf]
  %v137 = vld [vmem:[%s1 + $0x198] sm:$0xf]
  %v138 = vld [vmem:[%s1 + $0x19c] sm:$0xf]
  %v139 = vld [vmem:[%s1 + $0x1a0] sm:$0xf]
  %v140 = vld [vmem:[%s1 + $0x1a4] sm:$0xf]
  %v141 = vld [vmem:[%s1 + $0x1a8] sm:$0xf]
  %v142 = vld [vmem:[%s1 + $0x1ac] sm:$0xf]
  %v143 = vld [vmem:[%s1 + $0x1b0] sm:$0xf]
  %v144 = vld [vmem:[%s1 + $0x1b4] sm:$0xf]
  %v145 = vld [vmem:[%s1 + $0x1b8] sm:$0xf]
  %v146 = vld [vmem:[%s1 + $0x1bc] sm:$0xf]
  %v147 = vld [vmem:[%s1 + $0x1c0] sm:$0xf]
  %v148 = vld [vmem:[%s1 + $0x1c4] sm:$0xf]
  %v149 = vld [vmem:[%s1 + $0x1c8] sm:$0xf]
  %v150 = vld [vmem:[%s1 + $0x1cc] sm:$0xf]
  %v151 = vld [vmem:[%s1 + $0x1d0] sm:$0xf]
  %v152 = vld [vmem:[%s1 + $0x1d4] sm:$0xf]
  %v153 = vld [vmem:[%s1 + $0x1d8] sm:$0xf]
  %v154 = vld [vmem:[%s1 + $0x1dc] sm:$0xf]
  %v155 = vld [vmem:[%s1 + $0x1e0] sm:$0xf]
  %v156 = vld [vmem:[%s1 + $0x1e4] sm:$0xf]
  %v157 = vld [vmem:[%s1 + $0x1e8] sm:$0xf]
  %v158 = vld [vmem:[%s1 + $0x1ec] sm:$0xf]
  %v159 = vld [vmem:[%s1 + $0x1f0] sm:$0xf]
  %v160 = vld [vmem:[%s1 + $0x1f4] sm:$0xf]
  %v161 = vld [vmem:[%s1 + $0x1f8] sm:$0xf]
  %v162 = vld [vmem:[%s1 + $0x1fc] sm:$0xf]
  %v163 = vld [vmem:[%s1 + $0x200] sm:$0xf]
  %v164 = vld [vmem:[%s1 + $0x204] sm:$0xf]
  %v165 = vld [vmem:[%s1 + $0x208] sm:$0xf]
  %v166 = vld [vmem:[%s1 + $0x20c] sm:$0xf]
  %v167 = vld [vmem:[%s1 + $0x210] sm:$0xf]
  %v168 = vld [vmem:[%s1 + $0x214] sm:$0xf]
  %v169 = vld [vmem:[%s1 + $0x218] sm:$0xf]
  %v170 = vld [vmem:[%s1 + $0x21c] sm:$0xf]
  %v171 = vld [vmem:[%s1 + $0x220] sm:$0xf]
  %v172 = vld [vmem:[%s1 + $0x224] sm:$0xf]
  %v173 = vld [vmem:[%s1 + $0x228] sm:$0xf]
  %v174 = vld [vmem:[%s1 + $0x22c] sm:$0xf]
  %v175 = vld [vmem:[%s1 + $0x230] sm:$0xf]
  %v176 = vld [vmem:[%s1 + $0x234] sm:$0xf]
  %v177 = vld [vmem:[%s1 + $0x238] sm:$0xf]
  %v178 = vld [vmem:[%s1 + $0x23c] sm:$0xf]
  %v179 = vld [vmem:[%s2] sm:$0x1]
  %v181 = vlaneseq
  %v182 = vshrl.u32 %v181, 7
  %v183 = vsub.s32 0, %v182
  %v184 = vrot.slane %v179, %v183
  %v206 = vunpack.c.l.b16 %v15
  %v207 = vunpack.c.h.b16 %v15
  %v208 = vunpack.c.l.b16 %v16
  %v209 = vunpack.c.h.b16 %v16
  %v210 = vunpack.c.l.b16 %v17
  %v211 = vunpack.c.h.b16 %v17
  %v212 = vunpack.c.l.b16 %v18
  %v213 = vunpack.c.h.b16 %v18
  %v214 = vunpack.c.l.b16 %v19
  %v215 = vunpack.c.l.b16 %v20
  %v216 = vunpack.c.h.b16 %v20
  %v217 = vunpack.c.l.b16 %v21
  %v218 = vunpack.c.h.b16 %v21
  %v219 = vunpack.c.l.b16 %v22
  %v220 = vunpack.c.h.b16 %v22
  %v221 = vunpack.c.l.b16 %v23
  %v222 = vunpack.c.h.b16 %v23
  %v223 = vunpack.c.l.b16 %v24
  %v224 = vunpack.c.l.b16 %v25
  %v225 = vunpack.c.h.b16 %v25
  %v226 = vunpack.c.l.b16 %v26
  %v227 = vunpack.c.h.b16 %v26
  %v228 = vunpack.c.l.b16 %v27
  %v229 = vunpack.c.h.b16 %v27
  %v230 = vunpack.c.l.b16 %v28
  %v231 = vunpack.c.h.b16 %v28
  %v232 = vunpack.c.l.b16 %v29
  %v233 = vunpack.c.l.b16 %v30
  %v234 = vunpack.c.h.b16 %v30
  %v235 = vunpack.c.l.b16 %v31
  %v236 = vunpack.c.h.b16 %v31
  %v237 = vunpack.c.l.b16 %v32
  %v238 = vunpack.c.h.b16 %v32
  %v239 = vunpack.c.l.b16 %v33
  %v240 = vunpack.c.h.b16 %v33
  %v241 = vunpack.c.l.b16 %v34
  %v242 = vpack.c.b16 %v215, %v206
  %v243 = vpack.c.b16 %v216, %v207
  %v244 = vpack.c.b16 %v217, %v208
  %v245 = vpack.c.b16 %v218, %v209
  %v246 = vpack.c.b16 %v219, %v210
  %v247 = vpack.c.b16 %v220, %v211
  %v248 = vpack.c.b16 %v221, %v212
  %v249 = vpack.c.b16 %v222, %v213
  %v250 = vpack.c.b16 %v223, %v214
  %v251 = vpack.c.b16 %v233, %v224
  %v252 = vpack.c.b16 %v234, %v225
  %v253 = vpack.c.b16 %v235, %v226
  %v254 = vpack.c.b16 %v236, %v227
  %v255 = vpack.c.b16 %v237, %v228
  %v256 = vpack.c.b16 %v238, %v229
  %v257 = vpack.c.b16 %v239, %v230
  %v258 = vpack.c.b16 %v240, %v231
  %v259 = vpack.c.b16 %v241, %v232
  %v422 = vunpack.c.l.b16 %v35
  %v423 = vunpack.c.l.b16 %v36
  %v424 = vunpack.c.l.b16 %v37
  %v425 = vunpack.c.l.b16 %v38
  %v426 = vunpack.c.l.b16 %v39
  %v427 = vunpack.c.l.b16 %v40
  %v428 = vunpack.c.l.b16 %v41
  %v429 = vunpack.c.l.b16 %v42
  %v430 = vunpack.c.l.b16 %v43
  %v431 = vunpack.c.l.b16 %v44
  %v432 = vunpack.c.l.b16 %v45
  %v433 = vunpack.c.l.b16 %v46
  %v434 = vunpack.c.l.b16 %v47
  %v435 = vunpack.c.l.b16 %v48
  %v436 = vunpack.c.l.b16 %v49
  %v437 = vunpack.c.l.b16 %v50
  %v438 = vunpack.c.l.b16 %v51
  %v439 = vunpack.c.l.b16 %v52
  %v440 = vunpack.c.l.b16 %v53
  %v441 = vunpack.c.l.b16 %v54
  %v442 = vunpack.c.l.b16 %v55
  %v443 = vunpack.c.l.b16 %v56
  %v444 = vunpack.c.l.b16 %v57
  %v445 = vunpack.c.l.b16 %v58
  %v446 = vunpack.c.l.b16 %v59
  %v447 = vunpack.c.l.b16 %v60
  %v448 = vunpack.c.l.b16 %v61
  %v449 = vunpack.c.l.b16 %v62
  %v450 = vunpack.c.l.b16 %v63
  %v451 = vunpack.c.l.b16 %v64
  %v452 = vunpack.c.l.b16 %v65
  %v453 = vunpack.c.l.b16 %v66
  %v454 = vunpack.c.l.b16 %v67
  %v455 = vunpack.c.l.b16 %v68
  %v456 = vunpack.c.l.b16 %v69
  %v457 = vunpack.c.l.b16 %v70
  %v458 = vunpack.c.l.b16 %v71
  %v459 = vunpack.c.l.b16 %v72
  %v460 = vunpack.c.l.b16 %v73
  %v461 = vunpack.c.l.b16 %v74
  %v462 = vunpack.c.l.b16 %v75
  %v463 = vunpack.c.l.b16 %v76
  %v464 = vunpack.c.l.b16 %v77
  %v465 = vunpack.c.l.b16 %v78
  %v466 = vunpack.c.l.b16 %v79
  %v467 = vunpack.c.l.b16 %v80
  %v468 = vunpack.c.l.b16 %v81
  %v469 = vunpack.c.l.b16 %v82
  %v470 = vunpack.c.l.b16 %v83
  %v471 = vunpack.c.l.b16 %v84
  %v472 = vunpack.c.l.b16 %v85
  %v473 = vunpack.c.l.b16 %v86
  %v474 = vunpack.c.l.b16 %v87
  %v475 = vunpack.c.l.b16 %v88
  %v476 = vunpack.c.l.b16 %v89
  %v477 = vunpack.c.l.b16 %v90
  %v478 = vunpack.c.l.b16 %v91
  %v479 = vunpack.c.l.b16 %v92
  %v480 = vunpack.c.l.b16 %v93
  %v481 = vunpack.c.l.b16 %v94
  %v482 = vunpack.c.l.b16 %v95
  %v483 = vunpack.c.l.b16 %v96
  %v484 = vunpack.c.l.b16 %v97
  %v485 = vunpack.c.l.b16 %v98
  %v486 = vunpack.c.l.b16 %v99
  %v487 = vunpack.c.l.b16 %v100
  %v488 = vunpack.c.l.b16 %v101
  %v489 = vunpack.c.l.b16 %v102
  %v490 = vunpack.c.l.b16 %v103
  %v491 = vunpack.c.l.b16 %v104
  %v492 = vunpack.c.l.b16 %v105
  %v493 = vunpack.c.l.b16 %v106
  %v494 = vunpack.c.l.b16 %v107
  %v495 = vunpack.c.l.b16 %v108
  %v496 = vunpack.c.l.b16 %v109
  %v497 = vunpack.c.l.b16 %v110
  %v498 = vunpack.c.l.b16 %v111
  %v499 = vunpack.c.l.b16 %v112
  %v500 = vunpack.c.l.b16 %v113
  %v501 = vunpack.c.l.b16 %v114
  %v502 = vunpack.c.l.b16 %v115
  %v503 = vunpack.c.l.b16 %v116
  %v504 = vunpack.c.l.b16 %v117
  %v505 = vunpack.c.l.b16 %v118
  %v506 = vunpack.c.l.b16 %v119
  %v507 = vunpack.c.l.b16 %v120
  %v508 = vunpack.c.l.b16 %v121
  %v509 = vunpack.c.l.b16 %v122
  %v510 = vunpack.c.l.b16 %v123
  %v511 = vunpack.c.l.b16 %v124
  %v512 = vunpack.c.l.b16 %v125
  %v513 = vunpack.c.l.b16 %v126
  %v514 = vunpack.c.l.b16 %v127
  %v515 = vunpack.c.l.b16 %v128
  %v516 = vunpack.c.l.b16 %v129
  %v517 = vunpack.c.l.b16 %v130
  %v518 = vunpack.c.l.b16 %v131
  %v519 = vunpack.c.l.b16 %v132
  %v520 = vunpack.c.l.b16 %v133
  %v521 = vunpack.c.l.b16 %v134
  %v522 = vunpack.c.l.b16 %v135
  %v523 = vunpack.c.l.b16 %v136
  %v524 = vunpack.c.l.b16 %v137
  %v525 = vunpack.c.l.b16 %v138
  %v526 = vunpack.c.l.b16 %v139
  %v527 = vunpack.c.l.b16 %v140
  %v528 = vunpack.c.l.b16 %v141
  %v529 = vunpack.c.l.b16 %v142
  %v530 = vunpack.c.l.b16 %v143
  %v531 = vunpack.c.l.b16 %v144
  %v532 = vunpack.c.l.b16 %v145
  %v533 = vunpack.c.l.b16 %v146
  %v534 = vunpack.c.l.b16 %v147
  %v535 = vunpack.c.l.b16 %v148
  %v536 = vunpack.c.l.b16 %v149
  %v537 = vunpack.c.l.b16 %v150
  %v538 = vunpack.c.l.b16 %v151
  %v539 = vunpack.c.l.b16 %v152
  %v540 = vunpack.c.l.b16 %v153
  %v541 = vunpack.c.l.b16 %v154
  %v542 = vunpack.c.l.b16 %v155
  %v543 = vunpack.c.l.b16 %v156
  %v544 = vunpack.c.l.b16 %v157
  %v545 = vunpack.c.l.b16 %v158
  %v546 = vunpack.c.l.b16 %v159
  %v547 = vunpack.c.l.b16 %v160
  %v548 = vunpack.c.l.b16 %v161
  %v549 = vunpack.c.l.b16 %v162
  %v550 = vunpack.c.l.b16 %v163
  %v551 = vunpack.c.l.b16 %v164
  %v552 = vunpack.c.l.b16 %v165
  %v553 = vunpack.c.l.b16 %v166
  %v554 = vunpack.c.l.b16 %v167
  %v555 = vunpack.c.l.b16 %v168
  %v556 = vunpack.c.l.b16 %v169
  %v557 = vunpack.c.l.b16 %v170
  %v558 = vunpack.c.l.b16 %v171
  %v559 = vunpack.c.l.b16 %v172
  %v560 = vunpack.c.l.b16 %v173
  %v561 = vunpack.c.l.b16 %v174
  %v562 = vunpack.c.l.b16 %v175
  %v563 = vunpack.c.l.b16 %v176
  %v564 = vunpack.c.l.b16 %v177
  %v565 = vunpack.c.l.b16 %v178
  %v566 = vpack.c.b16 %v423, %v422
  %v567 = vpack.c.b16 %v425, %v424
  %v568 = vpack.c.b16 %v427, %v426
  %v569 = vpack.c.b16 %v429, %v428
  %v570 = vpack.c.b16 %v431, %v430
  %v571 = vpack.c.b16 %v433, %v432
  %v572 = vpack.c.b16 %v435, %v434
  %v573 = vpack.c.b16 %v437, %v436
  %v574 = vpack.c.b16 %v439, %v438
  %v575 = vpack.c.b16 %v441, %v440
  %v576 = vpack.c.b16 %v443, %v442
  %v577 = vpack.c.b16 %v445, %v444
  %v578 = vpack.c.b16 %v447, %v446
  %v579 = vpack.c.b16 %v449, %v448
  %v580 = vpack.c.b16 %v451, %v450
  %v581 = vpack.c.b16 %v453, %v452
  %v582 = vpack.c.b16 %v455, %v454
  %v583 = vpack.c.b16 %v457, %v456
  %v584 = vpack.c.b16 %v459, %v458
  %v585 = vpack.c.b16 %v461, %v460
  %v586 = vpack.c.b16 %v463, %v462
  %v587 = vpack.c.b16 %v465, %v464
  %v588 = vpack.c.b16 %v467, %v466
  %v589 = vpack.c.b16 %v469, %v468
  %v590 = vpack.c.b16 %v471, %v470
  %v591 = vpack.c.b16 %v473, %v472
  %v592 = vpack.c.b16 %v475, %v474
  %v593 = vpack.c.b16 %v477, %v476
  %v594 = vpack.c.b16 %v479, %v478
  %v595 = vpack.c.b16 %v481, %v480
  %v596 = vpack.c.b16 %v483, %v482
  %v597 = vpack.c.b16 %v485, %v484
  %v598 = vpack.c.b16 %v487, %v486
  %v599 = vpack.c.b16 %v489, %v488
  %v600 = vpack.c.b16 %v491, %v490
  %v601 = vpack.c.b16 %v493, %v492
  %v602 = vpack.c.b16 %v495, %v494
  %v603 = vpack.c.b16 %v497, %v496
  %v604 = vpack.c.b16 %v499, %v498
  %v605 = vpack.c.b16 %v501, %v500
  %v606 = vpack.c.b16 %v503, %v502
  %v607 = vpack.c.b16 %v505, %v504
  %v608 = vpack.c.b16 %v507, %v506
  %v609 = vpack.c.b16 %v509, %v508
  %v610 = vpack.c.b16 %v511, %v510
  %v611 = vpack.c.b16 %v513, %v512
  %v612 = vpack.c.b16 %v515, %v514
  %v613 = vpack.c.b16 %v517, %v516
  %v614 = vpack.c.b16 %v519, %v518
  %v615 = vpack.c.b16 %v521, %v520
  %v616 = vpack.c.b16 %v523, %v522
  %v617 = vpack.c.b16 %v525, %v524
  %v618 = vpack.c.b16 %v527, %v526
  %v619 = vpack.c.b16 %v529, %v528
  %v620 = vpack.c.b16 %v531, %v530
  %v621 = vpack.c.b16 %v533, %v532
  %v622 = vpack.c.b16 %v535, %v534
  %v623 = vpack.c.b16 %v537, %v536
  %v624 = vpack.c.b16 %v539, %v538
  %v625 = vpack.c.b16 %v541, %v540
  %v626 = vpack.c.b16 %v543, %v542
  %v627 = vpack.c.b16 %v545, %v544
  %v628 = vpack.c.b16 %v547, %v546
  %v629 = vpack.c.b16 %v549, %v548
  %v630 = vpack.c.b16 %v551, %v550
  %v631 = vpack.c.b16 %v553, %v552
  %v632 = vpack.c.b16 %v555, %v554
  %v633 = vpack.c.b16 %v557, %v556
  %v634 = vpack.c.b16 %v559, %v558
  %v635 = vpack.c.b16 %v561, %v560
  %v636 = vpack.c.b16 %v563, %v562
  %v637 = vpack.c.b16 %v565, %v564
  %710 = vmatprep.subr.bf16.mxu0 0
  %711 = vmatpush1.bf16.msra.mxu0 %v573
  %712 = vmatprep.subr.bf16.mxu0 0
  %713 = vmatpush1.bf16.msra.mxu0 %v572
  %714 = vmatprep.subr.bf16.mxu0 0
  %715 = vmatpush1.bf16.msra.mxu0 %v571
  %716 = vmatprep.subr.bf16.mxu0 0
  %717 = vmatpush1.bf16.msra.mxu0 %v570
  %718 = vmatprep.subr.bf16.mxu0 0
  %719 = vmatpush1.bf16.msra.mxu0 %v569
  %720 = vmatprep.subr.bf16.mxu0 0
  %721 = vmatpush1.bf16.msra.mxu0 %v568
  %722 = vmatprep.subr.bf16.mxu0 0
  %723 = vmatpush1.bf16.msra.mxu0 %v567
  %724 = vmatprep.subr.bf16.mxu0 0
  %725 = vmatpush1.bf16.msra.mxu0 %v566
  %726 = vmatprep.subr.bf16.mxu0 0
  %727 = vmatpush2.bf16.msra.mxu0 %v581
  %728 = vmatprep.subr.bf16.mxu0 0
  %729 = vmatpush2.bf16.msra.mxu0 %v580
  %730 = vmatprep.subr.bf16.mxu0 0
  %731 = vmatpush2.bf16.msra.mxu0 %v579
  %732 = vmatprep.subr.bf16.mxu0 0
  %733 = vmatpush2.bf16.msra.mxu0 %v578
  %734 = vmatprep.subr.bf16.mxu0 0
  %735 = vmatpush2.bf16.msra.mxu0 %v577
  %736 = vmatprep.subr.bf16.mxu0 0
  %737 = vmatpush2.bf16.msra.mxu0 %v576
  %738 = vmatprep.subr.bf16.mxu0 0
  %739 = vmatpush2.bf16.msra.mxu0 %v575
  %740 = vmatprep.subr.bf16.mxu0 0
  %741 = vmatpush2.bf16.msra.mxu0 %v574
  %742 = vmatprep.mubr.bf16.mxu0 %v243
  %743 = vmatmul.mubr.bf16.gmra.mxu0 %v242
  %v744 = vpop.f32.mrf.mxu0
  %v745 = vadd.f32 %v184, %v744
  %v746 = vpop.f32.mrf.mxu0
  %v747 = vpop.f32.mrf.mxu0
  %v748 = vadd.f32 %v184, %v747
  %v749 = vpop.f32.mrf.mxu0
  %750 = vmatprep.mubr.bf16.mxu0 %v252
  %751 = vmatmul.mubr.bf16.gmra.mxu0 %v251
  %v752 = vpop.f32.mrf.mxu0
  %v753 = vadd.f32 %v184, %v752
  %v754 = vpop.f32.mrf.mxu0
  %v755 = vpop.f32.mrf.mxu0
  %v756 = vadd.f32 %v184, %v755
  %v757 = vpop.f32.mrf.mxu0
  %758 = vdwg.mxu0
  %759 = vmatprep.subr.bf16.mxu0 0
  %760 = vmatpush1.bf16.msra.mxu0 %v589
  %761 = vmatprep.subr.bf16.mxu0 0
  %762 = vmatpush1.bf16.msra.mxu0 %v588
  %763 = vmatprep.subr.bf16.mxu0 0
  %764 = vmatpush1.bf16.msra.mxu0 %v587
  %765 = vmatprep.subr.bf16.mxu0 0
  %766 = vmatpush1.bf16.msra.mxu0 %v586
  %767 = vmatprep.subr.bf16.mxu0 0
  %768 = vmatpush1.bf16.msra.mxu0 %v585
  %769 = vmatprep.subr.bf16.mxu0 0
  %770 = vmatpush1.bf16.msra.mxu0 %v584
  %771 = vmatprep.subr.bf16.mxu0 0
  %772 = vmatpush1.bf16.msra.mxu0 %v583
  %773 = vmatprep.subr.bf16.mxu0 0
  %774 = vmatpush1.bf16.msra.mxu0 %v582
  %775 = vmatprep.subr.bf16.mxu0 0
  %776 = vmatpush2.bf16.msra.mxu0 %v597
  %777 = vmatprep.subr.bf16.mxu0 0
  %778 = vmatpush2.bf16.msra.mxu0 %v596
  %779 = vmatprep.subr.bf16.mxu0 0
  %780 = vmatpush2.bf16.msra.mxu0 %v595
  %781 = vmatprep.subr.bf16.mxu0 0
  %782 = vmatpush2.bf16.msra.mxu0 %v594
  %783 = vmatprep.subr.bf16.mxu0 0
  %784 = vmatpush2.bf16.msra.mxu0 %v593
  %785 = vmatprep.subr.bf16.mxu0 0
  %786 = vmatpush2.bf16.msra.mxu0 %v592
  %787 = vmatprep.subr.bf16.mxu0 0
  %788 = vmatpush2.bf16.msra.mxu0 %v591
  %789 = vmatprep.subr.bf16.mxu0 0
  %790 = vmatpush2.bf16.msra.mxu0 %v590
  %791 = vmatprep.mubr.bf16.mxu0 %v245
  %792 = vmatmul.mubr.bf16.gmra.mxu0 %v244
  %v793 = vpop.f32.mrf.mxu0
  %v794 = vadd.f32 %v745, %v793
  %v795 = vpop.f32.mrf.mxu0
  %v796 = vpop.f32.mrf.mxu0
  %v797 = vadd.f32 %v748, %v796
  %v798 = vpop.f32.mrf.mxu0
  %799 = vmatprep.mubr.bf16.mxu0 %v254
  %800 = vmatmul.mubr.bf16.gmra.mxu0 %v253
  %v801 = vpop.f32.mrf.mxu0
  %v802 = vadd.f32 %v753, %v801
  %v803 = vpop.f32.mrf.mxu0
  %v804 = vpop.f32.mrf.mxu0
  %v805 = vadd.f32 %v756, %v804
  %v806 = vpop.f32.mrf.mxu0
  %807 = vdwg.mxu0
  %808 = vmatprep.subr.bf16.mxu0 0
  %809 = vmatpush1.bf16.msra.mxu0 %v605
  %810 = vmatprep.subr.bf16.mxu0 0
  %811 = vmatpush1.bf16.msra.mxu0 %v604
  %812 = vmatprep.subr.bf16.mxu0 0
  %813 = vmatpush1.bf16.msra.mxu0 %v603
  %814 = vmatprep.subr.bf16.mxu0 0
  %815 = vmatpush1.bf16.msra.mxu0 %v602
  %816 = vmatprep.subr.bf16.mxu0 0
  %817 = vmatpush1.bf16.msra.mxu0 %v601
  %818 = vmatprep.subr.bf16.mxu0 0
  %819 = vmatpush1.bf16.msra.mxu0 %v600
  %820 = vmatprep.subr.bf16.mxu0 0
  %821 = vmatpush1.bf16.msra.mxu0 %v599
  %822 = vmatprep.subr.bf16.mxu0 0
  %823 = vmatpush1.bf16.msra.mxu0 %v598
  %824 = vmatprep.subr.bf16.mxu0 0
  %825 = vmatpush2.bf16.msra.mxu0 %v613
  %826 = vmatprep.subr.bf16.mxu0 0
  %827 = vmatpush2.bf16.msra.mxu0 %v612
  %828 = vmatprep.subr.bf16.mxu0 0
  %829 = vmatpush2.bf16.msra.mxu0 %v611
  %830 = vmatprep.subr.bf16.mxu0 0
  %831 = vmatpush2.bf16.msra.mxu0 %v610
  %832 = vmatprep.subr.bf16.mxu0 0
  %833 = vmatpush2.bf16.msra.mxu0 %v609
  %834 = vmatprep.subr.bf16.mxu0 0
  %835 = vmatpush2.bf16.msra.mxu0 %v608
  %836 = vmatprep.subr.bf16.mxu0 0
  %837 = vmatpush2.bf16.msra.mxu0 %v607
  %838 = vmatprep.subr.bf16.mxu0 0
  %839 = vmatpush2.bf16.msra.mxu0 %v606
  %840 = vmatprep.mubr.bf16.mxu0 %v247
  %841 = vmatmul.mubr.bf16.gmra.mxu0 %v246
  %v842 = vpop.f32.mrf.mxu0
  %v843 = vadd.f32 %v794, %v842
  %v844 = vpop.f32.mrf.mxu0
  %v845 = vpop.f32.mrf.mxu0
  %v846 = vadd.f32 %v797, %v845
  %v847 = vpop.f32.mrf.mxu0
  %848 = vmatprep.mubr.bf16.mxu0 %v256
  %849 = vmatmul.mubr.bf16.gmra.mxu0 %v255
  %v850 = vpop.f32.mrf.mxu0
  %v851 = vadd.f32 %v802, %v850
  %v852 = vpop.f32.mrf.mxu0
  %v853 = vpop.f32.mrf.mxu0
  %v854 = vadd.f32 %v805, %v853
  %v855 = vpop.f32.mrf.mxu0
  %856 = vdwg.mxu0
  %857 = vmatprep.subr.bf16.mxu0 0
  %858 = vmatpush1.bf16.msra.mxu0 %v621
  %859 = vmatprep.subr.bf16.mxu0 0
  %860 = vmatpush1.bf16.msra.mxu0 %v620
  %861 = vmatprep.subr.bf16.mxu0 0
  %862 = vmatpush1.bf16.msra.mxu0 %v619
  %863 = vmatprep.subr.bf16.mxu0 0
  %864 = vmatpush1.bf16.msra.mxu0 %v618
  %865 = vmatprep.subr.bf16.mxu0 0
  %866 = vmatpush1.bf16.msra.mxu0 %v617
  %867 = vmatprep.subr.bf16.mxu0 0
  %868 = vmatpush1.bf16.msra.mxu0 %v616
  %869 = vmatprep.subr.bf16.mxu0 0
  %870 = vmatpush1.bf16.msra.mxu0 %v615
  %871 = vmatprep.subr.bf16.mxu0 0
  %872 = vmatpush1.bf16.msra.mxu0 %v614
  %873 = vmatprep.subr.bf16.mxu0 0
  %874 = vmatpush2.bf16.msra.mxu0 %v629
  %875 = vmatprep.subr.bf16.mxu0 0
  %876 = vmatpush2.bf16.msra.mxu0 %v628
  %877 = vmatprep.subr.bf16.mxu0 0
  %878 = vmatpush2.bf16.msra.mxu0 %v627
  %879 = vmatprep.subr.bf16.mxu0 0
  %880 = vmatpush2.bf16.msra.mxu0 %v626
  %881 = vmatprep.subr.bf16.mxu0 0
  %882 = vmatpush2.bf16.msra.mxu0 %v625
  %883 = vmatprep.subr.bf16.mxu0 0
  %884 = vmatpush2.bf16.msra.mxu0 %v624
  %885 = vmatprep.subr.bf16.mxu0 0
  %886 = vmatpush2.bf16.msra.mxu0 %v623
  %887 = vmatprep.subr.bf16.mxu0 0
  %888 = vmatpush2.bf16.msra.mxu0 %v622
  %889 = vmatprep.mubr.bf16.mxu0 %v249
  %890 = vmatmul.mubr.bf16.gmra.mxu0 %v248
  %v891 = vpop.f32.mrf.mxu0
  %v892 = vadd.f32 %v843, %v891
  %v893 = vpop.f32.mrf.mxu0
  %v894 = vpop.f32.mrf.mxu0
  %v895 = vadd.f32 %v846, %v894
  %v896 = vpop.f32.mrf.mxu0
  %897 = vmatprep.mubr.bf16.mxu0 %v258
  %898 = vmatmul.mubr.bf16.gmra.mxu0 %v257
  %v899 = vpop.f32.mrf.mxu0
  %v900 = vadd.f32 %v851, %v899
  %v901 = vpop.f32.mrf.mxu0
  %v902 = vpop.f32.mrf.mxu0
  %v903 = vadd.f32 %v854, %v902
  %v904 = vpop.f32.mrf.mxu0
  %905 = vdwg.mxu0
  %906 = vmatprep.subr.bf16.mxu0 0
  %907 = vmatpush1.bf16.msra.mxu0 %v637
  %908 = vmatprep.subr.bf16.mxu0 0
  %909 = vmatpush1.bf16.msra.mxu0 %v636
  %910 = vmatprep.subr.bf16.mxu0 0
  %911 = vmatpush1.bf16.msra.mxu0 %v635
  %912 = vmatprep.subr.bf16.mxu0 0
  %913 = vmatpush1.bf16.msra.mxu0 %v634
  %914 = vmatprep.subr.bf16.mxu0 0
  %915 = vmatpush1.bf16.msra.mxu0 %v633
  %916 = vmatprep.subr.bf16.mxu0 0
  %917 = vmatpush1.bf16.msra.mxu0 %v632
  %918 = vmatprep.subr.bf16.mxu0 0
  %919 = vmatpush1.bf16.msra.mxu0 %v631
  %920 = vmatprep.subr.bf16.mxu0 0
  %921 = vmatpush1.bf16.msra.mxu0 %v630
  %922 = vmatprep.subr.bf16.mxu0 0
  %923 = vmatpush2.bf16.msra.mxu0 0
  %924 = vmatprep.subr.bf16.mxu0 0
  %925 = vmatpush2.bf16.msra.mxu0 0
  %926 = vmatprep.subr.bf16.mxu0 0
  %927 = vmatpush2.bf16.msra.mxu0 0
  %928 = vmatprep.subr.bf16.mxu0 0
  %929 = vmatpush2.bf16.msra.mxu0 0
  %930 = vmatprep.subr.bf16.mxu0 0
  %931 = vmatpush2.bf16.msra.mxu0 0
  %932 = vmatprep.subr.bf16.mxu0 0
  %933 = vmatpush2.bf16.msra.mxu0 0
  %934 = vmatprep.subr.bf16.mxu0 0
  %935 = vmatpush2.bf16.msra.mxu0 0
  %936 = vmatprep.subr.bf16.mxu0 0
  %937 = vmatpush2.bf16.msra.mxu0 0
  %938 = vmatprep.mubr.bf16.mxu0 0
  %939 = vmatmul.mubr.bf16.gmra.mxu0 %v250
  %v940 = vpop.f32.mrf.mxu0
  %v941 = vadd.f32 %v892, %v940
  %v942 = vpop.f32.mrf.mxu0
  %v943 = vpop.f32.mrf.mxu0
  %v944 = vadd.f32 %v895, %v943
  %v945 = vpop.f32.mrf.mxu0
  %946 = vmatprep.mubr.bf16.mxu0 0
  %947 = vmatmul.mubr.bf16.gmra.mxu0 %v259
  %v948 = vpop.f32.mrf.mxu0
  %v949 = vadd.f32 %v900, %v948
  %v950 = vpop.f32.mrf.mxu0
  %v951 = vpop.f32.mrf.mxu0
  %v952 = vadd.f32 %v903, %v951
  %v953 = vpop.f32.mrf.mxu0
  %954 = vdwg.mxu0
  %v955 = vld [vmem:[%s0 + $0x10] sm:$0xf]
  %v956 = vld [vmem:[%s0 + $0x34] sm:$0xf]
  %v957 = vld [vmem:[%s0 + $0x58] sm:$0xf]
  %v958 = vld [vmem:[%s0 + $0x7c] sm:$0xf]
  %v959 = vunpack.c.l.bf16 %v955
  %v960 = vunpack.c.l.bf16 %v956
  %v961 = vunpack.c.l.bf16 %v957
  %v962 = vunpack.c.l.bf16 %v958
  %v963 = vadd.f32 %v941, %v959
  %v964 = vadd.f32 %v944, %v960
  %v965 = vadd.f32 %v949, %v961
  %v966 = vadd.f32 %v952, %v962
  %v967 = vmax.f32 %v963, 0.0
  %v968 = vmax.f32 %v964, 0.0
  %v969 = vmax.f32 %v965, 0.0
  %v970 = vmax.f32 %v966, 0.0
  %v971 = vpack.c.bf16 %v968, %v967
  %v972 = vpack.c.bf16 %v970, %v969
  %v975 = vunpack.c.l.b16 %v971
  %v976 = vunpack.c.h.b16 %v971
  %v977 = vunpack.c.l.b16 %v972
  %v978 = vunpack.c.h.b16 %v972
  %v979 = vpack.c.b16 %v975, %v975
  %v980 = vpack.c.b16 %v976, %v976
  %v981 = vpack.c.b16 %v977, %v977
  %v982 = vpack.c.b16 %v978, %v978
  %987 = vst [vmem:[%s3] sm:$0xf] %v979
  %988 = vst [vmem:[%s3 + $0x4] sm:$0xf] %v980
  %989 = vst [vmem:[%s3 + $0x8] sm:$0xf] %v981
  %990 = vst [vmem:[%s3 + $0xc] sm:$0xf] %v982
  // Predicated region
  $region14: #{_lambda_.14} parent=0 // pred_check
    _
  $region15: #{_lambda_.14} parent=0 // pred_check_branch
    %992 = sbr.rel (0) target = $region17
  $region16: #{_lambda_.14} parent=0 // pred_region
    _
  $region17: #{_lambda_.14} parent=0 // pred_fallthru
    _
  // Predicated region
  $region18: #{_lambda_.14} parent=0 // pred_check
    _
  $region19: #{_lambda_.14} parent=0 // pred_check_branch
    %994 = sbr.rel (0) target = $region21
  $region20: #{_lambda_.14} parent=0 // pred_region
    _
  $region21: #{_lambda_.14} parent=0 // pred_fallthru
    _

// kernel: _lambda_.15
$region0: #{_lambda_.15}
  #allocation0 [shape = 'u32[]', space=smem, size = 0x4, offset = 0x4, fixed_abs, tag = 'smem constant byte address 0x4 - core index']
  #allocation1 [shape = 'u32[144,128]{1,0:T(1,128)}', space=vmem, size = 0x12000, scoped, tag = 'internal scratch']
  %s0 = inlined_call_operand.vmem [shape: bf16[2,32,128], index: 0, kind: input, shape index: {}]
  %s1 = inlined_call_operand.vmem [shape: bf16[128,384], index: 1, kind: input, shape index: {}]
  %s2 = inlined_call_operand.vmem [shape: f32[1,384], index: 2, kind: input, shape index: {}]
  %s3 = inlined_call_operand.vmem [shape: bf16[128,128], index: 3, kind: input, shape index: {}]
  %s4 = inlined_call_operand.vmem [shape: f32[1,128], index: 4, kind: input, shape index: {}]
  %s5 = inlined_call_operand.hbm [shape: f32[1,1], index: 5, kind: output, shape index: {}]
  %s6 = sld [smem:[#allocation0]]
  $region30: #{_lambda_.15} parent=0
    _
  %s8 = ssub.s32 1, %s6
  %s9 = scalar_select 0, %s8, %s6
  $region1: #{_lambda_.15} parent=0
    #allocation2 [shape = 'u8[512]{0}', space=smem, size = 0x200, scoped, tag = 'output window, operand 0, single buffered']
    #allocation3 [shape = 's32[1]{0}', space=sflag, size = 0x4, scoped, tag = 'scoped memory for _lambda_.15']
    %10 = vsyncpa [#allocation3], 0
    // Predicated region
    $region2: #{_lambda_.15} parent=1 // pred_check
      _
    $region3: #{_lambda_.15} parent=1 // pred_check_branch
      %12 = sbr.rel (0) target = $region5
    $region4: #{_lambda_.15} parent=1 // pred_region
      _
    $region5: #{_lambda_.15} parent=1 // pred_fallthru
      _
    // Predicated region
    $region6: #{_lambda_.15} parent=1 // pred_check
      _
    $region7: #{_lambda_.15} parent=1 // pred_check_branch
      %14 = sbr.rel (0) target = $region9
    $region8: #{_lambda_.15} parent=1 // pred_region
      _
    $region9: #{_lambda_.15} parent=1 // pred_fallthru
      _
    // Predicated region
    $region10: #{_lambda_.15} parent=1 // pred_check
      _
    $region11: #{_lambda_.15} parent=1 // pred_check_branch
      %16 = sbr.rel (0) target = $region13
    $region12: #{_lambda_.15} parent=1 // pred_region
      _
    $region13: #{_lambda_.15} parent=1 // pred_fallthru
      _
    // Predicated region
    $region14: #{_lambda_.15} parent=1 // pred_check
      _
    $region15: #{_lambda_.15} parent=1 // pred_check_branch
      %18 = sbr.rel (0) target = $region17
    $region16: #{_lambda_.15} parent=1 // pred_region
      _
    $region17: #{_lambda_.15} parent=1 // pred_fallthru
      _
    // Predicated region
    $region18: #{_lambda_.15} parent=1 // pred_check
      _
    $region19: #{_lambda_.15} parent=1 // pred_check_branch
      %20 = sbr.rel (0) target = $region21
    $region20: #{_lambda_.15} parent=1 // pred_region
      _
    $region21: #{_lambda_.15} parent=1 // pred_fallthru
      _
    %v22 = vld [vmem:[%s0] sm:$0xf]
    %v23 = vld [vmem:[%s0 + $0x4] sm:$0xf]
    %v24 = vld [vmem:[%s0 + $0x8] sm:$0xf]
    %v25 = vld [vmem:[%s0 + $0xc] sm:$0xf]
    %v26 = vld [vmem:[%s0 + $0x10] sm:$0xf]
    %v27 = vld [vmem:[%s0 + $0x14] sm:$0xf]
    %v28 = vld [vmem:[%s0 + $0x18] sm:$0xf]
    %v29 = vld [vmem:[%s0 + $0x1c] sm:$0xf]
    %v30 = vld [vmem:[%s1] sm:$0xff]
    %v31 = vld [vmem:[%s1 + $0x8] sm:$0xf]
    %v32 = vld [vmem:[%s1 + $0xc] sm:$0xff]
    %v33 = vld [vmem:[%s1 + $0x14] sm:$0xf]
    %v34 = vld [vmem:[%s1 + $0x18] sm:$0xff]
    %v35 = vld [vmem:[%s1 + $0x20] sm:$0xf]
    %v36 = vld [vmem:[%s1 + $0x24] sm:$0xff]
    %v37 = vld [vmem:[%s1 + $0x2c] sm:$0xf]
    %v38 = vld [vmem:[%s1 + $0x30] sm:$0xff]
    %v39 = vld [vmem:[%s1 + $0x38] sm:$0xf]
    %v40 = vld [vmem:[%s1 + $0x3c] sm:$0xff]
    %v41 = vld [vmem:[%s1 + $0x44] sm:$0xf]
    %v42 = vld [vmem:[%s1 + $0x48] sm:$0xff]
    %v43 = vld [vmem:[%s1 + $0x50] sm:$0xf]
    %v44 = vld [vmem:[%s1 + $0x54] sm:$0xff]
    %v45 = vld [vmem:[%s1 + $0x5c] sm:$0xf]
    %v46 = vld [vmem:[%s1 + $0x60] sm:$0xff]
    %v47 = vld [vmem:[%s1 + $0x68] sm:$0xf]
    %v48 = vld [vmem:[%s1 + $0x6c] sm:$0xff]
    %v49 = vld [vmem:[%s1 + $0x74] sm:$0xf]
    %v50 = vld [vmem:[%s1 + $0x78] sm:$0xff]
    %v51 = vld [vmem:[%s1 + $0x80] sm:$0xf]
    %v52 = vld [vmem:[%s1 + $0x84] sm:$0xff]
    %v53 = vld [vmem:[%s1 + $0x8c] sm:$0xf]
    %v54 = vld [vmem:[%s1 + $0x90] sm:$0xff]
    %v55 = vld [vmem:[%s1 + $0x98] sm:$0xf]
    %v56 = vld [vmem:[%s1 + $0x9c] sm:$0xff]
    %v57 = vld [vmem:[%s1 + $0xa4] sm:$0xf]
    %v58 = vld [vmem:[%s1 + $0xa8] sm:$0xff]
    %v59 = vld [vmem:[%s1 + $0xb0] sm:$0xf]
    %v60 = vld [vmem:[%s1 + $0xb4] sm:$0xff]
    %v61 = vld [vmem:[%s1 + $0xbc] sm:$0xf]
    %v62 = vld [vmem:[%s2] sm:$0x7]
    %v64 = vlaneseq
    %v65 = vshrl.u32 %v64, 7
    %v66 = vsub.s32 0, %v65
    %v67 = vrot.slane %v62, %v66
    %v68 = vlaneseq
    %v69 = vshrl.u32 %v68, 7
    %v70 = vsub.s32 1, %v69
    %v71 = vrot.slane %v62, %v70
    %v72 = vlaneseq
    %v73 = vshrl.u32 %v72, 7
    %v74 = vsub.s32 2, %v73
    %v75 = vrot.slane %v62, %v74
    %v87 = vunpack.c.l.b16 %v22
    %v88 = vunpack.c.l.b16 %v23
    %v89 = vunpack.c.l.b16 %v24
    %v90 = vunpack.c.l.b16 %v25
    %v91 = vunpack.c.l.b16 %v26
    %v92 = vunpack.c.l.b16 %v27
    %v93 = vunpack.c.l.b16 %v28
    %v94 = vunpack.c.l.b16 %v29
    %v95 = vpack.c.b16 %v88, %v87
    %v96 = vpack.c.b16 %v90, %v89
    %v97 = vpack.c.b16 %v92, %v91
    %v98 = vpack.c.b16 %v94, %v93
    %v135 = vunpack.c.l.b16 %v30
    %v136 = vunpack.c.h.b16 %v30
    %v137 = vunpack.c.l.b16 %v31
    %v138 = vunpack.c.l.b16 %v32
    %v139 = vunpack.c.h.b16 %v32
    %v140 = vunpack.c.l.b16 %v33
    %v141 = vunpack.c.l.b16 %v34
    %v142 = vunpack.c.h.b16 %v34
    %v143 = vunpack.c.l.b16 %v35
    %v144 = vunpack.c.l.b16 %v36
    %v145 = vunpack.c.h.b16 %v36
    %v146 = vunpack.c.l.b16 %v37
    %v147 = vunpack.c.l.b16 %v38
    %v148 = vunpack.c.h.b16 %v38
    %v149 = vunpack.c.l.b16 %v39
    %v150 = vunpack.c.l.b16 %v40
    %v151 = vunpack.c.h.b16 %v40
    %v152 = vunpack.c.l.b16 %v41
    %v153 = vunpack.c.l.b16 %v42
    %v154 = vunpack.c.h.b16 %v42
    %v155 = vunpack.c.l.b16 %v43
    %v156 = vunpack.c.l.b16 %v44
    %v157 = vunpack.c.h.b16 %v44
    %v158 = vunpack.c.l.b16 %v45
    %v159 = vunpack.c.l.b16 %v46
    %v160 = vunpack.c.h.b16 %v46
    %v161 = vunpack.c.l.b16 %v47
    %v162 = vunpack.c.l.b16 %v48
    %v163 = vunpack.c.h.b16 %v48
    %v164 = vunpack.c.l.b16 %v49
    %v165 = vunpack.c.l.b16 %v50
    %v166 = vunpack.c.h.b16 %v50
    %v167 = vunpack.c.l.b16 %v51
    %v168 = vunpack.c.l.b16 %v52
    %v169 = vunpack.c.h.b16 %v52
    %v170 = vunpack.c.l.b16 %v53
    %v171 = vunpack.c.l.b16 %v54
    %v172 = vunpack.c.h.b16 %v54
    %v173 = vunpack.c.l.b16 %v55
    %v174 = vunpack.c.l.b16 %v56
    %v175 = vunpack.c.h.b16 %v56
    %v176 = vunpack.c.l.b16 %v57
    %v177 = vunpack.c.l.b16 %v58
    %v178 = vunpack.c.h.b16 %v58
    %v179 = vunpack.c.l.b16 %v59
    %v180 = vunpack.c.l.b16 %v60
    %v181 = vunpack.c.h.b16 %v60
    %v182 = vunpack.c.l.b16 %v61
    %v183 = vpack.c.b16 %v138, %v135
    %v184 = vpack.c.b16 %v139, %v136
    %v185 = vpack.c.b16 %v140, %v137
    %v186 = vpack.c.b16 %v144, %v141
    %v187 = vpack.c.b16 %v145, %v142
    %v188 = vpack.c.b16 %v146, %v143
    %v189 = vpack.c.b16 %v150, %v147
    %v190 = vpack.c.b16 %v151, %v148
    %v191 = vpack.c.b16 %v152, %v149
    %v192 = vpack.c.b16 %v156, %v153
    %v193 = vpack.c.b16 %v157, %v154
    %v194 = vpack.c.b16 %v158, %v155
    %v195 = vpack.c.b16 %v162, %v159
    %v196 = vpack.c.b16 %v163, %v160
    %v197 = vpack.c.b16 %v164, %v161
    %v198 = vpack.c.b16 %v168, %v165
    %v199 = vpack.c.b16 %v169, %v166
    %v200 = vpack.c.b16 %v170, %v167
    %v201 = vpack.c.b16 %v174, %v171
    %v202 = vpack.c.b16 %v175, %v172
    %v203 = vpack.c.b16 %v176, %v173
    %v204 = vpack.c.b16 %v180, %v177
    %v205 = vpack.c.b16 %v181, %v178
    %v206 = vpack.c.b16 %v182, %v179
    %231 = vmatprep.subr.bf16.mxu0 %v205
    %232 = vmatpush1.bf16.msra.mxu0 %v204
    %233 = vmatprep.subr.bf16.mxu0 %v202
    %234 = vmatpush1.bf16.msra.mxu0 %v201
    %235 = vmatprep.subr.bf16.mxu0 %v199
    %236 = vmatpush1.bf16.msra.mxu0 %v198
    %237 = vmatprep.subr.bf16.mxu0 %v196
    %238 = vmatpush1.bf16.msra.mxu0 %v195
    %239 = vmatprep.subr.bf16.mxu0 %v193
    %240 = vmatpush1.bf16.msra.mxu0 %v192
    %241 = vmatprep.subr.bf16.mxu0 %v190
    %242 = vmatpush1.bf16.msra.mxu0 %v189
    %243 = vmatprep.subr.bf16.mxu0 %v187
    %244 = vmatpush1.bf16.msra.mxu0 %v186
    %245 = vmatprep.subr.bf16.mxu0 %v184
    %246 = vmatpush1.bf16.msra.mxu0 %v183
    %247 = vmatprep.subr.bf16.mxu0 0
    %248 = vmatpush2.bf16.msra.mxu0 0
    %249 = vmatprep.subr.bf16.mxu0 0
    %250 = vmatpush2.bf16.msra.mxu0 0
    %251 = vmatprep.subr.bf16.mxu0 0
    %252 = vmatpush2.bf16.msra.mxu0 0
    %253 = vmatprep.subr.bf16.mxu0 0
    %254 = vmatpush2.bf16.msra.mxu0 0
    %255 = vmatprep.subr.bf16.mxu0 0
    %256 = vmatpush2.bf16.msra.mxu0 0
    %257 = vmatprep.subr.bf16.mxu0 0
    %258 = vmatpush2.bf16.msra.mxu0 0
    %259 = vmatprep.subr.bf16.mxu0 0
    %260 = vmatpush2.bf16.msra.mxu0 0
    %261 = vmatprep.subr.bf16.mxu0 0
    %262 = vmatpush2.bf16.msra.mxu0 0
    %263 = vmatprep.mubr.bf16.mxu0 0
    %264 = vmatmul.mubr.bf16.gmra.mxu0 %v95
    %v265 = vpop.f32.mrf.mxu0
    %v266 = vadd.f32 %v67, %v265
    %v267 = vpop.f32.mrf.mxu0
    %v268 = vadd.f32 %v71, %v267
    %v269 = vpop.f32.mrf.mxu0
    %v270 = vpop.f32.mrf.mxu0
    %v271 = vadd.f32 %v71, %v270
    %272 = vmatprep.mubr.bf16.mxu0 0
    %273 = vmatmul.mubr.bf16.gmra.mxu0 %v96
    %v274 = vpop.f32.mrf.mxu0
    %v275 = vpop.f32.mrf.mxu0
    %v276 = vadd.f32 %v71, %v275
    %v277 = vpop.f32.mrf.mxu0
    %v278 = vpop.f32.mrf.mxu0
    %v279 = vadd.f32 %v71, %v278
    %280 = vmatprep.mubr.bf16.mxu0 0
    %281 = vmatmul.mubr.bf16.gmra.mxu0 %v97
    %v282 = vpop.f32.mrf.mxu0
    %v283 = vadd.f32 %v67, %v282
    %v284 = vpop.f32.mrf.mxu0
    %v285 = vadd.f32 %v71, %v284
    %v286 = vpop.f32.mrf.mxu0
    %v287 = vpop.f32.mrf.mxu0
    %v288 = vadd.f32 %v71, %v287
    %289 = vmatprep.mubr.bf16.mxu0 0
    %290 = vmatmul.mubr.bf16.gmra.mxu0 %v98
    %v291 = vpop.f32.mrf.mxu0
    %v292 = vpop.f32.mrf.mxu0
    %v293 = vadd.f32 %v71, %v292
    %v294 = vpop.f32.mrf.mxu0
    %v295 = vpop.f32.mrf.mxu0
    %v296 = vadd.f32 %v71, %v295
    %297 = vdwg.mxu0
    %298 = vmatprep.subr.bf16.mxu0 0
    %299 = vmatpush1.bf16.msra.mxu0 %v206
    %300 = vmatprep.subr.bf16.mxu0 0
    %301 = vmatpush1.bf16.msra.mxu0 %v203
    %302 = vmatprep.subr.bf16.mxu0 0
    %303 = vmatpush1.bf16.msra.mxu0 %v200
    %304 = vmatprep.subr.bf16.mxu0 0
    %305 = vmatpush1.bf16.msra.mxu0 %v197
    %306 = vmatprep.subr.bf16.mxu0 0
    %307 = vmatpush1.bf16.msra.mxu0 %v194
    %308 = vmatprep.subr.bf16.mxu0 0
    %309 = vmatpush1.bf16.msra.mxu0 %v191
    %310 = vmatprep.subr.bf16.mxu0 0
    %311 = vmatpush1.bf16.msra.mxu0 %v188
    %312 = vmatprep.subr.bf16.mxu0 0
    %313 = vmatpush1.bf16.msra.mxu0 %v185
    %314 = vmatprep.subr.bf16.mxu0 0
    %315 = vmatpush2.bf16.msra.mxu0 0
    %316 = vmatprep.subr.bf16.mxu0 0
    %317 = vmatpush2.bf16.msra.mxu0 0
    %318 = vmatprep.subr.bf16.mxu0 0
    %319 = vmatpush2.bf16.msra.mxu0 0
    %320 = vmatprep.subr.bf16.mxu0 0
    %321 = vmatpush2.bf16.msra.mxu0 0
    %322 = vmatprep.subr.bf16.mxu0 0
    %323 = vmatpush2.bf16.msra.mxu0 0
    %324 = vmatprep.subr.bf16.mxu0 0
    %325 = vmatpush2.bf16.msra.mxu0 0
    %326 = vmatprep.subr.bf16.mxu0 0
    %327 = vmatpush2.bf16.msra.mxu0 0
    %328 = vmatprep.subr.bf16.mxu0 0
    %329 = vmatpush2.bf16.msra.mxu0 0
    %330 = vmatprep.mubr.bf16.mxu0 0
    %331 = vmatmul.mubr.bf16.gmra.mxu0 %v95
    %v332 = vpop.f32.mrf.mxu0
    %v333 = vadd.f32 %v75, %v332
    %v334 = vpop.f32.mrf.mxu0
    %v335 = vpop.f32.mrf.mxu0
    %v336 = vadd.f32 %v75, %v335
    %v337 = vpop.f32.mrf.mxu0
    %338 = vmatprep.mubr.bf16.mxu0 0
    %339 = vmatmul.mubr.bf16.gmra.mxu0 %v96
    %v340 = vpop.f32.mrf.mxu0
    %v341 = vadd.f32 %v75, %v340
    %v342 = vpop.f32.mrf.mxu0
    %v343 = vpop.f32.mrf.mxu0
    %v344 = vadd.f32 %v75, %v343
    %v345 = vpop.f32.mrf.mxu0
    %346 = vmatprep.mubr.bf16.mxu0 0
    %347 = vmatmul.mubr.bf16.gmra.mxu0 %v97
    %v348 = vpop.f32.mrf.mxu0
    %v349 = vadd.f32 %v75, %v348
    %v350 = vpop.f32.mrf.mxu0
    %v351 = vpop.f32.mrf.mxu0
    %v352 = vadd.f32 %v75, %v351
    %v353 = vpop.f32.mrf.mxu0
    %354 = vmatprep.mubr.bf16.mxu0 0
    %355 = vmatmul.mubr.bf16.gmra.mxu0 %v98
    %v356 = vpop.f32.mrf.mxu0
    %v357 = vadd.f32 %v75, %v356
    %v358 = vpop.f32.mrf.mxu0
    %v359 = vpop.f32.mrf.mxu0
    %v360 = vadd.f32 %v75, %v359
    %v361 = vpop.f32.mrf.mxu0
    %362 = vdwg.mxu0
    %363 = vmatprep.subr.mxu0 0.0
    %364 = vmatpush1.xpose.msra.mxu0 0.0
    %365 = vmatprep.subr.mxu0 0.0
    %366 = vmatpush1.xpose.msra.mxu0 0.0
    %367 = vmatprep.subr.mxu0 0.0
    %368 = vmatpush1.xpose.msra.mxu0 0.0
    %369 = vmatprep.subr.mxu0 0.0
    %370 = vmatpush1.xpose.msra.mxu0 0.0
    %371 = vmatprep.subr.mxu0 0.0
    %372 = vmatpush1.xpose.msra.mxu0 0.0
    %373 = vmatprep.subr.mxu0 0.0
    %374 = vmatpush1.xpose.msra.mxu0 0.0
    %375 = vmatprep.subr.mxu0 0.0
    %376 = vmatpush1.xpose.msra.mxu0 0.0
    %377 = vmatprep.subr.mxu0 0.0
    %378 = vmatpush1.xpose.msra.mxu0 0.0
    %379 = vmatprep.subr.mxu0 0.0
    %380 = vmatpush1.xpose.msra.mxu0 0.0
    %381 = vmatprep.subr.mxu0 0.0
    %382 = vmatpush1.xpose.msra.mxu0 0.0
    %383 = vmatprep.subr.mxu0 0.0
    %384 = vmatpush1.xpose.msra.mxu0 0.0
    %385 = vmatprep.subr.mxu0 0.0
    %386 = vmatpush1.xpose.msra.mxu0 0.0
    %387 = vmatprep.subr.mxu0 0.0
    %388 = vmatpush1.xpose.msra.mxu0 %v279
    %389 = vmatprep.subr.mxu0 0.0
    %390 = vmatpush1.xpose.msra.mxu0 %v276
    %391 = vmatprep.subr.mxu0 0.0
    %392 = vmatpush1.xpose.msra.mxu0 %v271
    %393 = vmatprep.subr.mxu0 0.0
    %394 = vmatpush1.xpose.msra.mxu0 %v268
    %395 = vmatprep.subr.mxu0 0.0
    %396 = vmatpush2.xpose.msra.mxu0 0.0
    %397 = vmatprep.subr.mxu0 0.0
    %398 = vmatpush2.xpose.msra.mxu0 0.0
    %399 = vmatprep.subr.mxu0 0.0
    %400 = vmatpush2.xpose.msra.mxu0 0.0
    %401 = vmatprep.subr.mxu0 0.0
    %402 = vmatpush2.xpose.msra.mxu0 0.0
    %403 = vmatprep.subr.mxu0 0.0
    %404 = vmatpush2.xpose.msra.mxu0 0.0
    %405 = vmatprep.subr.mxu0 0.0
    %406 = vmatpush2.xpose.msra.mxu0 0.0
    %407 = vmatprep.subr.mxu0 0.0
    %408 = vmatpush2.xpose.msra.mxu0 0.0
    %409 = vmatprep.subr.mxu0 0.0
    %410 = vmatpush2.xpose.msra.mxu0 0.0
    %411 = vmatprep.subr.mxu0 0.0
    %412 = vmatpush2.xpose.msra.mxu0 0.0
    %413 = vmatprep.subr.mxu0 0.0
    %414 = vmatpush2.xpose.msra.mxu0 0.0
    %415 = vmatprep.subr.mxu0 0.0
    %416 = vmatpush2.xpose.msra.mxu0 0.0
    %417 = vmatprep.subr.mxu0 0.0
    %418 = vmatpush2.xpose.msra.mxu0 0.0
    %419 = vmatprep.subr.mxu0 0.0
    %420 = vmatpush2.xpose.msra.mxu0 0.0
    %421 = vmatprep.subr.mxu0 0.0
    %422 = vmatpush2.xpose.msra.mxu0 0.0
    %423 = vmatprep.subr.mxu0 0.0
    %424 = vmatpush2.xpose.msra.mxu0 0.0
    %425 = vmatprep.subr.mxu0 0.0
    %426 = vmatpush2.xpose.msra.mxu0 0.0
    %427 = vmatprep.mubr.f32.mxu0 0.0
    %428 = vmatmul.mubr.f32.gmra.mxu0 %v266
    %v429 = vpop.f32.mrf.mxu0
    %v430 = vadd.f32 0.0, %v429
    %v431 = vpop.f32.mrf.mxu0
    %432 = vdwg.mxu0
    %433 = vmatprep.subr.mxu0 0.0
    %434 = vmatpush1.xpose.msra.mxu0 0.0
    %435 = vmatprep.subr.mxu0 0.0
    %436 = vmatpush1.xpose.msra.mxu0 0.0
    %437 = vmatprep.subr.mxu0 0.0
    %438 = vmatpush1.xpose.msra.mxu0 0.0
    %439 = vmatprep.subr.mxu0 0.0
    %440 = vmatpush1.xpose.msra.mxu0 0.0
    %441 = vmatprep.subr.mxu0 0.0
    %442 = vmatpush1.xpose.msra.mxu0 0.0
    %443 = vmatprep.subr.mxu0 0.0
    %444 = vmatpush1.xpose.msra.mxu0 0.0
    %445 = vmatprep.subr.mxu0 0.0
    %446 = vmatpush1.xpose.msra.mxu0 0.0
    %447 = vmatprep.subr.mxu0 0.0
    %448 = vmatpush1.xpose.msra.mxu0 0.0
    %449 = vmatprep.subr.mxu0 0.0
    %450 = vmatpush1.xpose.msra.mxu0 0.0
    %451 = vmatprep.subr.mxu0 0.0
    %452 = vmatpush1.xpose.msra.mxu0 0.0
    %453 = vmatprep.subr.mxu0 0.0
    %454 = vmatpush1.xpose.msra.mxu0 0.0
    %455 = vmatprep.subr.mxu0 0.0
    %456 = vmatpush1.xpose.msra.mxu0 0.0
    %457 = vmatprep.subr.mxu0 0.0
    %458 = vmatpush1.xpose.msra.mxu0 %v296
    %459 = vmatprep.subr.mxu0 0.0
    %460 = vmatpush1.xpose.msra.mxu0 %v293
    %461 = vmatprep.subr.mxu0 0.0
    %462 = vmatpush1.xpose.msra.mxu0 %v288
    %463 = vmatprep.subr.mxu0 0.0
    %464 = vmatpush1.xpose.msra.mxu0 %v285
    %465 = vmatprep.subr.mxu0 0.0
    %466 = vmatpush2.xpose.msra.mxu0 0.0
    %467 = vmatprep.subr.mxu0 0.0
    %468 = vmatpush2.xpose.msra.mxu0 0.0
    %469 = vmatprep.subr.mxu0 0.0
    %470 = vmatpush2.xpose.msra.mxu0 0.0
    %471 = vmatprep.subr.mxu0 0.0
    %472 = vmatpush2.xpose.msra.mxu0 0.0
    %473 = vmatprep.subr.mxu0 0.0
    %474 = vmatpush2.xpose.msra.mxu0 0.0
    %475 = vmatprep.subr.mxu0 0.0
    %476 = vmatpush2.xpose.msra.mxu0 0.0
    %477 = vmatprep.subr.mxu0 0.0
    %478 = vmatpush2.xpose.msra.mxu0 0.0
    %479 = vmatprep.subr.mxu0 0.0
    %480 = vmatpush2.xpose.msra.mxu0 0.0
    %481 = vmatprep.subr.mxu0 0.0
    %482 = vmatpush2.xpose.msra.mxu0 0.0
    %483 = vmatprep.subr.mxu0 0.0
    %484 = vmatpush2.xpose.msra.mxu0 0.0
    %485 = vmatprep.subr.mxu0 0.0
    %486 = vmatpush2.xpose.msra.mxu0 0.0
    %487 = vmatprep.subr.mxu0 0.0
    %488 = vmatpush2.xpose.msra.mxu0 0.0
    %489 = vmatprep.subr.mxu0 0.0
    %490 = vmatpush2.xpose.msra.mxu0 0.0
    %491 = vmatprep.subr.mxu0 0.0
    %492 = vmatpush2.xpose.msra.mxu0 0.0
    %493 = vmatprep.subr.mxu0 0.0
    %494 = vmatpush2.xpose.msra.mxu0 0.0
    %495 = vmatprep.subr.mxu0 0.0
    %496 = vmatpush2.xpose.msra.mxu0 0.0
    %497 = vmatprep.mubr.f32.mxu0 0.0
    %498 = vmatmul.mubr.f32.gmra.mxu0 %v283
    %v499 = vpop.f32.mrf.mxu0
    %v500 = vadd.f32 0.0, %v499
    %v501 = vpop.f32.mrf.mxu0
    %502 = vdwg.mxu0
    %v503 = vmul.f32 %v430, 0.125
    %v504 = vmul.f32 %v500, 0.125
    %v505 = vlaneseq
    %v506 = vand.u32 %v505, 127
    %vm507 = vcmp.lt.s32.totalorder %v506, 17
    %v508 = vsel %vm507, %v503, -1e+30
    %v509 = vsel %vm507, %v504, -1e+30
    %vm510 = vcmask 253952
    %v511 = vsel %vm510, %v508, -inf
    %512 = vmax.xlane.f32.xlu0 %v511
    %v513 = vpop.xlane.xlu0 %512
    %v514 = vsel %vm510, %v509, -inf
    %515 = vmax.xlane.f32.xlu0 %v514
    %v516 = vpop.xlane.xlu0 %515
    %v517 = vsub.f32 %v508, %v513
    %v518 = vsub.f32 %v509, %v516
    %v519 = vmul.f32 %v517, 1.442695
    %v520 = vpow.pop %v519
    %v521 = vmul.f32 %v518, 1.442695
    %v522 = vpow.pop %v521
    %v523 = vsel %vm510, %v520, 0.0
    %524 = vadd.xlane.f32.xlu0 %v523
    %v525 = vpop.xlane.xlu0 %524
    %v526 = vsel %vm510, %v522, 0.0
    %527 = vadd.xlane.f32.xlu0 %v526
    %v528 = vpop.xlane.xlu0 %527
    %v529 = vrcp.pop %v525
    %v530 = vmul.f32 %v520, %v529
    %v531 = vrcp.pop %v528
    %v532 = vmul.f32 %v522, %v531
    %vm533 = vcmask 261120
    %v535 = vsel %vm533, %v530, 0
    %537 = vmatprep.subr.mxu0 0.0
    %538 = vmatpush1.msra.mxu0 0.0
    %539 = vmatprep.subr.mxu0 0.0
    %540 = vmatpush1.msra.mxu0 0.0
    %541 = vmatprep.subr.mxu0 0.0
    %542 = vmatpush1.msra.mxu0 0.0
    %543 = vmatprep.subr.mxu0 0.0
    %544 = vmatpush1.msra.mxu0 0.0
    %545 = vmatprep.subr.mxu0 0.0
    %546 = vmatpush1.msra.mxu0 0.0
    %547 = vmatprep.subr.mxu0 0.0
    %548 = vmatpush1.msra.mxu0 0.0
    %549 = vmatprep.subr.mxu0 0.0
    %550 = vmatpush1.msra.mxu0 0.0
    %551 = vmatprep.subr.mxu0 0.0
    %552 = vmatpush1.msra.mxu0 0.0
    %553 = vmatprep.subr.mxu0 0.0
    %554 = vmatpush1.msra.mxu0 0.0
    %555 = vmatprep.subr.mxu0 0.0
    %556 = vmatpush1.msra.mxu0 0.0
    %557 = vmatprep.subr.mxu0 0.0
    %558 = vmatpush1.msra.mxu0 0.0
    %559 = vmatprep.subr.mxu0 0.0
    %560 = vmatpush1.msra.mxu0 0.0
    %561 = vmatprep.subr.mxu0 0.0
    %562 = vmatpush1.msra.mxu0 %v344
    %563 = vmatprep.subr.mxu0 0.0
    %564 = vmatpush1.msra.mxu0 %v341
    %565 = vmatprep.subr.mxu0 0.0
    %566 = vmatpush1.msra.mxu0 %v336
    %567 = vmatprep.subr.mxu0 0.0
    %568 = vmatpush1.msra.mxu0 %v333
    %569 = vmatprep.subr.mxu0 0.0
    %570 = vmatpush2.msra.mxu0 0.0
    %571 = vmatprep.subr.mxu0 0.0
    %572 = vmatpush2.msra.mxu0 0.0
    %573 = vmatprep.subr.mxu0 0.0
    %574 = vmatpush2.msra.mxu0 0.0
    %575 = vmatprep.subr.mxu0 0.0
    %576 = vmatpush2.msra.mxu0 0.0
    %577 = vmatprep.subr.mxu0 0.0
    %578 = vmatpush2.msra.mxu0 0.0
    %579 = vmatprep.subr.mxu0 0.0
    %580 = vmatpush2.msra.mxu0 0.0
    %581 = vmatprep.subr.mxu0 0.0
    %582 = vmatpush2.msra.mxu0 0.0
    %583 = vmatprep.subr.mxu0 0.0
    %584 = vmatpush2.msra.mxu0 0.0
    %585 = vmatprep.subr.mxu0 0.0
    %586 = vmatpush2.msra.mxu0 0.0
    %587 = vmatprep.subr.mxu0 0.0
    %588 = vmatpush2.msra.mxu0 0.0
    %589 = vmatprep.subr.mxu0 0.0
    %590 = vmatpush2.msra.mxu0 0.0
    %591 = vmatprep.subr.mxu0 0.0
    %592 = vmatpush2.msra.mxu0 0.0
    %593 = vmatprep.subr.mxu0 0.0
    %594 = vmatpush2.msra.mxu0 0.0
    %595 = vmatprep.subr.mxu0 0.0
    %596 = vmatpush2.msra.mxu0 0.0
    %597 = vmatprep.subr.mxu0 0.0
    %598 = vmatpush2.msra.mxu0 0.0
    %599 = vmatprep.subr.mxu0 0.0
    %600 = vmatpush2.msra.mxu0 0.0
    %601 = vmatprep.mubr.f32.mxu0 0.0
    %602 = vmatmul.mubr.f32.gmra.mxu0 %v535
    %v603 = vpop.f32.mrf.mxu0
    %v604 = vadd.f32 0.0, %v603
    %v605 = vpop.f32.mrf.mxu0
    %606 = vdwg.mxu0
    %v608 = vsel %vm533, %v532, 0
    %610 = vmatprep.subr.mxu0 0.0
    %611 = vmatpush1.msra.mxu0 0.0
    %612 = vmatprep.subr.mxu0 0.0
    %613 = vmatpush1.msra.mxu0 0.0
    %614 = vmatprep.subr.mxu0 0.0
    %615 = vmatpush1.msra.mxu0 0.0
    %616 = vmatprep.subr.mxu0 0.0
    %617 = vmatpush1.msra.mxu0 0.0
    %618 = vmatprep.subr.mxu0 0.0
    %619 = vmatpush1.msra.mxu0 0.0
    %620 = vmatprep.subr.mxu0 0.0
    %621 = vmatpush1.msra.mxu0 0.0
    %622 = vmatprep.subr.mxu0 0.0
    %623 = vmatpush1.msra.mxu0 0.0
    %624 = vmatprep.subr.mxu0 0.0
    %625 = vmatpush1.msra.mxu0 0.0
    %626 = vmatprep.subr.mxu0 0.0
    %627 = vmatpush1.msra.mxu0 0.0
    %628 = vmatprep.subr.mxu0 0.0
    %629 = vmatpush1.msra.mxu0 0.0
    %630 = vmatprep.subr.mxu0 0.0
    %631 = vmatpush1.msra.mxu0 0.0
    %632 = vmatprep.subr.mxu0 0.0
    %633 = vmatpush1.msra.mxu0 0.0
    %634 = vmatprep.subr.mxu0 0.0
    %635 = vmatpush1.msra.mxu0 %v360
    %636 = vmatprep.subr.mxu0 0.0
    %637 = vmatpush1.msra.mxu0 %v357
    %638 = vmatprep.subr.mxu0 0.0
    %639 = vmatpush1.msra.mxu0 %v352
    %640 = vmatprep.subr.mxu0 0.0
    %641 = vmatpush1.msra.mxu0 %v349
    %642 = vmatprep.subr.mxu0 0.0
    %643 = vmatpush2.msra.mxu0 0.0
    %644 = vmatprep.subr.mxu0 0.0
    %645 = vmatpush2.msra.mxu0 0.0
    %646 = vmatprep.subr.mxu0 0.0
    %647 = vmatpush2.msra.mxu0 0.0
    %648 = vmatprep.subr.mxu0 0.0
    %649 = vmatpush2.msra.mxu0 0.0
    %650 = vmatprep.subr.mxu0 0.0
    %651 = vmatpush2.msra.mxu0 0.0
    %652 = vmatprep.subr.mxu0 0.0
    %653 = vmatpush2.msra.mxu0 0.0
    %654 = vmatprep.subr.mxu0 0.0
    %655 = vmatpush2.msra.mxu0 0.0
    %656 = vmatprep.subr.mxu0 0.0
    %657 = vmatpush2.msra.mxu0 0.0
    %658 = vmatprep.subr.mxu0 0.0
    %659 = vmatpush2.msra.mxu0 0.0
    %660 = vmatprep.subr.mxu0 0.0
    %661 = vmatpush2.msra.mxu0 0.0
    %662 = vmatprep.subr.mxu0 0.0
    %663 = vmatpush2.msra.mxu0 0.0
    %664 = vmatprep.subr.mxu0 0.0
    %665 = vmatpush2.msra.mxu0 0.0
    %666 = vmatprep.subr.mxu0 0.0
    %667 = vmatpush2.msra.mxu0 0.0
    %668 = vmatprep.subr.mxu0 0.0
    %669 = vmatpush2.msra.mxu0 0.0
    %670 = vmatprep.subr.mxu0 0.0
    %671 = vmatpush2.msra.mxu0 0.0
    %672 = vmatprep.subr.mxu0 0.0
    %673 = vmatpush2.msra.mxu0 0.0
    %674 = vmatprep.mubr.f32.mxu0 0.0
    %675 = vmatmul.mubr.f32.gmra.mxu0 %v608
    %v676 = vpop.f32.mrf.mxu0
    %v677 = vadd.f32 0.0, %v676
    %v678 = vpop.f32.mrf.mxu0
    %679 = vdwg.mxu0
    %v680 = vpack.c.bf16 %v604, %v604
    %v681 = vpack.c.bf16 %v677, %v677
    %v682 = vld [vmem:[%s3] sm:$0xf]
    %v683 = vld [vmem:[%s3 + $0x4] sm:$0xf]
    %v684 = vld [vmem:[%s3 + $0x8] sm:$0xf]
    %v685 = vld [vmem:[%s3 + $0xc] sm:$0xf]
    %v686 = vld [vmem:[%s3 + $0x10] sm:$0xf]
    %v687 = vld [vmem:[%s3 + $0x14] sm:$0xf]
    %v688 = vld [vmem:[%s3 + $0x18] sm:$0xf]
    %v689 = vld [vmem:[%s3 + $0x1c] sm:$0xf]
    %v690 = vld [vmem:[%s3 + $0x20] sm:$0xf]
    %v691 = vld [vmem:[%s3 + $0x24] sm:$0xf]
    %v692 = vld [vmem:[%s3 + $0x28] sm:$0xf]
    %v693 = vld [vmem:[%s3 + $0x2c] sm:$0xf]
    %v694 = vld [vmem:[%s3 + $0x30] sm:$0xf]
    %v695 = vld [vmem:[%s3 + $0x34] sm:$0xf]
    %v696 = vld [vmem:[%s3 + $0x38] sm:$0xf]
    %v697 = vld [vmem:[%s3 + $0x3c] sm:$0xf]
    %v698 = vld [vmem:[%s4] sm:$0x1]
    %v700 = vlaneseq
    %v701 = vshrl.u32 %v700, 7
    %v702 = vsub.s32 0, %v701
    %v703 = vrot.slane %v698, %v702
    %v707 = vunpack.c.l.b16 %v680
    %v708 = vunpack.c.l.b16 %v681
    %v709 = vrot.slane %v708, 7
    %vm710 = vcmask 1041409
    %v711 = vsel %vm710, %v709, %v707
    %v712 = vpack.c.b16 %v711, %v711
    %v730 = vunpack.c.l.b16 %v682
    %v731 = vunpack.c.l.b16 %v683
    %v732 = vunpack.c.l.b16 %v684
    %v733 = vunpack.c.l.b16 %v685
    %v734 = vunpack.c.l.b16 %v686
    %v735 = vunpack.c.l.b16 %v687
    %v736 = vunpack.c.l.b16 %v688
    %v737 = vunpack.c.l.b16 %v689
    %v738 = vunpack.c.l.b16 %v690
    %v739 = vunpack.c.l.b16 %v691
    %v740 = vunpack.c.l.b16 %v692
    %v741 = vunpack.c.l.b16 %v693
    %v742 = vunpack.c.l.b16 %v694
    %v743 = vunpack.c.l.b16 %v695
    %v744 = vunpack.c.l.b16 %v696
    %v745 = vunpack.c.l.b16 %v697
    %v746 = vpack.c.b16 %v731, %v730
    %v747 = vpack.c.b16 %v733, %v732
    %v748 = vpack.c.b16 %v735, %v734
    %v749 = vpack.c.b16 %v737, %v736
    %v750 = vpack.c.b16 %v739, %v738
    %v751 = vpack.c.b16 %v741, %v740
    %v752 = vpack.c.b16 %v743, %v742
    %v753 = vpack.c.b16 %v745, %v744
    %762 = vmatprep.subr.bf16.mxu0 0
    %763 = vmatpush1.bf16.msra.mxu0 %v753
    %764 = vmatprep.subr.bf16.mxu0 0
    %765 = vmatpush1.bf16.msra.mxu0 %v752
    %766 = vmatprep.subr.bf16.mxu0 0
    %767 = vmatpush1.bf16.msra.mxu0 %v751
    %768 = vmatprep.subr.bf16.mxu0 0
    %769 = vmatpush1.bf16.msra.mxu0 %v750
    %770 = vmatprep.subr.bf16.mxu0 0
    %771 = vmatpush1.bf16.msra.mxu0 %v749
    %772 = vmatprep.subr.bf16.mxu0 0
    %773 = vmatpush1.bf16.msra.mxu0 %v748
    %774 = vmatprep.subr.bf16.mxu0 0
    %775 = vmatpush1.bf16.msra.mxu0 %v747
    %776 = vmatprep.subr.bf16.mxu0 0
    %777 = vmatpush1.bf16.msra.mxu0 %v746
    %778 = vmatprep.subr.bf16.mxu0 0
    %779 = vmatpush2.bf16.msra.mxu0 0
    %780 = vmatprep.subr.bf16.mxu0 0
    %781 = vmatpush2.bf16.msra.mxu0 0
    %782 = vmatprep.subr.bf16.mxu0 0
    %783 = vmatpush2.bf16.msra.mxu0 0
    %784 = vmatprep.subr.bf16.mxu0 0
    %785 = vmatpush2.bf16.msra.mxu0 0
    %786 = vmatprep.subr.bf16.mxu0 0
    %787 = vmatpush2.bf16.msra.mxu0 0
    %788 = vmatprep.subr.bf16.mxu0 0
    %789 = vmatpush2.bf16.msra.mxu0 0
    %790 = vmatprep.subr.bf16.mxu0 0
    %791 = vmatpush2.bf16.msra.mxu0 0
    %792 = vmatprep.subr.bf16.mxu0 0
    %793 = vmatpush2.bf16.msra.mxu0 0
    %794 = vmatprep.mubr.bf16.mxu0 0
    %795 = vmatmul.mubr.bf16.gmra.mxu0 %v712
    %v796 = vpop.f32.mrf.mxu0
    %v797 = vadd.f32 %v703, %v796
    %v798 = vpop.f32.mrf.mxu0
    %v799 = vpop.f32.mrf.mxu0
    %v800 = vpop.f32.mrf.mxu0
    %801 = vdwg.mxu0
    %v803 = vrot.slane %v797, 1
    %v805 = vmul.f32 %v797, %v803
    %vm806 = vcmask 1040384
    %v807 = vsel %vm806, %v805, 0.0
    %808 = vadd.xlane.f32.xlu0 %v807
    %v809 = vpop.xlane.xlu0 %808
    %v810 = vmul.f32 %v797, %v797
    %v811 = vsel %vm806, %v810, 0.0
    %812 = vadd.xlane.f32.xlu0 %v811
    %v813 = vpop.xlane.xlu0 %812
    %v814 = vrsqrt.pop %v813
    %v815 = vmul.f32 %v813, %v814
    %vm816 = vcmp.eq.f32.partialorder %v813, inf
    %v817 = vsel %vm816, %v813, %v815
    %vm818 = vcmp.eq.f32.partialorder %v813, 0.0
    %v819 = vand.u32 %v813, 2147483648
    %v820 = vsel %vm818, %v819, %v817
    %v821 = vsel %vm710, %v810, 0.0
    %822 = vadd.xlane.f32.xlu0 %v821
    %v823 = vpop.xlane.xlu0 %822
    %v824 = vrsqrt.pop %v823
    %v825 = vmul.f32 %v823, %v824
    %vm826 = vcmp.eq.f32.partialorder %v823, inf
    %v827 = vsel %vm826, %v823, %v825
    %vm828 = vcmp.eq.f32.partialorder %v823, 0.0
    %v829 = vand.u32 %v823, 2147483648
    %v830 = vsel %vm828, %v829, %v827
    %v831 = vmax.f32 %v820, 1e-08
    %v832 = vmax.f32 %v830, 1e-08
    %v834 = vrot.slane %v832, 1
    %v836 = vmul.f32 %v831, %v834
    %v837 = vrcp.pop %v836
    %v838 = vmul.f32 %v809, %v837
    %v839 = vsub.f32 1.0, %v838
    %v840 = vadd.f32 %v839, 0.0
    %s841 = vtos %v840
    %s842 = scalar_lea.smem [#allocation2], 0
    %843 = sst [smem:[%s842]] %s841
    // Predicated region
    $region22: #{_lambda_.15} parent=1 // pred_check
      _
    $region23: #{_lambda_.15} parent=1 // pred_check_branch
      %845 = sbr.rel (0) target = $region25
    $region24: #{_lambda_.15} parent=1 // pred_region
      %s847 = ssub.s32 16, 16
      %848 = vsyncadd [#allocation3], %s847
      %851 = dma.smem_to_hbm [#allocation2], 16, %s5, [#allocation3]
    $region25: #{_lambda_.15} parent=1 // pred_fallthru
      _
    // Predicated region
    $region26: #{_lambda_.15} parent=1 // pred_check
      _
    $region27: #{_lambda_.15} parent=1 // pred_check_branch
      %853 = sbr.rel (0) target = $region29
    $region28: #{_lambda_.15} parent=1 // pred_region
      %854 = dma.done [#allocation3], 16
    $region29: #{_lambda_.15} parent=1 // pred_fallthru
      _
    %855 = sfence
    %856 = vsyncpa [#allocation3], 1

</llo_original>
